<compile_context>
chip_gen: v7x
topology: tpu7x:2x2x1
jax: 0.10.0
libtpu: 0.0.40
codegen_flags: <defaults>
</compile_context>

<pallas_src>
import jax
import jax.numpy as jnp
from jax.experimental import pallas as pl
from jax.experimental.pallas import tpu as pltpu


# --------------------------------------------------------------------------------------
# Kernels
# --------------------------------------------------------------------------------------

def _pool_kernel_single(x_ref, mask_ref, scale_ref, out_ref):
    """Whole-sequence tile: masked sum over s and scale, no scratch / revisits.

    x_ref     : (tb, S, D)  backbone tile, native dtype (e.g. bf16)
    mask_ref  : (tb, S, 1)  0/1 mask tile, same dtype as backbone (seq on sublanes)
    scale_ref : (tb, 1) f32 rsqrt(max(len, 1))
    out_ref   : (tb, D)     aggregation tile, backbone dtype
    """
    xm = (x_ref[...] * mask_ref[...]).astype(jnp.float32)   # exact bf16 mul, f32 accumulate
    masked_sum = jnp.sum(xm, axis=1)                         # (tb, D) f32
    out_ref[...] = (masked_sum * scale_ref[...]).astype(out_ref.dtype)


def _pool_kernel_multi(x_ref, mask_ref, scale_ref, out_ref, acc_ref):
    """Sequence-tiled masked sum with a resident f32 accumulator over the seq grid axis.

    x_ref     : (tb, ts, D)  backbone tile, native dtype
    mask_ref  : (tb, ts, 1)  0/1 mask tile, same dtype as backbone
    scale_ref : (tb, 1) f32  rsqrt(max(len, 1))
    out_ref   : (tb, D)      aggregation tile (resident across the seq axis)
    acc_ref   : (tb, D) f32  running masked sum (VMEM scratch)
    """
    j = pl.program_id(1)

    @pl.when(j == 0)
    def _init():
        acc_ref[...] = jnp.zeros_like(acc_ref)

    xm = (x_ref[...] * mask_ref[...]).astype(jnp.float32)
    acc_ref[...] += jnp.sum(xm, axis=1)

    @pl.when(j == pl.num_programs(1) - 1)
    def _finalize():
        out_ref[...] = (acc_ref[...] * scale_ref[...]).astype(out_ref.dtype)


# --------------------------------------------------------------------------------------
# Tiling / VMEM budgeting
# --------------------------------------------------------------------------------------

def _vmem_limit_bytes():
    """Explicit scoped-VMEM limit, generation-aware (v5e/v6e: 128 MiB, v7x: 64 MiB)."""
    try:
        cap = int(pltpu.get_tpu_info().vmem_capacity_bytes)
    except Exception:
        cap = 64 * 1024 * 1024          # conservative default = v7x per-TC VMEM
    return min((cap * 3) // 4, 100 * 1024 * 1024)


def _select_tiles(B, S, D, itemsize, input_budget):
    """Pick (tb, ts) maximizing bytes moved per grid step within the double-buffered budget.

    Constraints: out/scale blocks need tb % 8 == 0 or tb == B; x/mask blocks need
    ts % 8 == 0 or ts == S, and ts must divide S.  The mask tile is lane-padded
    ((ts, 1) minor dim -> 128 lanes in VMEM), which is accounted for as +128 features.
    """
    tb_cands = sorted({B} | {c for c in (64, 32, 16, 8) if c < B and B % c == 0},
                      reverse=True)
    ts_cands = [S] + [c for c in (4096, 2048, 1024, 512, 256, 128, 64, 32, 16, 8)
                      if c < S and S % c == 0]

    def step_bytes(tb, ts):
        # x tile + lane-padded mask tile, both double-buffered by the pipeline.
        return 2 * tb * ts * (D + 128) * itemsize

    best, best_score = None, None
    for tb in tb_cands:
        for ts in ts_cands:                       # descending: first fit = largest ts
            if step_bytes(tb, ts) <= input_budget:
                score = (tb * ts, int(ts == S))   # prefer bigger tiles; tie -> single pass
                if best is None or score > best_score:
                    best, best_score = (tb, ts), score
                break
    if best is None:
        # Even the smallest tiles exceed the budget (enormous D); take the smallest combo
        # and let the explicit vmem_limit_bytes do its best.
        best = (tb_cands[-1], ts_cands[-1])
    return best


# --------------------------------------------------------------------------------------
# Wrapper
# --------------------------------------------------------------------------------------

def global_pooling(backbone, pad_mask, *, _force_tiles=None):
    """aggregation = GlobalMaskedPooling('mean', length_scaling=True, scaling_square_root=True).

    backbone : (B, S, D) activations (any float dtype; bf16 recommended)
    pad_mask : (B, S)    1.0 = valid token, 0.0 = padding
    returns  : (B, D)    in backbone.dtype
    """
    B, S, D = backbone.shape
    dt = backbone.dtype
    itemsize = jnp.dtype(dt).itemsize

    # Per-row scale computed once (tiny): mean * sqrt(len) == masked_sum * rsqrt(len).
    # max(len, 1) guards all-padding rows (0 instead of PyTorch's NaN via 0/0).
    lengths = jnp.sum(pad_mask.astype(jnp.float32), axis=1, keepdims=True)      # (B, 1)
    scale = jax.lax.rsqrt(jnp.maximum(lengths, 1.0))                            # (B, 1) f32

    # Mask as (B, S, 1) in the backbone dtype: seq on sublanes (matching x), lane broadcast
    # across D is near free; 0/1 is exact in bf16.
    mask = pad_mask.astype(dt).reshape(B, S, 1)

    vmem_limit = _vmem_limit_bytes()
    if _force_tiles is not None:
        tb, ts = _force_tiles
    else:
        tb, ts = _select_tiles(B, S, D, itemsize, input_budget=vmem_limit // 2)
    assert B % tb == 0 and S % ts == 0, (tb, ts, B, S)

    out_shape = jax.ShapeDtypeStruct((B, D), dt)

    if ts == S:
        # Single pass over the sequence: no reduction grid axis, no accumulator scratch.
        out = pl.pallas_call(
            _pool_kernel_single,
            out_shape=out_shape,
            grid_spec=pltpu.PrefetchScalarGridSpec(
                num_scalar_prefetch=0,
                grid=(B // tb,),
                in_specs=[
                    pl.BlockSpec((tb, S, D), lambda i: (i, 0, 0)),   # backbone tile
                    pl.BlockSpec((tb, S, 1), lambda i: (i, 0, 0)),   # mask tile
                    pl.BlockSpec((tb, 1), lambda i: (i, 0)),         # rsqrt(len)
                ],
                out_specs=pl.BlockSpec((tb, D), lambda i: (i, 0)),
            ),
            compiler_params=pltpu.CompilerParams(
                dimension_semantics=("parallel",),
                vmem_limit_bytes=vmem_limit,
            ),
        )(backbone, mask, scale)
    else:
        # Sequence-tiled reduction: batch axis parallel, seq axis arbitrary (last).
        out = pl.pallas_call(
            _pool_kernel_multi,
            out_shape=out_shape,
            grid_spec=pltpu.PrefetchScalarGridSpec(
                num_scalar_prefetch=0,
                grid=(B // tb, S // ts),
                in_specs=[
                    pl.BlockSpec((tb, ts, D), lambda i, j: (i, j, 0)),
                    pl.BlockSpec((tb, ts, 1), lambda i, j: (i, j, 0)),
                    pl.BlockSpec((tb, 1), lambda i, j: (i, 0)),
                ],
                out_specs=pl.BlockSpec((tb, D), lambda i, j: (i, 0)),
                scratch_shapes=[pltpu.VMEM((tb, D), jnp.float32)],
            ),
            compiler_params=pltpu.CompilerParams(
                dimension_semantics=("parallel", "arbitrary"),
                vmem_limit_bytes=vmem_limit,
            ),
        )(backbone, mask, scale)

    return out


# --------------------------------------------------------------------------------------
# Reference + self-test
# --------------------------------------------------------------------------------------

def _reference(backbone, pad_mask):
    """Pure-JAX f32 reference of GlobalMaskedPooling('mean', length_scaling, sqrt)."""
    xf = backbone.astype(jnp.float32)
    m = pad_mask.astype(jnp.float32)
    L = jnp.maximum(m.sum(axis=1, keepdims=True), 1.0)   # same all-padding guard as the kernel
    return (xf * m[:, :, None]).sum(axis=1) / L * jnp.sqrt(L)


if __name__ == "__main__":
    key = jax.random.PRNGKey(0)
    kx1, kl1, kx2 = jax.random.split(key, 3)

    # Case 1: aligned shapes, bf16 backbone -> single-pass kernel (ts == S).
    B, S, D = 16, 256, 256
    backbone = jax.random.normal(kx1, (B, S, D), dtype=jnp.float32).astype(jnp.bfloat16)
    lengths = jax.random.randint(kl1, (B,), minval=1, maxval=S + 1)
    lengths = lengths.at[1].set(S).at[2].set(0)          # full row + an all-padding row
    pad_mask = (jnp.arange(S)[None, :] < lengths[:, None]).astype(jnp.float32)

    out = jax.block_until_ready(global_pooling(backbone, pad_mask))
    ref = jax.block_until_ready(_reference(backbone, pad_mask))
    if not bool(jnp.allclose(out.astype(jnp.float32), ref, atol=3e-2, rtol=3e-2)):
        raise AssertionError("Pallas kernel output does not match JAX reference (case 1)")

    # Case 2: tiny, unaligned shapes (B=2, S=8, D=32), f32 backbone -> full-dim blocks.
    backbone2 = jax.random.normal(kx2, (2, 8, 32), dtype=jnp.float32)
    pad_mask2 = (jnp.arange(8)[None, :] < jnp.array([[8], [5]])).astype(jnp.float32)

    out2 = jax.block_until_ready(global_pooling(backbone2, pad_mask2))
    ref2 = jax.block_until_ready(_reference(backbone2, pad_mask2))
    if not bool(jnp.allclose(out2, ref2, atol=1e-5, rtol=1e-5)):
        raise AssertionError("Pallas kernel output does not match JAX reference (case 2)")

    # Case 3: same data as case 1 but with forced small tiles to exercise the
    # multi-pass (sequence-tiled, accumulator-scratch) kernel path.
    out3 = jax.block_until_ready(global_pooling(backbone, pad_mask, _force_tiles=(8, 128)))
    if not bool(jnp.allclose(out3.astype(jnp.float32), ref, atol=3e-2, rtol=3e-2)):
        raise AssertionError("Pallas kernel output does not match JAX reference (case 3)")

    print("KERNEL_OK")
</pallas_src>

<mosaic_0001>
module attributes {stable_mosaic.version = 11 : i64} {
  func.func @_pool_kernel_single(%arg0: i32, %arg1: memref<16x256x256xbf16, #tpu.memory_space<vmem>>, %arg2: memref<16x256x1xbf16, #tpu.memory_space<vmem>>, %arg3: memref<16x1xf32, #tpu.memory_space<vmem>>, %arg4: memref<16x256xbf16, #tpu.memory_space<vmem>>) attributes {dimension_semantics = [#tpu.dimension_semantics<parallel>], iteration_bounds = array<i64: 1>, scalar_prefetch = 0 : i64, scratch_operands = 0 : i64, tpu.core_type = #tpu.core_type<tc>, window_params = [{transform_indices = @transform_0, window_bounds = array<i64: 16, 256, 256>}, {transform_indices = @transform_1, window_bounds = array<i64: 16, 256, 1>}, {transform_indices = @transform_2, window_bounds = array<i64: 16, 1>}, {transform_indices = @transform_3, window_bounds = array<i64: 16, 256>}]} {
    %c0 = arith.constant 0 : index
    %c0_0 = arith.constant 0 : index
    %c0_1 = arith.constant 0 : index
    %0 = vector.load %arg1[%c0, %c0_0, %c0_1] : memref<16x256x256xbf16, #tpu.memory_space<vmem>>, vector<16x256x256xbf16>
    %c0_2 = arith.constant 0 : index
    %c0_3 = arith.constant 0 : index
    %c0_4 = arith.constant 0 : index
    %1 = vector.load %arg2[%c0_2, %c0_3, %c0_4] : memref<16x256x1xbf16, #tpu.memory_space<vmem>>, vector<16x256x1xbf16>
    %2 = vector.broadcast %1 : vector<16x256x1xbf16> to vector<16x256x256xbf16>
    %3 = arith.mulf %0, %2 : vector<16x256x256xbf16>
    %4 = arith.extf %3 : vector<16x256x256xbf16> to vector<16x256x256xf32>
    %cst = arith.constant dense<0.000000e+00> : vector<16x256xf32>
    %5 = vector.multi_reduction <add>, %4, %cst [1] : vector<16x256x256xf32> to vector<16x256xf32>
    %c0_5 = arith.constant 0 : index
    %c0_6 = arith.constant 0 : index
    %6 = vector.load %arg3[%c0_5, %c0_6] : memref<16x1xf32, #tpu.memory_space<vmem>>, vector<16x1xf32>
    %7 = vector.broadcast %6 : vector<16x1xf32> to vector<16x256xf32>
    %8 = arith.mulf %5, %7 : vector<16x256xf32>
    %9 = arith.truncf %8 : vector<16x256xf32> to vector<16x256xbf16>
    %c0_7 = arith.constant 0 : index
    %c0_8 = arith.constant 0 : index
    %10 = vector.load %arg4[%c0_7, %c0_8] : memref<16x256xbf16, #tpu.memory_space<vmem>>, vector<16x256xbf16>
    tpu.vector_store %arg4[%c0_7, %c0_8], %9 {strides = array<i32>} : memref<16x256xbf16, #tpu.memory_space<vmem>>, vector<16x256xbf16>,
    return
  }
  func.func @transform_0(%arg0: i32) -> (i32, i32, i32) {
    %c0_i32 = arith.constant 0 : i32
    %c0_i32_0 = arith.constant 0 : i32
    %c0_i32_1 = arith.constant 0 : i32
    return %arg0, %c0_i32, %c0_i32_0 : i32, i32, i32
  }
  func.func @transform_1(%arg0: i32) -> (i32, i32, i32) {
    %c0_i32 = arith.constant 0 : i32
    %c0_i32_0 = arith.constant 0 : i32
    %c0_i32_1 = arith.constant 0 : i32
    return %arg0, %c0_i32, %c0_i32_0 : i32, i32, i32
  }
  func.func @transform_2(%arg0: i32) -> (i32, i32) {
    %c0_i32 = arith.constant 0 : i32
    %c0_i32_0 = arith.constant 0 : i32
    return %arg0, %c0_i32 : i32, i32
  }
  func.func @transform_3(%arg0: i32) -> (i32, i32) {
    %c0_i32 = arith.constant 0 : i32
    %c0_i32_0 = arith.constant 0 : i32
    return %arg0, %c0_i32 : i32, i32
  }
}

</mosaic_0001>

<llo_original>
// kernel: tpu_custom_call.1
$region0: #{tpu_custom_call.1}
  #allocation0 [shape = 'u32[]', space=smem, size = 0x4, offset = 0x4, fixed_abs, tag = 'smem constant byte address 0x4 - core index']
  #allocation1 [shape = 'u32[144,128]{1,0:T(1,128)}', space=vmem, size = 0x12000, scoped, tag = 'internal scratch']
  %s0 = inlined_call_operand.hbm [shape: bf16[16,256,256], index: 0, kind: input, shape index: {}]
  %s1 = inlined_call_operand.vmem [shape: bf16[16,256,1], index: 1, kind: input, shape index: {}]
  %s2 = inlined_call_operand.vmem [shape: f32[16,1], index: 2, kind: input, shape index: {}]
  %s3 = inlined_call_operand.hbm [shape: bf16[16,256], index: 3, kind: output, shape index: {}]
  %s4 = sld [smem:[#allocation0]]
  $region26: #{tpu_custom_call.1} parent=0
    _
  %s6 = ssub.s32 1, %s4
  %s7 = scalar_select 0, %s6, %s4
  $region1: #{tpu_custom_call.1} parent=0
    #allocation2 [shape = 'u8[2097152]{0}', space=vmem, size = 0x200000, scoped, tag = 'input window, operand 0, single buffered']
    #allocation3 [shape = 's32[1]{0}', space=sflag, size = 0x4, scoped, tag = 'scoped memory for tpu_custom_call.1']
    #allocation4 [shape = 's32[1]{0}', space=sflag, size = 0x4, scoped, tag = 'scoped memory for tpu_custom_call.1']
    #allocation5 [shape = 'u8[8192]{0}', space=vmem, size = 0x2000, scoped, tag = 'output window, operand 0, single buffered']
    %8 = vsyncpa [#allocation3], 0
    %9 = vsyncpa [#allocation4], 0
    // Predicated region
    $region2: #{tpu_custom_call.1} parent=1 // pred_check
      _
    $region3: #{tpu_custom_call.1} parent=1 // pred_check_branch
      %11 = sbr.rel (0) target = $region5
    $region4: #{tpu_custom_call.1} parent=1 // pred_region
      %s13 = ssub.s32 65536, 65536
      %14 = vsyncadd [#allocation3], %s13
      %s15 = sshll.u32 [#allocation2], 4
      %s16 = int_to_ptr.vmem [resolvable:$true] %s15
      %21 = dma.hbm_to_vmem [thread:$0]  %s0, 65536, %s16, [#allocation3], 128, 128, 8
    $region5: #{tpu_custom_call.1} parent=1 // pred_fallthru
      _
    // Predicated region
    $region6: #{tpu_custom_call.1} parent=1 // pred_check
      _
    $region7: #{tpu_custom_call.1} parent=1 // pred_check_branch
      %23 = sbr.rel (0) target = $region9
    $region8: #{tpu_custom_call.1} parent=1 // pred_region
      _
    $region9: #{tpu_custom_call.1} parent=1 // pred_fallthru
      _
    // Predicated region
    $region10: #{tpu_custom_call.1} parent=1 // pred_check
      _
    $region11: #{tpu_custom_call.1} parent=1 // pred_check_branch
      %25 = sbr.rel (0) target = $region13
    $region12: #{tpu_custom_call.1} parent=1 // pred_region
      _
    $region13: #{tpu_custom_call.1} parent=1 // pred_fallthru
      _
    // Predicated region
    $region14: #{tpu_custom_call.1} parent=1 // pred_check
      _
    $region15: #{tpu_custom_call.1} parent=1 // pred_check_branch
      %27 = sbr.rel (0) target = $region17
    $region16: #{tpu_custom_call.1} parent=1 // pred_region
      %28 = dma.done [#allocation3], 65536
    $region17: #{tpu_custom_call.1} parent=1 // pred_fallthru
      _
    %v29 = vld [vmem:[#allocation2] sm:$0xff]
    %v30 = vld [vmem:[#allocation2 + $0x8] sm:$0xff]
    %v31 = vld [vmem:[#allocation2 + $0x10] sm:$0xff]
    %v32 = vld [vmem:[#allocation2 + $0x18] sm:$0xff]
    %v33 = vld [vmem:[#allocation2 + $0x20] sm:$0xff]
    %v34 = vld [vmem:[#allocation2 + $0x28] sm:$0xff]
    %v35 = vld [vmem:[#allocation2 + $0x30] sm:$0xff]
    %v36 = vld [vmem:[#allocation2 + $0x38] sm:$0xff]
    %v37 = vld [vmem:[#allocation2 + $0x40] sm:$0xff]
    %v38 = vld [vmem:[#allocation2 + $0x48] sm:$0xff]
    %v39 = vld [vmem:[#allocation2 + $0x50] sm:$0xff]
    %v40 = vld [vmem:[#allocation2 + $0x58] sm:$0xff]
    %v41 = vld [vmem:[#allocation2 + $0x60] sm:$0xff]
    %v42 = vld [vmem:[#allocation2 + $0x68] sm:$0xff]
    %v43 = vld [vmem:[#allocation2 + $0x70] sm:$0xff]
    %v44 = vld [vmem:[#allocation2 + $0x78] sm:$0xff]
    %v45 = vld [vmem:[#allocation2 + $0x80] sm:$0xff]
    %v46 = vld [vmem:[#allocation2 + $0x88] sm:$0xff]
    %v47 = vld [vmem:[#allocation2 + $0x90] sm:$0xff]
    %v48 = vld [vmem:[#allocation2 + $0x98] sm:$0xff]
    %v49 = vld [vmem:[#allocation2 + $0xa0] sm:$0xff]
    %v50 = vld [vmem:[#allocation2 + $0xa8] sm:$0xff]
    %v51 = vld [vmem:[#allocation2 + $0xb0] sm:$0xff]
    %v52 = vld [vmem:[#allocation2 + $0xb8] sm:$0xff]
    %v53 = vld [vmem:[#allocation2 + $0xc0] sm:$0xff]
    %v54 = vld [vmem:[#allocation2 + $0xc8] sm:$0xff]
    %v55 = vld [vmem:[#allocation2 + $0xd0] sm:$0xff]
    %v56 = vld [vmem:[#allocation2 + $0xd8] sm:$0xff]
    %v57 = vld [vmem:[#allocation2 + $0xe0] sm:$0xff]
    %v58 = vld [vmem:[#allocation2 + $0xe8] sm:$0xff]
    %v59 = vld [vmem:[#allocation2 + $0xf0] sm:$0xff]
    %v60 = vld [vmem:[#allocation2 + $0xf8] sm:$0xff]
    %v61 = vld [vmem:[#allocation2 + $0x100] sm:$0xff]
    %v62 = vld [vmem:[#allocation2 + $0x108] sm:$0xff]
    %v63 = vld [vmem:[#allocation2 + $0x110] sm:$0xff]
    %v64 = vld [vmem:[#allocation2 + $0x118] sm:$0xff]
    %v65 = vld [vmem:[#allocation2 + $0x120] sm:$0xff]
    %v66 = vld [vmem:[#allocation2 + $0x128] sm:$0xff]
    %v67 = vld [vmem:[#allocation2 + $0x130] sm:$0xff]
    %v68 = vld [vmem:[#allocation2 + $0x138] sm:$0xff]
    %v69 = vld [vmem:[#allocation2 + $0x140] sm:$0xff]
    %v70 = vld [vmem:[#allocation2 + $0x148] sm:$0xff]
    %v71 = vld [vmem:[#allocation2 + $0x150] sm:$0xff]
    %v72 = vld [vmem:[#allocation2 + $0x158] sm:$0xff]
    %v73 = vld [vmem:[#allocation2 + $0x160] sm:$0xff]
    %v74 = vld [vmem:[#allocation2 + $0x168] sm:$0xff]
    %v75 = vld [vmem:[#allocation2 + $0x170] sm:$0xff]
    %v76 = vld [vmem:[#allocation2 + $0x178] sm:$0xff]
    %v77 = vld [vmem:[#allocation2 + $0x180] sm:$0xff]
    %v78 = vld [vmem:[#allocation2 + $0x188] sm:$0xff]
    %v79 = vld [vmem:[#allocation2 + $0x190] sm:$0xff]
    %v80 = vld [vmem:[#allocation2 + $0x198] sm:$0xff]
    %v81 = vld [vmem:[#allocation2 + $0x1a0] sm:$0xff]
    %v82 = vld [vmem:[#allocation2 + $0x1a8] sm:$0xff]
    %v83 = vld [vmem:[#allocation2 + $0x1b0] sm:$0xff]
    %v84 = vld [vmem:[#allocation2 + $0x1b8] sm:$0xff]
    %v85 = vld [vmem:[#allocation2 + $0x1c0] sm:$0xff]
    %v86 = vld [vmem:[#allocation2 + $0x1c8] sm:$0xff]
    %v87 = vld [vmem:[#allocation2 + $0x1d0] sm:$0xff]
    %v88 = vld [vmem:[#allocation2 + $0x1d8] sm:$0xff]
    %v89 = vld [vmem:[#allocation2 + $0x1e0] sm:$0xff]
    %v90 = vld [vmem:[#allocation2 + $0x1e8] sm:$0xff]
    %v91 = vld [vmem:[#allocation2 + $0x1f0] sm:$0xff]
    %v92 = vld [vmem:[#allocation2 + $0x1f8] sm:$0xff]
    %v93 = vld [vmem:[#allocation2 + $0x200] sm:$0xff]
    %v94 = vld [vmem:[#allocation2 + $0x208] sm:$0xff]
    %v95 = vld [vmem:[#allocation2 + $0x210] sm:$0xff]
    %v96 = vld [vmem:[#allocation2 + $0x218] sm:$0xff]
    %v97 = vld [vmem:[#allocation2 + $0x220] sm:$0xff]
    %v98 = vld [vmem:[#allocation2 + $0x228] sm:$0xff]
    %v99 = vld [vmem:[#allocation2 + $0x230] sm:$0xff]
    %v100 = vld [vmem:[#allocation2 + $0x238] sm:$0xff]
    %v101 = vld [vmem:[#allocation2 + $0x240] sm:$0xff]
    %v102 = vld [vmem:[#allocation2 + $0x248] sm:$0xff]
    %v103 = vld [vmem:[#allocation2 + $0x250] sm:$0xff]
    %v104 = vld [vmem:[#allocation2 + $0x258] sm:$0xff]
    %v105 = vld [vmem:[#allocation2 + $0x260] sm:$0xff]
    %v106 = vld [vmem:[#allocation2 + $0x268] sm:$0xff]
    %v107 = vld [vmem:[#allocation2 + $0x270] sm:$0xff]
    %v108 = vld [vmem:[#allocation2 + $0x278] sm:$0xff]
    %v109 = vld [vmem:[#allocation2 + $0x280] sm:$0xff]
    %v110 = vld [vmem:[#allocation2 + $0x288] sm:$0xff]
    %v111 = vld [vmem:[#allocation2 + $0x290] sm:$0xff]
    %v112 = vld [vmem:[#allocation2 + $0x298] sm:$0xff]
    %v113 = vld [vmem:[#allocation2 + $0x2a0] sm:$0xff]
    %v114 = vld [vmem:[#allocation2 + $0x2a8] sm:$0xff]
    %v115 = vld [vmem:[#allocation2 + $0x2b0] sm:$0xff]
    %v116 = vld [vmem:[#allocation2 + $0x2b8] sm:$0xff]
    %v117 = vld [vmem:[#allocation2 + $0x2c0] sm:$0xff]
    %v118 = vld [vmem:[#allocation2 + $0x2c8] sm:$0xff]
    %v119 = vld [vmem:[#allocation2 + $0x2d0] sm:$0xff]
    %v120 = vld [vmem:[#allocation2 + $0x2d8] sm:$0xff]
    %v121 = vld [vmem:[#allocation2 + $0x2e0] sm:$0xff]
    %v122 = vld [vmem:[#allocation2 + $0x2e8] sm:$0xff]
    %v123 = vld [vmem:[#allocation2 + $0x2f0] sm:$0xff]
    %v124 = vld [vmem:[#allocation2 + $0x2f8] sm:$0xff]
    %v125 = vld [vmem:[#allocation2 + $0x300] sm:$0xff]
    %v126 = vld [vmem:[#allocation2 + $0x308] sm:$0xff]
    %v127 = vld [vmem:[#allocation2 + $0x310] sm:$0xff]
    %v128 = vld [vmem:[#allocation2 + $0x318] sm:$0xff]
    %v129 = vld [vmem:[#allocation2 + $0x320] sm:$0xff]
    %v130 = vld [vmem:[#allocation2 + $0x328] sm:$0xff]
    %v131 = vld [vmem:[#allocation2 + $0x330] sm:$0xff]
    %v132 = vld [vmem:[#allocation2 + $0x338] sm:$0xff]
    %v133 = vld [vmem:[#allocation2 + $0x340] sm:$0xff]
    %v134 = vld [vmem:[#allocation2 + $0x348] sm:$0xff]
    %v135 = vld [vmem:[#allocation2 + $0x350] sm:$0xff]
    %v136 = vld [vmem:[#allocation2 + $0x358] sm:$0xff]
    %v137 = vld [vmem:[#allocation2 + $0x360] sm:$0xff]
    %v138 = vld [vmem:[#allocation2 + $0x368] sm:$0xff]
    %v139 = vld [vmem:[#allocation2 + $0x370] sm:$0xff]
    %v140 = vld [vmem:[#allocation2 + $0x378] sm:$0xff]
    %v141 = vld [vmem:[#allocation2 + $0x380] sm:$0xff]
    %v142 = vld [vmem:[#allocation2 + $0x388] sm:$0xff]
    %v143 = vld [vmem:[#allocation2 + $0x390] sm:$0xff]
    %v144 = vld [vmem:[#allocation2 + $0x398] sm:$0xff]
    %v145 = vld [vmem:[#allocation2 + $0x3a0] sm:$0xff]
    %v146 = vld [vmem:[#allocation2 + $0x3a8] sm:$0xff]
    %v147 = vld [vmem:[#allocation2 + $0x3b0] sm:$0xff]
    %v148 = vld [vmem:[#allocation2 + $0x3b8] sm:$0xff]
    %v149 = vld [vmem:[#allocation2 + $0x3c0] sm:$0xff]
    %v150 = vld [vmem:[#allocation2 + $0x3c8] sm:$0xff]
    %v151 = vld [vmem:[#allocation2 + $0x3d0] sm:$0xff]
    %v152 = vld [vmem:[#allocation2 + $0x3d8] sm:$0xff]
    %v153 = vld [vmem:[#allocation2 + $0x3e0] sm:$0xff]
    %v154 = vld [vmem:[#allocation2 + $0x3e8] sm:$0xff]
    %v155 = vld [vmem:[#allocation2 + $0x3f0] sm:$0xff]
    %v156 = vld [vmem:[#allocation2 + $0x3f8] sm:$0xff]
    %v157 = vld [vmem:[#allocation2 + $0x400] sm:$0xff]
    %v158 = vld [vmem:[#allocation2 + $0x408] sm:$0xff]
    %v159 = vld [vmem:[#allocation2 + $0x410] sm:$0xff]
    %v160 = vld [vmem:[#allocation2 + $0x418] sm:$0xff]
    %v161 = vld [vmem:[#allocation2 + $0x420] sm:$0xff]
    %v162 = vld [vmem:[#allocation2 + $0x428] sm:$0xff]
    %v163 = vld [vmem:[#allocation2 + $0x430] sm:$0xff]
    %v164 = vld [vmem:[#allocation2 + $0x438] sm:$0xff]
    %v165 = vld [vmem:[#allocation2 + $0x440] sm:$0xff]
    %v166 = vld [vmem:[#allocation2 + $0x448] sm:$0xff]
    %v167 = vld [vmem:[#allocation2 + $0x450] sm:$0xff]
    %v168 = vld [vmem:[#allocation2 + $0x458] sm:$0xff]
    %v169 = vld [vmem:[#allocation2 + $0x460] sm:$0xff]
    %v170 = vld [vmem:[#allocation2 + $0x468] sm:$0xff]
    %v171 = vld [vmem:[#allocation2 + $0x470] sm:$0xff]
    %v172 = vld [vmem:[#allocation2 + $0x478] sm:$0xff]
    %v173 = vld [vmem:[#allocation2 + $0x480] sm:$0xff]
    %v174 = vld [vmem:[#allocation2 + $0x488] sm:$0xff]
    %v175 = vld [vmem:[#allocation2 + $0x490] sm:$0xff]
    %v176 = vld [vmem:[#allocation2 + $0x498] sm:$0xff]
    %v177 = vld [vmem:[#allocation2 + $0x4a0] sm:$0xff]
    %v178 = vld [vmem:[#allocation2 + $0x4a8] sm:$0xff]
    %v179 = vld [vmem:[#allocation2 + $0x4b0] sm:$0xff]
    %v180 = vld [vmem:[#allocation2 + $0x4b8] sm:$0xff]
    %v181 = vld [vmem:[#allocation2 + $0x4c0] sm:$0xff]
    %v182 = vld [vmem:[#allocation2 + $0x4c8] sm:$0xff]
    %v183 = vld [vmem:[#allocation2 + $0x4d0] sm:$0xff]
    %v184 = vld [vmem:[#allocation2 + $0x4d8] sm:$0xff]
    %v185 = vld [vmem:[#allocation2 + $0x4e0] sm:$0xff]
    %v186 = vld [vmem:[#allocation2 + $0x4e8] sm:$0xff]
    %v187 = vld [vmem:[#allocation2 + $0x4f0] sm:$0xff]
    %v188 = vld [vmem:[#allocation2 + $0x4f8] sm:$0xff]
    %v189 = vld [vmem:[#allocation2 + $0x500] sm:$0xff]
    %v190 = vld [vmem:[#allocation2 + $0x508] sm:$0xff]
    %v191 = vld [vmem:[#allocation2 + $0x510] sm:$0xff]
    %v192 = vld [vmem:[#allocation2 + $0x518] sm:$0xff]
    %v193 = vld [vmem:[#allocation2 + $0x520] sm:$0xff]
    %v194 = vld [vmem:[#allocation2 + $0x528] sm:$0xff]
    %v195 = vld [vmem:[#allocation2 + $0x530] sm:$0xff]
    %v196 = vld [vmem:[#allocation2 + $0x538] sm:$0xff]
    %v197 = vld [vmem:[#allocation2 + $0x540] sm:$0xff]
    %v198 = vld [vmem:[#allocation2 + $0x548] sm:$0xff]
    %v199 = vld [vmem:[#allocation2 + $0x550] sm:$0xff]
    %v200 = vld [vmem:[#allocation2 + $0x558] sm:$0xff]
    %v201 = vld [vmem:[#allocation2 + $0x560] sm:$0xff]
    %v202 = vld [vmem:[#allocation2 + $0x568] sm:$0xff]
    %v203 = vld [vmem:[#allocation2 + $0x570] sm:$0xff]
    %v204 = vld [vmem:[#allocation2 + $0x578] sm:$0xff]
    %v205 = vld [vmem:[#allocation2 + $0x580] sm:$0xff]
    %v206 = vld [vmem:[#allocation2 + $0x588] sm:$0xff]
    %v207 = vld [vmem:[#allocation2 + $0x590] sm:$0xff]
    %v208 = vld [vmem:[#allocation2 + $0x598] sm:$0xff]
    %v209 = vld [vmem:[#allocation2 + $0x5a0] sm:$0xff]
    %v210 = vld [vmem:[#allocation2 + $0x5a8] sm:$0xff]
    %v211 = vld [vmem:[#allocation2 + $0x5b0] sm:$0xff]
    %v212 = vld [vmem:[#allocation2 + $0x5b8] sm:$0xff]
    %v213 = vld [vmem:[#allocation2 + $0x5c0] sm:$0xff]
    %v214 = vld [vmem:[#allocation2 + $0x5c8] sm:$0xff]
    %v215 = vld [vmem:[#allocation2 + $0x5d0] sm:$0xff]
    %v216 = vld [vmem:[#allocation2 + $0x5d8] sm:$0xff]
    %v217 = vld [vmem:[#allocation2 + $0x5e0] sm:$0xff]
    %v218 = vld [vmem:[#allocation2 + $0x5e8] sm:$0xff]
    %v219 = vld [vmem:[#allocation2 + $0x5f0] sm:$0xff]
    %v220 = vld [vmem:[#allocation2 + $0x5f8] sm:$0xff]
    %v221 = vld [vmem:[#allocation2 + $0x600] sm:$0xff]
    %v222 = vld [vmem:[#allocation2 + $0x608] sm:$0xff]
    %v223 = vld [vmem:[#allocation2 + $0x610] sm:$0xff]
    %v224 = vld [vmem:[#allocation2 + $0x618] sm:$0xff]
    %v225 = vld [vmem:[#allocation2 + $0x620] sm:$0xff]
    %v226 = vld [vmem:[#allocation2 + $0x628] sm:$0xff]
    %v227 = vld [vmem:[#allocation2 + $0x630] sm:$0xff]
    %v228 = vld [vmem:[#allocation2 + $0x638] sm:$0xff]
    %v229 = vld [vmem:[#allocation2 + $0x640] sm:$0xff]
    %v230 = vld [vmem:[#allocation2 + $0x648] sm:$0xff]
    %v231 = vld [vmem:[#allocation2 + $0x650] sm:$0xff]
    %v232 = vld [vmem:[#allocation2 + $0x658] sm:$0xff]
    %v233 = vld [vmem:[#allocation2 + $0x660] sm:$0xff]
    %v234 = vld [vmem:[#allocation2 + $0x668] sm:$0xff]
    %v235 = vld [vmem:[#allocation2 + $0x670] sm:$0xff]
    %v236 = vld [vmem:[#allocation2 + $0x678] sm:$0xff]
    %v237 = vld [vmem:[#allocation2 + $0x680] sm:$0xff]
    %v238 = vld [vmem:[#allocation2 + $0x688] sm:$0xff]
    %v239 = vld [vmem:[#allocation2 + $0x690] sm:$0xff]
    %v240 = vld [vmem:[#allocation2 + $0x698] sm:$0xff]
    %v241 = vld [vmem:[#allocation2 + $0x6a0] sm:$0xff]
    %v242 = vld [vmem:[#allocation2 + $0x6a8] sm:$0xff]
    %v243 = vld [vmem:[#allocation2 + $0x6b0] sm:$0xff]
    %v244 = vld [vmem:[#allocation2 + $0x6b8] sm:$0xff]
    %v245 = vld [vmem:[#allocation2 + $0x6c0] sm:$0xff]
    %v246 = vld [vmem:[#allocation2 + $0x6c8] sm:$0xff]
    %v247 = vld [vmem:[#allocation2 + $0x6d0] sm:$0xff]
    %v248 = vld [vmem:[#allocation2 + $0x6d8] sm:$0xff]
    %v249 = vld [vmem:[#allocation2 + $0x6e0] sm:$0xff]
    %v250 = vld [vmem:[#allocation2 + $0x6e8] sm:$0xff]
    %v251 = vld [vmem:[#allocation2 + $0x6f0] sm:$0xff]
    %v252 = vld [vmem:[#allocation2 + $0x6f8] sm:$0xff]
    %v253 = vld [vmem:[#allocation2 + $0x700] sm:$0xff]
    %v254 = vld [vmem:[#allocation2 + $0x708] sm:$0xff]
    %v255 = vld [vmem:[#allocation2 + $0x710] sm:$0xff]
    %v256 = vld [vmem:[#allocation2 + $0x718] sm:$0xff]
    %v257 = vld [vmem:[#allocation2 + $0x720] sm:$0xff]
    %v258 = vld [vmem:[#allocation2 + $0x728] sm:$0xff]
    %v259 = vld [vmem:[#allocation2 + $0x730] sm:$0xff]
    %v260 = vld [vmem:[#allocation2 + $0x738] sm:$0xff]
    %v261 = vld [vmem:[#allocation2 + $0x740] sm:$0xff]
    %v262 = vld [vmem:[#allocation2 + $0x748] sm:$0xff]
    %v263 = vld [vmem:[#allocation2 + $0x750] sm:$0xff]
    %v264 = vld [vmem:[#allocation2 + $0x758] sm:$0xff]
    %v265 = vld [vmem:[#allocation2 + $0x760] sm:$0xff]
    %v266 = vld [vmem:[#allocation2 + $0x768] sm:$0xff]
    %v267 = vld [vmem:[#allocation2 + $0x770] sm:$0xff]
    %v268 = vld [vmem:[#allocation2 + $0x778] sm:$0xff]
    %v269 = vld [vmem:[#allocation2 + $0x780] sm:$0xff]
    %v270 = vld [vmem:[#allocation2 + $0x788] sm:$0xff]
    %v271 = vld [vmem:[#allocation2 + $0x790] sm:$0xff]
    %v272 = vld [vmem:[#allocation2 + $0x798] sm:$0xff]
    %v273 = vld [vmem:[#allocation2 + $0x7a0] sm:$0xff]
    %v274 = vld [vmem:[#allocation2 + $0x7a8] sm:$0xff]
    %v275 = vld [vmem:[#allocation2 + $0x7b0] sm:$0xff]
    %v276 = vld [vmem:[#allocation2 + $0x7b8] sm:$0xff]
    %v277 = vld [vmem:[#allocation2 + $0x7c0] sm:$0xff]
    %v278 = vld [vmem:[#allocation2 + $0x7c8] sm:$0xff]
    %v279 = vld [vmem:[#allocation2 + $0x7d0] sm:$0xff]
    %v280 = vld [vmem:[#allocation2 + $0x7d8] sm:$0xff]
    %v281 = vld [vmem:[#allocation2 + $0x7e0] sm:$0xff]
    %v282 = vld [vmem:[#allocation2 + $0x7e8] sm:$0xff]
    %v283 = vld [vmem:[#allocation2 + $0x7f0] sm:$0xff]
    %v284 = vld [vmem:[#allocation2 + $0x7f8] sm:$0xff]
    %v285 = vld [vmem:[#allocation2 + $0x800] sm:$0xff]
    %v286 = vld [vmem:[#allocation2 + $0x808] sm:$0xff]
    %v287 = vld [vmem:[#allocation2 + $0x810] sm:$0xff]
    %v288 = vld [vmem:[#allocation2 + $0x818] sm:$0xff]
    %v289 = vld [vmem:[#allocation2 + $0x820] sm:$0xff]
    %v290 = vld [vmem:[#allocation2 + $0x828] sm:$0xff]
    %v291 = vld [vmem:[#allocation2 + $0x830] sm:$0xff]
    %v292 = vld [vmem:[#allocation2 + $0x838] sm:$0xff]
    %v293 = vld [vmem:[#allocation2 + $0x840] sm:$0xff]
    %v294 = vld [vmem:[#allocation2 + $0x848] sm:$0xff]
    %v295 = vld [vmem:[#allocation2 + $0x850] sm:$0xff]
    %v296 = vld [vmem:[#allocation2 + $0x858] sm:$0xff]
    %v297 = vld [vmem:[#allocation2 + $0x860] sm:$0xff]
    %v298 = vld [vmem:[#allocation2 + $0x868] sm:$0xff]
    %v299 = vld [vmem:[#allocation2 + $0x870] sm:$0xff]
    %v300 = vld [vmem:[#allocation2 + $0x878] sm:$0xff]
    %v301 = vld [vmem:[#allocation2 + $0x880] sm:$0xff]
    %v302 = vld [vmem:[#allocation2 + $0x888] sm:$0xff]
    %v303 = vld [vmem:[#allocation2 + $0x890] sm:$0xff]
    %v304 = vld [vmem:[#allocation2 + $0x898] sm:$0xff]
    %v305 = vld [vmem:[#allocation2 + $0x8a0] sm:$0xff]
    %v306 = vld [vmem:[#allocation2 + $0x8a8] sm:$0xff]
    %v307 = vld [vmem:[#allocation2 + $0x8b0] sm:$0xff]
    %v308 = vld [vmem:[#allocation2 + $0x8b8] sm:$0xff]
    %v309 = vld [vmem:[#allocation2 + $0x8c0] sm:$0xff]
    %v310 = vld [vmem:[#allocation2 + $0x8c8] sm:$0xff]
    %v311 = vld [vmem:[#allocation2 + $0x8d0] sm:$0xff]
    %v312 = vld [vmem:[#allocation2 + $0x8d8] sm:$0xff]
    %v313 = vld [vmem:[#allocation2 + $0x8e0] sm:$0xff]
    %v314 = vld [vmem:[#allocation2 + $0x8e8] sm:$0xff]
    %v315 = vld [vmem:[#allocation2 + $0x8f0] sm:$0xff]
    %v316 = vld [vmem:[#allocation2 + $0x8f8] sm:$0xff]
    %v317 = vld [vmem:[#allocation2 + $0x900] sm:$0xff]
    %v318 = vld [vmem:[#allocation2 + $0x908] sm:$0xff]
    %v319 = vld [vmem:[#allocation2 + $0x910] sm:$0xff]
    %v320 = vld [vmem:[#allocation2 + $0x918] sm:$0xff]
    %v321 = vld [vmem:[#allocation2 + $0x920] sm:$0xff]
    %v322 = vld [vmem:[#allocation2 + $0x928] sm:$0xff]
    %v323 = vld [vmem:[#allocation2 + $0x930] sm:$0xff]
    %v324 = vld [vmem:[#allocation2 + $0x938] sm:$0xff]
    %v325 = vld [vmem:[#allocation2 + $0x940] sm:$0xff]
    %v326 = vld [vmem:[#allocation2 + $0x948] sm:$0xff]
    %v327 = vld [vmem:[#allocation2 + $0x950] sm:$0xff]
    %v328 = vld [vmem:[#allocation2 + $0x958] sm:$0xff]
    %v329 = vld [vmem:[#allocation2 + $0x960] sm:$0xff]
    %v330 = vld [vmem:[#allocation2 + $0x968] sm:$0xff]
    %v331 = vld [vmem:[#allocation2 + $0x970] sm:$0xff]
    %v332 = vld [vmem:[#allocation2 + $0x978] sm:$0xff]
    %v333 = vld [vmem:[#allocation2 + $0x980] sm:$0xff]
    %v334 = vld [vmem:[#allocation2 + $0x988] sm:$0xff]
    %v335 = vld [vmem:[#allocation2 + $0x990] sm:$0xff]
    %v336 = vld [vmem:[#allocation2 + $0x998] sm:$0xff]
    %v337 = vld [vmem:[#allocation2 + $0x9a0] sm:$0xff]
    %v338 = vld [vmem:[#allocation2 + $0x9a8] sm:$0xff]
    %v339 = vld [vmem:[#allocation2 + $0x9b0] sm:$0xff]
    %v340 = vld [vmem:[#allocation2 + $0x9b8] sm:$0xff]
    %v341 = vld [vmem:[#allocation2 + $0x9c0] sm:$0xff]
    %v342 = vld [vmem:[#allocation2 + $0x9c8] sm:$0xff]
    %v343 = vld [vmem:[#allocation2 + $0x9d0] sm:$0xff]
    %v344 = vld [vmem:[#allocation2 + $0x9d8] sm:$0xff]
    %v345 = vld [vmem:[#allocation2 + $0x9e0] sm:$0xff]
    %v346 = vld [vmem:[#allocation2 + $0x9e8] sm:$0xff]
    %v347 = vld [vmem:[#allocation2 + $0x9f0] sm:$0xff]
    %v348 = vld [vmem:[#allocation2 + $0x9f8] sm:$0xff]
    %v349 = vld [vmem:[#allocation2 + $0xa00] sm:$0xff]
    %v350 = vld [vmem:[#allocation2 + $0xa08] sm:$0xff]
    %v351 = vld [vmem:[#allocation2 + $0xa10] sm:$0xff]
    %v352 = vld [vmem:[#allocation2 + $0xa18] sm:$0xff]
    %v353 = vld [vmem:[#allocation2 + $0xa20] sm:$0xff]
    %v354 = vld [vmem:[#allocation2 + $0xa28] sm:$0xff]
    %v355 = vld [vmem:[#allocation2 + $0xa30] sm:$0xff]
    %v356 = vld [vmem:[#allocation2 + $0xa38] sm:$0xff]
    %v357 = vld [vmem:[#allocation2 + $0xa40] sm:$0xff]
    %v358 = vld [vmem:[#allocation2 + $0xa48] sm:$0xff]
    %v359 = vld [vmem:[#allocation2 + $0xa50] sm:$0xff]
    %v360 = vld [vmem:[#allocation2 + $0xa58] sm:$0xff]
    %v361 = vld [vmem:[#allocation2 + $0xa60] sm:$0xff]
    %v362 = vld [vmem:[#allocation2 + $0xa68] sm:$0xff]
    %v363 = vld [vmem:[#allocation2 + $0xa70] sm:$0xff]
    %v364 = vld [vmem:[#allocation2 + $0xa78] sm:$0xff]
    %v365 = vld [vmem:[#allocation2 + $0xa80] sm:$0xff]
    %v366 = vld [vmem:[#allocation2 + $0xa88] sm:$0xff]
    %v367 = vld [vmem:[#allocation2 + $0xa90] sm:$0xff]
    %v368 = vld [vmem:[#allocation2 + $0xa98] sm:$0xff]
    %v369 = vld [vmem:[#allocation2 + $0xaa0] sm:$0xff]
    %v370 = vld [vmem:[#allocation2 + $0xaa8] sm:$0xff]
    %v371 = vld [vmem:[#allocation2 + $0xab0] sm:$0xff]
    %v372 = vld [vmem:[#allocation2 + $0xab8] sm:$0xff]
    %v373 = vld [vmem:[#allocation2 + $0xac0] sm:$0xff]
    %v374 = vld [vmem:[#allocation2 + $0xac8] sm:$0xff]
    %v375 = vld [vmem:[#allocation2 + $0xad0] sm:$0xff]
    %v376 = vld [vmem:[#allocation2 + $0xad8] sm:$0xff]
    %v377 = vld [vmem:[#allocation2 + $0xae0] sm:$0xff]
    %v378 = vld [vmem:[#allocation2 + $0xae8] sm:$0xff]
    %v379 = vld [vmem:[#allocation2 + $0xaf0] sm:$0xff]
    %v380 = vld [vmem:[#allocation2 + $0xaf8] sm:$0xff]
    %v381 = vld [vmem:[#allocation2 + $0xb00] sm:$0xff]
    %v382 = vld [vmem:[#allocation2 + $0xb08] sm:$0xff]
    %v383 = vld [vmem:[#allocation2 + $0xb10] sm:$0xff]
    %v384 = vld [vmem:[#allocation2 + $0xb18] sm:$0xff]
    %v385 = vld [vmem:[#allocation2 + $0xb20] sm:$0xff]
    %v386 = vld [vmem:[#allocation2 + $0xb28] sm:$0xff]
    %v387 = vld [vmem:[#allocation2 + $0xb30] sm:$0xff]
    %v388 = vld [vmem:[#allocation2 + $0xb38] sm:$0xff]
    %v389 = vld [vmem:[#allocation2 + $0xb40] sm:$0xff]
    %v390 = vld [vmem:[#allocation2 + $0xb48] sm:$0xff]
    %v391 = vld [vmem:[#allocation2 + $0xb50] sm:$0xff]
    %v392 = vld [vmem:[#allocation2 + $0xb58] sm:$0xff]
    %v393 = vld [vmem:[#allocation2 + $0xb60] sm:$0xff]
    %v394 = vld [vmem:[#allocation2 + $0xb68] sm:$0xff]
    %v395 = vld [vmem:[#allocation2 + $0xb70] sm:$0xff]
    %v396 = vld [vmem:[#allocation2 + $0xb78] sm:$0xff]
    %v397 = vld [vmem:[#allocation2 + $0xb80] sm:$0xff]
    %v398 = vld [vmem:[#allocation2 + $0xb88] sm:$0xff]
    %v399 = vld [vmem:[#allocation2 + $0xb90] sm:$0xff]
    %v400 = vld [vmem:[#allocation2 + $0xb98] sm:$0xff]
    %v401 = vld [vmem:[#allocation2 + $0xba0] sm:$0xff]
    %v402 = vld [vmem:[#allocation2 + $0xba8] sm:$0xff]
    %v403 = vld [vmem:[#allocation2 + $0xbb0] sm:$0xff]
    %v404 = vld [vmem:[#allocation2 + $0xbb8] sm:$0xff]
    %v405 = vld [vmem:[#allocation2 + $0xbc0] sm:$0xff]
    %v406 = vld [vmem:[#allocation2 + $0xbc8] sm:$0xff]
    %v407 = vld [vmem:[#allocation2 + $0xbd0] sm:$0xff]
    %v408 = vld [vmem:[#allocation2 + $0xbd8] sm:$0xff]
    %v409 = vld [vmem:[#allocation2 + $0xbe0] sm:$0xff]
    %v410 = vld [vmem:[#allocation2 + $0xbe8] sm:$0xff]
    %v411 = vld [vmem:[#allocation2 + $0xbf0] sm:$0xff]
    %v412 = vld [vmem:[#allocation2 + $0xbf8] sm:$0xff]
    %v413 = vld [vmem:[#allocation2 + $0xc00] sm:$0xff]
    %v414 = vld [vmem:[#allocation2 + $0xc08] sm:$0xff]
    %v415 = vld [vmem:[#allocation2 + $0xc10] sm:$0xff]
    %v416 = vld [vmem:[#allocation2 + $0xc18] sm:$0xff]
    %v417 = vld [vmem:[#allocation2 + $0xc20] sm:$0xff]
    %v418 = vld [vmem:[#allocation2 + $0xc28] sm:$0xff]
    %v419 = vld [vmem:[#allocation2 + $0xc30] sm:$0xff]
    %v420 = vld [vmem:[#allocation2 + $0xc38] sm:$0xff]
    %v421 = vld [vmem:[#allocation2 + $0xc40] sm:$0xff]
    %v422 = vld [vmem:[#allocation2 + $0xc48] sm:$0xff]
    %v423 = vld [vmem:[#allocation2 + $0xc50] sm:$0xff]
    %v424 = vld [vmem:[#allocation2 + $0xc58] sm:$0xff]
    %v425 = vld [vmem:[#allocation2 + $0xc60] sm:$0xff]
    %v426 = vld [vmem:[#allocation2 + $0xc68] sm:$0xff]
    %v427 = vld [vmem:[#allocation2 + $0xc70] sm:$0xff]
    %v428 = vld [vmem:[#allocation2 + $0xc78] sm:$0xff]
    %v429 = vld [vmem:[#allocation2 + $0xc80] sm:$0xff]
    %v430 = vld [vmem:[#allocation2 + $0xc88] sm:$0xff]
    %v431 = vld [vmem:[#allocation2 + $0xc90] sm:$0xff]
    %v432 = vld [vmem:[#allocation2 + $0xc98] sm:$0xff]
    %v433 = vld [vmem:[#allocation2 + $0xca0] sm:$0xff]
    %v434 = vld [vmem:[#allocation2 + $0xca8] sm:$0xff]
    %v435 = vld [vmem:[#allocation2 + $0xcb0] sm:$0xff]
    %v436 = vld [vmem:[#allocation2 + $0xcb8] sm:$0xff]
    %v437 = vld [vmem:[#allocation2 + $0xcc0] sm:$0xff]
    %v438 = vld [vmem:[#allocation2 + $0xcc8] sm:$0xff]
    %v439 = vld [vmem:[#allocation2 + $0xcd0] sm:$0xff]
    %v440 = vld [vmem:[#allocation2 + $0xcd8] sm:$0xff]
    %v441 = vld [vmem:[#allocation2 + $0xce0] sm:$0xff]
    %v442 = vld [vmem:[#allocation2 + $0xce8] sm:$0xff]
    %v443 = vld [vmem:[#allocation2 + $0xcf0] sm:$0xff]
    %v444 = vld [vmem:[#allocation2 + $0xcf8] sm:$0xff]
    %v445 = vld [vmem:[#allocation2 + $0xd00] sm:$0xff]
    %v446 = vld [vmem:[#allocation2 + $0xd08] sm:$0xff]
    %v447 = vld [vmem:[#allocation2 + $0xd10] sm:$0xff]
    %v448 = vld [vmem:[#allocation2 + $0xd18] sm:$0xff]
    %v449 = vld [vmem:[#allocation2 + $0xd20] sm:$0xff]
    %v450 = vld [vmem:[#allocation2 + $0xd28] sm:$0xff]
    %v451 = vld [vmem:[#allocation2 + $0xd30] sm:$0xff]
    %v452 = vld [vmem:[#allocation2 + $0xd38] sm:$0xff]
    %v453 = vld [vmem:[#allocation2 + $0xd40] sm:$0xff]
    %v454 = vld [vmem:[#allocation2 + $0xd48] sm:$0xff]
    %v455 = vld [vmem:[#allocation2 + $0xd50] sm:$0xff]
    %v456 = vld [vmem:[#allocation2 + $0xd58] sm:$0xff]
    %v457 = vld [vmem:[#allocation2 + $0xd60] sm:$0xff]
    %v458 = vld [vmem:[#allocation2 + $0xd68] sm:$0xff]
    %v459 = vld [vmem:[#allocation2 + $0xd70] sm:$0xff]
    %v460 = vld [vmem:[#allocation2 + $0xd78] sm:$0xff]
    %v461 = vld [vmem:[#allocation2 + $0xd80] sm:$0xff]
    %v462 = vld [vmem:[#allocation2 + $0xd88] sm:$0xff]
    %v463 = vld [vmem:[#allocation2 + $0xd90] sm:$0xff]
    %v464 = vld [vmem:[#allocation2 + $0xd98] sm:$0xff]
    %v465 = vld [vmem:[#allocation2 + $0xda0] sm:$0xff]
    %v466 = vld [vmem:[#allocation2 + $0xda8] sm:$0xff]
    %v467 = vld [vmem:[#allocation2 + $0xdb0] sm:$0xff]
    %v468 = vld [vmem:[#allocation2 + $0xdb8] sm:$0xff]
    %v469 = vld [vmem:[#allocation2 + $0xdc0] sm:$0xff]
    %v470 = vld [vmem:[#allocation2 + $0xdc8] sm:$0xff]
    %v471 = vld [vmem:[#allocation2 + $0xdd0] sm:$0xff]
    %v472 = vld [vmem:[#allocation2 + $0xdd8] sm:$0xff]
    %v473 = vld [vmem:[#allocation2 + $0xde0] sm:$0xff]
    %v474 = vld [vmem:[#allocation2 + $0xde8] sm:$0xff]
    %v475 = vld [vmem:[#allocation2 + $0xdf0] sm:$0xff]
    %v476 = vld [vmem:[#allocation2 + $0xdf8] sm:$0xff]
    %v477 = vld [vmem:[#allocation2 + $0xe00] sm:$0xff]
    %v478 = vld [vmem:[#allocation2 + $0xe08] sm:$0xff]
    %v479 = vld [vmem:[#allocation2 + $0xe10] sm:$0xff]
    %v480 = vld [vmem:[#allocation2 + $0xe18] sm:$0xff]
    %v481 = vld [vmem:[#allocation2 + $0xe20] sm:$0xff]
    %v482 = vld [vmem:[#allocation2 + $0xe28] sm:$0xff]
    %v483 = vld [vmem:[#allocation2 + $0xe30] sm:$0xff]
    %v484 = vld [vmem:[#allocation2 + $0xe38] sm:$0xff]
    %v485 = vld [vmem:[#allocation2 + $0xe40] sm:$0xff]
    %v486 = vld [vmem:[#allocation2 + $0xe48] sm:$0xff]
    %v487 = vld [vmem:[#allocation2 + $0xe50] sm:$0xff]
    %v488 = vld [vmem:[#allocation2 + $0xe58] sm:$0xff]
    %v489 = vld [vmem:[#allocation2 + $0xe60] sm:$0xff]
    %v490 = vld [vmem:[#allocation2 + $0xe68] sm:$0xff]
    %v491 = vld [vmem:[#allocation2 + $0xe70] sm:$0xff]
    %v492 = vld [vmem:[#allocation2 + $0xe78] sm:$0xff]
    %v493 = vld [vmem:[#allocation2 + $0xe80] sm:$0xff]
    %v494 = vld [vmem:[#allocation2 + $0xe88] sm:$0xff]
    %v495 = vld [vmem:[#allocation2 + $0xe90] sm:$0xff]
    %v496 = vld [vmem:[#allocation2 + $0xe98] sm:$0xff]
    %v497 = vld [vmem:[#allocation2 + $0xea0] sm:$0xff]
    %v498 = vld [vmem:[#allocation2 + $0xea8] sm:$0xff]
    %v499 = vld [vmem:[#allocation2 + $0xeb0] sm:$0xff]
    %v500 = vld [vmem:[#allocation2 + $0xeb8] sm:$0xff]
    %v501 = vld [vmem:[#allocation2 + $0xec0] sm:$0xff]
    %v502 = vld [vmem:[#allocation2 + $0xec8] sm:$0xff]
    %v503 = vld [vmem:[#allocation2 + $0xed0] sm:$0xff]
    %v504 = vld [vmem:[#allocation2 + $0xed8] sm:$0xff]
    %v505 = vld [vmem:[#allocation2 + $0xee0] sm:$0xff]
    %v506 = vld [vmem:[#allocation2 + $0xee8] sm:$0xff]
    %v507 = vld [vmem:[#allocation2 + $0xef0] sm:$0xff]
    %v508 = vld [vmem:[#allocation2 + $0xef8] sm:$0xff]
    %v509 = vld [vmem:[#allocation2 + $0xf00] sm:$0xff]
    %v510 = vld [vmem:[#allocation2 + $0xf08] sm:$0xff]
    %v511 = vld [vmem:[#allocation2 + $0xf10] sm:$0xff]
    %v512 = vld [vmem:[#allocation2 + $0xf18] sm:$0xff]
    %v513 = vld [vmem:[#allocation2 + $0xf20] sm:$0xff]
    %v514 = vld [vmem:[#allocation2 + $0xf28] sm:$0xff]
    %v515 = vld [vmem:[#allocation2 + $0xf30] sm:$0xff]
    %v516 = vld [vmem:[#allocation2 + $0xf38] sm:$0xff]
    %v517 = vld [vmem:[#allocation2 + $0xf40] sm:$0xff]
    %v518 = vld [vmem:[#allocation2 + $0xf48] sm:$0xff]
    %v519 = vld [vmem:[#allocation2 + $0xf50] sm:$0xff]
    %v520 = vld [vmem:[#allocation2 + $0xf58] sm:$0xff]
    %v521 = vld [vmem:[#allocation2 + $0xf60] sm:$0xff]
    %v522 = vld [vmem:[#allocation2 + $0xf68] sm:$0xff]
    %v523 = vld [vmem:[#allocation2 + $0xf70] sm:$0xff]
    %v524 = vld [vmem:[#allocation2 + $0xf78] sm:$0xff]
    %v525 = vld [vmem:[#allocation2 + $0xf80] sm:$0xff]
    %v526 = vld [vmem:[#allocation2 + $0xf88] sm:$0xff]
    %v527 = vld [vmem:[#allocation2 + $0xf90] sm:$0xff]
    %v528 = vld [vmem:[#allocation2 + $0xf98] sm:$0xff]
    %v529 = vld [vmem:[#allocation2 + $0xfa0] sm:$0xff]
    %v530 = vld [vmem:[#allocation2 + $0xfa8] sm:$0xff]
    %v531 = vld [vmem:[#allocation2 + $0xfb0] sm:$0xff]
    %v532 = vld [vmem:[#allocation2 + $0xfb8] sm:$0xff]
    %v533 = vld [vmem:[#allocation2 + $0xfc0] sm:$0xff]
    %v534 = vld [vmem:[#allocation2 + $0xfc8] sm:$0xff]
    %v535 = vld [vmem:[#allocation2 + $0xfd0] sm:$0xff]
    %v536 = vld [vmem:[#allocation2 + $0xfd8] sm:$0xff]
    %v537 = vld [vmem:[#allocation2 + $0xfe0] sm:$0xff]
    %v538 = vld [vmem:[#allocation2 + $0xfe8] sm:$0xff]
    %v539 = vld [vmem:[#allocation2 + $0xff0] sm:$0xff]
    %v540 = vld [vmem:[#allocation2 + $0xff8] sm:$0xff]
    %v541 = vld [vmem:[%s1] sm:$0xf]
    %v542 = vld [vmem:[%s1 + $0x4] sm:$0xf]
    %v543 = vld [vmem:[%s1 + $0x8] sm:$0xf]
    %v544 = vld [vmem:[%s1 + $0xc] sm:$0xf]
    %v545 = vld [vmem:[%s1 + $0x10] sm:$0xf]
    %v546 = vld [vmem:[%s1 + $0x14] sm:$0xf]
    %v547 = vld [vmem:[%s1 + $0x18] sm:$0xf]
    %v548 = vld [vmem:[%s1 + $0x1c] sm:$0xf]
    %v549 = vld [vmem:[%s1 + $0x20] sm:$0xf]
    %v550 = vld [vmem:[%s1 + $0x24] sm:$0xf]
    %v551 = vld [vmem:[%s1 + $0x28] sm:$0xf]
    %v552 = vld [vmem:[%s1 + $0x2c] sm:$0xf]
    %v553 = vld [vmem:[%s1 + $0x30] sm:$0xf]
    %v554 = vld [vmem:[%s1 + $0x34] sm:$0xf]
    %v555 = vld [vmem:[%s1 + $0x38] sm:$0xf]
    %v556 = vld [vmem:[%s1 + $0x3c] sm:$0xf]
    %v557 = vld [vmem:[%s1 + $0x40] sm:$0xf]
    %v558 = vld [vmem:[%s1 + $0x44] sm:$0xf]
    %v559 = vld [vmem:[%s1 + $0x48] sm:$0xf]
    %v560 = vld [vmem:[%s1 + $0x4c] sm:$0xf]
    %v561 = vld [vmem:[%s1 + $0x50] sm:$0xf]
    %v562 = vld [vmem:[%s1 + $0x54] sm:$0xf]
    %v563 = vld [vmem:[%s1 + $0x58] sm:$0xf]
    %v564 = vld [vmem:[%s1 + $0x5c] sm:$0xf]
    %v565 = vld [vmem:[%s1 + $0x60] sm:$0xf]
    %v566 = vld [vmem:[%s1 + $0x64] sm:$0xf]
    %v567 = vld [vmem:[%s1 + $0x68] sm:$0xf]
    %v568 = vld [vmem:[%s1 + $0x6c] sm:$0xf]
    %v569 = vld [vmem:[%s1 + $0x70] sm:$0xf]
    %v570 = vld [vmem:[%s1 + $0x74] sm:$0xf]
    %v571 = vld [vmem:[%s1 + $0x78] sm:$0xf]
    %v572 = vld [vmem:[%s1 + $0x7c] sm:$0xf]
    %v573 = vld [vmem:[%s1 + $0x80] sm:$0xf]
    %v574 = vld [vmem:[%s1 + $0x84] sm:$0xf]
    %v575 = vld [vmem:[%s1 + $0x88] sm:$0xf]
    %v576 = vld [vmem:[%s1 + $0x8c] sm:$0xf]
    %v577 = vld [vmem:[%s1 + $0x90] sm:$0xf]
    %v578 = vld [vmem:[%s1 + $0x94] sm:$0xf]
    %v579 = vld [vmem:[%s1 + $0x98] sm:$0xf]
    %v580 = vld [vmem:[%s1 + $0x9c] sm:$0xf]
    %v581 = vld [vmem:[%s1 + $0xa0] sm:$0xf]
    %v582 = vld [vmem:[%s1 + $0xa4] sm:$0xf]
    %v583 = vld [vmem:[%s1 + $0xa8] sm:$0xf]
    %v584 = vld [vmem:[%s1 + $0xac] sm:$0xf]
    %v585 = vld [vmem:[%s1 + $0xb0] sm:$0xf]
    %v586 = vld [vmem:[%s1 + $0xb4] sm:$0xf]
    %v587 = vld [vmem:[%s1 + $0xb8] sm:$0xf]
    %v588 = vld [vmem:[%s1 + $0xbc] sm:$0xf]
    %v589 = vld [vmem:[%s1 + $0xc0] sm:$0xf]
    %v590 = vld [vmem:[%s1 + $0xc4] sm:$0xf]
    %v591 = vld [vmem:[%s1 + $0xc8] sm:$0xf]
    %v592 = vld [vmem:[%s1 + $0xcc] sm:$0xf]
    %v593 = vld [vmem:[%s1 + $0xd0] sm:$0xf]
    %v594 = vld [vmem:[%s1 + $0xd4] sm:$0xf]
    %v595 = vld [vmem:[%s1 + $0xd8] sm:$0xf]
    %v596 = vld [vmem:[%s1 + $0xdc] sm:$0xf]
    %v597 = vld [vmem:[%s1 + $0xe0] sm:$0xf]
    %v598 = vld [vmem:[%s1 + $0xe4] sm:$0xf]
    %v599 = vld [vmem:[%s1 + $0xe8] sm:$0xf]
    %v600 = vld [vmem:[%s1 + $0xec] sm:$0xf]
    %v601 = vld [vmem:[%s1 + $0xf0] sm:$0xf]
    %v602 = vld [vmem:[%s1 + $0xf4] sm:$0xf]
    %v603 = vld [vmem:[%s1 + $0xf8] sm:$0xf]
    %v604 = vld [vmem:[%s1 + $0xfc] sm:$0xf]
    %v605 = vld [vmem:[%s1 + $0x100] sm:$0xf]
    %v606 = vld [vmem:[%s1 + $0x104] sm:$0xf]
    %v607 = vld [vmem:[%s1 + $0x108] sm:$0xf]
    %v608 = vld [vmem:[%s1 + $0x10c] sm:$0xf]
    %v609 = vld [vmem:[%s1 + $0x110] sm:$0xf]
    %v610 = vld [vmem:[%s1 + $0x114] sm:$0xf]
    %v611 = vld [vmem:[%s1 + $0x118] sm:$0xf]
    %v612 = vld [vmem:[%s1 + $0x11c] sm:$0xf]
    %v613 = vld [vmem:[%s1 + $0x120] sm:$0xf]
    %v614 = vld [vmem:[%s1 + $0x124] sm:$0xf]
    %v615 = vld [vmem:[%s1 + $0x128] sm:$0xf]
    %v616 = vld [vmem:[%s1 + $0x12c] sm:$0xf]
    %v617 = vld [vmem:[%s1 + $0x130] sm:$0xf]
    %v618 = vld [vmem:[%s1 + $0x134] sm:$0xf]
    %v619 = vld [vmem:[%s1 + $0x138] sm:$0xf]
    %v620 = vld [vmem:[%s1 + $0x13c] sm:$0xf]
    %v621 = vld [vmem:[%s1 + $0x140] sm:$0xf]
    %v622 = vld [vmem:[%s1 + $0x144] sm:$0xf]
    %v623 = vld [vmem:[%s1 + $0x148] sm:$0xf]
    %v624 = vld [vmem:[%s1 + $0x14c] sm:$0xf]
    %v625 = vld [vmem:[%s1 + $0x150] sm:$0xf]
    %v626 = vld [vmem:[%s1 + $0x154] sm:$0xf]
    %v627 = vld [vmem:[%s1 + $0x158] sm:$0xf]
    %v628 = vld [vmem:[%s1 + $0x15c] sm:$0xf]
    %v629 = vld [vmem:[%s1 + $0x160] sm:$0xf]
    %v630 = vld [vmem:[%s1 + $0x164] sm:$0xf]
    %v631 = vld [vmem:[%s1 + $0x168] sm:$0xf]
    %v632 = vld [vmem:[%s1 + $0x16c] sm:$0xf]
    %v633 = vld [vmem:[%s1 + $0x170] sm:$0xf]
    %v634 = vld [vmem:[%s1 + $0x174] sm:$0xf]
    %v635 = vld [vmem:[%s1 + $0x178] sm:$0xf]
    %v636 = vld [vmem:[%s1 + $0x17c] sm:$0xf]
    %v637 = vld [vmem:[%s1 + $0x180] sm:$0xf]
    %v638 = vld [vmem:[%s1 + $0x184] sm:$0xf]
    %v639 = vld [vmem:[%s1 + $0x188] sm:$0xf]
    %v640 = vld [vmem:[%s1 + $0x18c] sm:$0xf]
    %v641 = vld [vmem:[%s1 + $0x190] sm:$0xf]
    %v642 = vld [vmem:[%s1 + $0x194] sm:$0xf]
    %v643 = vld [vmem:[%s1 + $0x198] sm:$0xf]
    %v644 = vld [vmem:[%s1 + $0x19c] sm:$0xf]
    %v645 = vld [vmem:[%s1 + $0x1a0] sm:$0xf]
    %v646 = vld [vmem:[%s1 + $0x1a4] sm:$0xf]
    %v647 = vld [vmem:[%s1 + $0x1a8] sm:$0xf]
    %v648 = vld [vmem:[%s1 + $0x1ac] sm:$0xf]
    %v649 = vld [vmem:[%s1 + $0x1b0] sm:$0xf]
    %v650 = vld [vmem:[%s1 + $0x1b4] sm:$0xf]
    %v651 = vld [vmem:[%s1 + $0x1b8] sm:$0xf]
    %v652 = vld [vmem:[%s1 + $0x1bc] sm:$0xf]
    %v653 = vld [vmem:[%s1 + $0x1c0] sm:$0xf]
    %v654 = vld [vmem:[%s1 + $0x1c4] sm:$0xf]
    %v655 = vld [vmem:[%s1 + $0x1c8] sm:$0xf]
    %v656 = vld [vmem:[%s1 + $0x1cc] sm:$0xf]
    %v657 = vld [vmem:[%s1 + $0x1d0] sm:$0xf]
    %v658 = vld [vmem:[%s1 + $0x1d4] sm:$0xf]
    %v659 = vld [vmem:[%s1 + $0x1d8] sm:$0xf]
    %v660 = vld [vmem:[%s1 + $0x1dc] sm:$0xf]
    %v661 = vld [vmem:[%s1 + $0x1e0] sm:$0xf]
    %v662 = vld [vmem:[%s1 + $0x1e4] sm:$0xf]
    %v663 = vld [vmem:[%s1 + $0x1e8] sm:$0xf]
    %v664 = vld [vmem:[%s1 + $0x1ec] sm:$0xf]
    %v665 = vld [vmem:[%s1 + $0x1f0] sm:$0xf]
    %v666 = vld [vmem:[%s1 + $0x1f4] sm:$0xf]
    %v667 = vld [vmem:[%s1 + $0x1f8] sm:$0xf]
    %v668 = vld [vmem:[%s1 + $0x1fc] sm:$0xf]
    %v669 = vld [vmem:[%s1 + $0x200] sm:$0xf]
    %v670 = vld [vmem:[%s1 + $0x204] sm:$0xf]
    %v671 = vld [vmem:[%s1 + $0x208] sm:$0xf]
    %v672 = vld [vmem:[%s1 + $0x20c] sm:$0xf]
    %v673 = vld [vmem:[%s1 + $0x210] sm:$0xf]
    %v674 = vld [vmem:[%s1 + $0x214] sm:$0xf]
    %v675 = vld [vmem:[%s1 + $0x218] sm:$0xf]
    %v676 = vld [vmem:[%s1 + $0x21c] sm:$0xf]
    %v677 = vld [vmem:[%s1 + $0x220] sm:$0xf]
    %v678 = vld [vmem:[%s1 + $0x224] sm:$0xf]
    %v679 = vld [vmem:[%s1 + $0x228] sm:$0xf]
    %v680 = vld [vmem:[%s1 + $0x22c] sm:$0xf]
    %v681 = vld [vmem:[%s1 + $0x230] sm:$0xf]
    %v682 = vld [vmem:[%s1 + $0x234] sm:$0xf]
    %v683 = vld [vmem:[%s1 + $0x238] sm:$0xf]
    %v684 = vld [vmem:[%s1 + $0x23c] sm:$0xf]
    %v685 = vld [vmem:[%s1 + $0x240] sm:$0xf]
    %v686 = vld [vmem:[%s1 + $0x244] sm:$0xf]
    %v687 = vld [vmem:[%s1 + $0x248] sm:$0xf]
    %v688 = vld [vmem:[%s1 + $0x24c] sm:$0xf]
    %v689 = vld [vmem:[%s1 + $0x250] sm:$0xf]
    %v690 = vld [vmem:[%s1 + $0x254] sm:$0xf]
    %v691 = vld [vmem:[%s1 + $0x258] sm:$0xf]
    %v692 = vld [vmem:[%s1 + $0x25c] sm:$0xf]
    %v693 = vld [vmem:[%s1 + $0x260] sm:$0xf]
    %v694 = vld [vmem:[%s1 + $0x264] sm:$0xf]
    %v695 = vld [vmem:[%s1 + $0x268] sm:$0xf]
    %v696 = vld [vmem:[%s1 + $0x26c] sm:$0xf]
    %v697 = vld [vmem:[%s1 + $0x270] sm:$0xf]
    %v698 = vld [vmem:[%s1 + $0x274] sm:$0xf]
    %v699 = vld [vmem:[%s1 + $0x278] sm:$0xf]
    %v700 = vld [vmem:[%s1 + $0x27c] sm:$0xf]
    %v701 = vld [vmem:[%s1 + $0x280] sm:$0xf]
    %v702 = vld [vmem:[%s1 + $0x284] sm:$0xf]
    %v703 = vld [vmem:[%s1 + $0x288] sm:$0xf]
    %v704 = vld [vmem:[%s1 + $0x28c] sm:$0xf]
    %v705 = vld [vmem:[%s1 + $0x290] sm:$0xf]
    %v706 = vld [vmem:[%s1 + $0x294] sm:$0xf]
    %v707 = vld [vmem:[%s1 + $0x298] sm:$0xf]
    %v708 = vld [vmem:[%s1 + $0x29c] sm:$0xf]
    %v709 = vld [vmem:[%s1 + $0x2a0] sm:$0xf]
    %v710 = vld [vmem:[%s1 + $0x2a4] sm:$0xf]
    %v711 = vld [vmem:[%s1 + $0x2a8] sm:$0xf]
    %v712 = vld [vmem:[%s1 + $0x2ac] sm:$0xf]
    %v713 = vld [vmem:[%s1 + $0x2b0] sm:$0xf]
    %v714 = vld [vmem:[%s1 + $0x2b4] sm:$0xf]
    %v715 = vld [vmem:[%s1 + $0x2b8] sm:$0xf]
    %v716 = vld [vmem:[%s1 + $0x2bc] sm:$0xf]
    %v717 = vld [vmem:[%s1 + $0x2c0] sm:$0xf]
    %v718 = vld [vmem:[%s1 + $0x2c4] sm:$0xf]
    %v719 = vld [vmem:[%s1 + $0x2c8] sm:$0xf]
    %v720 = vld [vmem:[%s1 + $0x2cc] sm:$0xf]
    %v721 = vld [vmem:[%s1 + $0x2d0] sm:$0xf]
    %v722 = vld [vmem:[%s1 + $0x2d4] sm:$0xf]
    %v723 = vld [vmem:[%s1 + $0x2d8] sm:$0xf]
    %v724 = vld [vmem:[%s1 + $0x2dc] sm:$0xf]
    %v725 = vld [vmem:[%s1 + $0x2e0] sm:$0xf]
    %v726 = vld [vmem:[%s1 + $0x2e4] sm:$0xf]
    %v727 = vld [vmem:[%s1 + $0x2e8] sm:$0xf]
    %v728 = vld [vmem:[%s1 + $0x2ec] sm:$0xf]
    %v729 = vld [vmem:[%s1 + $0x2f0] sm:$0xf]
    %v730 = vld [vmem:[%s1 + $0x2f4] sm:$0xf]
    %v731 = vld [vmem:[%s1 + $0x2f8] sm:$0xf]
    %v732 = vld [vmem:[%s1 + $0x2fc] sm:$0xf]
    %v733 = vld [vmem:[%s1 + $0x300] sm:$0xf]
    %v734 = vld [vmem:[%s1 + $0x304] sm:$0xf]
    %v735 = vld [vmem:[%s1 + $0x308] sm:$0xf]
    %v736 = vld [vmem:[%s1 + $0x30c] sm:$0xf]
    %v737 = vld [vmem:[%s1 + $0x310] sm:$0xf]
    %v738 = vld [vmem:[%s1 + $0x314] sm:$0xf]
    %v739 = vld [vmem:[%s1 + $0x318] sm:$0xf]
    %v740 = vld [vmem:[%s1 + $0x31c] sm:$0xf]
    %v741 = vld [vmem:[%s1 + $0x320] sm:$0xf]
    %v742 = vld [vmem:[%s1 + $0x324] sm:$0xf]
    %v743 = vld [vmem:[%s1 + $0x328] sm:$0xf]
    %v744 = vld [vmem:[%s1 + $0x32c] sm:$0xf]
    %v745 = vld [vmem:[%s1 + $0x330] sm:$0xf]
    %v746 = vld [vmem:[%s1 + $0x334] sm:$0xf]
    %v747 = vld [vmem:[%s1 + $0x338] sm:$0xf]
    %v748 = vld [vmem:[%s1 + $0x33c] sm:$0xf]
    %v749 = vld [vmem:[%s1 + $0x340] sm:$0xf]
    %v750 = vld [vmem:[%s1 + $0x344] sm:$0xf]
    %v751 = vld [vmem:[%s1 + $0x348] sm:$0xf]
    %v752 = vld [vmem:[%s1 + $0x34c] sm:$0xf]
    %v753 = vld [vmem:[%s1 + $0x350] sm:$0xf]
    %v754 = vld [vmem:[%s1 + $0x354] sm:$0xf]
    %v755 = vld [vmem:[%s1 + $0x358] sm:$0xf]
    %v756 = vld [vmem:[%s1 + $0x35c] sm:$0xf]
    %v757 = vld [vmem:[%s1 + $0x360] sm:$0xf]
    %v758 = vld [vmem:[%s1 + $0x364] sm:$0xf]
    %v759 = vld [vmem:[%s1 + $0x368] sm:$0xf]
    %v760 = vld [vmem:[%s1 + $0x36c] sm:$0xf]
    %v761 = vld [vmem:[%s1 + $0x370] sm:$0xf]
    %v762 = vld [vmem:[%s1 + $0x374] sm:$0xf]
    %v763 = vld [vmem:[%s1 + $0x378] sm:$0xf]
    %v764 = vld [vmem:[%s1 + $0x37c] sm:$0xf]
    %v765 = vld [vmem:[%s1 + $0x380] sm:$0xf]
    %v766 = vld [vmem:[%s1 + $0x384] sm:$0xf]
    %v767 = vld [vmem:[%s1 + $0x388] sm:$0xf]
    %v768 = vld [vmem:[%s1 + $0x38c] sm:$0xf]
    %v769 = vld [vmem:[%s1 + $0x390] sm:$0xf]
    %v770 = vld [vmem:[%s1 + $0x394] sm:$0xf]
    %v771 = vld [vmem:[%s1 + $0x398] sm:$0xf]
    %v772 = vld [vmem:[%s1 + $0x39c] sm:$0xf]
    %v773 = vld [vmem:[%s1 + $0x3a0] sm:$0xf]
    %v774 = vld [vmem:[%s1 + $0x3a4] sm:$0xf]
    %v775 = vld [vmem:[%s1 + $0x3a8] sm:$0xf]
    %v776 = vld [vmem:[%s1 + $0x3ac] sm:$0xf]
    %v777 = vld [vmem:[%s1 + $0x3b0] sm:$0xf]
    %v778 = vld [vmem:[%s1 + $0x3b4] sm:$0xf]
    %v779 = vld [vmem:[%s1 + $0x3b8] sm:$0xf]
    %v780 = vld [vmem:[%s1 + $0x3bc] sm:$0xf]
    %v781 = vld [vmem:[%s1 + $0x3c0] sm:$0xf]
    %v782 = vld [vmem:[%s1 + $0x3c4] sm:$0xf]
    %v783 = vld [vmem:[%s1 + $0x3c8] sm:$0xf]
    %v784 = vld [vmem:[%s1 + $0x3cc] sm:$0xf]
    %v785 = vld [vmem:[%s1 + $0x3d0] sm:$0xf]
    %v786 = vld [vmem:[%s1 + $0x3d4] sm:$0xf]
    %v787 = vld [vmem:[%s1 + $0x3d8] sm:$0xf]
    %v788 = vld [vmem:[%s1 + $0x3dc] sm:$0xf]
    %v789 = vld [vmem:[%s1 + $0x3e0] sm:$0xf]
    %v790 = vld [vmem:[%s1 + $0x3e4] sm:$0xf]
    %v791 = vld [vmem:[%s1 + $0x3e8] sm:$0xf]
    %v792 = vld [vmem:[%s1 + $0x3ec] sm:$0xf]
    %v793 = vld [vmem:[%s1 + $0x3f0] sm:$0xf]
    %v794 = vld [vmem:[%s1 + $0x3f4] sm:$0xf]
    %v795 = vld [vmem:[%s1 + $0x3f8] sm:$0xf]
    %v796 = vld [vmem:[%s1 + $0x3fc] sm:$0xf]
    %v797 = vld [vmem:[%s1 + $0x400] sm:$0xf]
    %v798 = vld [vmem:[%s1 + $0x404] sm:$0xf]
    %v799 = vld [vmem:[%s1 + $0x408] sm:$0xf]
    %v800 = vld [vmem:[%s1 + $0x40c] sm:$0xf]
    %v801 = vld [vmem:[%s1 + $0x410] sm:$0xf]
    %v802 = vld [vmem:[%s1 + $0x414] sm:$0xf]
    %v803 = vld [vmem:[%s1 + $0x418] sm:$0xf]
    %v804 = vld [vmem:[%s1 + $0x41c] sm:$0xf]
    %v805 = vld [vmem:[%s1 + $0x420] sm:$0xf]
    %v806 = vld [vmem:[%s1 + $0x424] sm:$0xf]
    %v807 = vld [vmem:[%s1 + $0x428] sm:$0xf]
    %v808 = vld [vmem:[%s1 + $0x42c] sm:$0xf]
    %v809 = vld [vmem:[%s1 + $0x430] sm:$0xf]
    %v810 = vld [vmem:[%s1 + $0x434] sm:$0xf]
    %v811 = vld [vmem:[%s1 + $0x438] sm:$0xf]
    %v812 = vld [vmem:[%s1 + $0x43c] sm:$0xf]
    %v813 = vld [vmem:[%s1 + $0x440] sm:$0xf]
    %v814 = vld [vmem:[%s1 + $0x444] sm:$0xf]
    %v815 = vld [vmem:[%s1 + $0x448] sm:$0xf]
    %v816 = vld [vmem:[%s1 + $0x44c] sm:$0xf]
    %v817 = vld [vmem:[%s1 + $0x450] sm:$0xf]
    %v818 = vld [vmem:[%s1 + $0x454] sm:$0xf]
    %v819 = vld [vmem:[%s1 + $0x458] sm:$0xf]
    %v820 = vld [vmem:[%s1 + $0x45c] sm:$0xf]
    %v821 = vld [vmem:[%s1 + $0x460] sm:$0xf]
    %v822 = vld [vmem:[%s1 + $0x464] sm:$0xf]
    %v823 = vld [vmem:[%s1 + $0x468] sm:$0xf]
    %v824 = vld [vmem:[%s1 + $0x46c] sm:$0xf]
    %v825 = vld [vmem:[%s1 + $0x470] sm:$0xf]
    %v826 = vld [vmem:[%s1 + $0x474] sm:$0xf]
    %v827 = vld [vmem:[%s1 + $0x478] sm:$0xf]
    %v828 = vld [vmem:[%s1 + $0x47c] sm:$0xf]
    %v829 = vld [vmem:[%s1 + $0x480] sm:$0xf]
    %v830 = vld [vmem:[%s1 + $0x484] sm:$0xf]
    %v831 = vld [vmem:[%s1 + $0x488] sm:$0xf]
    %v832 = vld [vmem:[%s1 + $0x48c] sm:$0xf]
    %v833 = vld [vmem:[%s1 + $0x490] sm:$0xf]
    %v834 = vld [vmem:[%s1 + $0x494] sm:$0xf]
    %v835 = vld [vmem:[%s1 + $0x498] sm:$0xf]
    %v836 = vld [vmem:[%s1 + $0x49c] sm:$0xf]
    %v837 = vld [vmem:[%s1 + $0x4a0] sm:$0xf]
    %v838 = vld [vmem:[%s1 + $0x4a4] sm:$0xf]
    %v839 = vld [vmem:[%s1 + $0x4a8] sm:$0xf]
    %v840 = vld [vmem:[%s1 + $0x4ac] sm:$0xf]
    %v841 = vld [vmem:[%s1 + $0x4b0] sm:$0xf]
    %v842 = vld [vmem:[%s1 + $0x4b4] sm:$0xf]
    %v843 = vld [vmem:[%s1 + $0x4b8] sm:$0xf]
    %v844 = vld [vmem:[%s1 + $0x4bc] sm:$0xf]
    %v845 = vld [vmem:[%s1 + $0x4c0] sm:$0xf]
    %v846 = vld [vmem:[%s1 + $0x4c4] sm:$0xf]
    %v847 = vld [vmem:[%s1 + $0x4c8] sm:$0xf]
    %v848 = vld [vmem:[%s1 + $0x4cc] sm:$0xf]
    %v849 = vld [vmem:[%s1 + $0x4d0] sm:$0xf]
    %v850 = vld [vmem:[%s1 + $0x4d4] sm:$0xf]
    %v851 = vld [vmem:[%s1 + $0x4d8] sm:$0xf]
    %v852 = vld [vmem:[%s1 + $0x4dc] sm:$0xf]
    %v853 = vld [vmem:[%s1 + $0x4e0] sm:$0xf]
    %v854 = vld [vmem:[%s1 + $0x4e4] sm:$0xf]
    %v855 = vld [vmem:[%s1 + $0x4e8] sm:$0xf]
    %v856 = vld [vmem:[%s1 + $0x4ec] sm:$0xf]
    %v857 = vld [vmem:[%s1 + $0x4f0] sm:$0xf]
    %v858 = vld [vmem:[%s1 + $0x4f4] sm:$0xf]
    %v859 = vld [vmem:[%s1 + $0x4f8] sm:$0xf]
    %v860 = vld [vmem:[%s1 + $0x4fc] sm:$0xf]
    %v861 = vld [vmem:[%s1 + $0x500] sm:$0xf]
    %v862 = vld [vmem:[%s1 + $0x504] sm:$0xf]
    %v863 = vld [vmem:[%s1 + $0x508] sm:$0xf]
    %v864 = vld [vmem:[%s1 + $0x50c] sm:$0xf]
    %v865 = vld [vmem:[%s1 + $0x510] sm:$0xf]
    %v866 = vld [vmem:[%s1 + $0x514] sm:$0xf]
    %v867 = vld [vmem:[%s1 + $0x518] sm:$0xf]
    %v868 = vld [vmem:[%s1 + $0x51c] sm:$0xf]
    %v869 = vld [vmem:[%s1 + $0x520] sm:$0xf]
    %v870 = vld [vmem:[%s1 + $0x524] sm:$0xf]
    %v871 = vld [vmem:[%s1 + $0x528] sm:$0xf]
    %v872 = vld [vmem:[%s1 + $0x52c] sm:$0xf]
    %v873 = vld [vmem:[%s1 + $0x530] sm:$0xf]
    %v874 = vld [vmem:[%s1 + $0x534] sm:$0xf]
    %v875 = vld [vmem:[%s1 + $0x538] sm:$0xf]
    %v876 = vld [vmem:[%s1 + $0x53c] sm:$0xf]
    %v877 = vld [vmem:[%s1 + $0x540] sm:$0xf]
    %v878 = vld [vmem:[%s1 + $0x544] sm:$0xf]
    %v879 = vld [vmem:[%s1 + $0x548] sm:$0xf]
    %v880 = vld [vmem:[%s1 + $0x54c] sm:$0xf]
    %v881 = vld [vmem:[%s1 + $0x550] sm:$0xf]
    %v882 = vld [vmem:[%s1 + $0x554] sm:$0xf]
    %v883 = vld [vmem:[%s1 + $0x558] sm:$0xf]
    %v884 = vld [vmem:[%s1 + $0x55c] sm:$0xf]
    %v885 = vld [vmem:[%s1 + $0x560] sm:$0xf]
    %v886 = vld [vmem:[%s1 + $0x564] sm:$0xf]
    %v887 = vld [vmem:[%s1 + $0x568] sm:$0xf]
    %v888 = vld [vmem:[%s1 + $0x56c] sm:$0xf]
    %v889 = vld [vmem:[%s1 + $0x570] sm:$0xf]
    %v890 = vld [vmem:[%s1 + $0x574] sm:$0xf]
    %v891 = vld [vmem:[%s1 + $0x578] sm:$0xf]
    %v892 = vld [vmem:[%s1 + $0x57c] sm:$0xf]
    %v893 = vld [vmem:[%s1 + $0x580] sm:$0xf]
    %v894 = vld [vmem:[%s1 + $0x584] sm:$0xf]
    %v895 = vld [vmem:[%s1 + $0x588] sm:$0xf]
    %v896 = vld [vmem:[%s1 + $0x58c] sm:$0xf]
    %v897 = vld [vmem:[%s1 + $0x590] sm:$0xf]
    %v898 = vld [vmem:[%s1 + $0x594] sm:$0xf]
    %v899 = vld [vmem:[%s1 + $0x598] sm:$0xf]
    %v900 = vld [vmem:[%s1 + $0x59c] sm:$0xf]
    %v901 = vld [vmem:[%s1 + $0x5a0] sm:$0xf]
    %v902 = vld [vmem:[%s1 + $0x5a4] sm:$0xf]
    %v903 = vld [vmem:[%s1 + $0x5a8] sm:$0xf]
    %v904 = vld [vmem:[%s1 + $0x5ac] sm:$0xf]
    %v905 = vld [vmem:[%s1 + $0x5b0] sm:$0xf]
    %v906 = vld [vmem:[%s1 + $0x5b4] sm:$0xf]
    %v907 = vld [vmem:[%s1 + $0x5b8] sm:$0xf]
    %v908 = vld [vmem:[%s1 + $0x5bc] sm:$0xf]
    %v909 = vld [vmem:[%s1 + $0x5c0] sm:$0xf]
    %v910 = vld [vmem:[%s1 + $0x5c4] sm:$0xf]
    %v911 = vld [vmem:[%s1 + $0x5c8] sm:$0xf]
    %v912 = vld [vmem:[%s1 + $0x5cc] sm:$0xf]
    %v913 = vld [vmem:[%s1 + $0x5d0] sm:$0xf]
    %v914 = vld [vmem:[%s1 + $0x5d4] sm:$0xf]
    %v915 = vld [vmem:[%s1 + $0x5d8] sm:$0xf]
    %v916 = vld [vmem:[%s1 + $0x5dc] sm:$0xf]
    %v917 = vld [vmem:[%s1 + $0x5e0] sm:$0xf]
    %v918 = vld [vmem:[%s1 + $0x5e4] sm:$0xf]
    %v919 = vld [vmem:[%s1 + $0x5e8] sm:$0xf]
    %v920 = vld [vmem:[%s1 + $0x5ec] sm:$0xf]
    %v921 = vld [vmem:[%s1 + $0x5f0] sm:$0xf]
    %v922 = vld [vmem:[%s1 + $0x5f4] sm:$0xf]
    %v923 = vld [vmem:[%s1 + $0x5f8] sm:$0xf]
    %v924 = vld [vmem:[%s1 + $0x5fc] sm:$0xf]
    %v925 = vld [vmem:[%s1 + $0x600] sm:$0xf]
    %v926 = vld [vmem:[%s1 + $0x604] sm:$0xf]
    %v927 = vld [vmem:[%s1 + $0x608] sm:$0xf]
    %v928 = vld [vmem:[%s1 + $0x60c] sm:$0xf]
    %v929 = vld [vmem:[%s1 + $0x610] sm:$0xf]
    %v930 = vld [vmem:[%s1 + $0x614] sm:$0xf]
    %v931 = vld [vmem:[%s1 + $0x618] sm:$0xf]
    %v932 = vld [vmem:[%s1 + $0x61c] sm:$0xf]
    %v933 = vld [vmem:[%s1 + $0x620] sm:$0xf]
    %v934 = vld [vmem:[%s1 + $0x624] sm:$0xf]
    %v935 = vld [vmem:[%s1 + $0x628] sm:$0xf]
    %v936 = vld [vmem:[%s1 + $0x62c] sm:$0xf]
    %v937 = vld [vmem:[%s1 + $0x630] sm:$0xf]
    %v938 = vld [vmem:[%s1 + $0x634] sm:$0xf]
    %v939 = vld [vmem:[%s1 + $0x638] sm:$0xf]
    %v940 = vld [vmem:[%s1 + $0x63c] sm:$0xf]
    %v941 = vld [vmem:[%s1 + $0x640] sm:$0xf]
    %v942 = vld [vmem:[%s1 + $0x644] sm:$0xf]
    %v943 = vld [vmem:[%s1 + $0x648] sm:$0xf]
    %v944 = vld [vmem:[%s1 + $0x64c] sm:$0xf]
    %v945 = vld [vmem:[%s1 + $0x650] sm:$0xf]
    %v946 = vld [vmem:[%s1 + $0x654] sm:$0xf]
    %v947 = vld [vmem:[%s1 + $0x658] sm:$0xf]
    %v948 = vld [vmem:[%s1 + $0x65c] sm:$0xf]
    %v949 = vld [vmem:[%s1 + $0x660] sm:$0xf]
    %v950 = vld [vmem:[%s1 + $0x664] sm:$0xf]
    %v951 = vld [vmem:[%s1 + $0x668] sm:$0xf]
    %v952 = vld [vmem:[%s1 + $0x66c] sm:$0xf]
    %v953 = vld [vmem:[%s1 + $0x670] sm:$0xf]
    %v954 = vld [vmem:[%s1 + $0x674] sm:$0xf]
    %v955 = vld [vmem:[%s1 + $0x678] sm:$0xf]
    %v956 = vld [vmem:[%s1 + $0x67c] sm:$0xf]
    %v957 = vld [vmem:[%s1 + $0x680] sm:$0xf]
    %v958 = vld [vmem:[%s1 + $0x684] sm:$0xf]
    %v959 = vld [vmem:[%s1 + $0x688] sm:$0xf]
    %v960 = vld [vmem:[%s1 + $0x68c] sm:$0xf]
    %v961 = vld [vmem:[%s1 + $0x690] sm:$0xf]
    %v962 = vld [vmem:[%s1 + $0x694] sm:$0xf]
    %v963 = vld [vmem:[%s1 + $0x698] sm:$0xf]
    %v964 = vld [vmem:[%s1 + $0x69c] sm:$0xf]
    %v965 = vld [vmem:[%s1 + $0x6a0] sm:$0xf]
    %v966 = vld [vmem:[%s1 + $0x6a4] sm:$0xf]
    %v967 = vld [vmem:[%s1 + $0x6a8] sm:$0xf]
    %v968 = vld [vmem:[%s1 + $0x6ac] sm:$0xf]
    %v969 = vld [vmem:[%s1 + $0x6b0] sm:$0xf]
    %v970 = vld [vmem:[%s1 + $0x6b4] sm:$0xf]
    %v971 = vld [vmem:[%s1 + $0x6b8] sm:$0xf]
    %v972 = vld [vmem:[%s1 + $0x6bc] sm:$0xf]
    %v973 = vld [vmem:[%s1 + $0x6c0] sm:$0xf]
    %v974 = vld [vmem:[%s1 + $0x6c4] sm:$0xf]
    %v975 = vld [vmem:[%s1 + $0x6c8] sm:$0xf]
    %v976 = vld [vmem:[%s1 + $0x6cc] sm:$0xf]
    %v977 = vld [vmem:[%s1 + $0x6d0] sm:$0xf]
    %v978 = vld [vmem:[%s1 + $0x6d4] sm:$0xf]
    %v979 = vld [vmem:[%s1 + $0x6d8] sm:$0xf]
    %v980 = vld [vmem:[%s1 + $0x6dc] sm:$0xf]
    %v981 = vld [vmem:[%s1 + $0x6e0] sm:$0xf]
    %v982 = vld [vmem:[%s1 + $0x6e4] sm:$0xf]
    %v983 = vld [vmem:[%s1 + $0x6e8] sm:$0xf]
    %v984 = vld [vmem:[%s1 + $0x6ec] sm:$0xf]
    %v985 = vld [vmem:[%s1 + $0x6f0] sm:$0xf]
    %v986 = vld [vmem:[%s1 + $0x6f4] sm:$0xf]
    %v987 = vld [vmem:[%s1 + $0x6f8] sm:$0xf]
    %v988 = vld [vmem:[%s1 + $0x6fc] sm:$0xf]
    %v989 = vld [vmem:[%s1 + $0x700] sm:$0xf]
    %v990 = vld [vmem:[%s1 + $0x704] sm:$0xf]
    %v991 = vld [vmem:[%s1 + $0x708] sm:$0xf]
    %v992 = vld [vmem:[%s1 + $0x70c] sm:$0xf]
    %v993 = vld [vmem:[%s1 + $0x710] sm:$0xf]
    %v994 = vld [vmem:[%s1 + $0x714] sm:$0xf]
    %v995 = vld [vmem:[%s1 + $0x718] sm:$0xf]
    %v996 = vld [vmem:[%s1 + $0x71c] sm:$0xf]
    %v997 = vld [vmem:[%s1 + $0x720] sm:$0xf]
    %v998 = vld [vmem:[%s1 + $0x724] sm:$0xf]
    %v999 = vld [vmem:[%s1 + $0x728] sm:$0xf]
    %v1000 = vld [vmem:[%s1 + $0x72c] sm:$0xf]
    %v1001 = vld [vmem:[%s1 + $0x730] sm:$0xf]
    %v1002 = vld [vmem:[%s1 + $0x734] sm:$0xf]
    %v1003 = vld [vmem:[%s1 + $0x738] sm:$0xf]
    %v1004 = vld [vmem:[%s1 + $0x73c] sm:$0xf]
    %v1005 = vld [vmem:[%s1 + $0x740] sm:$0xf]
    %v1006 = vld [vmem:[%s1 + $0x744] sm:$0xf]
    %v1007 = vld [vmem:[%s1 + $0x748] sm:$0xf]
    %v1008 = vld [vmem:[%s1 + $0x74c] sm:$0xf]
    %v1009 = vld [vmem:[%s1 + $0x750] sm:$0xf]
    %v1010 = vld [vmem:[%s1 + $0x754] sm:$0xf]
    %v1011 = vld [vmem:[%s1 + $0x758] sm:$0xf]
    %v1012 = vld [vmem:[%s1 + $0x75c] sm:$0xf]
    %v1013 = vld [vmem:[%s1 + $0x760] sm:$0xf]
    %v1014 = vld [vmem:[%s1 + $0x764] sm:$0xf]
    %v1015 = vld [vmem:[%s1 + $0x768] sm:$0xf]
    %v1016 = vld [vmem:[%s1 + $0x76c] sm:$0xf]
    %v1017 = vld [vmem:[%s1 + $0x770] sm:$0xf]
    %v1018 = vld [vmem:[%s1 + $0x774] sm:$0xf]
    %v1019 = vld [vmem:[%s1 + $0x778] sm:$0xf]
    %v1020 = vld [vmem:[%s1 + $0x77c] sm:$0xf]
    %v1021 = vld [vmem:[%s1 + $0x780] sm:$0xf]
    %v1022 = vld [vmem:[%s1 + $0x784] sm:$0xf]
    %v1023 = vld [vmem:[%s1 + $0x788] sm:$0xf]
    %v1024 = vld [vmem:[%s1 + $0x78c] sm:$0xf]
    %v1025 = vld [vmem:[%s1 + $0x790] sm:$0xf]
    %v1026 = vld [vmem:[%s1 + $0x794] sm:$0xf]
    %v1027 = vld [vmem:[%s1 + $0x798] sm:$0xf]
    %v1028 = vld [vmem:[%s1 + $0x79c] sm:$0xf]
    %v1029 = vld [vmem:[%s1 + $0x7a0] sm:$0xf]
    %v1030 = vld [vmem:[%s1 + $0x7a4] sm:$0xf]
    %v1031 = vld [vmem:[%s1 + $0x7a8] sm:$0xf]
    %v1032 = vld [vmem:[%s1 + $0x7ac] sm:$0xf]
    %v1033 = vld [vmem:[%s1 + $0x7b0] sm:$0xf]
    %v1034 = vld [vmem:[%s1 + $0x7b4] sm:$0xf]
    %v1035 = vld [vmem:[%s1 + $0x7b8] sm:$0xf]
    %v1036 = vld [vmem:[%s1 + $0x7bc] sm:$0xf]
    %v1037 = vld [vmem:[%s1 + $0x7c0] sm:$0xf]
    %v1038 = vld [vmem:[%s1 + $0x7c4] sm:$0xf]
    %v1039 = vld [vmem:[%s1 + $0x7c8] sm:$0xf]
    %v1040 = vld [vmem:[%s1 + $0x7cc] sm:$0xf]
    %v1041 = vld [vmem:[%s1 + $0x7d0] sm:$0xf]
    %v1042 = vld [vmem:[%s1 + $0x7d4] sm:$0xf]
    %v1043 = vld [vmem:[%s1 + $0x7d8] sm:$0xf]
    %v1044 = vld [vmem:[%s1 + $0x7dc] sm:$0xf]
    %v1045 = vld [vmem:[%s1 + $0x7e0] sm:$0xf]
    %v1046 = vld [vmem:[%s1 + $0x7e4] sm:$0xf]
    %v1047 = vld [vmem:[%s1 + $0x7e8] sm:$0xf]
    %v1048 = vld [vmem:[%s1 + $0x7ec] sm:$0xf]
    %v1049 = vld [vmem:[%s1 + $0x7f0] sm:$0xf]
    %v1050 = vld [vmem:[%s1 + $0x7f4] sm:$0xf]
    %v1051 = vld [vmem:[%s1 + $0x7f8] sm:$0xf]
    %v1052 = vld [vmem:[%s1 + $0x7fc] sm:$0xf]
    %1054 = vset.pattern.permute.xlu0 0
    %1055 = vperm.xlu0 %1054, %v541
    %v1056 = vpop.permute.xlu0 %1055
    %v1059 = vunpack.c.l.s4 839922192
    %v1060 = vunpack.c.0.s8 %v1059
    %v1061 = vlaneseq
    %v1062 = vshrl.u32 %v1061, 7
    %v1063 = vsub.s32 %v1060, %v1062
    %v1064 = vrot.slane %v1056, %v1063
    %1066 = vset.pattern.permute.xlu0 0
    %1067 = vperm.xlu0 %1066, %v542
    %v1068 = vpop.permute.xlu0 %1067
    %v1071 = vunpack.c.l.s4 839922192
    %v1072 = vunpack.c.0.s8 %v1071
    %v1073 = vlaneseq
    %v1074 = vshrl.u32 %v1073, 7
    %v1075 = vsub.s32 %v1072, %v1074
    %v1076 = vrot.slane %v1068, %v1075
    %1078 = vset.pattern.permute.xlu0 0
    %1079 = vperm.xlu0 %1078, %v543
    %v1080 = vpop.permute.xlu0 %1079
    %v1083 = vunpack.c.l.s4 839922192
    %v1084 = vunpack.c.0.s8 %v1083
    %v1085 = vlaneseq
    %v1086 = vshrl.u32 %v1085, 7
    %v1087 = vsub.s32 %v1084, %v1086
    %v1088 = vrot.slane %v1080, %v1087
    %1090 = vset.pattern.permute.xlu0 0
    %1091 = vperm.xlu0 %1090, %v544
    %v1092 = vpop.permute.xlu0 %1091
    %v1095 = vunpack.c.l.s4 839922192
    %v1096 = vunpack.c.0.s8 %v1095
    %v1097 = vlaneseq
    %v1098 = vshrl.u32 %v1097, 7
    %v1099 = vsub.s32 %v1096, %v1098
    %v1100 = vrot.slane %v1092, %v1099
    %1102 = vset.pattern.permute.xlu0 0
    %1103 = vperm.xlu0 %1102, %v545
    %v1104 = vpop.permute.xlu0 %1103
    %v1107 = vunpack.c.l.s4 839922192
    %v1108 = vunpack.c.0.s8 %v1107
    %v1109 = vlaneseq
    %v1110 = vshrl.u32 %v1109, 7
    %v1111 = vsub.s32 %v1108, %v1110
    %v1112 = vrot.slane %v1104, %v1111
    %1114 = vset.pattern.permute.xlu0 0
    %1115 = vperm.xlu0 %1114, %v546
    %v1116 = vpop.permute.xlu0 %1115
    %v1119 = vunpack.c.l.s4 839922192
    %v1120 = vunpack.c.0.s8 %v1119
    %v1121 = vlaneseq
    %v1122 = vshrl.u32 %v1121, 7
    %v1123 = vsub.s32 %v1120, %v1122
    %v1124 = vrot.slane %v1116, %v1123
    %1126 = vset.pattern.permute.xlu0 0
    %1127 = vperm.xlu0 %1126, %v547
    %v1128 = vpop.permute.xlu0 %1127
    %v1131 = vunpack.c.l.s4 839922192
    %v1132 = vunpack.c.0.s8 %v1131
    %v1133 = vlaneseq
    %v1134 = vshrl.u32 %v1133, 7
    %v1135 = vsub.s32 %v1132, %v1134
    %v1136 = vrot.slane %v1128, %v1135
    %1138 = vset.pattern.permute.xlu0 0
    %1139 = vperm.xlu0 %1138, %v548
    %v1140 = vpop.permute.xlu0 %1139
    %v1143 = vunpack.c.l.s4 839922192
    %v1144 = vunpack.c.0.s8 %v1143
    %v1145 = vlaneseq
    %v1146 = vshrl.u32 %v1145, 7
    %v1147 = vsub.s32 %v1144, %v1146
    %v1148 = vrot.slane %v1140, %v1147
    %1150 = vset.pattern.permute.xlu0 0
    %1151 = vperm.xlu0 %1150, %v549
    %v1152 = vpop.permute.xlu0 %1151
    %v1155 = vunpack.c.l.s4 839922192
    %v1156 = vunpack.c.0.s8 %v1155
    %v1157 = vlaneseq
    %v1158 = vshrl.u32 %v1157, 7
    %v1159 = vsub.s32 %v1156, %v1158
    %v1160 = vrot.slane %v1152, %v1159
    %1162 = vset.pattern.permute.xlu0 0
    %1163 = vperm.xlu0 %1162, %v550
    %v1164 = vpop.permute.xlu0 %1163
    %v1167 = vunpack.c.l.s4 839922192
    %v1168 = vunpack.c.0.s8 %v1167
    %v1169 = vlaneseq
    %v1170 = vshrl.u32 %v1169, 7
    %v1171 = vsub.s32 %v1168, %v1170
    %v1172 = vrot.slane %v1164, %v1171
    %1174 = vset.pattern.permute.xlu0 0
    %1175 = vperm.xlu0 %1174, %v551
    %v1176 = vpop.permute.xlu0 %1175
    %v1179 = vunpack.c.l.s4 839922192
    %v1180 = vunpack.c.0.s8 %v1179
    %v1181 = vlaneseq
    %v1182 = vshrl.u32 %v1181, 7
    %v1183 = vsub.s32 %v1180, %v1182
    %v1184 = vrot.slane %v1176, %v1183
    %1186 = vset.pattern.permute.xlu0 0
    %1187 = vperm.xlu0 %1186, %v552
    %v1188 = vpop.permute.xlu0 %1187
    %v1191 = vunpack.c.l.s4 839922192
    %v1192 = vunpack.c.0.s8 %v1191
    %v1193 = vlaneseq
    %v1194 = vshrl.u32 %v1193, 7
    %v1195 = vsub.s32 %v1192, %v1194
    %v1196 = vrot.slane %v1188, %v1195
    %1198 = vset.pattern.permute.xlu0 0
    %1199 = vperm.xlu0 %1198, %v553
    %v1200 = vpop.permute.xlu0 %1199
    %v1203 = vunpack.c.l.s4 839922192
    %v1204 = vunpack.c.0.s8 %v1203
    %v1205 = vlaneseq
    %v1206 = vshrl.u32 %v1205, 7
    %v1207 = vsub.s32 %v1204, %v1206
    %v1208 = vrot.slane %v1200, %v1207
    %1210 = vset.pattern.permute.xlu0 0
    %1211 = vperm.xlu0 %1210, %v554
    %v1212 = vpop.permute.xlu0 %1211
    %v1215 = vunpack.c.l.s4 839922192
    %v1216 = vunpack.c.0.s8 %v1215
    %v1217 = vlaneseq
    %v1218 = vshrl.u32 %v1217, 7
    %v1219 = vsub.s32 %v1216, %v1218
    %v1220 = vrot.slane %v1212, %v1219
    %1222 = vset.pattern.permute.xlu0 0
    %1223 = vperm.xlu0 %1222, %v555
    %v1224 = vpop.permute.xlu0 %1223
    %v1227 = vunpack.c.l.s4 839922192
    %v1228 = vunpack.c.0.s8 %v1227
    %v1229 = vlaneseq
    %v1230 = vshrl.u32 %v1229, 7
    %v1231 = vsub.s32 %v1228, %v1230
    %v1232 = vrot.slane %v1224, %v1231
    %1234 = vset.pattern.permute.xlu0 0
    %1235 = vperm.xlu0 %1234, %v556
    %v1236 = vpop.permute.xlu0 %1235
    %v1239 = vunpack.c.l.s4 839922192
    %v1240 = vunpack.c.0.s8 %v1239
    %v1241 = vlaneseq
    %v1242 = vshrl.u32 %v1241, 7
    %v1243 = vsub.s32 %v1240, %v1242
    %v1244 = vrot.slane %v1236, %v1243
    %1246 = vset.pattern.permute.xlu0 0
    %1247 = vperm.xlu0 %1246, %v557
    %v1248 = vpop.permute.xlu0 %1247
    %v1251 = vunpack.c.l.s4 839922192
    %v1252 = vunpack.c.0.s8 %v1251
    %v1253 = vlaneseq
    %v1254 = vshrl.u32 %v1253, 7
    %v1255 = vsub.s32 %v1252, %v1254
    %v1256 = vrot.slane %v1248, %v1255
    %1258 = vset.pattern.permute.xlu0 0
    %1259 = vperm.xlu0 %1258, %v558
    %v1260 = vpop.permute.xlu0 %1259
    %v1263 = vunpack.c.l.s4 839922192
    %v1264 = vunpack.c.0.s8 %v1263
    %v1265 = vlaneseq
    %v1266 = vshrl.u32 %v1265, 7
    %v1267 = vsub.s32 %v1264, %v1266
    %v1268 = vrot.slane %v1260, %v1267
    %1270 = vset.pattern.permute.xlu0 0
    %1271 = vperm.xlu0 %1270, %v559
    %v1272 = vpop.permute.xlu0 %1271
    %v1275 = vunpack.c.l.s4 839922192
    %v1276 = vunpack.c.0.s8 %v1275
    %v1277 = vlaneseq
    %v1278 = vshrl.u32 %v1277, 7
    %v1279 = vsub.s32 %v1276, %v1278
    %v1280 = vrot.slane %v1272, %v1279
    %1282 = vset.pattern.permute.xlu0 0
    %1283 = vperm.xlu0 %1282, %v560
    %v1284 = vpop.permute.xlu0 %1283
    %v1287 = vunpack.c.l.s4 839922192
    %v1288 = vunpack.c.0.s8 %v1287
    %v1289 = vlaneseq
    %v1290 = vshrl.u32 %v1289, 7
    %v1291 = vsub.s32 %v1288, %v1290
    %v1292 = vrot.slane %v1284, %v1291
    %1294 = vset.pattern.permute.xlu0 0
    %1295 = vperm.xlu0 %1294, %v561
    %v1296 = vpop.permute.xlu0 %1295
    %v1299 = vunpack.c.l.s4 839922192
    %v1300 = vunpack.c.0.s8 %v1299
    %v1301 = vlaneseq
    %v1302 = vshrl.u32 %v1301, 7
    %v1303 = vsub.s32 %v1300, %v1302
    %v1304 = vrot.slane %v1296, %v1303
    %1306 = vset.pattern.permute.xlu0 0
    %1307 = vperm.xlu0 %1306, %v562
    %v1308 = vpop.permute.xlu0 %1307
    %v1311 = vunpack.c.l.s4 839922192
    %v1312 = vunpack.c.0.s8 %v1311
    %v1313 = vlaneseq
    %v1314 = vshrl.u32 %v1313, 7
    %v1315 = vsub.s32 %v1312, %v1314
    %v1316 = vrot.slane %v1308, %v1315
    %1318 = vset.pattern.permute.xlu0 0
    %1319 = vperm.xlu0 %1318, %v563
    %v1320 = vpop.permute.xlu0 %1319
    %v1323 = vunpack.c.l.s4 839922192
    %v1324 = vunpack.c.0.s8 %v1323
    %v1325 = vlaneseq
    %v1326 = vshrl.u32 %v1325, 7
    %v1327 = vsub.s32 %v1324, %v1326
    %v1328 = vrot.slane %v1320, %v1327
    %1330 = vset.pattern.permute.xlu0 0
    %1331 = vperm.xlu0 %1330, %v564
    %v1332 = vpop.permute.xlu0 %1331
    %v1335 = vunpack.c.l.s4 839922192
    %v1336 = vunpack.c.0.s8 %v1335
    %v1337 = vlaneseq
    %v1338 = vshrl.u32 %v1337, 7
    %v1339 = vsub.s32 %v1336, %v1338
    %v1340 = vrot.slane %v1332, %v1339
    %1342 = vset.pattern.permute.xlu0 0
    %1343 = vperm.xlu0 %1342, %v565
    %v1344 = vpop.permute.xlu0 %1343
    %v1347 = vunpack.c.l.s4 839922192
    %v1348 = vunpack.c.0.s8 %v1347
    %v1349 = vlaneseq
    %v1350 = vshrl.u32 %v1349, 7
    %v1351 = vsub.s32 %v1348, %v1350
    %v1352 = vrot.slane %v1344, %v1351
    %1354 = vset.pattern.permute.xlu0 0
    %1355 = vperm.xlu0 %1354, %v566
    %v1356 = vpop.permute.xlu0 %1355
    %v1359 = vunpack.c.l.s4 839922192
    %v1360 = vunpack.c.0.s8 %v1359
    %v1361 = vlaneseq
    %v1362 = vshrl.u32 %v1361, 7
    %v1363 = vsub.s32 %v1360, %v1362
    %v1364 = vrot.slane %v1356, %v1363
    %1366 = vset.pattern.permute.xlu0 0
    %1367 = vperm.xlu0 %1366, %v567
    %v1368 = vpop.permute.xlu0 %1367
    %v1371 = vunpack.c.l.s4 839922192
    %v1372 = vunpack.c.0.s8 %v1371
    %v1373 = vlaneseq
    %v1374 = vshrl.u32 %v1373, 7
    %v1375 = vsub.s32 %v1372, %v1374
    %v1376 = vrot.slane %v1368, %v1375
    %1378 = vset.pattern.permute.xlu0 0
    %1379 = vperm.xlu0 %1378, %v568
    %v1380 = vpop.permute.xlu0 %1379
    %v1383 = vunpack.c.l.s4 839922192
    %v1384 = vunpack.c.0.s8 %v1383
    %v1385 = vlaneseq
    %v1386 = vshrl.u32 %v1385, 7
    %v1387 = vsub.s32 %v1384, %v1386
    %v1388 = vrot.slane %v1380, %v1387
    %1390 = vset.pattern.permute.xlu0 0
    %1391 = vperm.xlu0 %1390, %v569
    %v1392 = vpop.permute.xlu0 %1391
    %v1395 = vunpack.c.l.s4 839922192
    %v1396 = vunpack.c.0.s8 %v1395
    %v1397 = vlaneseq
    %v1398 = vshrl.u32 %v1397, 7
    %v1399 = vsub.s32 %v1396, %v1398
    %v1400 = vrot.slane %v1392, %v1399
    %1402 = vset.pattern.permute.xlu0 0
    %1403 = vperm.xlu0 %1402, %v570
    %v1404 = vpop.permute.xlu0 %1403
    %v1407 = vunpack.c.l.s4 839922192
    %v1408 = vunpack.c.0.s8 %v1407
    %v1409 = vlaneseq
    %v1410 = vshrl.u32 %v1409, 7
    %v1411 = vsub.s32 %v1408, %v1410
    %v1412 = vrot.slane %v1404, %v1411
    %1414 = vset.pattern.permute.xlu0 0
    %1415 = vperm.xlu0 %1414, %v571
    %v1416 = vpop.permute.xlu0 %1415
    %v1419 = vunpack.c.l.s4 839922192
    %v1420 = vunpack.c.0.s8 %v1419
    %v1421 = vlaneseq
    %v1422 = vshrl.u32 %v1421, 7
    %v1423 = vsub.s32 %v1420, %v1422
    %v1424 = vrot.slane %v1416, %v1423
    %1426 = vset.pattern.permute.xlu0 0
    %1427 = vperm.xlu0 %1426, %v572
    %v1428 = vpop.permute.xlu0 %1427
    %v1431 = vunpack.c.l.s4 839922192
    %v1432 = vunpack.c.0.s8 %v1431
    %v1433 = vlaneseq
    %v1434 = vshrl.u32 %v1433, 7
    %v1435 = vsub.s32 %v1432, %v1434
    %v1436 = vrot.slane %v1428, %v1435
    %1438 = vset.pattern.permute.xlu0 0
    %1439 = vperm.xlu0 %1438, %v573
    %v1440 = vpop.permute.xlu0 %1439
    %v1443 = vunpack.c.l.s4 839922192
    %v1444 = vunpack.c.0.s8 %v1443
    %v1445 = vlaneseq
    %v1446 = vshrl.u32 %v1445, 7
    %v1447 = vsub.s32 %v1444, %v1446
    %v1448 = vrot.slane %v1440, %v1447
    %1450 = vset.pattern.permute.xlu0 0
    %1451 = vperm.xlu0 %1450, %v574
    %v1452 = vpop.permute.xlu0 %1451
    %v1455 = vunpack.c.l.s4 839922192
    %v1456 = vunpack.c.0.s8 %v1455
    %v1457 = vlaneseq
    %v1458 = vshrl.u32 %v1457, 7
    %v1459 = vsub.s32 %v1456, %v1458
    %v1460 = vrot.slane %v1452, %v1459
    %1462 = vset.pattern.permute.xlu0 0
    %1463 = vperm.xlu0 %1462, %v575
    %v1464 = vpop.permute.xlu0 %1463
    %v1467 = vunpack.c.l.s4 839922192
    %v1468 = vunpack.c.0.s8 %v1467
    %v1469 = vlaneseq
    %v1470 = vshrl.u32 %v1469, 7
    %v1471 = vsub.s32 %v1468, %v1470
    %v1472 = vrot.slane %v1464, %v1471
    %1474 = vset.pattern.permute.xlu0 0
    %1475 = vperm.xlu0 %1474, %v576
    %v1476 = vpop.permute.xlu0 %1475
    %v1479 = vunpack.c.l.s4 839922192
    %v1480 = vunpack.c.0.s8 %v1479
    %v1481 = vlaneseq
    %v1482 = vshrl.u32 %v1481, 7
    %v1483 = vsub.s32 %v1480, %v1482
    %v1484 = vrot.slane %v1476, %v1483
    %1486 = vset.pattern.permute.xlu0 0
    %1487 = vperm.xlu0 %1486, %v577
    %v1488 = vpop.permute.xlu0 %1487
    %v1491 = vunpack.c.l.s4 839922192
    %v1492 = vunpack.c.0.s8 %v1491
    %v1493 = vlaneseq
    %v1494 = vshrl.u32 %v1493, 7
    %v1495 = vsub.s32 %v1492, %v1494
    %v1496 = vrot.slane %v1488, %v1495
    %1498 = vset.pattern.permute.xlu0 0
    %1499 = vperm.xlu0 %1498, %v578
    %v1500 = vpop.permute.xlu0 %1499
    %v1503 = vunpack.c.l.s4 839922192
    %v1504 = vunpack.c.0.s8 %v1503
    %v1505 = vlaneseq
    %v1506 = vshrl.u32 %v1505, 7
    %v1507 = vsub.s32 %v1504, %v1506
    %v1508 = vrot.slane %v1500, %v1507
    %1510 = vset.pattern.permute.xlu0 0
    %1511 = vperm.xlu0 %1510, %v579
    %v1512 = vpop.permute.xlu0 %1511
    %v1515 = vunpack.c.l.s4 839922192
    %v1516 = vunpack.c.0.s8 %v1515
    %v1517 = vlaneseq
    %v1518 = vshrl.u32 %v1517, 7
    %v1519 = vsub.s32 %v1516, %v1518
    %v1520 = vrot.slane %v1512, %v1519
    %1522 = vset.pattern.permute.xlu0 0
    %1523 = vperm.xlu0 %1522, %v580
    %v1524 = vpop.permute.xlu0 %1523
    %v1527 = vunpack.c.l.s4 839922192
    %v1528 = vunpack.c.0.s8 %v1527
    %v1529 = vlaneseq
    %v1530 = vshrl.u32 %v1529, 7
    %v1531 = vsub.s32 %v1528, %v1530
    %v1532 = vrot.slane %v1524, %v1531
    %1534 = vset.pattern.permute.xlu0 0
    %1535 = vperm.xlu0 %1534, %v581
    %v1536 = vpop.permute.xlu0 %1535
    %v1539 = vunpack.c.l.s4 839922192
    %v1540 = vunpack.c.0.s8 %v1539
    %v1541 = vlaneseq
    %v1542 = vshrl.u32 %v1541, 7
    %v1543 = vsub.s32 %v1540, %v1542
    %v1544 = vrot.slane %v1536, %v1543
    %1546 = vset.pattern.permute.xlu0 0
    %1547 = vperm.xlu0 %1546, %v582
    %v1548 = vpop.permute.xlu0 %1547
    %v1551 = vunpack.c.l.s4 839922192
    %v1552 = vunpack.c.0.s8 %v1551
    %v1553 = vlaneseq
    %v1554 = vshrl.u32 %v1553, 7
    %v1555 = vsub.s32 %v1552, %v1554
    %v1556 = vrot.slane %v1548, %v1555
    %1558 = vset.pattern.permute.xlu0 0
    %1559 = vperm.xlu0 %1558, %v583
    %v1560 = vpop.permute.xlu0 %1559
    %v1563 = vunpack.c.l.s4 839922192
    %v1564 = vunpack.c.0.s8 %v1563
    %v1565 = vlaneseq
    %v1566 = vshrl.u32 %v1565, 7
    %v1567 = vsub.s32 %v1564, %v1566
    %v1568 = vrot.slane %v1560, %v1567
    %1570 = vset.pattern.permute.xlu0 0
    %1571 = vperm.xlu0 %1570, %v584
    %v1572 = vpop.permute.xlu0 %1571
    %v1575 = vunpack.c.l.s4 839922192
    %v1576 = vunpack.c.0.s8 %v1575
    %v1577 = vlaneseq
    %v1578 = vshrl.u32 %v1577, 7
    %v1579 = vsub.s32 %v1576, %v1578
    %v1580 = vrot.slane %v1572, %v1579
    %1582 = vset.pattern.permute.xlu0 0
    %1583 = vperm.xlu0 %1582, %v585
    %v1584 = vpop.permute.xlu0 %1583
    %v1587 = vunpack.c.l.s4 839922192
    %v1588 = vunpack.c.0.s8 %v1587
    %v1589 = vlaneseq
    %v1590 = vshrl.u32 %v1589, 7
    %v1591 = vsub.s32 %v1588, %v1590
    %v1592 = vrot.slane %v1584, %v1591
    %1594 = vset.pattern.permute.xlu0 0
    %1595 = vperm.xlu0 %1594, %v586
    %v1596 = vpop.permute.xlu0 %1595
    %v1599 = vunpack.c.l.s4 839922192
    %v1600 = vunpack.c.0.s8 %v1599
    %v1601 = vlaneseq
    %v1602 = vshrl.u32 %v1601, 7
    %v1603 = vsub.s32 %v1600, %v1602
    %v1604 = vrot.slane %v1596, %v1603
    %1606 = vset.pattern.permute.xlu0 0
    %1607 = vperm.xlu0 %1606, %v587
    %v1608 = vpop.permute.xlu0 %1607
    %v1611 = vunpack.c.l.s4 839922192
    %v1612 = vunpack.c.0.s8 %v1611
    %v1613 = vlaneseq
    %v1614 = vshrl.u32 %v1613, 7
    %v1615 = vsub.s32 %v1612, %v1614
    %v1616 = vrot.slane %v1608, %v1615
    %1618 = vset.pattern.permute.xlu0 0
    %1619 = vperm.xlu0 %1618, %v588
    %v1620 = vpop.permute.xlu0 %1619
    %v1623 = vunpack.c.l.s4 839922192
    %v1624 = vunpack.c.0.s8 %v1623
    %v1625 = vlaneseq
    %v1626 = vshrl.u32 %v1625, 7
    %v1627 = vsub.s32 %v1624, %v1626
    %v1628 = vrot.slane %v1620, %v1627
    %1630 = vset.pattern.permute.xlu0 0
    %1631 = vperm.xlu0 %1630, %v589
    %v1632 = vpop.permute.xlu0 %1631
    %v1635 = vunpack.c.l.s4 839922192
    %v1636 = vunpack.c.0.s8 %v1635
    %v1637 = vlaneseq
    %v1638 = vshrl.u32 %v1637, 7
    %v1639 = vsub.s32 %v1636, %v1638
    %v1640 = vrot.slane %v1632, %v1639
    %1642 = vset.pattern.permute.xlu0 0
    %1643 = vperm.xlu0 %1642, %v590
    %v1644 = vpop.permute.xlu0 %1643
    %v1647 = vunpack.c.l.s4 839922192
    %v1648 = vunpack.c.0.s8 %v1647
    %v1649 = vlaneseq
    %v1650 = vshrl.u32 %v1649, 7
    %v1651 = vsub.s32 %v1648, %v1650
    %v1652 = vrot.slane %v1644, %v1651
    %1654 = vset.pattern.permute.xlu0 0
    %1655 = vperm.xlu0 %1654, %v591
    %v1656 = vpop.permute.xlu0 %1655
    %v1659 = vunpack.c.l.s4 839922192
    %v1660 = vunpack.c.0.s8 %v1659
    %v1661 = vlaneseq
    %v1662 = vshrl.u32 %v1661, 7
    %v1663 = vsub.s32 %v1660, %v1662
    %v1664 = vrot.slane %v1656, %v1663
    %1666 = vset.pattern.permute.xlu0 0
    %1667 = vperm.xlu0 %1666, %v592
    %v1668 = vpop.permute.xlu0 %1667
    %v1671 = vunpack.c.l.s4 839922192
    %v1672 = vunpack.c.0.s8 %v1671
    %v1673 = vlaneseq
    %v1674 = vshrl.u32 %v1673, 7
    %v1675 = vsub.s32 %v1672, %v1674
    %v1676 = vrot.slane %v1668, %v1675
    %1678 = vset.pattern.permute.xlu0 0
    %1679 = vperm.xlu0 %1678, %v593
    %v1680 = vpop.permute.xlu0 %1679
    %v1683 = vunpack.c.l.s4 839922192
    %v1684 = vunpack.c.0.s8 %v1683
    %v1685 = vlaneseq
    %v1686 = vshrl.u32 %v1685, 7
    %v1687 = vsub.s32 %v1684, %v1686
    %v1688 = vrot.slane %v1680, %v1687
    %1690 = vset.pattern.permute.xlu0 0
    %1691 = vperm.xlu0 %1690, %v594
    %v1692 = vpop.permute.xlu0 %1691
    %v1695 = vunpack.c.l.s4 839922192
    %v1696 = vunpack.c.0.s8 %v1695
    %v1697 = vlaneseq
    %v1698 = vshrl.u32 %v1697, 7
    %v1699 = vsub.s32 %v1696, %v1698
    %v1700 = vrot.slane %v1692, %v1699
    %1702 = vset.pattern.permute.xlu0 0
    %1703 = vperm.xlu0 %1702, %v595
    %v1704 = vpop.permute.xlu0 %1703
    %v1707 = vunpack.c.l.s4 839922192
    %v1708 = vunpack.c.0.s8 %v1707
    %v1709 = vlaneseq
    %v1710 = vshrl.u32 %v1709, 7
    %v1711 = vsub.s32 %v1708, %v1710
    %v1712 = vrot.slane %v1704, %v1711
    %1714 = vset.pattern.permute.xlu0 0
    %1715 = vperm.xlu0 %1714, %v596
    %v1716 = vpop.permute.xlu0 %1715
    %v1719 = vunpack.c.l.s4 839922192
    %v1720 = vunpack.c.0.s8 %v1719
    %v1721 = vlaneseq
    %v1722 = vshrl.u32 %v1721, 7
    %v1723 = vsub.s32 %v1720, %v1722
    %v1724 = vrot.slane %v1716, %v1723
    %1726 = vset.pattern.permute.xlu0 0
    %1727 = vperm.xlu0 %1726, %v597
    %v1728 = vpop.permute.xlu0 %1727
    %v1731 = vunpack.c.l.s4 839922192
    %v1732 = vunpack.c.0.s8 %v1731
    %v1733 = vlaneseq
    %v1734 = vshrl.u32 %v1733, 7
    %v1735 = vsub.s32 %v1732, %v1734
    %v1736 = vrot.slane %v1728, %v1735
    %1738 = vset.pattern.permute.xlu0 0
    %1739 = vperm.xlu0 %1738, %v598
    %v1740 = vpop.permute.xlu0 %1739
    %v1743 = vunpack.c.l.s4 839922192
    %v1744 = vunpack.c.0.s8 %v1743
    %v1745 = vlaneseq
    %v1746 = vshrl.u32 %v1745, 7
    %v1747 = vsub.s32 %v1744, %v1746
    %v1748 = vrot.slane %v1740, %v1747
    %1750 = vset.pattern.permute.xlu0 0
    %1751 = vperm.xlu0 %1750, %v599
    %v1752 = vpop.permute.xlu0 %1751
    %v1755 = vunpack.c.l.s4 839922192
    %v1756 = vunpack.c.0.s8 %v1755
    %v1757 = vlaneseq
    %v1758 = vshrl.u32 %v1757, 7
    %v1759 = vsub.s32 %v1756, %v1758
    %v1760 = vrot.slane %v1752, %v1759
    %1762 = vset.pattern.permute.xlu0 0
    %1763 = vperm.xlu0 %1762, %v600
    %v1764 = vpop.permute.xlu0 %1763
    %v1767 = vunpack.c.l.s4 839922192
    %v1768 = vunpack.c.0.s8 %v1767
    %v1769 = vlaneseq
    %v1770 = vshrl.u32 %v1769, 7
    %v1771 = vsub.s32 %v1768, %v1770
    %v1772 = vrot.slane %v1764, %v1771
    %1774 = vset.pattern.permute.xlu0 0
    %1775 = vperm.xlu0 %1774, %v601
    %v1776 = vpop.permute.xlu0 %1775
    %v1779 = vunpack.c.l.s4 839922192
    %v1780 = vunpack.c.0.s8 %v1779
    %v1781 = vlaneseq
    %v1782 = vshrl.u32 %v1781, 7
    %v1783 = vsub.s32 %v1780, %v1782
    %v1784 = vrot.slane %v1776, %v1783
    %1786 = vset.pattern.permute.xlu0 0
    %1787 = vperm.xlu0 %1786, %v602
    %v1788 = vpop.permute.xlu0 %1787
    %v1791 = vunpack.c.l.s4 839922192
    %v1792 = vunpack.c.0.s8 %v1791
    %v1793 = vlaneseq
    %v1794 = vshrl.u32 %v1793, 7
    %v1795 = vsub.s32 %v1792, %v1794
    %v1796 = vrot.slane %v1788, %v1795
    %1798 = vset.pattern.permute.xlu0 0
    %1799 = vperm.xlu0 %1798, %v603
    %v1800 = vpop.permute.xlu0 %1799
    %v1803 = vunpack.c.l.s4 839922192
    %v1804 = vunpack.c.0.s8 %v1803
    %v1805 = vlaneseq
    %v1806 = vshrl.u32 %v1805, 7
    %v1807 = vsub.s32 %v1804, %v1806
    %v1808 = vrot.slane %v1800, %v1807
    %1810 = vset.pattern.permute.xlu0 0
    %1811 = vperm.xlu0 %1810, %v604
    %v1812 = vpop.permute.xlu0 %1811
    %v1815 = vunpack.c.l.s4 839922192
    %v1816 = vunpack.c.0.s8 %v1815
    %v1817 = vlaneseq
    %v1818 = vshrl.u32 %v1817, 7
    %v1819 = vsub.s32 %v1816, %v1818
    %v1820 = vrot.slane %v1812, %v1819
    %1822 = vset.pattern.permute.xlu0 0
    %1823 = vperm.xlu0 %1822, %v605
    %v1824 = vpop.permute.xlu0 %1823
    %v1827 = vunpack.c.l.s4 839922192
    %v1828 = vunpack.c.0.s8 %v1827
    %v1829 = vlaneseq
    %v1830 = vshrl.u32 %v1829, 7
    %v1831 = vsub.s32 %v1828, %v1830
    %v1832 = vrot.slane %v1824, %v1831
    %1834 = vset.pattern.permute.xlu0 0
    %1835 = vperm.xlu0 %1834, %v606
    %v1836 = vpop.permute.xlu0 %1835
    %v1839 = vunpack.c.l.s4 839922192
    %v1840 = vunpack.c.0.s8 %v1839
    %v1841 = vlaneseq
    %v1842 = vshrl.u32 %v1841, 7
    %v1843 = vsub.s32 %v1840, %v1842
    %v1844 = vrot.slane %v1836, %v1843
    %1846 = vset.pattern.permute.xlu0 0
    %1847 = vperm.xlu0 %1846, %v607
    %v1848 = vpop.permute.xlu0 %1847
    %v1851 = vunpack.c.l.s4 839922192
    %v1852 = vunpack.c.0.s8 %v1851
    %v1853 = vlaneseq
    %v1854 = vshrl.u32 %v1853, 7
    %v1855 = vsub.s32 %v1852, %v1854
    %v1856 = vrot.slane %v1848, %v1855
    %1858 = vset.pattern.permute.xlu0 0
    %1859 = vperm.xlu0 %1858, %v608
    %v1860 = vpop.permute.xlu0 %1859
    %v1863 = vunpack.c.l.s4 839922192
    %v1864 = vunpack.c.0.s8 %v1863
    %v1865 = vlaneseq
    %v1866 = vshrl.u32 %v1865, 7
    %v1867 = vsub.s32 %v1864, %v1866
    %v1868 = vrot.slane %v1860, %v1867
    %1870 = vset.pattern.permute.xlu0 0
    %1871 = vperm.xlu0 %1870, %v609
    %v1872 = vpop.permute.xlu0 %1871
    %v1875 = vunpack.c.l.s4 839922192
    %v1876 = vunpack.c.0.s8 %v1875
    %v1877 = vlaneseq
    %v1878 = vshrl.u32 %v1877, 7
    %v1879 = vsub.s32 %v1876, %v1878
    %v1880 = vrot.slane %v1872, %v1879
    %1882 = vset.pattern.permute.xlu0 0
    %1883 = vperm.xlu0 %1882, %v610
    %v1884 = vpop.permute.xlu0 %1883
    %v1887 = vunpack.c.l.s4 839922192
    %v1888 = vunpack.c.0.s8 %v1887
    %v1889 = vlaneseq
    %v1890 = vshrl.u32 %v1889, 7
    %v1891 = vsub.s32 %v1888, %v1890
    %v1892 = vrot.slane %v1884, %v1891
    %1894 = vset.pattern.permute.xlu0 0
    %1895 = vperm.xlu0 %1894, %v611
    %v1896 = vpop.permute.xlu0 %1895
    %v1899 = vunpack.c.l.s4 839922192
    %v1900 = vunpack.c.0.s8 %v1899
    %v1901 = vlaneseq
    %v1902 = vshrl.u32 %v1901, 7
    %v1903 = vsub.s32 %v1900, %v1902
    %v1904 = vrot.slane %v1896, %v1903
    %1906 = vset.pattern.permute.xlu0 0
    %1907 = vperm.xlu0 %1906, %v612
    %v1908 = vpop.permute.xlu0 %1907
    %v1911 = vunpack.c.l.s4 839922192
    %v1912 = vunpack.c.0.s8 %v1911
    %v1913 = vlaneseq
    %v1914 = vshrl.u32 %v1913, 7
    %v1915 = vsub.s32 %v1912, %v1914
    %v1916 = vrot.slane %v1908, %v1915
    %1918 = vset.pattern.permute.xlu0 0
    %1919 = vperm.xlu0 %1918, %v613
    %v1920 = vpop.permute.xlu0 %1919
    %v1923 = vunpack.c.l.s4 839922192
    %v1924 = vunpack.c.0.s8 %v1923
    %v1925 = vlaneseq
    %v1926 = vshrl.u32 %v1925, 7
    %v1927 = vsub.s32 %v1924, %v1926
    %v1928 = vrot.slane %v1920, %v1927
    %1930 = vset.pattern.permute.xlu0 0
    %1931 = vperm.xlu0 %1930, %v614
    %v1932 = vpop.permute.xlu0 %1931
    %v1935 = vunpack.c.l.s4 839922192
    %v1936 = vunpack.c.0.s8 %v1935
    %v1937 = vlaneseq
    %v1938 = vshrl.u32 %v1937, 7
    %v1939 = vsub.s32 %v1936, %v1938
    %v1940 = vrot.slane %v1932, %v1939
    %1942 = vset.pattern.permute.xlu0 0
    %1943 = vperm.xlu0 %1942, %v615
    %v1944 = vpop.permute.xlu0 %1943
    %v1947 = vunpack.c.l.s4 839922192
    %v1948 = vunpack.c.0.s8 %v1947
    %v1949 = vlaneseq
    %v1950 = vshrl.u32 %v1949, 7
    %v1951 = vsub.s32 %v1948, %v1950
    %v1952 = vrot.slane %v1944, %v1951
    %1954 = vset.pattern.permute.xlu0 0
    %1955 = vperm.xlu0 %1954, %v616
    %v1956 = vpop.permute.xlu0 %1955
    %v1959 = vunpack.c.l.s4 839922192
    %v1960 = vunpack.c.0.s8 %v1959
    %v1961 = vlaneseq
    %v1962 = vshrl.u32 %v1961, 7
    %v1963 = vsub.s32 %v1960, %v1962
    %v1964 = vrot.slane %v1956, %v1963
    %1966 = vset.pattern.permute.xlu0 0
    %1967 = vperm.xlu0 %1966, %v617
    %v1968 = vpop.permute.xlu0 %1967
    %v1971 = vunpack.c.l.s4 839922192
    %v1972 = vunpack.c.0.s8 %v1971
    %v1973 = vlaneseq
    %v1974 = vshrl.u32 %v1973, 7
    %v1975 = vsub.s32 %v1972, %v1974
    %v1976 = vrot.slane %v1968, %v1975
    %1978 = vset.pattern.permute.xlu0 0
    %1979 = vperm.xlu0 %1978, %v618
    %v1980 = vpop.permute.xlu0 %1979
    %v1983 = vunpack.c.l.s4 839922192
    %v1984 = vunpack.c.0.s8 %v1983
    %v1985 = vlaneseq
    %v1986 = vshrl.u32 %v1985, 7
    %v1987 = vsub.s32 %v1984, %v1986
    %v1988 = vrot.slane %v1980, %v1987
    %1990 = vset.pattern.permute.xlu0 0
    %1991 = vperm.xlu0 %1990, %v619
    %v1992 = vpop.permute.xlu0 %1991
    %v1995 = vunpack.c.l.s4 839922192
    %v1996 = vunpack.c.0.s8 %v1995
    %v1997 = vlaneseq
    %v1998 = vshrl.u32 %v1997, 7
    %v1999 = vsub.s32 %v1996, %v1998
    %v2000 = vrot.slane %v1992, %v1999
    %2002 = vset.pattern.permute.xlu0 0
    %2003 = vperm.xlu0 %2002, %v620
    %v2004 = vpop.permute.xlu0 %2003
    %v2007 = vunpack.c.l.s4 839922192
    %v2008 = vunpack.c.0.s8 %v2007
    %v2009 = vlaneseq
    %v2010 = vshrl.u32 %v2009, 7
    %v2011 = vsub.s32 %v2008, %v2010
    %v2012 = vrot.slane %v2004, %v2011
    %2014 = vset.pattern.permute.xlu0 0
    %2015 = vperm.xlu0 %2014, %v621
    %v2016 = vpop.permute.xlu0 %2015
    %v2019 = vunpack.c.l.s4 839922192
    %v2020 = vunpack.c.0.s8 %v2019
    %v2021 = vlaneseq
    %v2022 = vshrl.u32 %v2021, 7
    %v2023 = vsub.s32 %v2020, %v2022
    %v2024 = vrot.slane %v2016, %v2023
    %2026 = vset.pattern.permute.xlu0 0
    %2027 = vperm.xlu0 %2026, %v622
    %v2028 = vpop.permute.xlu0 %2027
    %v2031 = vunpack.c.l.s4 839922192
    %v2032 = vunpack.c.0.s8 %v2031
    %v2033 = vlaneseq
    %v2034 = vshrl.u32 %v2033, 7
    %v2035 = vsub.s32 %v2032, %v2034
    %v2036 = vrot.slane %v2028, %v2035
    %2038 = vset.pattern.permute.xlu0 0
    %2039 = vperm.xlu0 %2038, %v623
    %v2040 = vpop.permute.xlu0 %2039
    %v2043 = vunpack.c.l.s4 839922192
    %v2044 = vunpack.c.0.s8 %v2043
    %v2045 = vlaneseq
    %v2046 = vshrl.u32 %v2045, 7
    %v2047 = vsub.s32 %v2044, %v2046
    %v2048 = vrot.slane %v2040, %v2047
    %2050 = vset.pattern.permute.xlu0 0
    %2051 = vperm.xlu0 %2050, %v624
    %v2052 = vpop.permute.xlu0 %2051
    %v2055 = vunpack.c.l.s4 839922192
    %v2056 = vunpack.c.0.s8 %v2055
    %v2057 = vlaneseq
    %v2058 = vshrl.u32 %v2057, 7
    %v2059 = vsub.s32 %v2056, %v2058
    %v2060 = vrot.slane %v2052, %v2059
    %2062 = vset.pattern.permute.xlu0 0
    %2063 = vperm.xlu0 %2062, %v625
    %v2064 = vpop.permute.xlu0 %2063
    %v2067 = vunpack.c.l.s4 839922192
    %v2068 = vunpack.c.0.s8 %v2067
    %v2069 = vlaneseq
    %v2070 = vshrl.u32 %v2069, 7
    %v2071 = vsub.s32 %v2068, %v2070
    %v2072 = vrot.slane %v2064, %v2071
    %2074 = vset.pattern.permute.xlu0 0
    %2075 = vperm.xlu0 %2074, %v626
    %v2076 = vpop.permute.xlu0 %2075
    %v2079 = vunpack.c.l.s4 839922192
    %v2080 = vunpack.c.0.s8 %v2079
    %v2081 = vlaneseq
    %v2082 = vshrl.u32 %v2081, 7
    %v2083 = vsub.s32 %v2080, %v2082
    %v2084 = vrot.slane %v2076, %v2083
    %2086 = vset.pattern.permute.xlu0 0
    %2087 = vperm.xlu0 %2086, %v627
    %v2088 = vpop.permute.xlu0 %2087
    %v2091 = vunpack.c.l.s4 839922192
    %v2092 = vunpack.c.0.s8 %v2091
    %v2093 = vlaneseq
    %v2094 = vshrl.u32 %v2093, 7
    %v2095 = vsub.s32 %v2092, %v2094
    %v2096 = vrot.slane %v2088, %v2095
    %2098 = vset.pattern.permute.xlu0 0
    %2099 = vperm.xlu0 %2098, %v628
    %v2100 = vpop.permute.xlu0 %2099
    %v2103 = vunpack.c.l.s4 839922192
    %v2104 = vunpack.c.0.s8 %v2103
    %v2105 = vlaneseq
    %v2106 = vshrl.u32 %v2105, 7
    %v2107 = vsub.s32 %v2104, %v2106
    %v2108 = vrot.slane %v2100, %v2107
    %2110 = vset.pattern.permute.xlu0 0
    %2111 = vperm.xlu0 %2110, %v629
    %v2112 = vpop.permute.xlu0 %2111
    %v2115 = vunpack.c.l.s4 839922192
    %v2116 = vunpack.c.0.s8 %v2115
    %v2117 = vlaneseq
    %v2118 = vshrl.u32 %v2117, 7
    %v2119 = vsub.s32 %v2116, %v2118
    %v2120 = vrot.slane %v2112, %v2119
    %2122 = vset.pattern.permute.xlu0 0
    %2123 = vperm.xlu0 %2122, %v630
    %v2124 = vpop.permute.xlu0 %2123
    %v2127 = vunpack.c.l.s4 839922192
    %v2128 = vunpack.c.0.s8 %v2127
    %v2129 = vlaneseq
    %v2130 = vshrl.u32 %v2129, 7
    %v2131 = vsub.s32 %v2128, %v2130
    %v2132 = vrot.slane %v2124, %v2131
    %2134 = vset.pattern.permute.xlu0 0
    %2135 = vperm.xlu0 %2134, %v631
    %v2136 = vpop.permute.xlu0 %2135
    %v2139 = vunpack.c.l.s4 839922192
    %v2140 = vunpack.c.0.s8 %v2139
    %v2141 = vlaneseq
    %v2142 = vshrl.u32 %v2141, 7
    %v2143 = vsub.s32 %v2140, %v2142
    %v2144 = vrot.slane %v2136, %v2143
    %2146 = vset.pattern.permute.xlu0 0
    %2147 = vperm.xlu0 %2146, %v632
    %v2148 = vpop.permute.xlu0 %2147
    %v2151 = vunpack.c.l.s4 839922192
    %v2152 = vunpack.c.0.s8 %v2151
    %v2153 = vlaneseq
    %v2154 = vshrl.u32 %v2153, 7
    %v2155 = vsub.s32 %v2152, %v2154
    %v2156 = vrot.slane %v2148, %v2155
    %2158 = vset.pattern.permute.xlu0 0
    %2159 = vperm.xlu0 %2158, %v633
    %v2160 = vpop.permute.xlu0 %2159
    %v2163 = vunpack.c.l.s4 839922192
    %v2164 = vunpack.c.0.s8 %v2163
    %v2165 = vlaneseq
    %v2166 = vshrl.u32 %v2165, 7
    %v2167 = vsub.s32 %v2164, %v2166
    %v2168 = vrot.slane %v2160, %v2167
    %2170 = vset.pattern.permute.xlu0 0
    %2171 = vperm.xlu0 %2170, %v634
    %v2172 = vpop.permute.xlu0 %2171
    %v2175 = vunpack.c.l.s4 839922192
    %v2176 = vunpack.c.0.s8 %v2175
    %v2177 = vlaneseq
    %v2178 = vshrl.u32 %v2177, 7
    %v2179 = vsub.s32 %v2176, %v2178
    %v2180 = vrot.slane %v2172, %v2179
    %2182 = vset.pattern.permute.xlu0 0
    %2183 = vperm.xlu0 %2182, %v635
    %v2184 = vpop.permute.xlu0 %2183
    %v2187 = vunpack.c.l.s4 839922192
    %v2188 = vunpack.c.0.s8 %v2187
    %v2189 = vlaneseq
    %v2190 = vshrl.u32 %v2189, 7
    %v2191 = vsub.s32 %v2188, %v2190
    %v2192 = vrot.slane %v2184, %v2191
    %2194 = vset.pattern.permute.xlu0 0
    %2195 = vperm.xlu0 %2194, %v636
    %v2196 = vpop.permute.xlu0 %2195
    %v2199 = vunpack.c.l.s4 839922192
    %v2200 = vunpack.c.0.s8 %v2199
    %v2201 = vlaneseq
    %v2202 = vshrl.u32 %v2201, 7
    %v2203 = vsub.s32 %v2200, %v2202
    %v2204 = vrot.slane %v2196, %v2203
    %2206 = vset.pattern.permute.xlu0 0
    %2207 = vperm.xlu0 %2206, %v637
    %v2208 = vpop.permute.xlu0 %2207
    %v2211 = vunpack.c.l.s4 839922192
    %v2212 = vunpack.c.0.s8 %v2211
    %v2213 = vlaneseq
    %v2214 = vshrl.u32 %v2213, 7
    %v2215 = vsub.s32 %v2212, %v2214
    %v2216 = vrot.slane %v2208, %v2215
    %2218 = vset.pattern.permute.xlu0 0
    %2219 = vperm.xlu0 %2218, %v638
    %v2220 = vpop.permute.xlu0 %2219
    %v2223 = vunpack.c.l.s4 839922192
    %v2224 = vunpack.c.0.s8 %v2223
    %v2225 = vlaneseq
    %v2226 = vshrl.u32 %v2225, 7
    %v2227 = vsub.s32 %v2224, %v2226
    %v2228 = vrot.slane %v2220, %v2227
    %2230 = vset.pattern.permute.xlu0 0
    %2231 = vperm.xlu0 %2230, %v639
    %v2232 = vpop.permute.xlu0 %2231
    %v2235 = vunpack.c.l.s4 839922192
    %v2236 = vunpack.c.0.s8 %v2235
    %v2237 = vlaneseq
    %v2238 = vshrl.u32 %v2237, 7
    %v2239 = vsub.s32 %v2236, %v2238
    %v2240 = vrot.slane %v2232, %v2239
    %2242 = vset.pattern.permute.xlu0 0
    %2243 = vperm.xlu0 %2242, %v640
    %v2244 = vpop.permute.xlu0 %2243
    %v2247 = vunpack.c.l.s4 839922192
    %v2248 = vunpack.c.0.s8 %v2247
    %v2249 = vlaneseq
    %v2250 = vshrl.u32 %v2249, 7
    %v2251 = vsub.s32 %v2248, %v2250
    %v2252 = vrot.slane %v2244, %v2251
    %2254 = vset.pattern.permute.xlu0 0
    %2255 = vperm.xlu0 %2254, %v641
    %v2256 = vpop.permute.xlu0 %2255
    %v2259 = vunpack.c.l.s4 839922192
    %v2260 = vunpack.c.0.s8 %v2259
    %v2261 = vlaneseq
    %v2262 = vshrl.u32 %v2261, 7
    %v2263 = vsub.s32 %v2260, %v2262
    %v2264 = vrot.slane %v2256, %v2263
    %2266 = vset.pattern.permute.xlu0 0
    %2267 = vperm.xlu0 %2266, %v642
    %v2268 = vpop.permute.xlu0 %2267
    %v2271 = vunpack.c.l.s4 839922192
    %v2272 = vunpack.c.0.s8 %v2271
    %v2273 = vlaneseq
    %v2274 = vshrl.u32 %v2273, 7
    %v2275 = vsub.s32 %v2272, %v2274
    %v2276 = vrot.slane %v2268, %v2275
    %2278 = vset.pattern.permute.xlu0 0
    %2279 = vperm.xlu0 %2278, %v643
    %v2280 = vpop.permute.xlu0 %2279
    %v2283 = vunpack.c.l.s4 839922192
    %v2284 = vunpack.c.0.s8 %v2283
    %v2285 = vlaneseq
    %v2286 = vshrl.u32 %v2285, 7
    %v2287 = vsub.s32 %v2284, %v2286
    %v2288 = vrot.slane %v2280, %v2287
    %2290 = vset.pattern.permute.xlu0 0
    %2291 = vperm.xlu0 %2290, %v644
    %v2292 = vpop.permute.xlu0 %2291
    %v2295 = vunpack.c.l.s4 839922192
    %v2296 = vunpack.c.0.s8 %v2295
    %v2297 = vlaneseq
    %v2298 = vshrl.u32 %v2297, 7
    %v2299 = vsub.s32 %v2296, %v2298
    %v2300 = vrot.slane %v2292, %v2299
    %2302 = vset.pattern.permute.xlu0 0
    %2303 = vperm.xlu0 %2302, %v645
    %v2304 = vpop.permute.xlu0 %2303
    %v2307 = vunpack.c.l.s4 839922192
    %v2308 = vunpack.c.0.s8 %v2307
    %v2309 = vlaneseq
    %v2310 = vshrl.u32 %v2309, 7
    %v2311 = vsub.s32 %v2308, %v2310
    %v2312 = vrot.slane %v2304, %v2311
    %2314 = vset.pattern.permute.xlu0 0
    %2315 = vperm.xlu0 %2314, %v646
    %v2316 = vpop.permute.xlu0 %2315
    %v2319 = vunpack.c.l.s4 839922192
    %v2320 = vunpack.c.0.s8 %v2319
    %v2321 = vlaneseq
    %v2322 = vshrl.u32 %v2321, 7
    %v2323 = vsub.s32 %v2320, %v2322
    %v2324 = vrot.slane %v2316, %v2323
    %2326 = vset.pattern.permute.xlu0 0
    %2327 = vperm.xlu0 %2326, %v647
    %v2328 = vpop.permute.xlu0 %2327
    %v2331 = vunpack.c.l.s4 839922192
    %v2332 = vunpack.c.0.s8 %v2331
    %v2333 = vlaneseq
    %v2334 = vshrl.u32 %v2333, 7
    %v2335 = vsub.s32 %v2332, %v2334
    %v2336 = vrot.slane %v2328, %v2335
    %2338 = vset.pattern.permute.xlu0 0
    %2339 = vperm.xlu0 %2338, %v648
    %v2340 = vpop.permute.xlu0 %2339
    %v2343 = vunpack.c.l.s4 839922192
    %v2344 = vunpack.c.0.s8 %v2343
    %v2345 = vlaneseq
    %v2346 = vshrl.u32 %v2345, 7
    %v2347 = vsub.s32 %v2344, %v2346
    %v2348 = vrot.slane %v2340, %v2347
    %2350 = vset.pattern.permute.xlu0 0
    %2351 = vperm.xlu0 %2350, %v649
    %v2352 = vpop.permute.xlu0 %2351
    %v2355 = vunpack.c.l.s4 839922192
    %v2356 = vunpack.c.0.s8 %v2355
    %v2357 = vlaneseq
    %v2358 = vshrl.u32 %v2357, 7
    %v2359 = vsub.s32 %v2356, %v2358
    %v2360 = vrot.slane %v2352, %v2359
    %2362 = vset.pattern.permute.xlu0 0
    %2363 = vperm.xlu0 %2362, %v650
    %v2364 = vpop.permute.xlu0 %2363
    %v2367 = vunpack.c.l.s4 839922192
    %v2368 = vunpack.c.0.s8 %v2367
    %v2369 = vlaneseq
    %v2370 = vshrl.u32 %v2369, 7
    %v2371 = vsub.s32 %v2368, %v2370
    %v2372 = vrot.slane %v2364, %v2371
    %2374 = vset.pattern.permute.xlu0 0
    %2375 = vperm.xlu0 %2374, %v651
    %v2376 = vpop.permute.xlu0 %2375
    %v2379 = vunpack.c.l.s4 839922192
    %v2380 = vunpack.c.0.s8 %v2379
    %v2381 = vlaneseq
    %v2382 = vshrl.u32 %v2381, 7
    %v2383 = vsub.s32 %v2380, %v2382
    %v2384 = vrot.slane %v2376, %v2383
    %2386 = vset.pattern.permute.xlu0 0
    %2387 = vperm.xlu0 %2386, %v652
    %v2388 = vpop.permute.xlu0 %2387
    %v2391 = vunpack.c.l.s4 839922192
    %v2392 = vunpack.c.0.s8 %v2391
    %v2393 = vlaneseq
    %v2394 = vshrl.u32 %v2393, 7
    %v2395 = vsub.s32 %v2392, %v2394
    %v2396 = vrot.slane %v2388, %v2395
    %2398 = vset.pattern.permute.xlu0 0
    %2399 = vperm.xlu0 %2398, %v653
    %v2400 = vpop.permute.xlu0 %2399
    %v2403 = vunpack.c.l.s4 839922192
    %v2404 = vunpack.c.0.s8 %v2403
    %v2405 = vlaneseq
    %v2406 = vshrl.u32 %v2405, 7
    %v2407 = vsub.s32 %v2404, %v2406
    %v2408 = vrot.slane %v2400, %v2407
    %2410 = vset.pattern.permute.xlu0 0
    %2411 = vperm.xlu0 %2410, %v654
    %v2412 = vpop.permute.xlu0 %2411
    %v2415 = vunpack.c.l.s4 839922192
    %v2416 = vunpack.c.0.s8 %v2415
    %v2417 = vlaneseq
    %v2418 = vshrl.u32 %v2417, 7
    %v2419 = vsub.s32 %v2416, %v2418
    %v2420 = vrot.slane %v2412, %v2419
    %2422 = vset.pattern.permute.xlu0 0
    %2423 = vperm.xlu0 %2422, %v655
    %v2424 = vpop.permute.xlu0 %2423
    %v2427 = vunpack.c.l.s4 839922192
    %v2428 = vunpack.c.0.s8 %v2427
    %v2429 = vlaneseq
    %v2430 = vshrl.u32 %v2429, 7
    %v2431 = vsub.s32 %v2428, %v2430
    %v2432 = vrot.slane %v2424, %v2431
    %2434 = vset.pattern.permute.xlu0 0
    %2435 = vperm.xlu0 %2434, %v656
    %v2436 = vpop.permute.xlu0 %2435
    %v2439 = vunpack.c.l.s4 839922192
    %v2440 = vunpack.c.0.s8 %v2439
    %v2441 = vlaneseq
    %v2442 = vshrl.u32 %v2441, 7
    %v2443 = vsub.s32 %v2440, %v2442
    %v2444 = vrot.slane %v2436, %v2443
    %2446 = vset.pattern.permute.xlu0 0
    %2447 = vperm.xlu0 %2446, %v657
    %v2448 = vpop.permute.xlu0 %2447
    %v2451 = vunpack.c.l.s4 839922192
    %v2452 = vunpack.c.0.s8 %v2451
    %v2453 = vlaneseq
    %v2454 = vshrl.u32 %v2453, 7
    %v2455 = vsub.s32 %v2452, %v2454
    %v2456 = vrot.slane %v2448, %v2455
    %2458 = vset.pattern.permute.xlu0 0
    %2459 = vperm.xlu0 %2458, %v658
    %v2460 = vpop.permute.xlu0 %2459
    %v2463 = vunpack.c.l.s4 839922192
    %v2464 = vunpack.c.0.s8 %v2463
    %v2465 = vlaneseq
    %v2466 = vshrl.u32 %v2465, 7
    %v2467 = vsub.s32 %v2464, %v2466
    %v2468 = vrot.slane %v2460, %v2467
    %2470 = vset.pattern.permute.xlu0 0
    %2471 = vperm.xlu0 %2470, %v659
    %v2472 = vpop.permute.xlu0 %2471
    %v2475 = vunpack.c.l.s4 839922192
    %v2476 = vunpack.c.0.s8 %v2475
    %v2477 = vlaneseq
    %v2478 = vshrl.u32 %v2477, 7
    %v2479 = vsub.s32 %v2476, %v2478
    %v2480 = vrot.slane %v2472, %v2479
    %2482 = vset.pattern.permute.xlu0 0
    %2483 = vperm.xlu0 %2482, %v660
    %v2484 = vpop.permute.xlu0 %2483
    %v2487 = vunpack.c.l.s4 839922192
    %v2488 = vunpack.c.0.s8 %v2487
    %v2489 = vlaneseq
    %v2490 = vshrl.u32 %v2489, 7
    %v2491 = vsub.s32 %v2488, %v2490
    %v2492 = vrot.slane %v2484, %v2491
    %2494 = vset.pattern.permute.xlu0 0
    %2495 = vperm.xlu0 %2494, %v661
    %v2496 = vpop.permute.xlu0 %2495
    %v2499 = vunpack.c.l.s4 839922192
    %v2500 = vunpack.c.0.s8 %v2499
    %v2501 = vlaneseq
    %v2502 = vshrl.u32 %v2501, 7
    %v2503 = vsub.s32 %v2500, %v2502
    %v2504 = vrot.slane %v2496, %v2503
    %2506 = vset.pattern.permute.xlu0 0
    %2507 = vperm.xlu0 %2506, %v662
    %v2508 = vpop.permute.xlu0 %2507
    %v2511 = vunpack.c.l.s4 839922192
    %v2512 = vunpack.c.0.s8 %v2511
    %v2513 = vlaneseq
    %v2514 = vshrl.u32 %v2513, 7
    %v2515 = vsub.s32 %v2512, %v2514
    %v2516 = vrot.slane %v2508, %v2515
    %2518 = vset.pattern.permute.xlu0 0
    %2519 = vperm.xlu0 %2518, %v663
    %v2520 = vpop.permute.xlu0 %2519
    %v2523 = vunpack.c.l.s4 839922192
    %v2524 = vunpack.c.0.s8 %v2523
    %v2525 = vlaneseq
    %v2526 = vshrl.u32 %v2525, 7
    %v2527 = vsub.s32 %v2524, %v2526
    %v2528 = vrot.slane %v2520, %v2527
    %2530 = vset.pattern.permute.xlu0 0
    %2531 = vperm.xlu0 %2530, %v664
    %v2532 = vpop.permute.xlu0 %2531
    %v2535 = vunpack.c.l.s4 839922192
    %v2536 = vunpack.c.0.s8 %v2535
    %v2537 = vlaneseq
    %v2538 = vshrl.u32 %v2537, 7
    %v2539 = vsub.s32 %v2536, %v2538
    %v2540 = vrot.slane %v2532, %v2539
    %2542 = vset.pattern.permute.xlu0 0
    %2543 = vperm.xlu0 %2542, %v665
    %v2544 = vpop.permute.xlu0 %2543
    %v2547 = vunpack.c.l.s4 839922192
    %v2548 = vunpack.c.0.s8 %v2547
    %v2549 = vlaneseq
    %v2550 = vshrl.u32 %v2549, 7
    %v2551 = vsub.s32 %v2548, %v2550
    %v2552 = vrot.slane %v2544, %v2551
    %2554 = vset.pattern.permute.xlu0 0
    %2555 = vperm.xlu0 %2554, %v666
    %v2556 = vpop.permute.xlu0 %2555
    %v2559 = vunpack.c.l.s4 839922192
    %v2560 = vunpack.c.0.s8 %v2559
    %v2561 = vlaneseq
    %v2562 = vshrl.u32 %v2561, 7
    %v2563 = vsub.s32 %v2560, %v2562
    %v2564 = vrot.slane %v2556, %v2563
    %2566 = vset.pattern.permute.xlu0 0
    %2567 = vperm.xlu0 %2566, %v667
    %v2568 = vpop.permute.xlu0 %2567
    %v2571 = vunpack.c.l.s4 839922192
    %v2572 = vunpack.c.0.s8 %v2571
    %v2573 = vlaneseq
    %v2574 = vshrl.u32 %v2573, 7
    %v2575 = vsub.s32 %v2572, %v2574
    %v2576 = vrot.slane %v2568, %v2575
    %2578 = vset.pattern.permute.xlu0 0
    %2579 = vperm.xlu0 %2578, %v668
    %v2580 = vpop.permute.xlu0 %2579
    %v2583 = vunpack.c.l.s4 839922192
    %v2584 = vunpack.c.0.s8 %v2583
    %v2585 = vlaneseq
    %v2586 = vshrl.u32 %v2585, 7
    %v2587 = vsub.s32 %v2584, %v2586
    %v2588 = vrot.slane %v2580, %v2587
    %2590 = vset.pattern.permute.xlu0 0
    %2591 = vperm.xlu0 %2590, %v669
    %v2592 = vpop.permute.xlu0 %2591
    %v2595 = vunpack.c.l.s4 839922192
    %v2596 = vunpack.c.0.s8 %v2595
    %v2597 = vlaneseq
    %v2598 = vshrl.u32 %v2597, 7
    %v2599 = vsub.s32 %v2596, %v2598
    %v2600 = vrot.slane %v2592, %v2599
    %2602 = vset.pattern.permute.xlu0 0
    %2603 = vperm.xlu0 %2602, %v670
    %v2604 = vpop.permute.xlu0 %2603
    %v2607 = vunpack.c.l.s4 839922192
    %v2608 = vunpack.c.0.s8 %v2607
    %v2609 = vlaneseq
    %v2610 = vshrl.u32 %v2609, 7
    %v2611 = vsub.s32 %v2608, %v2610
    %v2612 = vrot.slane %v2604, %v2611
    %2614 = vset.pattern.permute.xlu0 0
    %2615 = vperm.xlu0 %2614, %v671
    %v2616 = vpop.permute.xlu0 %2615
    %v2619 = vunpack.c.l.s4 839922192
    %v2620 = vunpack.c.0.s8 %v2619
    %v2621 = vlaneseq
    %v2622 = vshrl.u32 %v2621, 7
    %v2623 = vsub.s32 %v2620, %v2622
    %v2624 = vrot.slane %v2616, %v2623
    %2626 = vset.pattern.permute.xlu0 0
    %2627 = vperm.xlu0 %2626, %v672
    %v2628 = vpop.permute.xlu0 %2627
    %v2631 = vunpack.c.l.s4 839922192
    %v2632 = vunpack.c.0.s8 %v2631
    %v2633 = vlaneseq
    %v2634 = vshrl.u32 %v2633, 7
    %v2635 = vsub.s32 %v2632, %v2634
    %v2636 = vrot.slane %v2628, %v2635
    %2638 = vset.pattern.permute.xlu0 0
    %2639 = vperm.xlu0 %2638, %v673
    %v2640 = vpop.permute.xlu0 %2639
    %v2643 = vunpack.c.l.s4 839922192
    %v2644 = vunpack.c.0.s8 %v2643
    %v2645 = vlaneseq
    %v2646 = vshrl.u32 %v2645, 7
    %v2647 = vsub.s32 %v2644, %v2646
    %v2648 = vrot.slane %v2640, %v2647
    %2650 = vset.pattern.permute.xlu0 0
    %2651 = vperm.xlu0 %2650, %v674
    %v2652 = vpop.permute.xlu0 %2651
    %v2655 = vunpack.c.l.s4 839922192
    %v2656 = vunpack.c.0.s8 %v2655
    %v2657 = vlaneseq
    %v2658 = vshrl.u32 %v2657, 7
    %v2659 = vsub.s32 %v2656, %v2658
    %v2660 = vrot.slane %v2652, %v2659
    %2662 = vset.pattern.permute.xlu0 0
    %2663 = vperm.xlu0 %2662, %v675
    %v2664 = vpop.permute.xlu0 %2663
    %v2667 = vunpack.c.l.s4 839922192
    %v2668 = vunpack.c.0.s8 %v2667
    %v2669 = vlaneseq
    %v2670 = vshrl.u32 %v2669, 7
    %v2671 = vsub.s32 %v2668, %v2670
    %v2672 = vrot.slane %v2664, %v2671
    %2674 = vset.pattern.permute.xlu0 0
    %2675 = vperm.xlu0 %2674, %v676
    %v2676 = vpop.permute.xlu0 %2675
    %v2679 = vunpack.c.l.s4 839922192
    %v2680 = vunpack.c.0.s8 %v2679
    %v2681 = vlaneseq
    %v2682 = vshrl.u32 %v2681, 7
    %v2683 = vsub.s32 %v2680, %v2682
    %v2684 = vrot.slane %v2676, %v2683
    %2686 = vset.pattern.permute.xlu0 0
    %2687 = vperm.xlu0 %2686, %v677
    %v2688 = vpop.permute.xlu0 %2687
    %v2691 = vunpack.c.l.s4 839922192
    %v2692 = vunpack.c.0.s8 %v2691
    %v2693 = vlaneseq
    %v2694 = vshrl.u32 %v2693, 7
    %v2695 = vsub.s32 %v2692, %v2694
    %v2696 = vrot.slane %v2688, %v2695
    %2698 = vset.pattern.permute.xlu0 0
    %2699 = vperm.xlu0 %2698, %v678
    %v2700 = vpop.permute.xlu0 %2699
    %v2703 = vunpack.c.l.s4 839922192
    %v2704 = vunpack.c.0.s8 %v2703
    %v2705 = vlaneseq
    %v2706 = vshrl.u32 %v2705, 7
    %v2707 = vsub.s32 %v2704, %v2706
    %v2708 = vrot.slane %v2700, %v2707
    %2710 = vset.pattern.permute.xlu0 0
    %2711 = vperm.xlu0 %2710, %v679
    %v2712 = vpop.permute.xlu0 %2711
    %v2715 = vunpack.c.l.s4 839922192
    %v2716 = vunpack.c.0.s8 %v2715
    %v2717 = vlaneseq
    %v2718 = vshrl.u32 %v2717, 7
    %v2719 = vsub.s32 %v2716, %v2718
    %v2720 = vrot.slane %v2712, %v2719
    %2722 = vset.pattern.permute.xlu0 0
    %2723 = vperm.xlu0 %2722, %v680
    %v2724 = vpop.permute.xlu0 %2723
    %v2727 = vunpack.c.l.s4 839922192
    %v2728 = vunpack.c.0.s8 %v2727
    %v2729 = vlaneseq
    %v2730 = vshrl.u32 %v2729, 7
    %v2731 = vsub.s32 %v2728, %v2730
    %v2732 = vrot.slane %v2724, %v2731
    %2734 = vset.pattern.permute.xlu0 0
    %2735 = vperm.xlu0 %2734, %v681
    %v2736 = vpop.permute.xlu0 %2735
    %v2739 = vunpack.c.l.s4 839922192
    %v2740 = vunpack.c.0.s8 %v2739
    %v2741 = vlaneseq
    %v2742 = vshrl.u32 %v2741, 7
    %v2743 = vsub.s32 %v2740, %v2742
    %v2744 = vrot.slane %v2736, %v2743
    %2746 = vset.pattern.permute.xlu0 0
    %2747 = vperm.xlu0 %2746, %v682
    %v2748 = vpop.permute.xlu0 %2747
    %v2751 = vunpack.c.l.s4 839922192
    %v2752 = vunpack.c.0.s8 %v2751
    %v2753 = vlaneseq
    %v2754 = vshrl.u32 %v2753, 7
    %v2755 = vsub.s32 %v2752, %v2754
    %v2756 = vrot.slane %v2748, %v2755
    %2758 = vset.pattern.permute.xlu0 0
    %2759 = vperm.xlu0 %2758, %v683
    %v2760 = vpop.permute.xlu0 %2759
    %v2763 = vunpack.c.l.s4 839922192
    %v2764 = vunpack.c.0.s8 %v2763
    %v2765 = vlaneseq
    %v2766 = vshrl.u32 %v2765, 7
    %v2767 = vsub.s32 %v2764, %v2766
    %v2768 = vrot.slane %v2760, %v2767
    %2770 = vset.pattern.permute.xlu0 0
    %2771 = vperm.xlu0 %2770, %v684
    %v2772 = vpop.permute.xlu0 %2771
    %v2775 = vunpack.c.l.s4 839922192
    %v2776 = vunpack.c.0.s8 %v2775
    %v2777 = vlaneseq
    %v2778 = vshrl.u32 %v2777, 7
    %v2779 = vsub.s32 %v2776, %v2778
    %v2780 = vrot.slane %v2772, %v2779
    %2782 = vset.pattern.permute.xlu0 0
    %2783 = vperm.xlu0 %2782, %v685
    %v2784 = vpop.permute.xlu0 %2783
    %v2787 = vunpack.c.l.s4 839922192
    %v2788 = vunpack.c.0.s8 %v2787
    %v2789 = vlaneseq
    %v2790 = vshrl.u32 %v2789, 7
    %v2791 = vsub.s32 %v2788, %v2790
    %v2792 = vrot.slane %v2784, %v2791
    %2794 = vset.pattern.permute.xlu0 0
    %2795 = vperm.xlu0 %2794, %v686
    %v2796 = vpop.permute.xlu0 %2795
    %v2799 = vunpack.c.l.s4 839922192
    %v2800 = vunpack.c.0.s8 %v2799
    %v2801 = vlaneseq
    %v2802 = vshrl.u32 %v2801, 7
    %v2803 = vsub.s32 %v2800, %v2802
    %v2804 = vrot.slane %v2796, %v2803
    %2806 = vset.pattern.permute.xlu0 0
    %2807 = vperm.xlu0 %2806, %v687
    %v2808 = vpop.permute.xlu0 %2807
    %v2811 = vunpack.c.l.s4 839922192
    %v2812 = vunpack.c.0.s8 %v2811
    %v2813 = vlaneseq
    %v2814 = vshrl.u32 %v2813, 7
    %v2815 = vsub.s32 %v2812, %v2814
    %v2816 = vrot.slane %v2808, %v2815
    %2818 = vset.pattern.permute.xlu0 0
    %2819 = vperm.xlu0 %2818, %v688
    %v2820 = vpop.permute.xlu0 %2819
    %v2823 = vunpack.c.l.s4 839922192
    %v2824 = vunpack.c.0.s8 %v2823
    %v2825 = vlaneseq
    %v2826 = vshrl.u32 %v2825, 7
    %v2827 = vsub.s32 %v2824, %v2826
    %v2828 = vrot.slane %v2820, %v2827
    %2830 = vset.pattern.permute.xlu0 0
    %2831 = vperm.xlu0 %2830, %v689
    %v2832 = vpop.permute.xlu0 %2831
    %v2835 = vunpack.c.l.s4 839922192
    %v2836 = vunpack.c.0.s8 %v2835
    %v2837 = vlaneseq
    %v2838 = vshrl.u32 %v2837, 7
    %v2839 = vsub.s32 %v2836, %v2838
    %v2840 = vrot.slane %v2832, %v2839
    %2842 = vset.pattern.permute.xlu0 0
    %2843 = vperm.xlu0 %2842, %v690
    %v2844 = vpop.permute.xlu0 %2843
    %v2847 = vunpack.c.l.s4 839922192
    %v2848 = vunpack.c.0.s8 %v2847
    %v2849 = vlaneseq
    %v2850 = vshrl.u32 %v2849, 7
    %v2851 = vsub.s32 %v2848, %v2850
    %v2852 = vrot.slane %v2844, %v2851
    %2854 = vset.pattern.permute.xlu0 0
    %2855 = vperm.xlu0 %2854, %v691
    %v2856 = vpop.permute.xlu0 %2855
    %v2859 = vunpack.c.l.s4 839922192
    %v2860 = vunpack.c.0.s8 %v2859
    %v2861 = vlaneseq
    %v2862 = vshrl.u32 %v2861, 7
    %v2863 = vsub.s32 %v2860, %v2862
    %v2864 = vrot.slane %v2856, %v2863
    %2866 = vset.pattern.permute.xlu0 0
    %2867 = vperm.xlu0 %2866, %v692
    %v2868 = vpop.permute.xlu0 %2867
    %v2871 = vunpack.c.l.s4 839922192
    %v2872 = vunpack.c.0.s8 %v2871
    %v2873 = vlaneseq
    %v2874 = vshrl.u32 %v2873, 7
    %v2875 = vsub.s32 %v2872, %v2874
    %v2876 = vrot.slane %v2868, %v2875
    %2878 = vset.pattern.permute.xlu0 0
    %2879 = vperm.xlu0 %2878, %v693
    %v2880 = vpop.permute.xlu0 %2879
    %v2883 = vunpack.c.l.s4 839922192
    %v2884 = vunpack.c.0.s8 %v2883
    %v2885 = vlaneseq
    %v2886 = vshrl.u32 %v2885, 7
    %v2887 = vsub.s32 %v2884, %v2886
    %v2888 = vrot.slane %v2880, %v2887
    %2890 = vset.pattern.permute.xlu0 0
    %2891 = vperm.xlu0 %2890, %v694
    %v2892 = vpop.permute.xlu0 %2891
    %v2895 = vunpack.c.l.s4 839922192
    %v2896 = vunpack.c.0.s8 %v2895
    %v2897 = vlaneseq
    %v2898 = vshrl.u32 %v2897, 7
    %v2899 = vsub.s32 %v2896, %v2898
    %v2900 = vrot.slane %v2892, %v2899
    %2902 = vset.pattern.permute.xlu0 0
    %2903 = vperm.xlu0 %2902, %v695
    %v2904 = vpop.permute.xlu0 %2903
    %v2907 = vunpack.c.l.s4 839922192
    %v2908 = vunpack.c.0.s8 %v2907
    %v2909 = vlaneseq
    %v2910 = vshrl.u32 %v2909, 7
    %v2911 = vsub.s32 %v2908, %v2910
    %v2912 = vrot.slane %v2904, %v2911
    %2914 = vset.pattern.permute.xlu0 0
    %2915 = vperm.xlu0 %2914, %v696
    %v2916 = vpop.permute.xlu0 %2915
    %v2919 = vunpack.c.l.s4 839922192
    %v2920 = vunpack.c.0.s8 %v2919
    %v2921 = vlaneseq
    %v2922 = vshrl.u32 %v2921, 7
    %v2923 = vsub.s32 %v2920, %v2922
    %v2924 = vrot.slane %v2916, %v2923
    %2926 = vset.pattern.permute.xlu0 0
    %2927 = vperm.xlu0 %2926, %v697
    %v2928 = vpop.permute.xlu0 %2927
    %v2931 = vunpack.c.l.s4 839922192
    %v2932 = vunpack.c.0.s8 %v2931
    %v2933 = vlaneseq
    %v2934 = vshrl.u32 %v2933, 7
    %v2935 = vsub.s32 %v2932, %v2934
    %v2936 = vrot.slane %v2928, %v2935
    %2938 = vset.pattern.permute.xlu0 0
    %2939 = vperm.xlu0 %2938, %v698
    %v2940 = vpop.permute.xlu0 %2939
    %v2943 = vunpack.c.l.s4 839922192
    %v2944 = vunpack.c.0.s8 %v2943
    %v2945 = vlaneseq
    %v2946 = vshrl.u32 %v2945, 7
    %v2947 = vsub.s32 %v2944, %v2946
    %v2948 = vrot.slane %v2940, %v2947
    %2950 = vset.pattern.permute.xlu0 0
    %2951 = vperm.xlu0 %2950, %v699
    %v2952 = vpop.permute.xlu0 %2951
    %v2955 = vunpack.c.l.s4 839922192
    %v2956 = vunpack.c.0.s8 %v2955
    %v2957 = vlaneseq
    %v2958 = vshrl.u32 %v2957, 7
    %v2959 = vsub.s32 %v2956, %v2958
    %v2960 = vrot.slane %v2952, %v2959
    %2962 = vset.pattern.permute.xlu0 0
    %2963 = vperm.xlu0 %2962, %v700
    %v2964 = vpop.permute.xlu0 %2963
    %v2967 = vunpack.c.l.s4 839922192
    %v2968 = vunpack.c.0.s8 %v2967
    %v2969 = vlaneseq
    %v2970 = vshrl.u32 %v2969, 7
    %v2971 = vsub.s32 %v2968, %v2970
    %v2972 = vrot.slane %v2964, %v2971
    %2974 = vset.pattern.permute.xlu0 0
    %2975 = vperm.xlu0 %2974, %v701
    %v2976 = vpop.permute.xlu0 %2975
    %v2979 = vunpack.c.l.s4 839922192
    %v2980 = vunpack.c.0.s8 %v2979
    %v2981 = vlaneseq
    %v2982 = vshrl.u32 %v2981, 7
    %v2983 = vsub.s32 %v2980, %v2982
    %v2984 = vrot.slane %v2976, %v2983
    %2986 = vset.pattern.permute.xlu0 0
    %2987 = vperm.xlu0 %2986, %v702
    %v2988 = vpop.permute.xlu0 %2987
    %v2991 = vunpack.c.l.s4 839922192
    %v2992 = vunpack.c.0.s8 %v2991
    %v2993 = vlaneseq
    %v2994 = vshrl.u32 %v2993, 7
    %v2995 = vsub.s32 %v2992, %v2994
    %v2996 = vrot.slane %v2988, %v2995
    %2998 = vset.pattern.permute.xlu0 0
    %2999 = vperm.xlu0 %2998, %v703
    %v3000 = vpop.permute.xlu0 %2999
    %v3003 = vunpack.c.l.s4 839922192
    %v3004 = vunpack.c.0.s8 %v3003
    %v3005 = vlaneseq
    %v3006 = vshrl.u32 %v3005, 7
    %v3007 = vsub.s32 %v3004, %v3006
    %v3008 = vrot.slane %v3000, %v3007
    %3010 = vset.pattern.permute.xlu0 0
    %3011 = vperm.xlu0 %3010, %v704
    %v3012 = vpop.permute.xlu0 %3011
    %v3015 = vunpack.c.l.s4 839922192
    %v3016 = vunpack.c.0.s8 %v3015
    %v3017 = vlaneseq
    %v3018 = vshrl.u32 %v3017, 7
    %v3019 = vsub.s32 %v3016, %v3018
    %v3020 = vrot.slane %v3012, %v3019
    %3022 = vset.pattern.permute.xlu0 0
    %3023 = vperm.xlu0 %3022, %v705
    %v3024 = vpop.permute.xlu0 %3023
    %v3027 = vunpack.c.l.s4 839922192
    %v3028 = vunpack.c.0.s8 %v3027
    %v3029 = vlaneseq
    %v3030 = vshrl.u32 %v3029, 7
    %v3031 = vsub.s32 %v3028, %v3030
    %v3032 = vrot.slane %v3024, %v3031
    %3034 = vset.pattern.permute.xlu0 0
    %3035 = vperm.xlu0 %3034, %v706
    %v3036 = vpop.permute.xlu0 %3035
    %v3039 = vunpack.c.l.s4 839922192
    %v3040 = vunpack.c.0.s8 %v3039
    %v3041 = vlaneseq
    %v3042 = vshrl.u32 %v3041, 7
    %v3043 = vsub.s32 %v3040, %v3042
    %v3044 = vrot.slane %v3036, %v3043
    %3046 = vset.pattern.permute.xlu0 0
    %3047 = vperm.xlu0 %3046, %v707
    %v3048 = vpop.permute.xlu0 %3047
    %v3051 = vunpack.c.l.s4 839922192
    %v3052 = vunpack.c.0.s8 %v3051
    %v3053 = vlaneseq
    %v3054 = vshrl.u32 %v3053, 7
    %v3055 = vsub.s32 %v3052, %v3054
    %v3056 = vrot.slane %v3048, %v3055
    %3058 = vset.pattern.permute.xlu0 0
    %3059 = vperm.xlu0 %3058, %v708
    %v3060 = vpop.permute.xlu0 %3059
    %v3063 = vunpack.c.l.s4 839922192
    %v3064 = vunpack.c.0.s8 %v3063
    %v3065 = vlaneseq
    %v3066 = vshrl.u32 %v3065, 7
    %v3067 = vsub.s32 %v3064, %v3066
    %v3068 = vrot.slane %v3060, %v3067
    %3070 = vset.pattern.permute.xlu0 0
    %3071 = vperm.xlu0 %3070, %v709
    %v3072 = vpop.permute.xlu0 %3071
    %v3075 = vunpack.c.l.s4 839922192
    %v3076 = vunpack.c.0.s8 %v3075
    %v3077 = vlaneseq
    %v3078 = vshrl.u32 %v3077, 7
    %v3079 = vsub.s32 %v3076, %v3078
    %v3080 = vrot.slane %v3072, %v3079
    %3082 = vset.pattern.permute.xlu0 0
    %3083 = vperm.xlu0 %3082, %v710
    %v3084 = vpop.permute.xlu0 %3083
    %v3087 = vunpack.c.l.s4 839922192
    %v3088 = vunpack.c.0.s8 %v3087
    %v3089 = vlaneseq
    %v3090 = vshrl.u32 %v3089, 7
    %v3091 = vsub.s32 %v3088, %v3090
    %v3092 = vrot.slane %v3084, %v3091
    %3094 = vset.pattern.permute.xlu0 0
    %3095 = vperm.xlu0 %3094, %v711
    %v3096 = vpop.permute.xlu0 %3095
    %v3099 = vunpack.c.l.s4 839922192
    %v3100 = vunpack.c.0.s8 %v3099
    %v3101 = vlaneseq
    %v3102 = vshrl.u32 %v3101, 7
    %v3103 = vsub.s32 %v3100, %v3102
    %v3104 = vrot.slane %v3096, %v3103
    %3106 = vset.pattern.permute.xlu0 0
    %3107 = vperm.xlu0 %3106, %v712
    %v3108 = vpop.permute.xlu0 %3107
    %v3111 = vunpack.c.l.s4 839922192
    %v3112 = vunpack.c.0.s8 %v3111
    %v3113 = vlaneseq
    %v3114 = vshrl.u32 %v3113, 7
    %v3115 = vsub.s32 %v3112, %v3114
    %v3116 = vrot.slane %v3108, %v3115
    %3118 = vset.pattern.permute.xlu0 0
    %3119 = vperm.xlu0 %3118, %v713
    %v3120 = vpop.permute.xlu0 %3119
    %v3123 = vunpack.c.l.s4 839922192
    %v3124 = vunpack.c.0.s8 %v3123
    %v3125 = vlaneseq
    %v3126 = vshrl.u32 %v3125, 7
    %v3127 = vsub.s32 %v3124, %v3126
    %v3128 = vrot.slane %v3120, %v3127
    %3130 = vset.pattern.permute.xlu0 0
    %3131 = vperm.xlu0 %3130, %v714
    %v3132 = vpop.permute.xlu0 %3131
    %v3135 = vunpack.c.l.s4 839922192
    %v3136 = vunpack.c.0.s8 %v3135
    %v3137 = vlaneseq
    %v3138 = vshrl.u32 %v3137, 7
    %v3139 = vsub.s32 %v3136, %v3138
    %v3140 = vrot.slane %v3132, %v3139
    %3142 = vset.pattern.permute.xlu0 0
    %3143 = vperm.xlu0 %3142, %v715
    %v3144 = vpop.permute.xlu0 %3143
    %v3147 = vunpack.c.l.s4 839922192
    %v3148 = vunpack.c.0.s8 %v3147
    %v3149 = vlaneseq
    %v3150 = vshrl.u32 %v3149, 7
    %v3151 = vsub.s32 %v3148, %v3150
    %v3152 = vrot.slane %v3144, %v3151
    %3154 = vset.pattern.permute.xlu0 0
    %3155 = vperm.xlu0 %3154, %v716
    %v3156 = vpop.permute.xlu0 %3155
    %v3159 = vunpack.c.l.s4 839922192
    %v3160 = vunpack.c.0.s8 %v3159
    %v3161 = vlaneseq
    %v3162 = vshrl.u32 %v3161, 7
    %v3163 = vsub.s32 %v3160, %v3162
    %v3164 = vrot.slane %v3156, %v3163
    %3166 = vset.pattern.permute.xlu0 0
    %3167 = vperm.xlu0 %3166, %v717
    %v3168 = vpop.permute.xlu0 %3167
    %v3171 = vunpack.c.l.s4 839922192
    %v3172 = vunpack.c.0.s8 %v3171
    %v3173 = vlaneseq
    %v3174 = vshrl.u32 %v3173, 7
    %v3175 = vsub.s32 %v3172, %v3174
    %v3176 = vrot.slane %v3168, %v3175
    %3178 = vset.pattern.permute.xlu0 0
    %3179 = vperm.xlu0 %3178, %v718
    %v3180 = vpop.permute.xlu0 %3179
    %v3183 = vunpack.c.l.s4 839922192
    %v3184 = vunpack.c.0.s8 %v3183
    %v3185 = vlaneseq
    %v3186 = vshrl.u32 %v3185, 7
    %v3187 = vsub.s32 %v3184, %v3186
    %v3188 = vrot.slane %v3180, %v3187
    %3190 = vset.pattern.permute.xlu0 0
    %3191 = vperm.xlu0 %3190, %v719
    %v3192 = vpop.permute.xlu0 %3191
    %v3195 = vunpack.c.l.s4 839922192
    %v3196 = vunpack.c.0.s8 %v3195
    %v3197 = vlaneseq
    %v3198 = vshrl.u32 %v3197, 7
    %v3199 = vsub.s32 %v3196, %v3198
    %v3200 = vrot.slane %v3192, %v3199
    %3202 = vset.pattern.permute.xlu0 0
    %3203 = vperm.xlu0 %3202, %v720
    %v3204 = vpop.permute.xlu0 %3203
    %v3207 = vunpack.c.l.s4 839922192
    %v3208 = vunpack.c.0.s8 %v3207
    %v3209 = vlaneseq
    %v3210 = vshrl.u32 %v3209, 7
    %v3211 = vsub.s32 %v3208, %v3210
    %v3212 = vrot.slane %v3204, %v3211
    %3214 = vset.pattern.permute.xlu0 0
    %3215 = vperm.xlu0 %3214, %v721
    %v3216 = vpop.permute.xlu0 %3215
    %v3219 = vunpack.c.l.s4 839922192
    %v3220 = vunpack.c.0.s8 %v3219
    %v3221 = vlaneseq
    %v3222 = vshrl.u32 %v3221, 7
    %v3223 = vsub.s32 %v3220, %v3222
    %v3224 = vrot.slane %v3216, %v3223
    %3226 = vset.pattern.permute.xlu0 0
    %3227 = vperm.xlu0 %3226, %v722
    %v3228 = vpop.permute.xlu0 %3227
    %v3231 = vunpack.c.l.s4 839922192
    %v3232 = vunpack.c.0.s8 %v3231
    %v3233 = vlaneseq
    %v3234 = vshrl.u32 %v3233, 7
    %v3235 = vsub.s32 %v3232, %v3234
    %v3236 = vrot.slane %v3228, %v3235
    %3238 = vset.pattern.permute.xlu0 0
    %3239 = vperm.xlu0 %3238, %v723
    %v3240 = vpop.permute.xlu0 %3239
    %v3243 = vunpack.c.l.s4 839922192
    %v3244 = vunpack.c.0.s8 %v3243
    %v3245 = vlaneseq
    %v3246 = vshrl.u32 %v3245, 7
    %v3247 = vsub.s32 %v3244, %v3246
    %v3248 = vrot.slane %v3240, %v3247
    %3250 = vset.pattern.permute.xlu0 0
    %3251 = vperm.xlu0 %3250, %v724
    %v3252 = vpop.permute.xlu0 %3251
    %v3255 = vunpack.c.l.s4 839922192
    %v3256 = vunpack.c.0.s8 %v3255
    %v3257 = vlaneseq
    %v3258 = vshrl.u32 %v3257, 7
    %v3259 = vsub.s32 %v3256, %v3258
    %v3260 = vrot.slane %v3252, %v3259
    %3262 = vset.pattern.permute.xlu0 0
    %3263 = vperm.xlu0 %3262, %v725
    %v3264 = vpop.permute.xlu0 %3263
    %v3267 = vunpack.c.l.s4 839922192
    %v3268 = vunpack.c.0.s8 %v3267
    %v3269 = vlaneseq
    %v3270 = vshrl.u32 %v3269, 7
    %v3271 = vsub.s32 %v3268, %v3270
    %v3272 = vrot.slane %v3264, %v3271
    %3274 = vset.pattern.permute.xlu0 0
    %3275 = vperm.xlu0 %3274, %v726
    %v3276 = vpop.permute.xlu0 %3275
    %v3279 = vunpack.c.l.s4 839922192
    %v3280 = vunpack.c.0.s8 %v3279
    %v3281 = vlaneseq
    %v3282 = vshrl.u32 %v3281, 7
    %v3283 = vsub.s32 %v3280, %v3282
    %v3284 = vrot.slane %v3276, %v3283
    %3286 = vset.pattern.permute.xlu0 0
    %3287 = vperm.xlu0 %3286, %v727
    %v3288 = vpop.permute.xlu0 %3287
    %v3291 = vunpack.c.l.s4 839922192
    %v3292 = vunpack.c.0.s8 %v3291
    %v3293 = vlaneseq
    %v3294 = vshrl.u32 %v3293, 7
    %v3295 = vsub.s32 %v3292, %v3294
    %v3296 = vrot.slane %v3288, %v3295
    %3298 = vset.pattern.permute.xlu0 0
    %3299 = vperm.xlu0 %3298, %v728
    %v3300 = vpop.permute.xlu0 %3299
    %v3303 = vunpack.c.l.s4 839922192
    %v3304 = vunpack.c.0.s8 %v3303
    %v3305 = vlaneseq
    %v3306 = vshrl.u32 %v3305, 7
    %v3307 = vsub.s32 %v3304, %v3306
    %v3308 = vrot.slane %v3300, %v3307
    %3310 = vset.pattern.permute.xlu0 0
    %3311 = vperm.xlu0 %3310, %v729
    %v3312 = vpop.permute.xlu0 %3311
    %v3315 = vunpack.c.l.s4 839922192
    %v3316 = vunpack.c.0.s8 %v3315
    %v3317 = vlaneseq
    %v3318 = vshrl.u32 %v3317, 7
    %v3319 = vsub.s32 %v3316, %v3318
    %v3320 = vrot.slane %v3312, %v3319
    %3322 = vset.pattern.permute.xlu0 0
    %3323 = vperm.xlu0 %3322, %v730
    %v3324 = vpop.permute.xlu0 %3323
    %v3327 = vunpack.c.l.s4 839922192
    %v3328 = vunpack.c.0.s8 %v3327
    %v3329 = vlaneseq
    %v3330 = vshrl.u32 %v3329, 7
    %v3331 = vsub.s32 %v3328, %v3330
    %v3332 = vrot.slane %v3324, %v3331
    %3334 = vset.pattern.permute.xlu0 0
    %3335 = vperm.xlu0 %3334, %v731
    %v3336 = vpop.permute.xlu0 %3335
    %v3339 = vunpack.c.l.s4 839922192
    %v3340 = vunpack.c.0.s8 %v3339
    %v3341 = vlaneseq
    %v3342 = vshrl.u32 %v3341, 7
    %v3343 = vsub.s32 %v3340, %v3342
    %v3344 = vrot.slane %v3336, %v3343
    %3346 = vset.pattern.permute.xlu0 0
    %3347 = vperm.xlu0 %3346, %v732
    %v3348 = vpop.permute.xlu0 %3347
    %v3351 = vunpack.c.l.s4 839922192
    %v3352 = vunpack.c.0.s8 %v3351
    %v3353 = vlaneseq
    %v3354 = vshrl.u32 %v3353, 7
    %v3355 = vsub.s32 %v3352, %v3354
    %v3356 = vrot.slane %v3348, %v3355
    %3358 = vset.pattern.permute.xlu0 0
    %3359 = vperm.xlu0 %3358, %v733
    %v3360 = vpop.permute.xlu0 %3359
    %v3363 = vunpack.c.l.s4 839922192
    %v3364 = vunpack.c.0.s8 %v3363
    %v3365 = vlaneseq
    %v3366 = vshrl.u32 %v3365, 7
    %v3367 = vsub.s32 %v3364, %v3366
    %v3368 = vrot.slane %v3360, %v3367
    %3370 = vset.pattern.permute.xlu0 0
    %3371 = vperm.xlu0 %3370, %v734
    %v3372 = vpop.permute.xlu0 %3371
    %v3375 = vunpack.c.l.s4 839922192
    %v3376 = vunpack.c.0.s8 %v3375
    %v3377 = vlaneseq
    %v3378 = vshrl.u32 %v3377, 7
    %v3379 = vsub.s32 %v3376, %v3378
    %v3380 = vrot.slane %v3372, %v3379
    %3382 = vset.pattern.permute.xlu0 0
    %3383 = vperm.xlu0 %3382, %v735
    %v3384 = vpop.permute.xlu0 %3383
    %v3387 = vunpack.c.l.s4 839922192
    %v3388 = vunpack.c.0.s8 %v3387
    %v3389 = vlaneseq
    %v3390 = vshrl.u32 %v3389, 7
    %v3391 = vsub.s32 %v3388, %v3390
    %v3392 = vrot.slane %v3384, %v3391
    %3394 = vset.pattern.permute.xlu0 0
    %3395 = vperm.xlu0 %3394, %v736
    %v3396 = vpop.permute.xlu0 %3395
    %v3399 = vunpack.c.l.s4 839922192
    %v3400 = vunpack.c.0.s8 %v3399
    %v3401 = vlaneseq
    %v3402 = vshrl.u32 %v3401, 7
    %v3403 = vsub.s32 %v3400, %v3402
    %v3404 = vrot.slane %v3396, %v3403
    %3406 = vset.pattern.permute.xlu0 0
    %3407 = vperm.xlu0 %3406, %v737
    %v3408 = vpop.permute.xlu0 %3407
    %v3411 = vunpack.c.l.s4 839922192
    %v3412 = vunpack.c.0.s8 %v3411
    %v3413 = vlaneseq
    %v3414 = vshrl.u32 %v3413, 7
    %v3415 = vsub.s32 %v3412, %v3414
    %v3416 = vrot.slane %v3408, %v3415
    %3418 = vset.pattern.permute.xlu0 0
    %3419 = vperm.xlu0 %3418, %v738
    %v3420 = vpop.permute.xlu0 %3419
    %v3423 = vunpack.c.l.s4 839922192
    %v3424 = vunpack.c.0.s8 %v3423
    %v3425 = vlaneseq
    %v3426 = vshrl.u32 %v3425, 7
    %v3427 = vsub.s32 %v3424, %v3426
    %v3428 = vrot.slane %v3420, %v3427
    %3430 = vset.pattern.permute.xlu0 0
    %3431 = vperm.xlu0 %3430, %v739
    %v3432 = vpop.permute.xlu0 %3431
    %v3435 = vunpack.c.l.s4 839922192
    %v3436 = vunpack.c.0.s8 %v3435
    %v3437 = vlaneseq
    %v3438 = vshrl.u32 %v3437, 7
    %v3439 = vsub.s32 %v3436, %v3438
    %v3440 = vrot.slane %v3432, %v3439
    %3442 = vset.pattern.permute.xlu0 0
    %3443 = vperm.xlu0 %3442, %v740
    %v3444 = vpop.permute.xlu0 %3443
    %v3447 = vunpack.c.l.s4 839922192
    %v3448 = vunpack.c.0.s8 %v3447
    %v3449 = vlaneseq
    %v3450 = vshrl.u32 %v3449, 7
    %v3451 = vsub.s32 %v3448, %v3450
    %v3452 = vrot.slane %v3444, %v3451
    %3454 = vset.pattern.permute.xlu0 0
    %3455 = vperm.xlu0 %3454, %v741
    %v3456 = vpop.permute.xlu0 %3455
    %v3459 = vunpack.c.l.s4 839922192
    %v3460 = vunpack.c.0.s8 %v3459
    %v3461 = vlaneseq
    %v3462 = vshrl.u32 %v3461, 7
    %v3463 = vsub.s32 %v3460, %v3462
    %v3464 = vrot.slane %v3456, %v3463
    %3466 = vset.pattern.permute.xlu0 0
    %3467 = vperm.xlu0 %3466, %v742
    %v3468 = vpop.permute.xlu0 %3467
    %v3471 = vunpack.c.l.s4 839922192
    %v3472 = vunpack.c.0.s8 %v3471
    %v3473 = vlaneseq
    %v3474 = vshrl.u32 %v3473, 7
    %v3475 = vsub.s32 %v3472, %v3474
    %v3476 = vrot.slane %v3468, %v3475
    %3478 = vset.pattern.permute.xlu0 0
    %3479 = vperm.xlu0 %3478, %v743
    %v3480 = vpop.permute.xlu0 %3479
    %v3483 = vunpack.c.l.s4 839922192
    %v3484 = vunpack.c.0.s8 %v3483
    %v3485 = vlaneseq
    %v3486 = vshrl.u32 %v3485, 7
    %v3487 = vsub.s32 %v3484, %v3486
    %v3488 = vrot.slane %v3480, %v3487
    %3490 = vset.pattern.permute.xlu0 0
    %3491 = vperm.xlu0 %3490, %v744
    %v3492 = vpop.permute.xlu0 %3491
    %v3495 = vunpack.c.l.s4 839922192
    %v3496 = vunpack.c.0.s8 %v3495
    %v3497 = vlaneseq
    %v3498 = vshrl.u32 %v3497, 7
    %v3499 = vsub.s32 %v3496, %v3498
    %v3500 = vrot.slane %v3492, %v3499
    %3502 = vset.pattern.permute.xlu0 0
    %3503 = vperm.xlu0 %3502, %v745
    %v3504 = vpop.permute.xlu0 %3503
    %v3507 = vunpack.c.l.s4 839922192
    %v3508 = vunpack.c.0.s8 %v3507
    %v3509 = vlaneseq
    %v3510 = vshrl.u32 %v3509, 7
    %v3511 = vsub.s32 %v3508, %v3510
    %v3512 = vrot.slane %v3504, %v3511
    %3514 = vset.pattern.permute.xlu0 0
    %3515 = vperm.xlu0 %3514, %v746
    %v3516 = vpop.permute.xlu0 %3515
    %v3519 = vunpack.c.l.s4 839922192
    %v3520 = vunpack.c.0.s8 %v3519
    %v3521 = vlaneseq
    %v3522 = vshrl.u32 %v3521, 7
    %v3523 = vsub.s32 %v3520, %v3522
    %v3524 = vrot.slane %v3516, %v3523
    %3526 = vset.pattern.permute.xlu0 0
    %3527 = vperm.xlu0 %3526, %v747
    %v3528 = vpop.permute.xlu0 %3527
    %v3531 = vunpack.c.l.s4 839922192
    %v3532 = vunpack.c.0.s8 %v3531
    %v3533 = vlaneseq
    %v3534 = vshrl.u32 %v3533, 7
    %v3535 = vsub.s32 %v3532, %v3534
    %v3536 = vrot.slane %v3528, %v3535
    %3538 = vset.pattern.permute.xlu0 0
    %3539 = vperm.xlu0 %3538, %v748
    %v3540 = vpop.permute.xlu0 %3539
    %v3543 = vunpack.c.l.s4 839922192
    %v3544 = vunpack.c.0.s8 %v3543
    %v3545 = vlaneseq
    %v3546 = vshrl.u32 %v3545, 7
    %v3547 = vsub.s32 %v3544, %v3546
    %v3548 = vrot.slane %v3540, %v3547
    %3550 = vset.pattern.permute.xlu0 0
    %3551 = vperm.xlu0 %3550, %v749
    %v3552 = vpop.permute.xlu0 %3551
    %v3555 = vunpack.c.l.s4 839922192
    %v3556 = vunpack.c.0.s8 %v3555
    %v3557 = vlaneseq
    %v3558 = vshrl.u32 %v3557, 7
    %v3559 = vsub.s32 %v3556, %v3558
    %v3560 = vrot.slane %v3552, %v3559
    %3562 = vset.pattern.permute.xlu0 0
    %3563 = vperm.xlu0 %3562, %v750
    %v3564 = vpop.permute.xlu0 %3563
    %v3567 = vunpack.c.l.s4 839922192
    %v3568 = vunpack.c.0.s8 %v3567
    %v3569 = vlaneseq
    %v3570 = vshrl.u32 %v3569, 7
    %v3571 = vsub.s32 %v3568, %v3570
    %v3572 = vrot.slane %v3564, %v3571
    %3574 = vset.pattern.permute.xlu0 0
    %3575 = vperm.xlu0 %3574, %v751
    %v3576 = vpop.permute.xlu0 %3575
    %v3579 = vunpack.c.l.s4 839922192
    %v3580 = vunpack.c.0.s8 %v3579
    %v3581 = vlaneseq
    %v3582 = vshrl.u32 %v3581, 7
    %v3583 = vsub.s32 %v3580, %v3582
    %v3584 = vrot.slane %v3576, %v3583
    %3586 = vset.pattern.permute.xlu0 0
    %3587 = vperm.xlu0 %3586, %v752
    %v3588 = vpop.permute.xlu0 %3587
    %v3591 = vunpack.c.l.s4 839922192
    %v3592 = vunpack.c.0.s8 %v3591
    %v3593 = vlaneseq
    %v3594 = vshrl.u32 %v3593, 7
    %v3595 = vsub.s32 %v3592, %v3594
    %v3596 = vrot.slane %v3588, %v3595
    %3598 = vset.pattern.permute.xlu0 0
    %3599 = vperm.xlu0 %3598, %v753
    %v3600 = vpop.permute.xlu0 %3599
    %v3603 = vunpack.c.l.s4 839922192
    %v3604 = vunpack.c.0.s8 %v3603
    %v3605 = vlaneseq
    %v3606 = vshrl.u32 %v3605, 7
    %v3607 = vsub.s32 %v3604, %v3606
    %v3608 = vrot.slane %v3600, %v3607
    %3610 = vset.pattern.permute.xlu0 0
    %3611 = vperm.xlu0 %3610, %v754
    %v3612 = vpop.permute.xlu0 %3611
    %v3615 = vunpack.c.l.s4 839922192
    %v3616 = vunpack.c.0.s8 %v3615
    %v3617 = vlaneseq
    %v3618 = vshrl.u32 %v3617, 7
    %v3619 = vsub.s32 %v3616, %v3618
    %v3620 = vrot.slane %v3612, %v3619
    %3622 = vset.pattern.permute.xlu0 0
    %3623 = vperm.xlu0 %3622, %v755
    %v3624 = vpop.permute.xlu0 %3623
    %v3627 = vunpack.c.l.s4 839922192
    %v3628 = vunpack.c.0.s8 %v3627
    %v3629 = vlaneseq
    %v3630 = vshrl.u32 %v3629, 7
    %v3631 = vsub.s32 %v3628, %v3630
    %v3632 = vrot.slane %v3624, %v3631
    %3634 = vset.pattern.permute.xlu0 0
    %3635 = vperm.xlu0 %3634, %v756
    %v3636 = vpop.permute.xlu0 %3635
    %v3639 = vunpack.c.l.s4 839922192
    %v3640 = vunpack.c.0.s8 %v3639
    %v3641 = vlaneseq
    %v3642 = vshrl.u32 %v3641, 7
    %v3643 = vsub.s32 %v3640, %v3642
    %v3644 = vrot.slane %v3636, %v3643
    %3646 = vset.pattern.permute.xlu0 0
    %3647 = vperm.xlu0 %3646, %v757
    %v3648 = vpop.permute.xlu0 %3647
    %v3651 = vunpack.c.l.s4 839922192
    %v3652 = vunpack.c.0.s8 %v3651
    %v3653 = vlaneseq
    %v3654 = vshrl.u32 %v3653, 7
    %v3655 = vsub.s32 %v3652, %v3654
    %v3656 = vrot.slane %v3648, %v3655
    %3658 = vset.pattern.permute.xlu0 0
    %3659 = vperm.xlu0 %3658, %v758
    %v3660 = vpop.permute.xlu0 %3659
    %v3663 = vunpack.c.l.s4 839922192
    %v3664 = vunpack.c.0.s8 %v3663
    %v3665 = vlaneseq
    %v3666 = vshrl.u32 %v3665, 7
    %v3667 = vsub.s32 %v3664, %v3666
    %v3668 = vrot.slane %v3660, %v3667
    %3670 = vset.pattern.permute.xlu0 0
    %3671 = vperm.xlu0 %3670, %v759
    %v3672 = vpop.permute.xlu0 %3671
    %v3675 = vunpack.c.l.s4 839922192
    %v3676 = vunpack.c.0.s8 %v3675
    %v3677 = vlaneseq
    %v3678 = vshrl.u32 %v3677, 7
    %v3679 = vsub.s32 %v3676, %v3678
    %v3680 = vrot.slane %v3672, %v3679
    %3682 = vset.pattern.permute.xlu0 0
    %3683 = vperm.xlu0 %3682, %v760
    %v3684 = vpop.permute.xlu0 %3683
    %v3687 = vunpack.c.l.s4 839922192
    %v3688 = vunpack.c.0.s8 %v3687
    %v3689 = vlaneseq
    %v3690 = vshrl.u32 %v3689, 7
    %v3691 = vsub.s32 %v3688, %v3690
    %v3692 = vrot.slane %v3684, %v3691
    %3694 = vset.pattern.permute.xlu0 0
    %3695 = vperm.xlu0 %3694, %v761
    %v3696 = vpop.permute.xlu0 %3695
    %v3699 = vunpack.c.l.s4 839922192
    %v3700 = vunpack.c.0.s8 %v3699
    %v3701 = vlaneseq
    %v3702 = vshrl.u32 %v3701, 7
    %v3703 = vsub.s32 %v3700, %v3702
    %v3704 = vrot.slane %v3696, %v3703
    %3706 = vset.pattern.permute.xlu0 0
    %3707 = vperm.xlu0 %3706, %v762
    %v3708 = vpop.permute.xlu0 %3707
    %v3711 = vunpack.c.l.s4 839922192
    %v3712 = vunpack.c.0.s8 %v3711
    %v3713 = vlaneseq
    %v3714 = vshrl.u32 %v3713, 7
    %v3715 = vsub.s32 %v3712, %v3714
    %v3716 = vrot.slane %v3708, %v3715
    %3718 = vset.pattern.permute.xlu0 0
    %3719 = vperm.xlu0 %3718, %v763
    %v3720 = vpop.permute.xlu0 %3719
    %v3723 = vunpack.c.l.s4 839922192
    %v3724 = vunpack.c.0.s8 %v3723
    %v3725 = vlaneseq
    %v3726 = vshrl.u32 %v3725, 7
    %v3727 = vsub.s32 %v3724, %v3726
    %v3728 = vrot.slane %v3720, %v3727
    %3730 = vset.pattern.permute.xlu0 0
    %3731 = vperm.xlu0 %3730, %v764
    %v3732 = vpop.permute.xlu0 %3731
    %v3735 = vunpack.c.l.s4 839922192
    %v3736 = vunpack.c.0.s8 %v3735
    %v3737 = vlaneseq
    %v3738 = vshrl.u32 %v3737, 7
    %v3739 = vsub.s32 %v3736, %v3738
    %v3740 = vrot.slane %v3732, %v3739
    %3742 = vset.pattern.permute.xlu0 0
    %3743 = vperm.xlu0 %3742, %v765
    %v3744 = vpop.permute.xlu0 %3743
    %v3747 = vunpack.c.l.s4 839922192
    %v3748 = vunpack.c.0.s8 %v3747
    %v3749 = vlaneseq
    %v3750 = vshrl.u32 %v3749, 7
    %v3751 = vsub.s32 %v3748, %v3750
    %v3752 = vrot.slane %v3744, %v3751
    %3754 = vset.pattern.permute.xlu0 0
    %3755 = vperm.xlu0 %3754, %v766
    %v3756 = vpop.permute.xlu0 %3755
    %v3759 = vunpack.c.l.s4 839922192
    %v3760 = vunpack.c.0.s8 %v3759
    %v3761 = vlaneseq
    %v3762 = vshrl.u32 %v3761, 7
    %v3763 = vsub.s32 %v3760, %v3762
    %v3764 = vrot.slane %v3756, %v3763
    %3766 = vset.pattern.permute.xlu0 0
    %3767 = vperm.xlu0 %3766, %v767
    %v3768 = vpop.permute.xlu0 %3767
    %v3771 = vunpack.c.l.s4 839922192
    %v3772 = vunpack.c.0.s8 %v3771
    %v3773 = vlaneseq
    %v3774 = vshrl.u32 %v3773, 7
    %v3775 = vsub.s32 %v3772, %v3774
    %v3776 = vrot.slane %v3768, %v3775
    %3778 = vset.pattern.permute.xlu0 0
    %3779 = vperm.xlu0 %3778, %v768
    %v3780 = vpop.permute.xlu0 %3779
    %v3783 = vunpack.c.l.s4 839922192
    %v3784 = vunpack.c.0.s8 %v3783
    %v3785 = vlaneseq
    %v3786 = vshrl.u32 %v3785, 7
    %v3787 = vsub.s32 %v3784, %v3786
    %v3788 = vrot.slane %v3780, %v3787
    %3790 = vset.pattern.permute.xlu0 0
    %3791 = vperm.xlu0 %3790, %v769
    %v3792 = vpop.permute.xlu0 %3791
    %v3795 = vunpack.c.l.s4 839922192
    %v3796 = vunpack.c.0.s8 %v3795
    %v3797 = vlaneseq
    %v3798 = vshrl.u32 %v3797, 7
    %v3799 = vsub.s32 %v3796, %v3798
    %v3800 = vrot.slane %v3792, %v3799
    %3802 = vset.pattern.permute.xlu0 0
    %3803 = vperm.xlu0 %3802, %v770
    %v3804 = vpop.permute.xlu0 %3803
    %v3807 = vunpack.c.l.s4 839922192
    %v3808 = vunpack.c.0.s8 %v3807
    %v3809 = vlaneseq
    %v3810 = vshrl.u32 %v3809, 7
    %v3811 = vsub.s32 %v3808, %v3810
    %v3812 = vrot.slane %v3804, %v3811
    %3814 = vset.pattern.permute.xlu0 0
    %3815 = vperm.xlu0 %3814, %v771
    %v3816 = vpop.permute.xlu0 %3815
    %v3819 = vunpack.c.l.s4 839922192
    %v3820 = vunpack.c.0.s8 %v3819
    %v3821 = vlaneseq
    %v3822 = vshrl.u32 %v3821, 7
    %v3823 = vsub.s32 %v3820, %v3822
    %v3824 = vrot.slane %v3816, %v3823
    %3826 = vset.pattern.permute.xlu0 0
    %3827 = vperm.xlu0 %3826, %v772
    %v3828 = vpop.permute.xlu0 %3827
    %v3831 = vunpack.c.l.s4 839922192
    %v3832 = vunpack.c.0.s8 %v3831
    %v3833 = vlaneseq
    %v3834 = vshrl.u32 %v3833, 7
    %v3835 = vsub.s32 %v3832, %v3834
    %v3836 = vrot.slane %v3828, %v3835
    %3838 = vset.pattern.permute.xlu0 0
    %3839 = vperm.xlu0 %3838, %v773
    %v3840 = vpop.permute.xlu0 %3839
    %v3843 = vunpack.c.l.s4 839922192
    %v3844 = vunpack.c.0.s8 %v3843
    %v3845 = vlaneseq
    %v3846 = vshrl.u32 %v3845, 7
    %v3847 = vsub.s32 %v3844, %v3846
    %v3848 = vrot.slane %v3840, %v3847
    %3850 = vset.pattern.permute.xlu0 0
    %3851 = vperm.xlu0 %3850, %v774
    %v3852 = vpop.permute.xlu0 %3851
    %v3855 = vunpack.c.l.s4 839922192
    %v3856 = vunpack.c.0.s8 %v3855
    %v3857 = vlaneseq
    %v3858 = vshrl.u32 %v3857, 7
    %v3859 = vsub.s32 %v3856, %v3858
    %v3860 = vrot.slane %v3852, %v3859
    %3862 = vset.pattern.permute.xlu0 0
    %3863 = vperm.xlu0 %3862, %v775
    %v3864 = vpop.permute.xlu0 %3863
    %v3867 = vunpack.c.l.s4 839922192
    %v3868 = vunpack.c.0.s8 %v3867
    %v3869 = vlaneseq
    %v3870 = vshrl.u32 %v3869, 7
    %v3871 = vsub.s32 %v3868, %v3870
    %v3872 = vrot.slane %v3864, %v3871
    %3874 = vset.pattern.permute.xlu0 0
    %3875 = vperm.xlu0 %3874, %v776
    %v3876 = vpop.permute.xlu0 %3875
    %v3879 = vunpack.c.l.s4 839922192
    %v3880 = vunpack.c.0.s8 %v3879
    %v3881 = vlaneseq
    %v3882 = vshrl.u32 %v3881, 7
    %v3883 = vsub.s32 %v3880, %v3882
    %v3884 = vrot.slane %v3876, %v3883
    %3886 = vset.pattern.permute.xlu0 0
    %3887 = vperm.xlu0 %3886, %v777
    %v3888 = vpop.permute.xlu0 %3887
    %v3891 = vunpack.c.l.s4 839922192
    %v3892 = vunpack.c.0.s8 %v3891
    %v3893 = vlaneseq
    %v3894 = vshrl.u32 %v3893, 7
    %v3895 = vsub.s32 %v3892, %v3894
    %v3896 = vrot.slane %v3888, %v3895
    %3898 = vset.pattern.permute.xlu0 0
    %3899 = vperm.xlu0 %3898, %v778
    %v3900 = vpop.permute.xlu0 %3899
    %v3903 = vunpack.c.l.s4 839922192
    %v3904 = vunpack.c.0.s8 %v3903
    %v3905 = vlaneseq
    %v3906 = vshrl.u32 %v3905, 7
    %v3907 = vsub.s32 %v3904, %v3906
    %v3908 = vrot.slane %v3900, %v3907
    %3910 = vset.pattern.permute.xlu0 0
    %3911 = vperm.xlu0 %3910, %v779
    %v3912 = vpop.permute.xlu0 %3911
    %v3915 = vunpack.c.l.s4 839922192
    %v3916 = vunpack.c.0.s8 %v3915
    %v3917 = vlaneseq
    %v3918 = vshrl.u32 %v3917, 7
    %v3919 = vsub.s32 %v3916, %v3918
    %v3920 = vrot.slane %v3912, %v3919
    %3922 = vset.pattern.permute.xlu0 0
    %3923 = vperm.xlu0 %3922, %v780
    %v3924 = vpop.permute.xlu0 %3923
    %v3927 = vunpack.c.l.s4 839922192
    %v3928 = vunpack.c.0.s8 %v3927
    %v3929 = vlaneseq
    %v3930 = vshrl.u32 %v3929, 7
    %v3931 = vsub.s32 %v3928, %v3930
    %v3932 = vrot.slane %v3924, %v3931
    %3934 = vset.pattern.permute.xlu0 0
    %3935 = vperm.xlu0 %3934, %v781
    %v3936 = vpop.permute.xlu0 %3935
    %v3939 = vunpack.c.l.s4 839922192
    %v3940 = vunpack.c.0.s8 %v3939
    %v3941 = vlaneseq
    %v3942 = vshrl.u32 %v3941, 7
    %v3943 = vsub.s32 %v3940, %v3942
    %v3944 = vrot.slane %v3936, %v3943
    %3946 = vset.pattern.permute.xlu0 0
    %3947 = vperm.xlu0 %3946, %v782
    %v3948 = vpop.permute.xlu0 %3947
    %v3951 = vunpack.c.l.s4 839922192
    %v3952 = vunpack.c.0.s8 %v3951
    %v3953 = vlaneseq
    %v3954 = vshrl.u32 %v3953, 7
    %v3955 = vsub.s32 %v3952, %v3954
    %v3956 = vrot.slane %v3948, %v3955
    %3958 = vset.pattern.permute.xlu0 0
    %3959 = vperm.xlu0 %3958, %v783
    %v3960 = vpop.permute.xlu0 %3959
    %v3963 = vunpack.c.l.s4 839922192
    %v3964 = vunpack.c.0.s8 %v3963
    %v3965 = vlaneseq
    %v3966 = vshrl.u32 %v3965, 7
    %v3967 = vsub.s32 %v3964, %v3966
    %v3968 = vrot.slane %v3960, %v3967
    %3970 = vset.pattern.permute.xlu0 0
    %3971 = vperm.xlu0 %3970, %v784
    %v3972 = vpop.permute.xlu0 %3971
    %v3975 = vunpack.c.l.s4 839922192
    %v3976 = vunpack.c.0.s8 %v3975
    %v3977 = vlaneseq
    %v3978 = vshrl.u32 %v3977, 7
    %v3979 = vsub.s32 %v3976, %v3978
    %v3980 = vrot.slane %v3972, %v3979
    %3982 = vset.pattern.permute.xlu0 0
    %3983 = vperm.xlu0 %3982, %v785
    %v3984 = vpop.permute.xlu0 %3983
    %v3987 = vunpack.c.l.s4 839922192
    %v3988 = vunpack.c.0.s8 %v3987
    %v3989 = vlaneseq
    %v3990 = vshrl.u32 %v3989, 7
    %v3991 = vsub.s32 %v3988, %v3990
    %v3992 = vrot.slane %v3984, %v3991
    %3994 = vset.pattern.permute.xlu0 0
    %3995 = vperm.xlu0 %3994, %v786
    %v3996 = vpop.permute.xlu0 %3995
    %v3999 = vunpack.c.l.s4 839922192
    %v4000 = vunpack.c.0.s8 %v3999
    %v4001 = vlaneseq
    %v4002 = vshrl.u32 %v4001, 7
    %v4003 = vsub.s32 %v4000, %v4002
    %v4004 = vrot.slane %v3996, %v4003
    %4006 = vset.pattern.permute.xlu0 0
    %4007 = vperm.xlu0 %4006, %v787
    %v4008 = vpop.permute.xlu0 %4007
    %v4011 = vunpack.c.l.s4 839922192
    %v4012 = vunpack.c.0.s8 %v4011
    %v4013 = vlaneseq
    %v4014 = vshrl.u32 %v4013, 7
    %v4015 = vsub.s32 %v4012, %v4014
    %v4016 = vrot.slane %v4008, %v4015
    %4018 = vset.pattern.permute.xlu0 0
    %4019 = vperm.xlu0 %4018, %v788
    %v4020 = vpop.permute.xlu0 %4019
    %v4023 = vunpack.c.l.s4 839922192
    %v4024 = vunpack.c.0.s8 %v4023
    %v4025 = vlaneseq
    %v4026 = vshrl.u32 %v4025, 7
    %v4027 = vsub.s32 %v4024, %v4026
    %v4028 = vrot.slane %v4020, %v4027
    %4030 = vset.pattern.permute.xlu0 0
    %4031 = vperm.xlu0 %4030, %v789
    %v4032 = vpop.permute.xlu0 %4031
    %v4035 = vunpack.c.l.s4 839922192
    %v4036 = vunpack.c.0.s8 %v4035
    %v4037 = vlaneseq
    %v4038 = vshrl.u32 %v4037, 7
    %v4039 = vsub.s32 %v4036, %v4038
    %v4040 = vrot.slane %v4032, %v4039
    %4042 = vset.pattern.permute.xlu0 0
    %4043 = vperm.xlu0 %4042, %v790
    %v4044 = vpop.permute.xlu0 %4043
    %v4047 = vunpack.c.l.s4 839922192
    %v4048 = vunpack.c.0.s8 %v4047
    %v4049 = vlaneseq
    %v4050 = vshrl.u32 %v4049, 7
    %v4051 = vsub.s32 %v4048, %v4050
    %v4052 = vrot.slane %v4044, %v4051
    %4054 = vset.pattern.permute.xlu0 0
    %4055 = vperm.xlu0 %4054, %v791
    %v4056 = vpop.permute.xlu0 %4055
    %v4059 = vunpack.c.l.s4 839922192
    %v4060 = vunpack.c.0.s8 %v4059
    %v4061 = vlaneseq
    %v4062 = vshrl.u32 %v4061, 7
    %v4063 = vsub.s32 %v4060, %v4062
    %v4064 = vrot.slane %v4056, %v4063
    %4066 = vset.pattern.permute.xlu0 0
    %4067 = vperm.xlu0 %4066, %v792
    %v4068 = vpop.permute.xlu0 %4067
    %v4071 = vunpack.c.l.s4 839922192
    %v4072 = vunpack.c.0.s8 %v4071
    %v4073 = vlaneseq
    %v4074 = vshrl.u32 %v4073, 7
    %v4075 = vsub.s32 %v4072, %v4074
    %v4076 = vrot.slane %v4068, %v4075
    %4078 = vset.pattern.permute.xlu0 0
    %4079 = vperm.xlu0 %4078, %v793
    %v4080 = vpop.permute.xlu0 %4079
    %v4083 = vunpack.c.l.s4 839922192
    %v4084 = vunpack.c.0.s8 %v4083
    %v4085 = vlaneseq
    %v4086 = vshrl.u32 %v4085, 7
    %v4087 = vsub.s32 %v4084, %v4086
    %v4088 = vrot.slane %v4080, %v4087
    %4090 = vset.pattern.permute.xlu0 0
    %4091 = vperm.xlu0 %4090, %v794
    %v4092 = vpop.permute.xlu0 %4091
    %v4095 = vunpack.c.l.s4 839922192
    %v4096 = vunpack.c.0.s8 %v4095
    %v4097 = vlaneseq
    %v4098 = vshrl.u32 %v4097, 7
    %v4099 = vsub.s32 %v4096, %v4098
    %v4100 = vrot.slane %v4092, %v4099
    %4102 = vset.pattern.permute.xlu0 0
    %4103 = vperm.xlu0 %4102, %v795
    %v4104 = vpop.permute.xlu0 %4103
    %v4107 = vunpack.c.l.s4 839922192
    %v4108 = vunpack.c.0.s8 %v4107
    %v4109 = vlaneseq
    %v4110 = vshrl.u32 %v4109, 7
    %v4111 = vsub.s32 %v4108, %v4110
    %v4112 = vrot.slane %v4104, %v4111
    %4114 = vset.pattern.permute.xlu0 0
    %4115 = vperm.xlu0 %4114, %v796
    %v4116 = vpop.permute.xlu0 %4115
    %v4119 = vunpack.c.l.s4 839922192
    %v4120 = vunpack.c.0.s8 %v4119
    %v4121 = vlaneseq
    %v4122 = vshrl.u32 %v4121, 7
    %v4123 = vsub.s32 %v4120, %v4122
    %v4124 = vrot.slane %v4116, %v4123
    %4126 = vset.pattern.permute.xlu0 0
    %4127 = vperm.xlu0 %4126, %v797
    %v4128 = vpop.permute.xlu0 %4127
    %v4131 = vunpack.c.l.s4 839922192
    %v4132 = vunpack.c.0.s8 %v4131
    %v4133 = vlaneseq
    %v4134 = vshrl.u32 %v4133, 7
    %v4135 = vsub.s32 %v4132, %v4134
    %v4136 = vrot.slane %v4128, %v4135
    %4138 = vset.pattern.permute.xlu0 0
    %4139 = vperm.xlu0 %4138, %v798
    %v4140 = vpop.permute.xlu0 %4139
    %v4143 = vunpack.c.l.s4 839922192
    %v4144 = vunpack.c.0.s8 %v4143
    %v4145 = vlaneseq
    %v4146 = vshrl.u32 %v4145, 7
    %v4147 = vsub.s32 %v4144, %v4146
    %v4148 = vrot.slane %v4140, %v4147
    %4150 = vset.pattern.permute.xlu0 0
    %4151 = vperm.xlu0 %4150, %v799
    %v4152 = vpop.permute.xlu0 %4151
    %v4155 = vunpack.c.l.s4 839922192
    %v4156 = vunpack.c.0.s8 %v4155
    %v4157 = vlaneseq
    %v4158 = vshrl.u32 %v4157, 7
    %v4159 = vsub.s32 %v4156, %v4158
    %v4160 = vrot.slane %v4152, %v4159
    %4162 = vset.pattern.permute.xlu0 0
    %4163 = vperm.xlu0 %4162, %v800
    %v4164 = vpop.permute.xlu0 %4163
    %v4167 = vunpack.c.l.s4 839922192
    %v4168 = vunpack.c.0.s8 %v4167
    %v4169 = vlaneseq
    %v4170 = vshrl.u32 %v4169, 7
    %v4171 = vsub.s32 %v4168, %v4170
    %v4172 = vrot.slane %v4164, %v4171
    %4174 = vset.pattern.permute.xlu0 0
    %4175 = vperm.xlu0 %4174, %v801
    %v4176 = vpop.permute.xlu0 %4175
    %v4179 = vunpack.c.l.s4 839922192
    %v4180 = vunpack.c.0.s8 %v4179
    %v4181 = vlaneseq
    %v4182 = vshrl.u32 %v4181, 7
    %v4183 = vsub.s32 %v4180, %v4182
    %v4184 = vrot.slane %v4176, %v4183
    %4186 = vset.pattern.permute.xlu0 0
    %4187 = vperm.xlu0 %4186, %v802
    %v4188 = vpop.permute.xlu0 %4187
    %v4191 = vunpack.c.l.s4 839922192
    %v4192 = vunpack.c.0.s8 %v4191
    %v4193 = vlaneseq
    %v4194 = vshrl.u32 %v4193, 7
    %v4195 = vsub.s32 %v4192, %v4194
    %v4196 = vrot.slane %v4188, %v4195
    %4198 = vset.pattern.permute.xlu0 0
    %4199 = vperm.xlu0 %4198, %v803
    %v4200 = vpop.permute.xlu0 %4199
    %v4203 = vunpack.c.l.s4 839922192
    %v4204 = vunpack.c.0.s8 %v4203
    %v4205 = vlaneseq
    %v4206 = vshrl.u32 %v4205, 7
    %v4207 = vsub.s32 %v4204, %v4206
    %v4208 = vrot.slane %v4200, %v4207
    %4210 = vset.pattern.permute.xlu0 0
    %4211 = vperm.xlu0 %4210, %v804
    %v4212 = vpop.permute.xlu0 %4211
    %v4215 = vunpack.c.l.s4 839922192
    %v4216 = vunpack.c.0.s8 %v4215
    %v4217 = vlaneseq
    %v4218 = vshrl.u32 %v4217, 7
    %v4219 = vsub.s32 %v4216, %v4218
    %v4220 = vrot.slane %v4212, %v4219
    %4222 = vset.pattern.permute.xlu0 0
    %4223 = vperm.xlu0 %4222, %v805
    %v4224 = vpop.permute.xlu0 %4223
    %v4227 = vunpack.c.l.s4 839922192
    %v4228 = vunpack.c.0.s8 %v4227
    %v4229 = vlaneseq
    %v4230 = vshrl.u32 %v4229, 7
    %v4231 = vsub.s32 %v4228, %v4230
    %v4232 = vrot.slane %v4224, %v4231
    %4234 = vset.pattern.permute.xlu0 0
    %4235 = vperm.xlu0 %4234, %v806
    %v4236 = vpop.permute.xlu0 %4235
    %v4239 = vunpack.c.l.s4 839922192
    %v4240 = vunpack.c.0.s8 %v4239
    %v4241 = vlaneseq
    %v4242 = vshrl.u32 %v4241, 7
    %v4243 = vsub.s32 %v4240, %v4242
    %v4244 = vrot.slane %v4236, %v4243
    %4246 = vset.pattern.permute.xlu0 0
    %4247 = vperm.xlu0 %4246, %v807
    %v4248 = vpop.permute.xlu0 %4247
    %v4251 = vunpack.c.l.s4 839922192
    %v4252 = vunpack.c.0.s8 %v4251
    %v4253 = vlaneseq
    %v4254 = vshrl.u32 %v4253, 7
    %v4255 = vsub.s32 %v4252, %v4254
    %v4256 = vrot.slane %v4248, %v4255
    %4258 = vset.pattern.permute.xlu0 0
    %4259 = vperm.xlu0 %4258, %v808
    %v4260 = vpop.permute.xlu0 %4259
    %v4263 = vunpack.c.l.s4 839922192
    %v4264 = vunpack.c.0.s8 %v4263
    %v4265 = vlaneseq
    %v4266 = vshrl.u32 %v4265, 7
    %v4267 = vsub.s32 %v4264, %v4266
    %v4268 = vrot.slane %v4260, %v4267
    %4270 = vset.pattern.permute.xlu0 0
    %4271 = vperm.xlu0 %4270, %v809
    %v4272 = vpop.permute.xlu0 %4271
    %v4275 = vunpack.c.l.s4 839922192
    %v4276 = vunpack.c.0.s8 %v4275
    %v4277 = vlaneseq
    %v4278 = vshrl.u32 %v4277, 7
    %v4279 = vsub.s32 %v4276, %v4278
    %v4280 = vrot.slane %v4272, %v4279
    %4282 = vset.pattern.permute.xlu0 0
    %4283 = vperm.xlu0 %4282, %v810
    %v4284 = vpop.permute.xlu0 %4283
    %v4287 = vunpack.c.l.s4 839922192
    %v4288 = vunpack.c.0.s8 %v4287
    %v4289 = vlaneseq
    %v4290 = vshrl.u32 %v4289, 7
    %v4291 = vsub.s32 %v4288, %v4290
    %v4292 = vrot.slane %v4284, %v4291
    %4294 = vset.pattern.permute.xlu0 0
    %4295 = vperm.xlu0 %4294, %v811
    %v4296 = vpop.permute.xlu0 %4295
    %v4299 = vunpack.c.l.s4 839922192
    %v4300 = vunpack.c.0.s8 %v4299
    %v4301 = vlaneseq
    %v4302 = vshrl.u32 %v4301, 7
    %v4303 = vsub.s32 %v4300, %v4302
    %v4304 = vrot.slane %v4296, %v4303
    %4306 = vset.pattern.permute.xlu0 0
    %4307 = vperm.xlu0 %4306, %v812
    %v4308 = vpop.permute.xlu0 %4307
    %v4311 = vunpack.c.l.s4 839922192
    %v4312 = vunpack.c.0.s8 %v4311
    %v4313 = vlaneseq
    %v4314 = vshrl.u32 %v4313, 7
    %v4315 = vsub.s32 %v4312, %v4314
    %v4316 = vrot.slane %v4308, %v4315
    %4318 = vset.pattern.permute.xlu0 0
    %4319 = vperm.xlu0 %4318, %v813
    %v4320 = vpop.permute.xlu0 %4319
    %v4323 = vunpack.c.l.s4 839922192
    %v4324 = vunpack.c.0.s8 %v4323
    %v4325 = vlaneseq
    %v4326 = vshrl.u32 %v4325, 7
    %v4327 = vsub.s32 %v4324, %v4326
    %v4328 = vrot.slane %v4320, %v4327
    %4330 = vset.pattern.permute.xlu0 0
    %4331 = vperm.xlu0 %4330, %v814
    %v4332 = vpop.permute.xlu0 %4331
    %v4335 = vunpack.c.l.s4 839922192
    %v4336 = vunpack.c.0.s8 %v4335
    %v4337 = vlaneseq
    %v4338 = vshrl.u32 %v4337, 7
    %v4339 = vsub.s32 %v4336, %v4338
    %v4340 = vrot.slane %v4332, %v4339
    %4342 = vset.pattern.permute.xlu0 0
    %4343 = vperm.xlu0 %4342, %v815
    %v4344 = vpop.permute.xlu0 %4343
    %v4347 = vunpack.c.l.s4 839922192
    %v4348 = vunpack.c.0.s8 %v4347
    %v4349 = vlaneseq
    %v4350 = vshrl.u32 %v4349, 7
    %v4351 = vsub.s32 %v4348, %v4350
    %v4352 = vrot.slane %v4344, %v4351
    %4354 = vset.pattern.permute.xlu0 0
    %4355 = vperm.xlu0 %4354, %v816
    %v4356 = vpop.permute.xlu0 %4355
    %v4359 = vunpack.c.l.s4 839922192
    %v4360 = vunpack.c.0.s8 %v4359
    %v4361 = vlaneseq
    %v4362 = vshrl.u32 %v4361, 7
    %v4363 = vsub.s32 %v4360, %v4362
    %v4364 = vrot.slane %v4356, %v4363
    %4366 = vset.pattern.permute.xlu0 0
    %4367 = vperm.xlu0 %4366, %v817
    %v4368 = vpop.permute.xlu0 %4367
    %v4371 = vunpack.c.l.s4 839922192
    %v4372 = vunpack.c.0.s8 %v4371
    %v4373 = vlaneseq
    %v4374 = vshrl.u32 %v4373, 7
    %v4375 = vsub.s32 %v4372, %v4374
    %v4376 = vrot.slane %v4368, %v4375
    %4378 = vset.pattern.permute.xlu0 0
    %4379 = vperm.xlu0 %4378, %v818
    %v4380 = vpop.permute.xlu0 %4379
    %v4383 = vunpack.c.l.s4 839922192
    %v4384 = vunpack.c.0.s8 %v4383
    %v4385 = vlaneseq
    %v4386 = vshrl.u32 %v4385, 7
    %v4387 = vsub.s32 %v4384, %v4386
    %v4388 = vrot.slane %v4380, %v4387
    %4390 = vset.pattern.permute.xlu0 0
    %4391 = vperm.xlu0 %4390, %v819
    %v4392 = vpop.permute.xlu0 %4391
    %v4395 = vunpack.c.l.s4 839922192
    %v4396 = vunpack.c.0.s8 %v4395
    %v4397 = vlaneseq
    %v4398 = vshrl.u32 %v4397, 7
    %v4399 = vsub.s32 %v4396, %v4398
    %v4400 = vrot.slane %v4392, %v4399
    %4402 = vset.pattern.permute.xlu0 0
    %4403 = vperm.xlu0 %4402, %v820
    %v4404 = vpop.permute.xlu0 %4403
    %v4407 = vunpack.c.l.s4 839922192
    %v4408 = vunpack.c.0.s8 %v4407
    %v4409 = vlaneseq
    %v4410 = vshrl.u32 %v4409, 7
    %v4411 = vsub.s32 %v4408, %v4410
    %v4412 = vrot.slane %v4404, %v4411
    %4414 = vset.pattern.permute.xlu0 0
    %4415 = vperm.xlu0 %4414, %v821
    %v4416 = vpop.permute.xlu0 %4415
    %v4419 = vunpack.c.l.s4 839922192
    %v4420 = vunpack.c.0.s8 %v4419
    %v4421 = vlaneseq
    %v4422 = vshrl.u32 %v4421, 7
    %v4423 = vsub.s32 %v4420, %v4422
    %v4424 = vrot.slane %v4416, %v4423
    %4426 = vset.pattern.permute.xlu0 0
    %4427 = vperm.xlu0 %4426, %v822
    %v4428 = vpop.permute.xlu0 %4427
    %v4431 = vunpack.c.l.s4 839922192
    %v4432 = vunpack.c.0.s8 %v4431
    %v4433 = vlaneseq
    %v4434 = vshrl.u32 %v4433, 7
    %v4435 = vsub.s32 %v4432, %v4434
    %v4436 = vrot.slane %v4428, %v4435
    %4438 = vset.pattern.permute.xlu0 0
    %4439 = vperm.xlu0 %4438, %v823
    %v4440 = vpop.permute.xlu0 %4439
    %v4443 = vunpack.c.l.s4 839922192
    %v4444 = vunpack.c.0.s8 %v4443
    %v4445 = vlaneseq
    %v4446 = vshrl.u32 %v4445, 7
    %v4447 = vsub.s32 %v4444, %v4446
    %v4448 = vrot.slane %v4440, %v4447
    %4450 = vset.pattern.permute.xlu0 0
    %4451 = vperm.xlu0 %4450, %v824
    %v4452 = vpop.permute.xlu0 %4451
    %v4455 = vunpack.c.l.s4 839922192
    %v4456 = vunpack.c.0.s8 %v4455
    %v4457 = vlaneseq
    %v4458 = vshrl.u32 %v4457, 7
    %v4459 = vsub.s32 %v4456, %v4458
    %v4460 = vrot.slane %v4452, %v4459
    %4462 = vset.pattern.permute.xlu0 0
    %4463 = vperm.xlu0 %4462, %v825
    %v4464 = vpop.permute.xlu0 %4463
    %v4467 = vunpack.c.l.s4 839922192
    %v4468 = vunpack.c.0.s8 %v4467
    %v4469 = vlaneseq
    %v4470 = vshrl.u32 %v4469, 7
    %v4471 = vsub.s32 %v4468, %v4470
    %v4472 = vrot.slane %v4464, %v4471
    %4474 = vset.pattern.permute.xlu0 0
    %4475 = vperm.xlu0 %4474, %v826
    %v4476 = vpop.permute.xlu0 %4475
    %v4479 = vunpack.c.l.s4 839922192
    %v4480 = vunpack.c.0.s8 %v4479
    %v4481 = vlaneseq
    %v4482 = vshrl.u32 %v4481, 7
    %v4483 = vsub.s32 %v4480, %v4482
    %v4484 = vrot.slane %v4476, %v4483
    %4486 = vset.pattern.permute.xlu0 0
    %4487 = vperm.xlu0 %4486, %v827
    %v4488 = vpop.permute.xlu0 %4487
    %v4491 = vunpack.c.l.s4 839922192
    %v4492 = vunpack.c.0.s8 %v4491
    %v4493 = vlaneseq
    %v4494 = vshrl.u32 %v4493, 7
    %v4495 = vsub.s32 %v4492, %v4494
    %v4496 = vrot.slane %v4488, %v4495
    %4498 = vset.pattern.permute.xlu0 0
    %4499 = vperm.xlu0 %4498, %v828
    %v4500 = vpop.permute.xlu0 %4499
    %v4503 = vunpack.c.l.s4 839922192
    %v4504 = vunpack.c.0.s8 %v4503
    %v4505 = vlaneseq
    %v4506 = vshrl.u32 %v4505, 7
    %v4507 = vsub.s32 %v4504, %v4506
    %v4508 = vrot.slane %v4500, %v4507
    %4510 = vset.pattern.permute.xlu0 0
    %4511 = vperm.xlu0 %4510, %v829
    %v4512 = vpop.permute.xlu0 %4511
    %v4515 = vunpack.c.l.s4 839922192
    %v4516 = vunpack.c.0.s8 %v4515
    %v4517 = vlaneseq
    %v4518 = vshrl.u32 %v4517, 7
    %v4519 = vsub.s32 %v4516, %v4518
    %v4520 = vrot.slane %v4512, %v4519
    %4522 = vset.pattern.permute.xlu0 0
    %4523 = vperm.xlu0 %4522, %v830
    %v4524 = vpop.permute.xlu0 %4523
    %v4527 = vunpack.c.l.s4 839922192
    %v4528 = vunpack.c.0.s8 %v4527
    %v4529 = vlaneseq
    %v4530 = vshrl.u32 %v4529, 7
    %v4531 = vsub.s32 %v4528, %v4530
    %v4532 = vrot.slane %v4524, %v4531
    %4534 = vset.pattern.permute.xlu0 0
    %4535 = vperm.xlu0 %4534, %v831
    %v4536 = vpop.permute.xlu0 %4535
    %v4539 = vunpack.c.l.s4 839922192
    %v4540 = vunpack.c.0.s8 %v4539
    %v4541 = vlaneseq
    %v4542 = vshrl.u32 %v4541, 7
    %v4543 = vsub.s32 %v4540, %v4542
    %v4544 = vrot.slane %v4536, %v4543
    %4546 = vset.pattern.permute.xlu0 0
    %4547 = vperm.xlu0 %4546, %v832
    %v4548 = vpop.permute.xlu0 %4547
    %v4551 = vunpack.c.l.s4 839922192
    %v4552 = vunpack.c.0.s8 %v4551
    %v4553 = vlaneseq
    %v4554 = vshrl.u32 %v4553, 7
    %v4555 = vsub.s32 %v4552, %v4554
    %v4556 = vrot.slane %v4548, %v4555
    %4558 = vset.pattern.permute.xlu0 0
    %4559 = vperm.xlu0 %4558, %v833
    %v4560 = vpop.permute.xlu0 %4559
    %v4563 = vunpack.c.l.s4 839922192
    %v4564 = vunpack.c.0.s8 %v4563
    %v4565 = vlaneseq
    %v4566 = vshrl.u32 %v4565, 7
    %v4567 = vsub.s32 %v4564, %v4566
    %v4568 = vrot.slane %v4560, %v4567
    %4570 = vset.pattern.permute.xlu0 0
    %4571 = vperm.xlu0 %4570, %v834
    %v4572 = vpop.permute.xlu0 %4571
    %v4575 = vunpack.c.l.s4 839922192
    %v4576 = vunpack.c.0.s8 %v4575
    %v4577 = vlaneseq
    %v4578 = vshrl.u32 %v4577, 7
    %v4579 = vsub.s32 %v4576, %v4578
    %v4580 = vrot.slane %v4572, %v4579
    %4582 = vset.pattern.permute.xlu0 0
    %4583 = vperm.xlu0 %4582, %v835
    %v4584 = vpop.permute.xlu0 %4583
    %v4587 = vunpack.c.l.s4 839922192
    %v4588 = vunpack.c.0.s8 %v4587
    %v4589 = vlaneseq
    %v4590 = vshrl.u32 %v4589, 7
    %v4591 = vsub.s32 %v4588, %v4590
    %v4592 = vrot.slane %v4584, %v4591
    %4594 = vset.pattern.permute.xlu0 0
    %4595 = vperm.xlu0 %4594, %v836
    %v4596 = vpop.permute.xlu0 %4595
    %v4599 = vunpack.c.l.s4 839922192
    %v4600 = vunpack.c.0.s8 %v4599
    %v4601 = vlaneseq
    %v4602 = vshrl.u32 %v4601, 7
    %v4603 = vsub.s32 %v4600, %v4602
    %v4604 = vrot.slane %v4596, %v4603
    %4606 = vset.pattern.permute.xlu0 0
    %4607 = vperm.xlu0 %4606, %v837
    %v4608 = vpop.permute.xlu0 %4607
    %v4611 = vunpack.c.l.s4 839922192
    %v4612 = vunpack.c.0.s8 %v4611
    %v4613 = vlaneseq
    %v4614 = vshrl.u32 %v4613, 7
    %v4615 = vsub.s32 %v4612, %v4614
    %v4616 = vrot.slane %v4608, %v4615
    %4618 = vset.pattern.permute.xlu0 0
    %4619 = vperm.xlu0 %4618, %v838
    %v4620 = vpop.permute.xlu0 %4619
    %v4623 = vunpack.c.l.s4 839922192
    %v4624 = vunpack.c.0.s8 %v4623
    %v4625 = vlaneseq
    %v4626 = vshrl.u32 %v4625, 7
    %v4627 = vsub.s32 %v4624, %v4626
    %v4628 = vrot.slane %v4620, %v4627
    %4630 = vset.pattern.permute.xlu0 0
    %4631 = vperm.xlu0 %4630, %v839
    %v4632 = vpop.permute.xlu0 %4631
    %v4635 = vunpack.c.l.s4 839922192
    %v4636 = vunpack.c.0.s8 %v4635
    %v4637 = vlaneseq
    %v4638 = vshrl.u32 %v4637, 7
    %v4639 = vsub.s32 %v4636, %v4638
    %v4640 = vrot.slane %v4632, %v4639
    %4642 = vset.pattern.permute.xlu0 0
    %4643 = vperm.xlu0 %4642, %v840
    %v4644 = vpop.permute.xlu0 %4643
    %v4647 = vunpack.c.l.s4 839922192
    %v4648 = vunpack.c.0.s8 %v4647
    %v4649 = vlaneseq
    %v4650 = vshrl.u32 %v4649, 7
    %v4651 = vsub.s32 %v4648, %v4650
    %v4652 = vrot.slane %v4644, %v4651
    %4654 = vset.pattern.permute.xlu0 0
    %4655 = vperm.xlu0 %4654, %v841
    %v4656 = vpop.permute.xlu0 %4655
    %v4659 = vunpack.c.l.s4 839922192
    %v4660 = vunpack.c.0.s8 %v4659
    %v4661 = vlaneseq
    %v4662 = vshrl.u32 %v4661, 7
    %v4663 = vsub.s32 %v4660, %v4662
    %v4664 = vrot.slane %v4656, %v4663
    %4666 = vset.pattern.permute.xlu0 0
    %4667 = vperm.xlu0 %4666, %v842
    %v4668 = vpop.permute.xlu0 %4667
    %v4671 = vunpack.c.l.s4 839922192
    %v4672 = vunpack.c.0.s8 %v4671
    %v4673 = vlaneseq
    %v4674 = vshrl.u32 %v4673, 7
    %v4675 = vsub.s32 %v4672, %v4674
    %v4676 = vrot.slane %v4668, %v4675
    %4678 = vset.pattern.permute.xlu0 0
    %4679 = vperm.xlu0 %4678, %v843
    %v4680 = vpop.permute.xlu0 %4679
    %v4683 = vunpack.c.l.s4 839922192
    %v4684 = vunpack.c.0.s8 %v4683
    %v4685 = vlaneseq
    %v4686 = vshrl.u32 %v4685, 7
    %v4687 = vsub.s32 %v4684, %v4686
    %v4688 = vrot.slane %v4680, %v4687
    %4690 = vset.pattern.permute.xlu0 0
    %4691 = vperm.xlu0 %4690, %v844
    %v4692 = vpop.permute.xlu0 %4691
    %v4695 = vunpack.c.l.s4 839922192
    %v4696 = vunpack.c.0.s8 %v4695
    %v4697 = vlaneseq
    %v4698 = vshrl.u32 %v4697, 7
    %v4699 = vsub.s32 %v4696, %v4698
    %v4700 = vrot.slane %v4692, %v4699
    %4702 = vset.pattern.permute.xlu0 0
    %4703 = vperm.xlu0 %4702, %v845
    %v4704 = vpop.permute.xlu0 %4703
    %v4707 = vunpack.c.l.s4 839922192
    %v4708 = vunpack.c.0.s8 %v4707
    %v4709 = vlaneseq
    %v4710 = vshrl.u32 %v4709, 7
    %v4711 = vsub.s32 %v4708, %v4710
    %v4712 = vrot.slane %v4704, %v4711
    %4714 = vset.pattern.permute.xlu0 0
    %4715 = vperm.xlu0 %4714, %v846
    %v4716 = vpop.permute.xlu0 %4715
    %v4719 = vunpack.c.l.s4 839922192
    %v4720 = vunpack.c.0.s8 %v4719
    %v4721 = vlaneseq
    %v4722 = vshrl.u32 %v4721, 7
    %v4723 = vsub.s32 %v4720, %v4722
    %v4724 = vrot.slane %v4716, %v4723
    %4726 = vset.pattern.permute.xlu0 0
    %4727 = vperm.xlu0 %4726, %v847
    %v4728 = vpop.permute.xlu0 %4727
    %v4731 = vunpack.c.l.s4 839922192
    %v4732 = vunpack.c.0.s8 %v4731
    %v4733 = vlaneseq
    %v4734 = vshrl.u32 %v4733, 7
    %v4735 = vsub.s32 %v4732, %v4734
    %v4736 = vrot.slane %v4728, %v4735
    %4738 = vset.pattern.permute.xlu0 0
    %4739 = vperm.xlu0 %4738, %v848
    %v4740 = vpop.permute.xlu0 %4739
    %v4743 = vunpack.c.l.s4 839922192
    %v4744 = vunpack.c.0.s8 %v4743
    %v4745 = vlaneseq
    %v4746 = vshrl.u32 %v4745, 7
    %v4747 = vsub.s32 %v4744, %v4746
    %v4748 = vrot.slane %v4740, %v4747
    %4750 = vset.pattern.permute.xlu0 0
    %4751 = vperm.xlu0 %4750, %v849
    %v4752 = vpop.permute.xlu0 %4751
    %v4755 = vunpack.c.l.s4 839922192
    %v4756 = vunpack.c.0.s8 %v4755
    %v4757 = vlaneseq
    %v4758 = vshrl.u32 %v4757, 7
    %v4759 = vsub.s32 %v4756, %v4758
    %v4760 = vrot.slane %v4752, %v4759
    %4762 = vset.pattern.permute.xlu0 0
    %4763 = vperm.xlu0 %4762, %v850
    %v4764 = vpop.permute.xlu0 %4763
    %v4767 = vunpack.c.l.s4 839922192
    %v4768 = vunpack.c.0.s8 %v4767
    %v4769 = vlaneseq
    %v4770 = vshrl.u32 %v4769, 7
    %v4771 = vsub.s32 %v4768, %v4770
    %v4772 = vrot.slane %v4764, %v4771
    %4774 = vset.pattern.permute.xlu0 0
    %4775 = vperm.xlu0 %4774, %v851
    %v4776 = vpop.permute.xlu0 %4775
    %v4779 = vunpack.c.l.s4 839922192
    %v4780 = vunpack.c.0.s8 %v4779
    %v4781 = vlaneseq
    %v4782 = vshrl.u32 %v4781, 7
    %v4783 = vsub.s32 %v4780, %v4782
    %v4784 = vrot.slane %v4776, %v4783
    %4786 = vset.pattern.permute.xlu0 0
    %4787 = vperm.xlu0 %4786, %v852
    %v4788 = vpop.permute.xlu0 %4787
    %v4791 = vunpack.c.l.s4 839922192
    %v4792 = vunpack.c.0.s8 %v4791
    %v4793 = vlaneseq
    %v4794 = vshrl.u32 %v4793, 7
    %v4795 = vsub.s32 %v4792, %v4794
    %v4796 = vrot.slane %v4788, %v4795
    %4798 = vset.pattern.permute.xlu0 0
    %4799 = vperm.xlu0 %4798, %v853
    %v4800 = vpop.permute.xlu0 %4799
    %v4803 = vunpack.c.l.s4 839922192
    %v4804 = vunpack.c.0.s8 %v4803
    %v4805 = vlaneseq
    %v4806 = vshrl.u32 %v4805, 7
    %v4807 = vsub.s32 %v4804, %v4806
    %v4808 = vrot.slane %v4800, %v4807
    %4810 = vset.pattern.permute.xlu0 0
    %4811 = vperm.xlu0 %4810, %v854
    %v4812 = vpop.permute.xlu0 %4811
    %v4815 = vunpack.c.l.s4 839922192
    %v4816 = vunpack.c.0.s8 %v4815
    %v4817 = vlaneseq
    %v4818 = vshrl.u32 %v4817, 7
    %v4819 = vsub.s32 %v4816, %v4818
    %v4820 = vrot.slane %v4812, %v4819
    %4822 = vset.pattern.permute.xlu0 0
    %4823 = vperm.xlu0 %4822, %v855
    %v4824 = vpop.permute.xlu0 %4823
    %v4827 = vunpack.c.l.s4 839922192
    %v4828 = vunpack.c.0.s8 %v4827
    %v4829 = vlaneseq
    %v4830 = vshrl.u32 %v4829, 7
    %v4831 = vsub.s32 %v4828, %v4830
    %v4832 = vrot.slane %v4824, %v4831
    %4834 = vset.pattern.permute.xlu0 0
    %4835 = vperm.xlu0 %4834, %v856
    %v4836 = vpop.permute.xlu0 %4835
    %v4839 = vunpack.c.l.s4 839922192
    %v4840 = vunpack.c.0.s8 %v4839
    %v4841 = vlaneseq
    %v4842 = vshrl.u32 %v4841, 7
    %v4843 = vsub.s32 %v4840, %v4842
    %v4844 = vrot.slane %v4836, %v4843
    %4846 = vset.pattern.permute.xlu0 0
    %4847 = vperm.xlu0 %4846, %v857
    %v4848 = vpop.permute.xlu0 %4847
    %v4851 = vunpack.c.l.s4 839922192
    %v4852 = vunpack.c.0.s8 %v4851
    %v4853 = vlaneseq
    %v4854 = vshrl.u32 %v4853, 7
    %v4855 = vsub.s32 %v4852, %v4854
    %v4856 = vrot.slane %v4848, %v4855
    %4858 = vset.pattern.permute.xlu0 0
    %4859 = vperm.xlu0 %4858, %v858
    %v4860 = vpop.permute.xlu0 %4859
    %v4863 = vunpack.c.l.s4 839922192
    %v4864 = vunpack.c.0.s8 %v4863
    %v4865 = vlaneseq
    %v4866 = vshrl.u32 %v4865, 7
    %v4867 = vsub.s32 %v4864, %v4866
    %v4868 = vrot.slane %v4860, %v4867
    %4870 = vset.pattern.permute.xlu0 0
    %4871 = vperm.xlu0 %4870, %v859
    %v4872 = vpop.permute.xlu0 %4871
    %v4875 = vunpack.c.l.s4 839922192
    %v4876 = vunpack.c.0.s8 %v4875
    %v4877 = vlaneseq
    %v4878 = vshrl.u32 %v4877, 7
    %v4879 = vsub.s32 %v4876, %v4878
    %v4880 = vrot.slane %v4872, %v4879
    %4882 = vset.pattern.permute.xlu0 0
    %4883 = vperm.xlu0 %4882, %v860
    %v4884 = vpop.permute.xlu0 %4883
    %v4887 = vunpack.c.l.s4 839922192
    %v4888 = vunpack.c.0.s8 %v4887
    %v4889 = vlaneseq
    %v4890 = vshrl.u32 %v4889, 7
    %v4891 = vsub.s32 %v4888, %v4890
    %v4892 = vrot.slane %v4884, %v4891
    %4894 = vset.pattern.permute.xlu0 0
    %4895 = vperm.xlu0 %4894, %v861
    %v4896 = vpop.permute.xlu0 %4895
    %v4899 = vunpack.c.l.s4 839922192
    %v4900 = vunpack.c.0.s8 %v4899
    %v4901 = vlaneseq
    %v4902 = vshrl.u32 %v4901, 7
    %v4903 = vsub.s32 %v4900, %v4902
    %v4904 = vrot.slane %v4896, %v4903
    %4906 = vset.pattern.permute.xlu0 0
    %4907 = vperm.xlu0 %4906, %v862
    %v4908 = vpop.permute.xlu0 %4907
    %v4911 = vunpack.c.l.s4 839922192
    %v4912 = vunpack.c.0.s8 %v4911
    %v4913 = vlaneseq
    %v4914 = vshrl.u32 %v4913, 7
    %v4915 = vsub.s32 %v4912, %v4914
    %v4916 = vrot.slane %v4908, %v4915
    %4918 = vset.pattern.permute.xlu0 0
    %4919 = vperm.xlu0 %4918, %v863
    %v4920 = vpop.permute.xlu0 %4919
    %v4923 = vunpack.c.l.s4 839922192
    %v4924 = vunpack.c.0.s8 %v4923
    %v4925 = vlaneseq
    %v4926 = vshrl.u32 %v4925, 7
    %v4927 = vsub.s32 %v4924, %v4926
    %v4928 = vrot.slane %v4920, %v4927
    %4930 = vset.pattern.permute.xlu0 0
    %4931 = vperm.xlu0 %4930, %v864
    %v4932 = vpop.permute.xlu0 %4931
    %v4935 = vunpack.c.l.s4 839922192
    %v4936 = vunpack.c.0.s8 %v4935
    %v4937 = vlaneseq
    %v4938 = vshrl.u32 %v4937, 7
    %v4939 = vsub.s32 %v4936, %v4938
    %v4940 = vrot.slane %v4932, %v4939
    %4942 = vset.pattern.permute.xlu0 0
    %4943 = vperm.xlu0 %4942, %v865
    %v4944 = vpop.permute.xlu0 %4943
    %v4947 = vunpack.c.l.s4 839922192
    %v4948 = vunpack.c.0.s8 %v4947
    %v4949 = vlaneseq
    %v4950 = vshrl.u32 %v4949, 7
    %v4951 = vsub.s32 %v4948, %v4950
    %v4952 = vrot.slane %v4944, %v4951
    %4954 = vset.pattern.permute.xlu0 0
    %4955 = vperm.xlu0 %4954, %v866
    %v4956 = vpop.permute.xlu0 %4955
    %v4959 = vunpack.c.l.s4 839922192
    %v4960 = vunpack.c.0.s8 %v4959
    %v4961 = vlaneseq
    %v4962 = vshrl.u32 %v4961, 7
    %v4963 = vsub.s32 %v4960, %v4962
    %v4964 = vrot.slane %v4956, %v4963
    %4966 = vset.pattern.permute.xlu0 0
    %4967 = vperm.xlu0 %4966, %v867
    %v4968 = vpop.permute.xlu0 %4967
    %v4971 = vunpack.c.l.s4 839922192
    %v4972 = vunpack.c.0.s8 %v4971
    %v4973 = vlaneseq
    %v4974 = vshrl.u32 %v4973, 7
    %v4975 = vsub.s32 %v4972, %v4974
    %v4976 = vrot.slane %v4968, %v4975
    %4978 = vset.pattern.permute.xlu0 0
    %4979 = vperm.xlu0 %4978, %v868
    %v4980 = vpop.permute.xlu0 %4979
    %v4983 = vunpack.c.l.s4 839922192
    %v4984 = vunpack.c.0.s8 %v4983
    %v4985 = vlaneseq
    %v4986 = vshrl.u32 %v4985, 7
    %v4987 = vsub.s32 %v4984, %v4986
    %v4988 = vrot.slane %v4980, %v4987
    %4990 = vset.pattern.permute.xlu0 0
    %4991 = vperm.xlu0 %4990, %v869
    %v4992 = vpop.permute.xlu0 %4991
    %v4995 = vunpack.c.l.s4 839922192
    %v4996 = vunpack.c.0.s8 %v4995
    %v4997 = vlaneseq
    %v4998 = vshrl.u32 %v4997, 7
    %v4999 = vsub.s32 %v4996, %v4998
    %v5000 = vrot.slane %v4992, %v4999
    %5002 = vset.pattern.permute.xlu0 0
    %5003 = vperm.xlu0 %5002, %v870
    %v5004 = vpop.permute.xlu0 %5003
    %v5007 = vunpack.c.l.s4 839922192
    %v5008 = vunpack.c.0.s8 %v5007
    %v5009 = vlaneseq
    %v5010 = vshrl.u32 %v5009, 7
    %v5011 = vsub.s32 %v5008, %v5010
    %v5012 = vrot.slane %v5004, %v5011
    %5014 = vset.pattern.permute.xlu0 0
    %5015 = vperm.xlu0 %5014, %v871
    %v5016 = vpop.permute.xlu0 %5015
    %v5019 = vunpack.c.l.s4 839922192
    %v5020 = vunpack.c.0.s8 %v5019
    %v5021 = vlaneseq
    %v5022 = vshrl.u32 %v5021, 7
    %v5023 = vsub.s32 %v5020, %v5022
    %v5024 = vrot.slane %v5016, %v5023
    %5026 = vset.pattern.permute.xlu0 0
    %5027 = vperm.xlu0 %5026, %v872
    %v5028 = vpop.permute.xlu0 %5027
    %v5031 = vunpack.c.l.s4 839922192
    %v5032 = vunpack.c.0.s8 %v5031
    %v5033 = vlaneseq
    %v5034 = vshrl.u32 %v5033, 7
    %v5035 = vsub.s32 %v5032, %v5034
    %v5036 = vrot.slane %v5028, %v5035
    %5038 = vset.pattern.permute.xlu0 0
    %5039 = vperm.xlu0 %5038, %v873
    %v5040 = vpop.permute.xlu0 %5039
    %v5043 = vunpack.c.l.s4 839922192
    %v5044 = vunpack.c.0.s8 %v5043
    %v5045 = vlaneseq
    %v5046 = vshrl.u32 %v5045, 7
    %v5047 = vsub.s32 %v5044, %v5046
    %v5048 = vrot.slane %v5040, %v5047
    %5050 = vset.pattern.permute.xlu0 0
    %5051 = vperm.xlu0 %5050, %v874
    %v5052 = vpop.permute.xlu0 %5051
    %v5055 = vunpack.c.l.s4 839922192
    %v5056 = vunpack.c.0.s8 %v5055
    %v5057 = vlaneseq
    %v5058 = vshrl.u32 %v5057, 7
    %v5059 = vsub.s32 %v5056, %v5058
    %v5060 = vrot.slane %v5052, %v5059
    %5062 = vset.pattern.permute.xlu0 0
    %5063 = vperm.xlu0 %5062, %v875
    %v5064 = vpop.permute.xlu0 %5063
    %v5067 = vunpack.c.l.s4 839922192
    %v5068 = vunpack.c.0.s8 %v5067
    %v5069 = vlaneseq
    %v5070 = vshrl.u32 %v5069, 7
    %v5071 = vsub.s32 %v5068, %v5070
    %v5072 = vrot.slane %v5064, %v5071
    %5074 = vset.pattern.permute.xlu0 0
    %5075 = vperm.xlu0 %5074, %v876
    %v5076 = vpop.permute.xlu0 %5075
    %v5079 = vunpack.c.l.s4 839922192
    %v5080 = vunpack.c.0.s8 %v5079
    %v5081 = vlaneseq
    %v5082 = vshrl.u32 %v5081, 7
    %v5083 = vsub.s32 %v5080, %v5082
    %v5084 = vrot.slane %v5076, %v5083
    %5086 = vset.pattern.permute.xlu0 0
    %5087 = vperm.xlu0 %5086, %v877
    %v5088 = vpop.permute.xlu0 %5087
    %v5091 = vunpack.c.l.s4 839922192
    %v5092 = vunpack.c.0.s8 %v5091
    %v5093 = vlaneseq
    %v5094 = vshrl.u32 %v5093, 7
    %v5095 = vsub.s32 %v5092, %v5094
    %v5096 = vrot.slane %v5088, %v5095
    %5098 = vset.pattern.permute.xlu0 0
    %5099 = vperm.xlu0 %5098, %v878
    %v5100 = vpop.permute.xlu0 %5099
    %v5103 = vunpack.c.l.s4 839922192
    %v5104 = vunpack.c.0.s8 %v5103
    %v5105 = vlaneseq
    %v5106 = vshrl.u32 %v5105, 7
    %v5107 = vsub.s32 %v5104, %v5106
    %v5108 = vrot.slane %v5100, %v5107
    %5110 = vset.pattern.permute.xlu0 0
    %5111 = vperm.xlu0 %5110, %v879
    %v5112 = vpop.permute.xlu0 %5111
    %v5115 = vunpack.c.l.s4 839922192
    %v5116 = vunpack.c.0.s8 %v5115
    %v5117 = vlaneseq
    %v5118 = vshrl.u32 %v5117, 7
    %v5119 = vsub.s32 %v5116, %v5118
    %v5120 = vrot.slane %v5112, %v5119
    %5122 = vset.pattern.permute.xlu0 0
    %5123 = vperm.xlu0 %5122, %v880
    %v5124 = vpop.permute.xlu0 %5123
    %v5127 = vunpack.c.l.s4 839922192
    %v5128 = vunpack.c.0.s8 %v5127
    %v5129 = vlaneseq
    %v5130 = vshrl.u32 %v5129, 7
    %v5131 = vsub.s32 %v5128, %v5130
    %v5132 = vrot.slane %v5124, %v5131
    %5134 = vset.pattern.permute.xlu0 0
    %5135 = vperm.xlu0 %5134, %v881
    %v5136 = vpop.permute.xlu0 %5135
    %v5139 = vunpack.c.l.s4 839922192
    %v5140 = vunpack.c.0.s8 %v5139
    %v5141 = vlaneseq
    %v5142 = vshrl.u32 %v5141, 7
    %v5143 = vsub.s32 %v5140, %v5142
    %v5144 = vrot.slane %v5136, %v5143
    %5146 = vset.pattern.permute.xlu0 0
    %5147 = vperm.xlu0 %5146, %v882
    %v5148 = vpop.permute.xlu0 %5147
    %v5151 = vunpack.c.l.s4 839922192
    %v5152 = vunpack.c.0.s8 %v5151
    %v5153 = vlaneseq
    %v5154 = vshrl.u32 %v5153, 7
    %v5155 = vsub.s32 %v5152, %v5154
    %v5156 = vrot.slane %v5148, %v5155
    %5158 = vset.pattern.permute.xlu0 0
    %5159 = vperm.xlu0 %5158, %v883
    %v5160 = vpop.permute.xlu0 %5159
    %v5163 = vunpack.c.l.s4 839922192
    %v5164 = vunpack.c.0.s8 %v5163
    %v5165 = vlaneseq
    %v5166 = vshrl.u32 %v5165, 7
    %v5167 = vsub.s32 %v5164, %v5166
    %v5168 = vrot.slane %v5160, %v5167
    %5170 = vset.pattern.permute.xlu0 0
    %5171 = vperm.xlu0 %5170, %v884
    %v5172 = vpop.permute.xlu0 %5171
    %v5175 = vunpack.c.l.s4 839922192
    %v5176 = vunpack.c.0.s8 %v5175
    %v5177 = vlaneseq
    %v5178 = vshrl.u32 %v5177, 7
    %v5179 = vsub.s32 %v5176, %v5178
    %v5180 = vrot.slane %v5172, %v5179
    %5182 = vset.pattern.permute.xlu0 0
    %5183 = vperm.xlu0 %5182, %v885
    %v5184 = vpop.permute.xlu0 %5183
    %v5187 = vunpack.c.l.s4 839922192
    %v5188 = vunpack.c.0.s8 %v5187
    %v5189 = vlaneseq
    %v5190 = vshrl.u32 %v5189, 7
    %v5191 = vsub.s32 %v5188, %v5190
    %v5192 = vrot.slane %v5184, %v5191
    %5194 = vset.pattern.permute.xlu0 0
    %5195 = vperm.xlu0 %5194, %v886
    %v5196 = vpop.permute.xlu0 %5195
    %v5199 = vunpack.c.l.s4 839922192
    %v5200 = vunpack.c.0.s8 %v5199
    %v5201 = vlaneseq
    %v5202 = vshrl.u32 %v5201, 7
    %v5203 = vsub.s32 %v5200, %v5202
    %v5204 = vrot.slane %v5196, %v5203
    %5206 = vset.pattern.permute.xlu0 0
    %5207 = vperm.xlu0 %5206, %v887
    %v5208 = vpop.permute.xlu0 %5207
    %v5211 = vunpack.c.l.s4 839922192
    %v5212 = vunpack.c.0.s8 %v5211
    %v5213 = vlaneseq
    %v5214 = vshrl.u32 %v5213, 7
    %v5215 = vsub.s32 %v5212, %v5214
    %v5216 = vrot.slane %v5208, %v5215
    %5218 = vset.pattern.permute.xlu0 0
    %5219 = vperm.xlu0 %5218, %v888
    %v5220 = vpop.permute.xlu0 %5219
    %v5223 = vunpack.c.l.s4 839922192
    %v5224 = vunpack.c.0.s8 %v5223
    %v5225 = vlaneseq
    %v5226 = vshrl.u32 %v5225, 7
    %v5227 = vsub.s32 %v5224, %v5226
    %v5228 = vrot.slane %v5220, %v5227
    %5230 = vset.pattern.permute.xlu0 0
    %5231 = vperm.xlu0 %5230, %v889
    %v5232 = vpop.permute.xlu0 %5231
    %v5235 = vunpack.c.l.s4 839922192
    %v5236 = vunpack.c.0.s8 %v5235
    %v5237 = vlaneseq
    %v5238 = vshrl.u32 %v5237, 7
    %v5239 = vsub.s32 %v5236, %v5238
    %v5240 = vrot.slane %v5232, %v5239
    %5242 = vset.pattern.permute.xlu0 0
    %5243 = vperm.xlu0 %5242, %v890
    %v5244 = vpop.permute.xlu0 %5243
    %v5247 = vunpack.c.l.s4 839922192
    %v5248 = vunpack.c.0.s8 %v5247
    %v5249 = vlaneseq
    %v5250 = vshrl.u32 %v5249, 7
    %v5251 = vsub.s32 %v5248, %v5250
    %v5252 = vrot.slane %v5244, %v5251
    %5254 = vset.pattern.permute.xlu0 0
    %5255 = vperm.xlu0 %5254, %v891
    %v5256 = vpop.permute.xlu0 %5255
    %v5259 = vunpack.c.l.s4 839922192
    %v5260 = vunpack.c.0.s8 %v5259
    %v5261 = vlaneseq
    %v5262 = vshrl.u32 %v5261, 7
    %v5263 = vsub.s32 %v5260, %v5262
    %v5264 = vrot.slane %v5256, %v5263
    %5266 = vset.pattern.permute.xlu0 0
    %5267 = vperm.xlu0 %5266, %v892
    %v5268 = vpop.permute.xlu0 %5267
    %v5271 = vunpack.c.l.s4 839922192
    %v5272 = vunpack.c.0.s8 %v5271
    %v5273 = vlaneseq
    %v5274 = vshrl.u32 %v5273, 7
    %v5275 = vsub.s32 %v5272, %v5274
    %v5276 = vrot.slane %v5268, %v5275
    %5278 = vset.pattern.permute.xlu0 0
    %5279 = vperm.xlu0 %5278, %v893
    %v5280 = vpop.permute.xlu0 %5279
    %v5283 = vunpack.c.l.s4 839922192
    %v5284 = vunpack.c.0.s8 %v5283
    %v5285 = vlaneseq
    %v5286 = vshrl.u32 %v5285, 7
    %v5287 = vsub.s32 %v5284, %v5286
    %v5288 = vrot.slane %v5280, %v5287
    %5290 = vset.pattern.permute.xlu0 0
    %5291 = vperm.xlu0 %5290, %v894
    %v5292 = vpop.permute.xlu0 %5291
    %v5295 = vunpack.c.l.s4 839922192
    %v5296 = vunpack.c.0.s8 %v5295
    %v5297 = vlaneseq
    %v5298 = vshrl.u32 %v5297, 7
    %v5299 = vsub.s32 %v5296, %v5298
    %v5300 = vrot.slane %v5292, %v5299
    %5302 = vset.pattern.permute.xlu0 0
    %5303 = vperm.xlu0 %5302, %v895
    %v5304 = vpop.permute.xlu0 %5303
    %v5307 = vunpack.c.l.s4 839922192
    %v5308 = vunpack.c.0.s8 %v5307
    %v5309 = vlaneseq
    %v5310 = vshrl.u32 %v5309, 7
    %v5311 = vsub.s32 %v5308, %v5310
    %v5312 = vrot.slane %v5304, %v5311
    %5314 = vset.pattern.permute.xlu0 0
    %5315 = vperm.xlu0 %5314, %v896
    %v5316 = vpop.permute.xlu0 %5315
    %v5319 = vunpack.c.l.s4 839922192
    %v5320 = vunpack.c.0.s8 %v5319
    %v5321 = vlaneseq
    %v5322 = vshrl.u32 %v5321, 7
    %v5323 = vsub.s32 %v5320, %v5322
    %v5324 = vrot.slane %v5316, %v5323
    %5326 = vset.pattern.permute.xlu0 0
    %5327 = vperm.xlu0 %5326, %v897
    %v5328 = vpop.permute.xlu0 %5327
    %v5331 = vunpack.c.l.s4 839922192
    %v5332 = vunpack.c.0.s8 %v5331
    %v5333 = vlaneseq
    %v5334 = vshrl.u32 %v5333, 7
    %v5335 = vsub.s32 %v5332, %v5334
    %v5336 = vrot.slane %v5328, %v5335
    %5338 = vset.pattern.permute.xlu0 0
    %5339 = vperm.xlu0 %5338, %v898
    %v5340 = vpop.permute.xlu0 %5339
    %v5343 = vunpack.c.l.s4 839922192
    %v5344 = vunpack.c.0.s8 %v5343
    %v5345 = vlaneseq
    %v5346 = vshrl.u32 %v5345, 7
    %v5347 = vsub.s32 %v5344, %v5346
    %v5348 = vrot.slane %v5340, %v5347
    %5350 = vset.pattern.permute.xlu0 0
    %5351 = vperm.xlu0 %5350, %v899
    %v5352 = vpop.permute.xlu0 %5351
    %v5355 = vunpack.c.l.s4 839922192
    %v5356 = vunpack.c.0.s8 %v5355
    %v5357 = vlaneseq
    %v5358 = vshrl.u32 %v5357, 7
    %v5359 = vsub.s32 %v5356, %v5358
    %v5360 = vrot.slane %v5352, %v5359
    %5362 = vset.pattern.permute.xlu0 0
    %5363 = vperm.xlu0 %5362, %v900
    %v5364 = vpop.permute.xlu0 %5363
    %v5367 = vunpack.c.l.s4 839922192
    %v5368 = vunpack.c.0.s8 %v5367
    %v5369 = vlaneseq
    %v5370 = vshrl.u32 %v5369, 7
    %v5371 = vsub.s32 %v5368, %v5370
    %v5372 = vrot.slane %v5364, %v5371
    %5374 = vset.pattern.permute.xlu0 0
    %5375 = vperm.xlu0 %5374, %v901
    %v5376 = vpop.permute.xlu0 %5375
    %v5379 = vunpack.c.l.s4 839922192
    %v5380 = vunpack.c.0.s8 %v5379
    %v5381 = vlaneseq
    %v5382 = vshrl.u32 %v5381, 7
    %v5383 = vsub.s32 %v5380, %v5382
    %v5384 = vrot.slane %v5376, %v5383
    %5386 = vset.pattern.permute.xlu0 0
    %5387 = vperm.xlu0 %5386, %v902
    %v5388 = vpop.permute.xlu0 %5387
    %v5391 = vunpack.c.l.s4 839922192
    %v5392 = vunpack.c.0.s8 %v5391
    %v5393 = vlaneseq
    %v5394 = vshrl.u32 %v5393, 7
    %v5395 = vsub.s32 %v5392, %v5394
    %v5396 = vrot.slane %v5388, %v5395
    %5398 = vset.pattern.permute.xlu0 0
    %5399 = vperm.xlu0 %5398, %v903
    %v5400 = vpop.permute.xlu0 %5399
    %v5403 = vunpack.c.l.s4 839922192
    %v5404 = vunpack.c.0.s8 %v5403
    %v5405 = vlaneseq
    %v5406 = vshrl.u32 %v5405, 7
    %v5407 = vsub.s32 %v5404, %v5406
    %v5408 = vrot.slane %v5400, %v5407
    %5410 = vset.pattern.permute.xlu0 0
    %5411 = vperm.xlu0 %5410, %v904
    %v5412 = vpop.permute.xlu0 %5411
    %v5415 = vunpack.c.l.s4 839922192
    %v5416 = vunpack.c.0.s8 %v5415
    %v5417 = vlaneseq
    %v5418 = vshrl.u32 %v5417, 7
    %v5419 = vsub.s32 %v5416, %v5418
    %v5420 = vrot.slane %v5412, %v5419
    %5422 = vset.pattern.permute.xlu0 0
    %5423 = vperm.xlu0 %5422, %v905
    %v5424 = vpop.permute.xlu0 %5423
    %v5427 = vunpack.c.l.s4 839922192
    %v5428 = vunpack.c.0.s8 %v5427
    %v5429 = vlaneseq
    %v5430 = vshrl.u32 %v5429, 7
    %v5431 = vsub.s32 %v5428, %v5430
    %v5432 = vrot.slane %v5424, %v5431
    %5434 = vset.pattern.permute.xlu0 0
    %5435 = vperm.xlu0 %5434, %v906
    %v5436 = vpop.permute.xlu0 %5435
    %v5439 = vunpack.c.l.s4 839922192
    %v5440 = vunpack.c.0.s8 %v5439
    %v5441 = vlaneseq
    %v5442 = vshrl.u32 %v5441, 7
    %v5443 = vsub.s32 %v5440, %v5442
    %v5444 = vrot.slane %v5436, %v5443
    %5446 = vset.pattern.permute.xlu0 0
    %5447 = vperm.xlu0 %5446, %v907
    %v5448 = vpop.permute.xlu0 %5447
    %v5451 = vunpack.c.l.s4 839922192
    %v5452 = vunpack.c.0.s8 %v5451
    %v5453 = vlaneseq
    %v5454 = vshrl.u32 %v5453, 7
    %v5455 = vsub.s32 %v5452, %v5454
    %v5456 = vrot.slane %v5448, %v5455
    %5458 = vset.pattern.permute.xlu0 0
    %5459 = vperm.xlu0 %5458, %v908
    %v5460 = vpop.permute.xlu0 %5459
    %v5463 = vunpack.c.l.s4 839922192
    %v5464 = vunpack.c.0.s8 %v5463
    %v5465 = vlaneseq
    %v5466 = vshrl.u32 %v5465, 7
    %v5467 = vsub.s32 %v5464, %v5466
    %v5468 = vrot.slane %v5460, %v5467
    %5470 = vset.pattern.permute.xlu0 0
    %5471 = vperm.xlu0 %5470, %v909
    %v5472 = vpop.permute.xlu0 %5471
    %v5475 = vunpack.c.l.s4 839922192
    %v5476 = vunpack.c.0.s8 %v5475
    %v5477 = vlaneseq
    %v5478 = vshrl.u32 %v5477, 7
    %v5479 = vsub.s32 %v5476, %v5478
    %v5480 = vrot.slane %v5472, %v5479
    %5482 = vset.pattern.permute.xlu0 0
    %5483 = vperm.xlu0 %5482, %v910
    %v5484 = vpop.permute.xlu0 %5483
    %v5487 = vunpack.c.l.s4 839922192
    %v5488 = vunpack.c.0.s8 %v5487
    %v5489 = vlaneseq
    %v5490 = vshrl.u32 %v5489, 7
    %v5491 = vsub.s32 %v5488, %v5490
    %v5492 = vrot.slane %v5484, %v5491
    %5494 = vset.pattern.permute.xlu0 0
    %5495 = vperm.xlu0 %5494, %v911
    %v5496 = vpop.permute.xlu0 %5495
    %v5499 = vunpack.c.l.s4 839922192
    %v5500 = vunpack.c.0.s8 %v5499
    %v5501 = vlaneseq
    %v5502 = vshrl.u32 %v5501, 7
    %v5503 = vsub.s32 %v5500, %v5502
    %v5504 = vrot.slane %v5496, %v5503
    %5506 = vset.pattern.permute.xlu0 0
    %5507 = vperm.xlu0 %5506, %v912
    %v5508 = vpop.permute.xlu0 %5507
    %v5511 = vunpack.c.l.s4 839922192
    %v5512 = vunpack.c.0.s8 %v5511
    %v5513 = vlaneseq
    %v5514 = vshrl.u32 %v5513, 7
    %v5515 = vsub.s32 %v5512, %v5514
    %v5516 = vrot.slane %v5508, %v5515
    %5518 = vset.pattern.permute.xlu0 0
    %5519 = vperm.xlu0 %5518, %v913
    %v5520 = vpop.permute.xlu0 %5519
    %v5523 = vunpack.c.l.s4 839922192
    %v5524 = vunpack.c.0.s8 %v5523
    %v5525 = vlaneseq
    %v5526 = vshrl.u32 %v5525, 7
    %v5527 = vsub.s32 %v5524, %v5526
    %v5528 = vrot.slane %v5520, %v5527
    %5530 = vset.pattern.permute.xlu0 0
    %5531 = vperm.xlu0 %5530, %v914
    %v5532 = vpop.permute.xlu0 %5531
    %v5535 = vunpack.c.l.s4 839922192
    %v5536 = vunpack.c.0.s8 %v5535
    %v5537 = vlaneseq
    %v5538 = vshrl.u32 %v5537, 7
    %v5539 = vsub.s32 %v5536, %v5538
    %v5540 = vrot.slane %v5532, %v5539
    %5542 = vset.pattern.permute.xlu0 0
    %5543 = vperm.xlu0 %5542, %v915
    %v5544 = vpop.permute.xlu0 %5543
    %v5547 = vunpack.c.l.s4 839922192
    %v5548 = vunpack.c.0.s8 %v5547
    %v5549 = vlaneseq
    %v5550 = vshrl.u32 %v5549, 7
    %v5551 = vsub.s32 %v5548, %v5550
    %v5552 = vrot.slane %v5544, %v5551
    %5554 = vset.pattern.permute.xlu0 0
    %5555 = vperm.xlu0 %5554, %v916
    %v5556 = vpop.permute.xlu0 %5555
    %v5559 = vunpack.c.l.s4 839922192
    %v5560 = vunpack.c.0.s8 %v5559
    %v5561 = vlaneseq
    %v5562 = vshrl.u32 %v5561, 7
    %v5563 = vsub.s32 %v5560, %v5562
    %v5564 = vrot.slane %v5556, %v5563
    %5566 = vset.pattern.permute.xlu0 0
    %5567 = vperm.xlu0 %5566, %v917
    %v5568 = vpop.permute.xlu0 %5567
    %v5571 = vunpack.c.l.s4 839922192
    %v5572 = vunpack.c.0.s8 %v5571
    %v5573 = vlaneseq
    %v5574 = vshrl.u32 %v5573, 7
    %v5575 = vsub.s32 %v5572, %v5574
    %v5576 = vrot.slane %v5568, %v5575
    %5578 = vset.pattern.permute.xlu0 0
    %5579 = vperm.xlu0 %5578, %v918
    %v5580 = vpop.permute.xlu0 %5579
    %v5583 = vunpack.c.l.s4 839922192
    %v5584 = vunpack.c.0.s8 %v5583
    %v5585 = vlaneseq
    %v5586 = vshrl.u32 %v5585, 7
    %v5587 = vsub.s32 %v5584, %v5586
    %v5588 = vrot.slane %v5580, %v5587
    %5590 = vset.pattern.permute.xlu0 0
    %5591 = vperm.xlu0 %5590, %v919
    %v5592 = vpop.permute.xlu0 %5591
    %v5595 = vunpack.c.l.s4 839922192
    %v5596 = vunpack.c.0.s8 %v5595
    %v5597 = vlaneseq
    %v5598 = vshrl.u32 %v5597, 7
    %v5599 = vsub.s32 %v5596, %v5598
    %v5600 = vrot.slane %v5592, %v5599
    %5602 = vset.pattern.permute.xlu0 0
    %5603 = vperm.xlu0 %5602, %v920
    %v5604 = vpop.permute.xlu0 %5603
    %v5607 = vunpack.c.l.s4 839922192
    %v5608 = vunpack.c.0.s8 %v5607
    %v5609 = vlaneseq
    %v5610 = vshrl.u32 %v5609, 7
    %v5611 = vsub.s32 %v5608, %v5610
    %v5612 = vrot.slane %v5604, %v5611
    %5614 = vset.pattern.permute.xlu0 0
    %5615 = vperm.xlu0 %5614, %v921
    %v5616 = vpop.permute.xlu0 %5615
    %v5619 = vunpack.c.l.s4 839922192
    %v5620 = vunpack.c.0.s8 %v5619
    %v5621 = vlaneseq
    %v5622 = vshrl.u32 %v5621, 7
    %v5623 = vsub.s32 %v5620, %v5622
    %v5624 = vrot.slane %v5616, %v5623
    %5626 = vset.pattern.permute.xlu0 0
    %5627 = vperm.xlu0 %5626, %v922
    %v5628 = vpop.permute.xlu0 %5627
    %v5631 = vunpack.c.l.s4 839922192
    %v5632 = vunpack.c.0.s8 %v5631
    %v5633 = vlaneseq
    %v5634 = vshrl.u32 %v5633, 7
    %v5635 = vsub.s32 %v5632, %v5634
    %v5636 = vrot.slane %v5628, %v5635
    %5638 = vset.pattern.permute.xlu0 0
    %5639 = vperm.xlu0 %5638, %v923
    %v5640 = vpop.permute.xlu0 %5639
    %v5643 = vunpack.c.l.s4 839922192
    %v5644 = vunpack.c.0.s8 %v5643
    %v5645 = vlaneseq
    %v5646 = vshrl.u32 %v5645, 7
    %v5647 = vsub.s32 %v5644, %v5646
    %v5648 = vrot.slane %v5640, %v5647
    %5650 = vset.pattern.permute.xlu0 0
    %5651 = vperm.xlu0 %5650, %v924
    %v5652 = vpop.permute.xlu0 %5651
    %v5655 = vunpack.c.l.s4 839922192
    %v5656 = vunpack.c.0.s8 %v5655
    %v5657 = vlaneseq
    %v5658 = vshrl.u32 %v5657, 7
    %v5659 = vsub.s32 %v5656, %v5658
    %v5660 = vrot.slane %v5652, %v5659
    %5662 = vset.pattern.permute.xlu0 0
    %5663 = vperm.xlu0 %5662, %v925
    %v5664 = vpop.permute.xlu0 %5663
    %v5667 = vunpack.c.l.s4 839922192
    %v5668 = vunpack.c.0.s8 %v5667
    %v5669 = vlaneseq
    %v5670 = vshrl.u32 %v5669, 7
    %v5671 = vsub.s32 %v5668, %v5670
    %v5672 = vrot.slane %v5664, %v5671
    %5674 = vset.pattern.permute.xlu0 0
    %5675 = vperm.xlu0 %5674, %v926
    %v5676 = vpop.permute.xlu0 %5675
    %v5679 = vunpack.c.l.s4 839922192
    %v5680 = vunpack.c.0.s8 %v5679
    %v5681 = vlaneseq
    %v5682 = vshrl.u32 %v5681, 7
    %v5683 = vsub.s32 %v5680, %v5682
    %v5684 = vrot.slane %v5676, %v5683
    %5686 = vset.pattern.permute.xlu0 0
    %5687 = vperm.xlu0 %5686, %v927
    %v5688 = vpop.permute.xlu0 %5687
    %v5691 = vunpack.c.l.s4 839922192
    %v5692 = vunpack.c.0.s8 %v5691
    %v5693 = vlaneseq
    %v5694 = vshrl.u32 %v5693, 7
    %v5695 = vsub.s32 %v5692, %v5694
    %v5696 = vrot.slane %v5688, %v5695
    %5698 = vset.pattern.permute.xlu0 0
    %5699 = vperm.xlu0 %5698, %v928
    %v5700 = vpop.permute.xlu0 %5699
    %v5703 = vunpack.c.l.s4 839922192
    %v5704 = vunpack.c.0.s8 %v5703
    %v5705 = vlaneseq
    %v5706 = vshrl.u32 %v5705, 7
    %v5707 = vsub.s32 %v5704, %v5706
    %v5708 = vrot.slane %v5700, %v5707
    %5710 = vset.pattern.permute.xlu0 0
    %5711 = vperm.xlu0 %5710, %v929
    %v5712 = vpop.permute.xlu0 %5711
    %v5715 = vunpack.c.l.s4 839922192
    %v5716 = vunpack.c.0.s8 %v5715
    %v5717 = vlaneseq
    %v5718 = vshrl.u32 %v5717, 7
    %v5719 = vsub.s32 %v5716, %v5718
    %v5720 = vrot.slane %v5712, %v5719
    %5722 = vset.pattern.permute.xlu0 0
    %5723 = vperm.xlu0 %5722, %v930
    %v5724 = vpop.permute.xlu0 %5723
    %v5727 = vunpack.c.l.s4 839922192
    %v5728 = vunpack.c.0.s8 %v5727
    %v5729 = vlaneseq
    %v5730 = vshrl.u32 %v5729, 7
    %v5731 = vsub.s32 %v5728, %v5730
    %v5732 = vrot.slane %v5724, %v5731
    %5734 = vset.pattern.permute.xlu0 0
    %5735 = vperm.xlu0 %5734, %v931
    %v5736 = vpop.permute.xlu0 %5735
    %v5739 = vunpack.c.l.s4 839922192
    %v5740 = vunpack.c.0.s8 %v5739
    %v5741 = vlaneseq
    %v5742 = vshrl.u32 %v5741, 7
    %v5743 = vsub.s32 %v5740, %v5742
    %v5744 = vrot.slane %v5736, %v5743
    %5746 = vset.pattern.permute.xlu0 0
    %5747 = vperm.xlu0 %5746, %v932
    %v5748 = vpop.permute.xlu0 %5747
    %v5751 = vunpack.c.l.s4 839922192
    %v5752 = vunpack.c.0.s8 %v5751
    %v5753 = vlaneseq
    %v5754 = vshrl.u32 %v5753, 7
    %v5755 = vsub.s32 %v5752, %v5754
    %v5756 = vrot.slane %v5748, %v5755
    %5758 = vset.pattern.permute.xlu0 0
    %5759 = vperm.xlu0 %5758, %v933
    %v5760 = vpop.permute.xlu0 %5759
    %v5763 = vunpack.c.l.s4 839922192
    %v5764 = vunpack.c.0.s8 %v5763
    %v5765 = vlaneseq
    %v5766 = vshrl.u32 %v5765, 7
    %v5767 = vsub.s32 %v5764, %v5766
    %v5768 = vrot.slane %v5760, %v5767
    %5770 = vset.pattern.permute.xlu0 0
    %5771 = vperm.xlu0 %5770, %v934
    %v5772 = vpop.permute.xlu0 %5771
    %v5775 = vunpack.c.l.s4 839922192
    %v5776 = vunpack.c.0.s8 %v5775
    %v5777 = vlaneseq
    %v5778 = vshrl.u32 %v5777, 7
    %v5779 = vsub.s32 %v5776, %v5778
    %v5780 = vrot.slane %v5772, %v5779
    %5782 = vset.pattern.permute.xlu0 0
    %5783 = vperm.xlu0 %5782, %v935
    %v5784 = vpop.permute.xlu0 %5783
    %v5787 = vunpack.c.l.s4 839922192
    %v5788 = vunpack.c.0.s8 %v5787
    %v5789 = vlaneseq
    %v5790 = vshrl.u32 %v5789, 7
    %v5791 = vsub.s32 %v5788, %v5790
    %v5792 = vrot.slane %v5784, %v5791
    %5794 = vset.pattern.permute.xlu0 0
    %5795 = vperm.xlu0 %5794, %v936
    %v5796 = vpop.permute.xlu0 %5795
    %v5799 = vunpack.c.l.s4 839922192
    %v5800 = vunpack.c.0.s8 %v5799
    %v5801 = vlaneseq
    %v5802 = vshrl.u32 %v5801, 7
    %v5803 = vsub.s32 %v5800, %v5802
    %v5804 = vrot.slane %v5796, %v5803
    %5806 = vset.pattern.permute.xlu0 0
    %5807 = vperm.xlu0 %5806, %v937
    %v5808 = vpop.permute.xlu0 %5807
    %v5811 = vunpack.c.l.s4 839922192
    %v5812 = vunpack.c.0.s8 %v5811
    %v5813 = vlaneseq
    %v5814 = vshrl.u32 %v5813, 7
    %v5815 = vsub.s32 %v5812, %v5814
    %v5816 = vrot.slane %v5808, %v5815
    %5818 = vset.pattern.permute.xlu0 0
    %5819 = vperm.xlu0 %5818, %v938
    %v5820 = vpop.permute.xlu0 %5819
    %v5823 = vunpack.c.l.s4 839922192
    %v5824 = vunpack.c.0.s8 %v5823
    %v5825 = vlaneseq
    %v5826 = vshrl.u32 %v5825, 7
    %v5827 = vsub.s32 %v5824, %v5826
    %v5828 = vrot.slane %v5820, %v5827
    %5830 = vset.pattern.permute.xlu0 0
    %5831 = vperm.xlu0 %5830, %v939
    %v5832 = vpop.permute.xlu0 %5831
    %v5835 = vunpack.c.l.s4 839922192
    %v5836 = vunpack.c.0.s8 %v5835
    %v5837 = vlaneseq
    %v5838 = vshrl.u32 %v5837, 7
    %v5839 = vsub.s32 %v5836, %v5838
    %v5840 = vrot.slane %v5832, %v5839
    %5842 = vset.pattern.permute.xlu0 0
    %5843 = vperm.xlu0 %5842, %v940
    %v5844 = vpop.permute.xlu0 %5843
    %v5847 = vunpack.c.l.s4 839922192
    %v5848 = vunpack.c.0.s8 %v5847
    %v5849 = vlaneseq
    %v5850 = vshrl.u32 %v5849, 7
    %v5851 = vsub.s32 %v5848, %v5850
    %v5852 = vrot.slane %v5844, %v5851
    %5854 = vset.pattern.permute.xlu0 0
    %5855 = vperm.xlu0 %5854, %v941
    %v5856 = vpop.permute.xlu0 %5855
    %v5859 = vunpack.c.l.s4 839922192
    %v5860 = vunpack.c.0.s8 %v5859
    %v5861 = vlaneseq
    %v5862 = vshrl.u32 %v5861, 7
    %v5863 = vsub.s32 %v5860, %v5862
    %v5864 = vrot.slane %v5856, %v5863
    %5866 = vset.pattern.permute.xlu0 0
    %5867 = vperm.xlu0 %5866, %v942
    %v5868 = vpop.permute.xlu0 %5867
    %v5871 = vunpack.c.l.s4 839922192
    %v5872 = vunpack.c.0.s8 %v5871
    %v5873 = vlaneseq
    %v5874 = vshrl.u32 %v5873, 7
    %v5875 = vsub.s32 %v5872, %v5874
    %v5876 = vrot.slane %v5868, %v5875
    %5878 = vset.pattern.permute.xlu0 0
    %5879 = vperm.xlu0 %5878, %v943
    %v5880 = vpop.permute.xlu0 %5879
    %v5883 = vunpack.c.l.s4 839922192
    %v5884 = vunpack.c.0.s8 %v5883
    %v5885 = vlaneseq
    %v5886 = vshrl.u32 %v5885, 7
    %v5887 = vsub.s32 %v5884, %v5886
    %v5888 = vrot.slane %v5880, %v5887
    %5890 = vset.pattern.permute.xlu0 0
    %5891 = vperm.xlu0 %5890, %v944
    %v5892 = vpop.permute.xlu0 %5891
    %v5895 = vunpack.c.l.s4 839922192
    %v5896 = vunpack.c.0.s8 %v5895
    %v5897 = vlaneseq
    %v5898 = vshrl.u32 %v5897, 7
    %v5899 = vsub.s32 %v5896, %v5898
    %v5900 = vrot.slane %v5892, %v5899
    %5902 = vset.pattern.permute.xlu0 0
    %5903 = vperm.xlu0 %5902, %v945
    %v5904 = vpop.permute.xlu0 %5903
    %v5907 = vunpack.c.l.s4 839922192
    %v5908 = vunpack.c.0.s8 %v5907
    %v5909 = vlaneseq
    %v5910 = vshrl.u32 %v5909, 7
    %v5911 = vsub.s32 %v5908, %v5910
    %v5912 = vrot.slane %v5904, %v5911
    %5914 = vset.pattern.permute.xlu0 0
    %5915 = vperm.xlu0 %5914, %v946
    %v5916 = vpop.permute.xlu0 %5915
    %v5919 = vunpack.c.l.s4 839922192
    %v5920 = vunpack.c.0.s8 %v5919
    %v5921 = vlaneseq
    %v5922 = vshrl.u32 %v5921, 7
    %v5923 = vsub.s32 %v5920, %v5922
    %v5924 = vrot.slane %v5916, %v5923
    %5926 = vset.pattern.permute.xlu0 0
    %5927 = vperm.xlu0 %5926, %v947
    %v5928 = vpop.permute.xlu0 %5927
    %v5931 = vunpack.c.l.s4 839922192
    %v5932 = vunpack.c.0.s8 %v5931
    %v5933 = vlaneseq
    %v5934 = vshrl.u32 %v5933, 7
    %v5935 = vsub.s32 %v5932, %v5934
    %v5936 = vrot.slane %v5928, %v5935
    %5938 = vset.pattern.permute.xlu0 0
    %5939 = vperm.xlu0 %5938, %v948
    %v5940 = vpop.permute.xlu0 %5939
    %v5943 = vunpack.c.l.s4 839922192
    %v5944 = vunpack.c.0.s8 %v5943
    %v5945 = vlaneseq
    %v5946 = vshrl.u32 %v5945, 7
    %v5947 = vsub.s32 %v5944, %v5946
    %v5948 = vrot.slane %v5940, %v5947
    %5950 = vset.pattern.permute.xlu0 0
    %5951 = vperm.xlu0 %5950, %v949
    %v5952 = vpop.permute.xlu0 %5951
    %v5955 = vunpack.c.l.s4 839922192
    %v5956 = vunpack.c.0.s8 %v5955
    %v5957 = vlaneseq
    %v5958 = vshrl.u32 %v5957, 7
    %v5959 = vsub.s32 %v5956, %v5958
    %v5960 = vrot.slane %v5952, %v5959
    %5962 = vset.pattern.permute.xlu0 0
    %5963 = vperm.xlu0 %5962, %v950
    %v5964 = vpop.permute.xlu0 %5963
    %v5967 = vunpack.c.l.s4 839922192
    %v5968 = vunpack.c.0.s8 %v5967
    %v5969 = vlaneseq
    %v5970 = vshrl.u32 %v5969, 7
    %v5971 = vsub.s32 %v5968, %v5970
    %v5972 = vrot.slane %v5964, %v5971
    %5974 = vset.pattern.permute.xlu0 0
    %5975 = vperm.xlu0 %5974, %v951
    %v5976 = vpop.permute.xlu0 %5975
    %v5979 = vunpack.c.l.s4 839922192
    %v5980 = vunpack.c.0.s8 %v5979
    %v5981 = vlaneseq
    %v5982 = vshrl.u32 %v5981, 7
    %v5983 = vsub.s32 %v5980, %v5982
    %v5984 = vrot.slane %v5976, %v5983
    %5986 = vset.pattern.permute.xlu0 0
    %5987 = vperm.xlu0 %5986, %v952
    %v5988 = vpop.permute.xlu0 %5987
    %v5991 = vunpack.c.l.s4 839922192
    %v5992 = vunpack.c.0.s8 %v5991
    %v5993 = vlaneseq
    %v5994 = vshrl.u32 %v5993, 7
    %v5995 = vsub.s32 %v5992, %v5994
    %v5996 = vrot.slane %v5988, %v5995
    %5998 = vset.pattern.permute.xlu0 0
    %5999 = vperm.xlu0 %5998, %v953
    %v6000 = vpop.permute.xlu0 %5999
    %v6003 = vunpack.c.l.s4 839922192
    %v6004 = vunpack.c.0.s8 %v6003
    %v6005 = vlaneseq
    %v6006 = vshrl.u32 %v6005, 7
    %v6007 = vsub.s32 %v6004, %v6006
    %v6008 = vrot.slane %v6000, %v6007
    %6010 = vset.pattern.permute.xlu0 0
    %6011 = vperm.xlu0 %6010, %v954
    %v6012 = vpop.permute.xlu0 %6011
    %v6015 = vunpack.c.l.s4 839922192
    %v6016 = vunpack.c.0.s8 %v6015
    %v6017 = vlaneseq
    %v6018 = vshrl.u32 %v6017, 7
    %v6019 = vsub.s32 %v6016, %v6018
    %v6020 = vrot.slane %v6012, %v6019
    %6022 = vset.pattern.permute.xlu0 0
    %6023 = vperm.xlu0 %6022, %v955
    %v6024 = vpop.permute.xlu0 %6023
    %v6027 = vunpack.c.l.s4 839922192
    %v6028 = vunpack.c.0.s8 %v6027
    %v6029 = vlaneseq
    %v6030 = vshrl.u32 %v6029, 7
    %v6031 = vsub.s32 %v6028, %v6030
    %v6032 = vrot.slane %v6024, %v6031
    %6034 = vset.pattern.permute.xlu0 0
    %6035 = vperm.xlu0 %6034, %v956
    %v6036 = vpop.permute.xlu0 %6035
    %v6039 = vunpack.c.l.s4 839922192
    %v6040 = vunpack.c.0.s8 %v6039
    %v6041 = vlaneseq
    %v6042 = vshrl.u32 %v6041, 7
    %v6043 = vsub.s32 %v6040, %v6042
    %v6044 = vrot.slane %v6036, %v6043
    %6046 = vset.pattern.permute.xlu0 0
    %6047 = vperm.xlu0 %6046, %v957
    %v6048 = vpop.permute.xlu0 %6047
    %v6051 = vunpack.c.l.s4 839922192
    %v6052 = vunpack.c.0.s8 %v6051
    %v6053 = vlaneseq
    %v6054 = vshrl.u32 %v6053, 7
    %v6055 = vsub.s32 %v6052, %v6054
    %v6056 = vrot.slane %v6048, %v6055
    %6058 = vset.pattern.permute.xlu0 0
    %6059 = vperm.xlu0 %6058, %v958
    %v6060 = vpop.permute.xlu0 %6059
    %v6063 = vunpack.c.l.s4 839922192
    %v6064 = vunpack.c.0.s8 %v6063
    %v6065 = vlaneseq
    %v6066 = vshrl.u32 %v6065, 7
    %v6067 = vsub.s32 %v6064, %v6066
    %v6068 = vrot.slane %v6060, %v6067
    %6070 = vset.pattern.permute.xlu0 0
    %6071 = vperm.xlu0 %6070, %v959
    %v6072 = vpop.permute.xlu0 %6071
    %v6075 = vunpack.c.l.s4 839922192
    %v6076 = vunpack.c.0.s8 %v6075
    %v6077 = vlaneseq
    %v6078 = vshrl.u32 %v6077, 7
    %v6079 = vsub.s32 %v6076, %v6078
    %v6080 = vrot.slane %v6072, %v6079
    %6082 = vset.pattern.permute.xlu0 0
    %6083 = vperm.xlu0 %6082, %v960
    %v6084 = vpop.permute.xlu0 %6083
    %v6087 = vunpack.c.l.s4 839922192
    %v6088 = vunpack.c.0.s8 %v6087
    %v6089 = vlaneseq
    %v6090 = vshrl.u32 %v6089, 7
    %v6091 = vsub.s32 %v6088, %v6090
    %v6092 = vrot.slane %v6084, %v6091
    %6094 = vset.pattern.permute.xlu0 0
    %6095 = vperm.xlu0 %6094, %v961
    %v6096 = vpop.permute.xlu0 %6095
    %v6099 = vunpack.c.l.s4 839922192
    %v6100 = vunpack.c.0.s8 %v6099
    %v6101 = vlaneseq
    %v6102 = vshrl.u32 %v6101, 7
    %v6103 = vsub.s32 %v6100, %v6102
    %v6104 = vrot.slane %v6096, %v6103
    %6106 = vset.pattern.permute.xlu0 0
    %6107 = vperm.xlu0 %6106, %v962
    %v6108 = vpop.permute.xlu0 %6107
    %v6111 = vunpack.c.l.s4 839922192
    %v6112 = vunpack.c.0.s8 %v6111
    %v6113 = vlaneseq
    %v6114 = vshrl.u32 %v6113, 7
    %v6115 = vsub.s32 %v6112, %v6114
    %v6116 = vrot.slane %v6108, %v6115
    %6118 = vset.pattern.permute.xlu0 0
    %6119 = vperm.xlu0 %6118, %v963
    %v6120 = vpop.permute.xlu0 %6119
    %v6123 = vunpack.c.l.s4 839922192
    %v6124 = vunpack.c.0.s8 %v6123
    %v6125 = vlaneseq
    %v6126 = vshrl.u32 %v6125, 7
    %v6127 = vsub.s32 %v6124, %v6126
    %v6128 = vrot.slane %v6120, %v6127
    %6130 = vset.pattern.permute.xlu0 0
    %6131 = vperm.xlu0 %6130, %v964
    %v6132 = vpop.permute.xlu0 %6131
    %v6135 = vunpack.c.l.s4 839922192
    %v6136 = vunpack.c.0.s8 %v6135
    %v6137 = vlaneseq
    %v6138 = vshrl.u32 %v6137, 7
    %v6139 = vsub.s32 %v6136, %v6138
    %v6140 = vrot.slane %v6132, %v6139
    %6142 = vset.pattern.permute.xlu0 0
    %6143 = vperm.xlu0 %6142, %v965
    %v6144 = vpop.permute.xlu0 %6143
    %v6147 = vunpack.c.l.s4 839922192
    %v6148 = vunpack.c.0.s8 %v6147
    %v6149 = vlaneseq
    %v6150 = vshrl.u32 %v6149, 7
    %v6151 = vsub.s32 %v6148, %v6150
    %v6152 = vrot.slane %v6144, %v6151
    %6154 = vset.pattern.permute.xlu0 0
    %6155 = vperm.xlu0 %6154, %v966
    %v6156 = vpop.permute.xlu0 %6155
    %v6159 = vunpack.c.l.s4 839922192
    %v6160 = vunpack.c.0.s8 %v6159
    %v6161 = vlaneseq
    %v6162 = vshrl.u32 %v6161, 7
    %v6163 = vsub.s32 %v6160, %v6162
    %v6164 = vrot.slane %v6156, %v6163
    %6166 = vset.pattern.permute.xlu0 0
    %6167 = vperm.xlu0 %6166, %v967
    %v6168 = vpop.permute.xlu0 %6167
    %v6171 = vunpack.c.l.s4 839922192
    %v6172 = vunpack.c.0.s8 %v6171
    %v6173 = vlaneseq
    %v6174 = vshrl.u32 %v6173, 7
    %v6175 = vsub.s32 %v6172, %v6174
    %v6176 = vrot.slane %v6168, %v6175
    %6178 = vset.pattern.permute.xlu0 0
    %6179 = vperm.xlu0 %6178, %v968
    %v6180 = vpop.permute.xlu0 %6179
    %v6183 = vunpack.c.l.s4 839922192
    %v6184 = vunpack.c.0.s8 %v6183
    %v6185 = vlaneseq
    %v6186 = vshrl.u32 %v6185, 7
    %v6187 = vsub.s32 %v6184, %v6186
    %v6188 = vrot.slane %v6180, %v6187
    %6190 = vset.pattern.permute.xlu0 0
    %6191 = vperm.xlu0 %6190, %v969
    %v6192 = vpop.permute.xlu0 %6191
    %v6195 = vunpack.c.l.s4 839922192
    %v6196 = vunpack.c.0.s8 %v6195
    %v6197 = vlaneseq
    %v6198 = vshrl.u32 %v6197, 7
    %v6199 = vsub.s32 %v6196, %v6198
    %v6200 = vrot.slane %v6192, %v6199
    %6202 = vset.pattern.permute.xlu0 0
    %6203 = vperm.xlu0 %6202, %v970
    %v6204 = vpop.permute.xlu0 %6203
    %v6207 = vunpack.c.l.s4 839922192
    %v6208 = vunpack.c.0.s8 %v6207
    %v6209 = vlaneseq
    %v6210 = vshrl.u32 %v6209, 7
    %v6211 = vsub.s32 %v6208, %v6210
    %v6212 = vrot.slane %v6204, %v6211
    %6214 = vset.pattern.permute.xlu0 0
    %6215 = vperm.xlu0 %6214, %v971
    %v6216 = vpop.permute.xlu0 %6215
    %v6219 = vunpack.c.l.s4 839922192
    %v6220 = vunpack.c.0.s8 %v6219
    %v6221 = vlaneseq
    %v6222 = vshrl.u32 %v6221, 7
    %v6223 = vsub.s32 %v6220, %v6222
    %v6224 = vrot.slane %v6216, %v6223
    %6226 = vset.pattern.permute.xlu0 0
    %6227 = vperm.xlu0 %6226, %v972
    %v6228 = vpop.permute.xlu0 %6227
    %v6231 = vunpack.c.l.s4 839922192
    %v6232 = vunpack.c.0.s8 %v6231
    %v6233 = vlaneseq
    %v6234 = vshrl.u32 %v6233, 7
    %v6235 = vsub.s32 %v6232, %v6234
    %v6236 = vrot.slane %v6228, %v6235
    %6238 = vset.pattern.permute.xlu0 0
    %6239 = vperm.xlu0 %6238, %v973
    %v6240 = vpop.permute.xlu0 %6239
    %v6243 = vunpack.c.l.s4 839922192
    %v6244 = vunpack.c.0.s8 %v6243
    %v6245 = vlaneseq
    %v6246 = vshrl.u32 %v6245, 7
    %v6247 = vsub.s32 %v6244, %v6246
    %v6248 = vrot.slane %v6240, %v6247
    %6250 = vset.pattern.permute.xlu0 0
    %6251 = vperm.xlu0 %6250, %v974
    %v6252 = vpop.permute.xlu0 %6251
    %v6255 = vunpack.c.l.s4 839922192
    %v6256 = vunpack.c.0.s8 %v6255
    %v6257 = vlaneseq
    %v6258 = vshrl.u32 %v6257, 7
    %v6259 = vsub.s32 %v6256, %v6258
    %v6260 = vrot.slane %v6252, %v6259
    %6262 = vset.pattern.permute.xlu0 0
    %6263 = vperm.xlu0 %6262, %v975
    %v6264 = vpop.permute.xlu0 %6263
    %v6267 = vunpack.c.l.s4 839922192
    %v6268 = vunpack.c.0.s8 %v6267
    %v6269 = vlaneseq
    %v6270 = vshrl.u32 %v6269, 7
    %v6271 = vsub.s32 %v6268, %v6270
    %v6272 = vrot.slane %v6264, %v6271
    %6274 = vset.pattern.permute.xlu0 0
    %6275 = vperm.xlu0 %6274, %v976
    %v6276 = vpop.permute.xlu0 %6275
    %v6279 = vunpack.c.l.s4 839922192
    %v6280 = vunpack.c.0.s8 %v6279
    %v6281 = vlaneseq
    %v6282 = vshrl.u32 %v6281, 7
    %v6283 = vsub.s32 %v6280, %v6282
    %v6284 = vrot.slane %v6276, %v6283
    %6286 = vset.pattern.permute.xlu0 0
    %6287 = vperm.xlu0 %6286, %v977
    %v6288 = vpop.permute.xlu0 %6287
    %v6291 = vunpack.c.l.s4 839922192
    %v6292 = vunpack.c.0.s8 %v6291
    %v6293 = vlaneseq
    %v6294 = vshrl.u32 %v6293, 7
    %v6295 = vsub.s32 %v6292, %v6294
    %v6296 = vrot.slane %v6288, %v6295
    %6298 = vset.pattern.permute.xlu0 0
    %6299 = vperm.xlu0 %6298, %v978
    %v6300 = vpop.permute.xlu0 %6299
    %v6303 = vunpack.c.l.s4 839922192
    %v6304 = vunpack.c.0.s8 %v6303
    %v6305 = vlaneseq
    %v6306 = vshrl.u32 %v6305, 7
    %v6307 = vsub.s32 %v6304, %v6306
    %v6308 = vrot.slane %v6300, %v6307
    %6310 = vset.pattern.permute.xlu0 0
    %6311 = vperm.xlu0 %6310, %v979
    %v6312 = vpop.permute.xlu0 %6311
    %v6315 = vunpack.c.l.s4 839922192
    %v6316 = vunpack.c.0.s8 %v6315
    %v6317 = vlaneseq
    %v6318 = vshrl.u32 %v6317, 7
    %v6319 = vsub.s32 %v6316, %v6318
    %v6320 = vrot.slane %v6312, %v6319
    %6322 = vset.pattern.permute.xlu0 0
    %6323 = vperm.xlu0 %6322, %v980
    %v6324 = vpop.permute.xlu0 %6323
    %v6327 = vunpack.c.l.s4 839922192
    %v6328 = vunpack.c.0.s8 %v6327
    %v6329 = vlaneseq
    %v6330 = vshrl.u32 %v6329, 7
    %v6331 = vsub.s32 %v6328, %v6330
    %v6332 = vrot.slane %v6324, %v6331
    %6334 = vset.pattern.permute.xlu0 0
    %6335 = vperm.xlu0 %6334, %v981
    %v6336 = vpop.permute.xlu0 %6335
    %v6339 = vunpack.c.l.s4 839922192
    %v6340 = vunpack.c.0.s8 %v6339
    %v6341 = vlaneseq
    %v6342 = vshrl.u32 %v6341, 7
    %v6343 = vsub.s32 %v6340, %v6342
    %v6344 = vrot.slane %v6336, %v6343
    %6346 = vset.pattern.permute.xlu0 0
    %6347 = vperm.xlu0 %6346, %v982
    %v6348 = vpop.permute.xlu0 %6347
    %v6351 = vunpack.c.l.s4 839922192
    %v6352 = vunpack.c.0.s8 %v6351
    %v6353 = vlaneseq
    %v6354 = vshrl.u32 %v6353, 7
    %v6355 = vsub.s32 %v6352, %v6354
    %v6356 = vrot.slane %v6348, %v6355
    %6358 = vset.pattern.permute.xlu0 0
    %6359 = vperm.xlu0 %6358, %v983
    %v6360 = vpop.permute.xlu0 %6359
    %v6363 = vunpack.c.l.s4 839922192
    %v6364 = vunpack.c.0.s8 %v6363
    %v6365 = vlaneseq
    %v6366 = vshrl.u32 %v6365, 7
    %v6367 = vsub.s32 %v6364, %v6366
    %v6368 = vrot.slane %v6360, %v6367
    %6370 = vset.pattern.permute.xlu0 0
    %6371 = vperm.xlu0 %6370, %v984
    %v6372 = vpop.permute.xlu0 %6371
    %v6375 = vunpack.c.l.s4 839922192
    %v6376 = vunpack.c.0.s8 %v6375
    %v6377 = vlaneseq
    %v6378 = vshrl.u32 %v6377, 7
    %v6379 = vsub.s32 %v6376, %v6378
    %v6380 = vrot.slane %v6372, %v6379
    %6382 = vset.pattern.permute.xlu0 0
    %6383 = vperm.xlu0 %6382, %v985
    %v6384 = vpop.permute.xlu0 %6383
    %v6387 = vunpack.c.l.s4 839922192
    %v6388 = vunpack.c.0.s8 %v6387
    %v6389 = vlaneseq
    %v6390 = vshrl.u32 %v6389, 7
    %v6391 = vsub.s32 %v6388, %v6390
    %v6392 = vrot.slane %v6384, %v6391
    %6394 = vset.pattern.permute.xlu0 0
    %6395 = vperm.xlu0 %6394, %v986
    %v6396 = vpop.permute.xlu0 %6395
    %v6399 = vunpack.c.l.s4 839922192
    %v6400 = vunpack.c.0.s8 %v6399
    %v6401 = vlaneseq
    %v6402 = vshrl.u32 %v6401, 7
    %v6403 = vsub.s32 %v6400, %v6402
    %v6404 = vrot.slane %v6396, %v6403
    %6406 = vset.pattern.permute.xlu0 0
    %6407 = vperm.xlu0 %6406, %v987
    %v6408 = vpop.permute.xlu0 %6407
    %v6411 = vunpack.c.l.s4 839922192
    %v6412 = vunpack.c.0.s8 %v6411
    %v6413 = vlaneseq
    %v6414 = vshrl.u32 %v6413, 7
    %v6415 = vsub.s32 %v6412, %v6414
    %v6416 = vrot.slane %v6408, %v6415
    %6418 = vset.pattern.permute.xlu0 0
    %6419 = vperm.xlu0 %6418, %v988
    %v6420 = vpop.permute.xlu0 %6419
    %v6423 = vunpack.c.l.s4 839922192
    %v6424 = vunpack.c.0.s8 %v6423
    %v6425 = vlaneseq
    %v6426 = vshrl.u32 %v6425, 7
    %v6427 = vsub.s32 %v6424, %v6426
    %v6428 = vrot.slane %v6420, %v6427
    %6430 = vset.pattern.permute.xlu0 0
    %6431 = vperm.xlu0 %6430, %v989
    %v6432 = vpop.permute.xlu0 %6431
    %v6435 = vunpack.c.l.s4 839922192
    %v6436 = vunpack.c.0.s8 %v6435
    %v6437 = vlaneseq
    %v6438 = vshrl.u32 %v6437, 7
    %v6439 = vsub.s32 %v6436, %v6438
    %v6440 = vrot.slane %v6432, %v6439
    %6442 = vset.pattern.permute.xlu0 0
    %6443 = vperm.xlu0 %6442, %v990
    %v6444 = vpop.permute.xlu0 %6443
    %v6447 = vunpack.c.l.s4 839922192
    %v6448 = vunpack.c.0.s8 %v6447
    %v6449 = vlaneseq
    %v6450 = vshrl.u32 %v6449, 7
    %v6451 = vsub.s32 %v6448, %v6450
    %v6452 = vrot.slane %v6444, %v6451
    %6454 = vset.pattern.permute.xlu0 0
    %6455 = vperm.xlu0 %6454, %v991
    %v6456 = vpop.permute.xlu0 %6455
    %v6459 = vunpack.c.l.s4 839922192
    %v6460 = vunpack.c.0.s8 %v6459
    %v6461 = vlaneseq
    %v6462 = vshrl.u32 %v6461, 7
    %v6463 = vsub.s32 %v6460, %v6462
    %v6464 = vrot.slane %v6456, %v6463
    %6466 = vset.pattern.permute.xlu0 0
    %6467 = vperm.xlu0 %6466, %v992
    %v6468 = vpop.permute.xlu0 %6467
    %v6471 = vunpack.c.l.s4 839922192
    %v6472 = vunpack.c.0.s8 %v6471
    %v6473 = vlaneseq
    %v6474 = vshrl.u32 %v6473, 7
    %v6475 = vsub.s32 %v6472, %v6474
    %v6476 = vrot.slane %v6468, %v6475
    %6478 = vset.pattern.permute.xlu0 0
    %6479 = vperm.xlu0 %6478, %v993
    %v6480 = vpop.permute.xlu0 %6479
    %v6483 = vunpack.c.l.s4 839922192
    %v6484 = vunpack.c.0.s8 %v6483
    %v6485 = vlaneseq
    %v6486 = vshrl.u32 %v6485, 7
    %v6487 = vsub.s32 %v6484, %v6486
    %v6488 = vrot.slane %v6480, %v6487
    %6490 = vset.pattern.permute.xlu0 0
    %6491 = vperm.xlu0 %6490, %v994
    %v6492 = vpop.permute.xlu0 %6491
    %v6495 = vunpack.c.l.s4 839922192
    %v6496 = vunpack.c.0.s8 %v6495
    %v6497 = vlaneseq
    %v6498 = vshrl.u32 %v6497, 7
    %v6499 = vsub.s32 %v6496, %v6498
    %v6500 = vrot.slane %v6492, %v6499
    %6502 = vset.pattern.permute.xlu0 0
    %6503 = vperm.xlu0 %6502, %v995
    %v6504 = vpop.permute.xlu0 %6503
    %v6507 = vunpack.c.l.s4 839922192
    %v6508 = vunpack.c.0.s8 %v6507
    %v6509 = vlaneseq
    %v6510 = vshrl.u32 %v6509, 7
    %v6511 = vsub.s32 %v6508, %v6510
    %v6512 = vrot.slane %v6504, %v6511
    %6514 = vset.pattern.permute.xlu0 0
    %6515 = vperm.xlu0 %6514, %v996
    %v6516 = vpop.permute.xlu0 %6515
    %v6519 = vunpack.c.l.s4 839922192
    %v6520 = vunpack.c.0.s8 %v6519
    %v6521 = vlaneseq
    %v6522 = vshrl.u32 %v6521, 7
    %v6523 = vsub.s32 %v6520, %v6522
    %v6524 = vrot.slane %v6516, %v6523
    %6526 = vset.pattern.permute.xlu0 0
    %6527 = vperm.xlu0 %6526, %v997
    %v6528 = vpop.permute.xlu0 %6527
    %v6531 = vunpack.c.l.s4 839922192
    %v6532 = vunpack.c.0.s8 %v6531
    %v6533 = vlaneseq
    %v6534 = vshrl.u32 %v6533, 7
    %v6535 = vsub.s32 %v6532, %v6534
    %v6536 = vrot.slane %v6528, %v6535
    %6538 = vset.pattern.permute.xlu0 0
    %6539 = vperm.xlu0 %6538, %v998
    %v6540 = vpop.permute.xlu0 %6539
    %v6543 = vunpack.c.l.s4 839922192
    %v6544 = vunpack.c.0.s8 %v6543
    %v6545 = vlaneseq
    %v6546 = vshrl.u32 %v6545, 7
    %v6547 = vsub.s32 %v6544, %v6546
    %v6548 = vrot.slane %v6540, %v6547
    %6550 = vset.pattern.permute.xlu0 0
    %6551 = vperm.xlu0 %6550, %v999
    %v6552 = vpop.permute.xlu0 %6551
    %v6555 = vunpack.c.l.s4 839922192
    %v6556 = vunpack.c.0.s8 %v6555
    %v6557 = vlaneseq
    %v6558 = vshrl.u32 %v6557, 7
    %v6559 = vsub.s32 %v6556, %v6558
    %v6560 = vrot.slane %v6552, %v6559
    %6562 = vset.pattern.permute.xlu0 0
    %6563 = vperm.xlu0 %6562, %v1000
    %v6564 = vpop.permute.xlu0 %6563
    %v6567 = vunpack.c.l.s4 839922192
    %v6568 = vunpack.c.0.s8 %v6567
    %v6569 = vlaneseq
    %v6570 = vshrl.u32 %v6569, 7
    %v6571 = vsub.s32 %v6568, %v6570
    %v6572 = vrot.slane %v6564, %v6571
    %6574 = vset.pattern.permute.xlu0 0
    %6575 = vperm.xlu0 %6574, %v1001
    %v6576 = vpop.permute.xlu0 %6575
    %v6579 = vunpack.c.l.s4 839922192
    %v6580 = vunpack.c.0.s8 %v6579
    %v6581 = vlaneseq
    %v6582 = vshrl.u32 %v6581, 7
    %v6583 = vsub.s32 %v6580, %v6582
    %v6584 = vrot.slane %v6576, %v6583
    %6586 = vset.pattern.permute.xlu0 0
    %6587 = vperm.xlu0 %6586, %v1002
    %v6588 = vpop.permute.xlu0 %6587
    %v6591 = vunpack.c.l.s4 839922192
    %v6592 = vunpack.c.0.s8 %v6591
    %v6593 = vlaneseq
    %v6594 = vshrl.u32 %v6593, 7
    %v6595 = vsub.s32 %v6592, %v6594
    %v6596 = vrot.slane %v6588, %v6595
    %6598 = vset.pattern.permute.xlu0 0
    %6599 = vperm.xlu0 %6598, %v1003
    %v6600 = vpop.permute.xlu0 %6599
    %v6603 = vunpack.c.l.s4 839922192
    %v6604 = vunpack.c.0.s8 %v6603
    %v6605 = vlaneseq
    %v6606 = vshrl.u32 %v6605, 7
    %v6607 = vsub.s32 %v6604, %v6606
    %v6608 = vrot.slane %v6600, %v6607
    %6610 = vset.pattern.permute.xlu0 0
    %6611 = vperm.xlu0 %6610, %v1004
    %v6612 = vpop.permute.xlu0 %6611
    %v6615 = vunpack.c.l.s4 839922192
    %v6616 = vunpack.c.0.s8 %v6615
    %v6617 = vlaneseq
    %v6618 = vshrl.u32 %v6617, 7
    %v6619 = vsub.s32 %v6616, %v6618
    %v6620 = vrot.slane %v6612, %v6619
    %6622 = vset.pattern.permute.xlu0 0
    %6623 = vperm.xlu0 %6622, %v1005
    %v6624 = vpop.permute.xlu0 %6623
    %v6627 = vunpack.c.l.s4 839922192
    %v6628 = vunpack.c.0.s8 %v6627
    %v6629 = vlaneseq
    %v6630 = vshrl.u32 %v6629, 7
    %v6631 = vsub.s32 %v6628, %v6630
    %v6632 = vrot.slane %v6624, %v6631
    %6634 = vset.pattern.permute.xlu0 0
    %6635 = vperm.xlu0 %6634, %v1006
    %v6636 = vpop.permute.xlu0 %6635
    %v6639 = vunpack.c.l.s4 839922192
    %v6640 = vunpack.c.0.s8 %v6639
    %v6641 = vlaneseq
    %v6642 = vshrl.u32 %v6641, 7
    %v6643 = vsub.s32 %v6640, %v6642
    %v6644 = vrot.slane %v6636, %v6643
    %6646 = vset.pattern.permute.xlu0 0
    %6647 = vperm.xlu0 %6646, %v1007
    %v6648 = vpop.permute.xlu0 %6647
    %v6651 = vunpack.c.l.s4 839922192
    %v6652 = vunpack.c.0.s8 %v6651
    %v6653 = vlaneseq
    %v6654 = vshrl.u32 %v6653, 7
    %v6655 = vsub.s32 %v6652, %v6654
    %v6656 = vrot.slane %v6648, %v6655
    %6658 = vset.pattern.permute.xlu0 0
    %6659 = vperm.xlu0 %6658, %v1008
    %v6660 = vpop.permute.xlu0 %6659
    %v6663 = vunpack.c.l.s4 839922192
    %v6664 = vunpack.c.0.s8 %v6663
    %v6665 = vlaneseq
    %v6666 = vshrl.u32 %v6665, 7
    %v6667 = vsub.s32 %v6664, %v6666
    %v6668 = vrot.slane %v6660, %v6667
    %6670 = vset.pattern.permute.xlu0 0
    %6671 = vperm.xlu0 %6670, %v1009
    %v6672 = vpop.permute.xlu0 %6671
    %v6675 = vunpack.c.l.s4 839922192
    %v6676 = vunpack.c.0.s8 %v6675
    %v6677 = vlaneseq
    %v6678 = vshrl.u32 %v6677, 7
    %v6679 = vsub.s32 %v6676, %v6678
    %v6680 = vrot.slane %v6672, %v6679
    %6682 = vset.pattern.permute.xlu0 0
    %6683 = vperm.xlu0 %6682, %v1010
    %v6684 = vpop.permute.xlu0 %6683
    %v6687 = vunpack.c.l.s4 839922192
    %v6688 = vunpack.c.0.s8 %v6687
    %v6689 = vlaneseq
    %v6690 = vshrl.u32 %v6689, 7
    %v6691 = vsub.s32 %v6688, %v6690
    %v6692 = vrot.slane %v6684, %v6691
    %6694 = vset.pattern.permute.xlu0 0
    %6695 = vperm.xlu0 %6694, %v1011
    %v6696 = vpop.permute.xlu0 %6695
    %v6699 = vunpack.c.l.s4 839922192
    %v6700 = vunpack.c.0.s8 %v6699
    %v6701 = vlaneseq
    %v6702 = vshrl.u32 %v6701, 7
    %v6703 = vsub.s32 %v6700, %v6702
    %v6704 = vrot.slane %v6696, %v6703
    %6706 = vset.pattern.permute.xlu0 0
    %6707 = vperm.xlu0 %6706, %v1012
    %v6708 = vpop.permute.xlu0 %6707
    %v6711 = vunpack.c.l.s4 839922192
    %v6712 = vunpack.c.0.s8 %v6711
    %v6713 = vlaneseq
    %v6714 = vshrl.u32 %v6713, 7
    %v6715 = vsub.s32 %v6712, %v6714
    %v6716 = vrot.slane %v6708, %v6715
    %6718 = vset.pattern.permute.xlu0 0
    %6719 = vperm.xlu0 %6718, %v1013
    %v6720 = vpop.permute.xlu0 %6719
    %v6723 = vunpack.c.l.s4 839922192
    %v6724 = vunpack.c.0.s8 %v6723
    %v6725 = vlaneseq
    %v6726 = vshrl.u32 %v6725, 7
    %v6727 = vsub.s32 %v6724, %v6726
    %v6728 = vrot.slane %v6720, %v6727
    %6730 = vset.pattern.permute.xlu0 0
    %6731 = vperm.xlu0 %6730, %v1014
    %v6732 = vpop.permute.xlu0 %6731
    %v6735 = vunpack.c.l.s4 839922192
    %v6736 = vunpack.c.0.s8 %v6735
    %v6737 = vlaneseq
    %v6738 = vshrl.u32 %v6737, 7
    %v6739 = vsub.s32 %v6736, %v6738
    %v6740 = vrot.slane %v6732, %v6739
    %6742 = vset.pattern.permute.xlu0 0
    %6743 = vperm.xlu0 %6742, %v1015
    %v6744 = vpop.permute.xlu0 %6743
    %v6747 = vunpack.c.l.s4 839922192
    %v6748 = vunpack.c.0.s8 %v6747
    %v6749 = vlaneseq
    %v6750 = vshrl.u32 %v6749, 7
    %v6751 = vsub.s32 %v6748, %v6750
    %v6752 = vrot.slane %v6744, %v6751
    %6754 = vset.pattern.permute.xlu0 0
    %6755 = vperm.xlu0 %6754, %v1016
    %v6756 = vpop.permute.xlu0 %6755
    %v6759 = vunpack.c.l.s4 839922192
    %v6760 = vunpack.c.0.s8 %v6759
    %v6761 = vlaneseq
    %v6762 = vshrl.u32 %v6761, 7
    %v6763 = vsub.s32 %v6760, %v6762
    %v6764 = vrot.slane %v6756, %v6763
    %6766 = vset.pattern.permute.xlu0 0
    %6767 = vperm.xlu0 %6766, %v1017
    %v6768 = vpop.permute.xlu0 %6767
    %v6771 = vunpack.c.l.s4 839922192
    %v6772 = vunpack.c.0.s8 %v6771
    %v6773 = vlaneseq
    %v6774 = vshrl.u32 %v6773, 7
    %v6775 = vsub.s32 %v6772, %v6774
    %v6776 = vrot.slane %v6768, %v6775
    %6778 = vset.pattern.permute.xlu0 0
    %6779 = vperm.xlu0 %6778, %v1018
    %v6780 = vpop.permute.xlu0 %6779
    %v6783 = vunpack.c.l.s4 839922192
    %v6784 = vunpack.c.0.s8 %v6783
    %v6785 = vlaneseq
    %v6786 = vshrl.u32 %v6785, 7
    %v6787 = vsub.s32 %v6784, %v6786
    %v6788 = vrot.slane %v6780, %v6787
    %6790 = vset.pattern.permute.xlu0 0
    %6791 = vperm.xlu0 %6790, %v1019
    %v6792 = vpop.permute.xlu0 %6791
    %v6795 = vunpack.c.l.s4 839922192
    %v6796 = vunpack.c.0.s8 %v6795
    %v6797 = vlaneseq
    %v6798 = vshrl.u32 %v6797, 7
    %v6799 = vsub.s32 %v6796, %v6798
    %v6800 = vrot.slane %v6792, %v6799
    %6802 = vset.pattern.permute.xlu0 0
    %6803 = vperm.xlu0 %6802, %v1020
    %v6804 = vpop.permute.xlu0 %6803
    %v6807 = vunpack.c.l.s4 839922192
    %v6808 = vunpack.c.0.s8 %v6807
    %v6809 = vlaneseq
    %v6810 = vshrl.u32 %v6809, 7
    %v6811 = vsub.s32 %v6808, %v6810
    %v6812 = vrot.slane %v6804, %v6811
    %6814 = vset.pattern.permute.xlu0 0
    %6815 = vperm.xlu0 %6814, %v1021
    %v6816 = vpop.permute.xlu0 %6815
    %v6819 = vunpack.c.l.s4 839922192
    %v6820 = vunpack.c.0.s8 %v6819
    %v6821 = vlaneseq
    %v6822 = vshrl.u32 %v6821, 7
    %v6823 = vsub.s32 %v6820, %v6822
    %v6824 = vrot.slane %v6816, %v6823
    %6826 = vset.pattern.permute.xlu0 0
    %6827 = vperm.xlu0 %6826, %v1022
    %v6828 = vpop.permute.xlu0 %6827
    %v6831 = vunpack.c.l.s4 839922192
    %v6832 = vunpack.c.0.s8 %v6831
    %v6833 = vlaneseq
    %v6834 = vshrl.u32 %v6833, 7
    %v6835 = vsub.s32 %v6832, %v6834
    %v6836 = vrot.slane %v6828, %v6835
    %6838 = vset.pattern.permute.xlu0 0
    %6839 = vperm.xlu0 %6838, %v1023
    %v6840 = vpop.permute.xlu0 %6839
    %v6843 = vunpack.c.l.s4 839922192
    %v6844 = vunpack.c.0.s8 %v6843
    %v6845 = vlaneseq
    %v6846 = vshrl.u32 %v6845, 7
    %v6847 = vsub.s32 %v6844, %v6846
    %v6848 = vrot.slane %v6840, %v6847
    %6850 = vset.pattern.permute.xlu0 0
    %6851 = vperm.xlu0 %6850, %v1024
    %v6852 = vpop.permute.xlu0 %6851
    %v6855 = vunpack.c.l.s4 839922192
    %v6856 = vunpack.c.0.s8 %v6855
    %v6857 = vlaneseq
    %v6858 = vshrl.u32 %v6857, 7
    %v6859 = vsub.s32 %v6856, %v6858
    %v6860 = vrot.slane %v6852, %v6859
    %6862 = vset.pattern.permute.xlu0 0
    %6863 = vperm.xlu0 %6862, %v1025
    %v6864 = vpop.permute.xlu0 %6863
    %v6867 = vunpack.c.l.s4 839922192
    %v6868 = vunpack.c.0.s8 %v6867
    %v6869 = vlaneseq
    %v6870 = vshrl.u32 %v6869, 7
    %v6871 = vsub.s32 %v6868, %v6870
    %v6872 = vrot.slane %v6864, %v6871
    %6874 = vset.pattern.permute.xlu0 0
    %6875 = vperm.xlu0 %6874, %v1026
    %v6876 = vpop.permute.xlu0 %6875
    %v6879 = vunpack.c.l.s4 839922192
    %v6880 = vunpack.c.0.s8 %v6879
    %v6881 = vlaneseq
    %v6882 = vshrl.u32 %v6881, 7
    %v6883 = vsub.s32 %v6880, %v6882
    %v6884 = vrot.slane %v6876, %v6883
    %6886 = vset.pattern.permute.xlu0 0
    %6887 = vperm.xlu0 %6886, %v1027
    %v6888 = vpop.permute.xlu0 %6887
    %v6891 = vunpack.c.l.s4 839922192
    %v6892 = vunpack.c.0.s8 %v6891
    %v6893 = vlaneseq
    %v6894 = vshrl.u32 %v6893, 7
    %v6895 = vsub.s32 %v6892, %v6894
    %v6896 = vrot.slane %v6888, %v6895
    %6898 = vset.pattern.permute.xlu0 0
    %6899 = vperm.xlu0 %6898, %v1028
    %v6900 = vpop.permute.xlu0 %6899
    %v6903 = vunpack.c.l.s4 839922192
    %v6904 = vunpack.c.0.s8 %v6903
    %v6905 = vlaneseq
    %v6906 = vshrl.u32 %v6905, 7
    %v6907 = vsub.s32 %v6904, %v6906
    %v6908 = vrot.slane %v6900, %v6907
    %6910 = vset.pattern.permute.xlu0 0
    %6911 = vperm.xlu0 %6910, %v1029
    %v6912 = vpop.permute.xlu0 %6911
    %v6915 = vunpack.c.l.s4 839922192
    %v6916 = vunpack.c.0.s8 %v6915
    %v6917 = vlaneseq
    %v6918 = vshrl.u32 %v6917, 7
    %v6919 = vsub.s32 %v6916, %v6918
    %v6920 = vrot.slane %v6912, %v6919
    %6922 = vset.pattern.permute.xlu0 0
    %6923 = vperm.xlu0 %6922, %v1030
    %v6924 = vpop.permute.xlu0 %6923
    %v6927 = vunpack.c.l.s4 839922192
    %v6928 = vunpack.c.0.s8 %v6927
    %v6929 = vlaneseq
    %v6930 = vshrl.u32 %v6929, 7
    %v6931 = vsub.s32 %v6928, %v6930
    %v6932 = vrot.slane %v6924, %v6931
    %6934 = vset.pattern.permute.xlu0 0
    %6935 = vperm.xlu0 %6934, %v1031
    %v6936 = vpop.permute.xlu0 %6935
    %v6939 = vunpack.c.l.s4 839922192
    %v6940 = vunpack.c.0.s8 %v6939
    %v6941 = vlaneseq
    %v6942 = vshrl.u32 %v6941, 7
    %v6943 = vsub.s32 %v6940, %v6942
    %v6944 = vrot.slane %v6936, %v6943
    %6946 = vset.pattern.permute.xlu0 0
    %6947 = vperm.xlu0 %6946, %v1032
    %v6948 = vpop.permute.xlu0 %6947
    %v6951 = vunpack.c.l.s4 839922192
    %v6952 = vunpack.c.0.s8 %v6951
    %v6953 = vlaneseq
    %v6954 = vshrl.u32 %v6953, 7
    %v6955 = vsub.s32 %v6952, %v6954
    %v6956 = vrot.slane %v6948, %v6955
    %6958 = vset.pattern.permute.xlu0 0
    %6959 = vperm.xlu0 %6958, %v1033
    %v6960 = vpop.permute.xlu0 %6959
    %v6963 = vunpack.c.l.s4 839922192
    %v6964 = vunpack.c.0.s8 %v6963
    %v6965 = vlaneseq
    %v6966 = vshrl.u32 %v6965, 7
    %v6967 = vsub.s32 %v6964, %v6966
    %v6968 = vrot.slane %v6960, %v6967
    %6970 = vset.pattern.permute.xlu0 0
    %6971 = vperm.xlu0 %6970, %v1034
    %v6972 = vpop.permute.xlu0 %6971
    %v6975 = vunpack.c.l.s4 839922192
    %v6976 = vunpack.c.0.s8 %v6975
    %v6977 = vlaneseq
    %v6978 = vshrl.u32 %v6977, 7
    %v6979 = vsub.s32 %v6976, %v6978
    %v6980 = vrot.slane %v6972, %v6979
    %6982 = vset.pattern.permute.xlu0 0
    %6983 = vperm.xlu0 %6982, %v1035
    %v6984 = vpop.permute.xlu0 %6983
    %v6987 = vunpack.c.l.s4 839922192
    %v6988 = vunpack.c.0.s8 %v6987
    %v6989 = vlaneseq
    %v6990 = vshrl.u32 %v6989, 7
    %v6991 = vsub.s32 %v6988, %v6990
    %v6992 = vrot.slane %v6984, %v6991
    %6994 = vset.pattern.permute.xlu0 0
    %6995 = vperm.xlu0 %6994, %v1036
    %v6996 = vpop.permute.xlu0 %6995
    %v6999 = vunpack.c.l.s4 839922192
    %v7000 = vunpack.c.0.s8 %v6999
    %v7001 = vlaneseq
    %v7002 = vshrl.u32 %v7001, 7
    %v7003 = vsub.s32 %v7000, %v7002
    %v7004 = vrot.slane %v6996, %v7003
    %7006 = vset.pattern.permute.xlu0 0
    %7007 = vperm.xlu0 %7006, %v1037
    %v7008 = vpop.permute.xlu0 %7007
    %v7011 = vunpack.c.l.s4 839922192
    %v7012 = vunpack.c.0.s8 %v7011
    %v7013 = vlaneseq
    %v7014 = vshrl.u32 %v7013, 7
    %v7015 = vsub.s32 %v7012, %v7014
    %v7016 = vrot.slane %v7008, %v7015
    %7018 = vset.pattern.permute.xlu0 0
    %7019 = vperm.xlu0 %7018, %v1038
    %v7020 = vpop.permute.xlu0 %7019
    %v7023 = vunpack.c.l.s4 839922192
    %v7024 = vunpack.c.0.s8 %v7023
    %v7025 = vlaneseq
    %v7026 = vshrl.u32 %v7025, 7
    %v7027 = vsub.s32 %v7024, %v7026
    %v7028 = vrot.slane %v7020, %v7027
    %7030 = vset.pattern.permute.xlu0 0
    %7031 = vperm.xlu0 %7030, %v1039
    %v7032 = vpop.permute.xlu0 %7031
    %v7035 = vunpack.c.l.s4 839922192
    %v7036 = vunpack.c.0.s8 %v7035
    %v7037 = vlaneseq
    %v7038 = vshrl.u32 %v7037, 7
    %v7039 = vsub.s32 %v7036, %v7038
    %v7040 = vrot.slane %v7032, %v7039
    %7042 = vset.pattern.permute.xlu0 0
    %7043 = vperm.xlu0 %7042, %v1040
    %v7044 = vpop.permute.xlu0 %7043
    %v7047 = vunpack.c.l.s4 839922192
    %v7048 = vunpack.c.0.s8 %v7047
    %v7049 = vlaneseq
    %v7050 = vshrl.u32 %v7049, 7
    %v7051 = vsub.s32 %v7048, %v7050
    %v7052 = vrot.slane %v7044, %v7051
    %7054 = vset.pattern.permute.xlu0 0
    %7055 = vperm.xlu0 %7054, %v1041
    %v7056 = vpop.permute.xlu0 %7055
    %v7059 = vunpack.c.l.s4 839922192
    %v7060 = vunpack.c.0.s8 %v7059
    %v7061 = vlaneseq
    %v7062 = vshrl.u32 %v7061, 7
    %v7063 = vsub.s32 %v7060, %v7062
    %v7064 = vrot.slane %v7056, %v7063
    %7066 = vset.pattern.permute.xlu0 0
    %7067 = vperm.xlu0 %7066, %v1042
    %v7068 = vpop.permute.xlu0 %7067
    %v7071 = vunpack.c.l.s4 839922192
    %v7072 = vunpack.c.0.s8 %v7071
    %v7073 = vlaneseq
    %v7074 = vshrl.u32 %v7073, 7
    %v7075 = vsub.s32 %v7072, %v7074
    %v7076 = vrot.slane %v7068, %v7075
    %7078 = vset.pattern.permute.xlu0 0
    %7079 = vperm.xlu0 %7078, %v1043
    %v7080 = vpop.permute.xlu0 %7079
    %v7083 = vunpack.c.l.s4 839922192
    %v7084 = vunpack.c.0.s8 %v7083
    %v7085 = vlaneseq
    %v7086 = vshrl.u32 %v7085, 7
    %v7087 = vsub.s32 %v7084, %v7086
    %v7088 = vrot.slane %v7080, %v7087
    %7090 = vset.pattern.permute.xlu0 0
    %7091 = vperm.xlu0 %7090, %v1044
    %v7092 = vpop.permute.xlu0 %7091
    %v7095 = vunpack.c.l.s4 839922192
    %v7096 = vunpack.c.0.s8 %v7095
    %v7097 = vlaneseq
    %v7098 = vshrl.u32 %v7097, 7
    %v7099 = vsub.s32 %v7096, %v7098
    %v7100 = vrot.slane %v7092, %v7099
    %7102 = vset.pattern.permute.xlu0 0
    %7103 = vperm.xlu0 %7102, %v1045
    %v7104 = vpop.permute.xlu0 %7103
    %v7107 = vunpack.c.l.s4 839922192
    %v7108 = vunpack.c.0.s8 %v7107
    %v7109 = vlaneseq
    %v7110 = vshrl.u32 %v7109, 7
    %v7111 = vsub.s32 %v7108, %v7110
    %v7112 = vrot.slane %v7104, %v7111
    %7114 = vset.pattern.permute.xlu0 0
    %7115 = vperm.xlu0 %7114, %v1046
    %v7116 = vpop.permute.xlu0 %7115
    %v7119 = vunpack.c.l.s4 839922192
    %v7120 = vunpack.c.0.s8 %v7119
    %v7121 = vlaneseq
    %v7122 = vshrl.u32 %v7121, 7
    %v7123 = vsub.s32 %v7120, %v7122
    %v7124 = vrot.slane %v7116, %v7123
    %7126 = vset.pattern.permute.xlu0 0
    %7127 = vperm.xlu0 %7126, %v1047
    %v7128 = vpop.permute.xlu0 %7127
    %v7131 = vunpack.c.l.s4 839922192
    %v7132 = vunpack.c.0.s8 %v7131
    %v7133 = vlaneseq
    %v7134 = vshrl.u32 %v7133, 7
    %v7135 = vsub.s32 %v7132, %v7134
    %v7136 = vrot.slane %v7128, %v7135
    %7138 = vset.pattern.permute.xlu0 0
    %7139 = vperm.xlu0 %7138, %v1048
    %v7140 = vpop.permute.xlu0 %7139
    %v7143 = vunpack.c.l.s4 839922192
    %v7144 = vunpack.c.0.s8 %v7143
    %v7145 = vlaneseq
    %v7146 = vshrl.u32 %v7145, 7
    %v7147 = vsub.s32 %v7144, %v7146
    %v7148 = vrot.slane %v7140, %v7147
    %7150 = vset.pattern.permute.xlu0 0
    %7151 = vperm.xlu0 %7150, %v1049
    %v7152 = vpop.permute.xlu0 %7151
    %v7155 = vunpack.c.l.s4 839922192
    %v7156 = vunpack.c.0.s8 %v7155
    %v7157 = vlaneseq
    %v7158 = vshrl.u32 %v7157, 7
    %v7159 = vsub.s32 %v7156, %v7158
    %v7160 = vrot.slane %v7152, %v7159
    %7162 = vset.pattern.permute.xlu0 0
    %7163 = vperm.xlu0 %7162, %v1050
    %v7164 = vpop.permute.xlu0 %7163
    %v7167 = vunpack.c.l.s4 839922192
    %v7168 = vunpack.c.0.s8 %v7167
    %v7169 = vlaneseq
    %v7170 = vshrl.u32 %v7169, 7
    %v7171 = vsub.s32 %v7168, %v7170
    %v7172 = vrot.slane %v7164, %v7171
    %7174 = vset.pattern.permute.xlu0 0
    %7175 = vperm.xlu0 %7174, %v1051
    %v7176 = vpop.permute.xlu0 %7175
    %v7179 = vunpack.c.l.s4 839922192
    %v7180 = vunpack.c.0.s8 %v7179
    %v7181 = vlaneseq
    %v7182 = vshrl.u32 %v7181, 7
    %v7183 = vsub.s32 %v7180, %v7182
    %v7184 = vrot.slane %v7176, %v7183
    %7186 = vset.pattern.permute.xlu0 0
    %7187 = vperm.xlu0 %7186, %v1052
    %v7188 = vpop.permute.xlu0 %7187
    %v7191 = vunpack.c.l.s4 839922192
    %v7192 = vunpack.c.0.s8 %v7191
    %v7193 = vlaneseq
    %v7194 = vshrl.u32 %v7193, 7
    %v7195 = vsub.s32 %v7192, %v7194
    %v7196 = vrot.slane %v7188, %v7195
    %v7197 = vmul.bf16 %v29, %v1064
    %v7198 = vmul.bf16 %v30, %v1076
    %v7199 = vmul.bf16 %v31, %v1088
    %v7200 = vmul.bf16 %v32, %v1100
    %v7201 = vmul.bf16 %v33, %v1112
    %v7202 = vmul.bf16 %v34, %v1124
    %v7203 = vmul.bf16 %v35, %v1136
    %v7204 = vmul.bf16 %v36, %v1148
    %v7205 = vmul.bf16 %v37, %v1160
    %v7206 = vmul.bf16 %v38, %v1172
    %v7207 = vmul.bf16 %v39, %v1184
    %v7208 = vmul.bf16 %v40, %v1196
    %v7209 = vmul.bf16 %v41, %v1208
    %v7210 = vmul.bf16 %v42, %v1220
    %v7211 = vmul.bf16 %v43, %v1232
    %v7212 = vmul.bf16 %v44, %v1244
    %v7213 = vmul.bf16 %v45, %v1256
    %v7214 = vmul.bf16 %v46, %v1268
    %v7215 = vmul.bf16 %v47, %v1280
    %v7216 = vmul.bf16 %v48, %v1292
    %v7217 = vmul.bf16 %v49, %v1304
    %v7218 = vmul.bf16 %v50, %v1316
    %v7219 = vmul.bf16 %v51, %v1328
    %v7220 = vmul.bf16 %v52, %v1340
    %v7221 = vmul.bf16 %v53, %v1352
    %v7222 = vmul.bf16 %v54, %v1364
    %v7223 = vmul.bf16 %v55, %v1376
    %v7224 = vmul.bf16 %v56, %v1388
    %v7225 = vmul.bf16 %v57, %v1400
    %v7226 = vmul.bf16 %v58, %v1412
    %v7227 = vmul.bf16 %v59, %v1424
    %v7228 = vmul.bf16 %v60, %v1436
    %v7229 = vmul.bf16 %v61, %v1448
    %v7230 = vmul.bf16 %v62, %v1460
    %v7231 = vmul.bf16 %v63, %v1472
    %v7232 = vmul.bf16 %v64, %v1484
    %v7233 = vmul.bf16 %v65, %v1496
    %v7234 = vmul.bf16 %v66, %v1508
    %v7235 = vmul.bf16 %v67, %v1520
    %v7236 = vmul.bf16 %v68, %v1532
    %v7237 = vmul.bf16 %v69, %v1544
    %v7238 = vmul.bf16 %v70, %v1556
    %v7239 = vmul.bf16 %v71, %v1568
    %v7240 = vmul.bf16 %v72, %v1580
    %v7241 = vmul.bf16 %v73, %v1592
    %v7242 = vmul.bf16 %v74, %v1604
    %v7243 = vmul.bf16 %v75, %v1616
    %v7244 = vmul.bf16 %v76, %v1628
    %v7245 = vmul.bf16 %v77, %v1640
    %v7246 = vmul.bf16 %v78, %v1652
    %v7247 = vmul.bf16 %v79, %v1664
    %v7248 = vmul.bf16 %v80, %v1676
    %v7249 = vmul.bf16 %v81, %v1688
    %v7250 = vmul.bf16 %v82, %v1700
    %v7251 = vmul.bf16 %v83, %v1712
    %v7252 = vmul.bf16 %v84, %v1724
    %v7253 = vmul.bf16 %v85, %v1736
    %v7254 = vmul.bf16 %v86, %v1748
    %v7255 = vmul.bf16 %v87, %v1760
    %v7256 = vmul.bf16 %v88, %v1772
    %v7257 = vmul.bf16 %v89, %v1784
    %v7258 = vmul.bf16 %v90, %v1796
    %v7259 = vmul.bf16 %v91, %v1808
    %v7260 = vmul.bf16 %v92, %v1820
    %v7261 = vmul.bf16 %v93, %v1832
    %v7262 = vmul.bf16 %v94, %v1844
    %v7263 = vmul.bf16 %v95, %v1856
    %v7264 = vmul.bf16 %v96, %v1868
    %v7265 = vmul.bf16 %v97, %v1880
    %v7266 = vmul.bf16 %v98, %v1892
    %v7267 = vmul.bf16 %v99, %v1904
    %v7268 = vmul.bf16 %v100, %v1916
    %v7269 = vmul.bf16 %v101, %v1928
    %v7270 = vmul.bf16 %v102, %v1940
    %v7271 = vmul.bf16 %v103, %v1952
    %v7272 = vmul.bf16 %v104, %v1964
    %v7273 = vmul.bf16 %v105, %v1976
    %v7274 = vmul.bf16 %v106, %v1988
    %v7275 = vmul.bf16 %v107, %v2000
    %v7276 = vmul.bf16 %v108, %v2012
    %v7277 = vmul.bf16 %v109, %v2024
    %v7278 = vmul.bf16 %v110, %v2036
    %v7279 = vmul.bf16 %v111, %v2048
    %v7280 = vmul.bf16 %v112, %v2060
    %v7281 = vmul.bf16 %v113, %v2072
    %v7282 = vmul.bf16 %v114, %v2084
    %v7283 = vmul.bf16 %v115, %v2096
    %v7284 = vmul.bf16 %v116, %v2108
    %v7285 = vmul.bf16 %v117, %v2120
    %v7286 = vmul.bf16 %v118, %v2132
    %v7287 = vmul.bf16 %v119, %v2144
    %v7288 = vmul.bf16 %v120, %v2156
    %v7289 = vmul.bf16 %v121, %v2168
    %v7290 = vmul.bf16 %v122, %v2180
    %v7291 = vmul.bf16 %v123, %v2192
    %v7292 = vmul.bf16 %v124, %v2204
    %v7293 = vmul.bf16 %v125, %v2216
    %v7294 = vmul.bf16 %v126, %v2228
    %v7295 = vmul.bf16 %v127, %v2240
    %v7296 = vmul.bf16 %v128, %v2252
    %v7297 = vmul.bf16 %v129, %v2264
    %v7298 = vmul.bf16 %v130, %v2276
    %v7299 = vmul.bf16 %v131, %v2288
    %v7300 = vmul.bf16 %v132, %v2300
    %v7301 = vmul.bf16 %v133, %v2312
    %v7302 = vmul.bf16 %v134, %v2324
    %v7303 = vmul.bf16 %v135, %v2336
    %v7304 = vmul.bf16 %v136, %v2348
    %v7305 = vmul.bf16 %v137, %v2360
    %v7306 = vmul.bf16 %v138, %v2372
    %v7307 = vmul.bf16 %v139, %v2384
    %v7308 = vmul.bf16 %v140, %v2396
    %v7309 = vmul.bf16 %v141, %v2408
    %v7310 = vmul.bf16 %v142, %v2420
    %v7311 = vmul.bf16 %v143, %v2432
    %v7312 = vmul.bf16 %v144, %v2444
    %v7313 = vmul.bf16 %v145, %v2456
    %v7314 = vmul.bf16 %v146, %v2468
    %v7315 = vmul.bf16 %v147, %v2480
    %v7316 = vmul.bf16 %v148, %v2492
    %v7317 = vmul.bf16 %v149, %v2504
    %v7318 = vmul.bf16 %v150, %v2516
    %v7319 = vmul.bf16 %v151, %v2528
    %v7320 = vmul.bf16 %v152, %v2540
    %v7321 = vmul.bf16 %v153, %v2552
    %v7322 = vmul.bf16 %v154, %v2564
    %v7323 = vmul.bf16 %v155, %v2576
    %v7324 = vmul.bf16 %v156, %v2588
    %v7325 = vmul.bf16 %v157, %v2600
    %v7326 = vmul.bf16 %v158, %v2612
    %v7327 = vmul.bf16 %v159, %v2624
    %v7328 = vmul.bf16 %v160, %v2636
    %v7329 = vmul.bf16 %v161, %v2648
    %v7330 = vmul.bf16 %v162, %v2660
    %v7331 = vmul.bf16 %v163, %v2672
    %v7332 = vmul.bf16 %v164, %v2684
    %v7333 = vmul.bf16 %v165, %v2696
    %v7334 = vmul.bf16 %v166, %v2708
    %v7335 = vmul.bf16 %v167, %v2720
    %v7336 = vmul.bf16 %v168, %v2732
    %v7337 = vmul.bf16 %v169, %v2744
    %v7338 = vmul.bf16 %v170, %v2756
    %v7339 = vmul.bf16 %v171, %v2768
    %v7340 = vmul.bf16 %v172, %v2780
    %v7341 = vmul.bf16 %v173, %v2792
    %v7342 = vmul.bf16 %v174, %v2804
    %v7343 = vmul.bf16 %v175, %v2816
    %v7344 = vmul.bf16 %v176, %v2828
    %v7345 = vmul.bf16 %v177, %v2840
    %v7346 = vmul.bf16 %v178, %v2852
    %v7347 = vmul.bf16 %v179, %v2864
    %v7348 = vmul.bf16 %v180, %v2876
    %v7349 = vmul.bf16 %v181, %v2888
    %v7350 = vmul.bf16 %v182, %v2900
    %v7351 = vmul.bf16 %v183, %v2912
    %v7352 = vmul.bf16 %v184, %v2924
    %v7353 = vmul.bf16 %v185, %v2936
    %v7354 = vmul.bf16 %v186, %v2948
    %v7355 = vmul.bf16 %v187, %v2960
    %v7356 = vmul.bf16 %v188, %v2972
    %v7357 = vmul.bf16 %v189, %v2984
    %v7358 = vmul.bf16 %v190, %v2996
    %v7359 = vmul.bf16 %v191, %v3008
    %v7360 = vmul.bf16 %v192, %v3020
    %v7361 = vmul.bf16 %v193, %v3032
    %v7362 = vmul.bf16 %v194, %v3044
    %v7363 = vmul.bf16 %v195, %v3056
    %v7364 = vmul.bf16 %v196, %v3068
    %v7365 = vmul.bf16 %v197, %v3080
    %v7366 = vmul.bf16 %v198, %v3092
    %v7367 = vmul.bf16 %v199, %v3104
    %v7368 = vmul.bf16 %v200, %v3116
    %v7369 = vmul.bf16 %v201, %v3128
    %v7370 = vmul.bf16 %v202, %v3140
    %v7371 = vmul.bf16 %v203, %v3152
    %v7372 = vmul.bf16 %v204, %v3164
    %v7373 = vmul.bf16 %v205, %v3176
    %v7374 = vmul.bf16 %v206, %v3188
    %v7375 = vmul.bf16 %v207, %v3200
    %v7376 = vmul.bf16 %v208, %v3212
    %v7377 = vmul.bf16 %v209, %v3224
    %v7378 = vmul.bf16 %v210, %v3236
    %v7379 = vmul.bf16 %v211, %v3248
    %v7380 = vmul.bf16 %v212, %v3260
    %v7381 = vmul.bf16 %v213, %v3272
    %v7382 = vmul.bf16 %v214, %v3284
    %v7383 = vmul.bf16 %v215, %v3296
    %v7384 = vmul.bf16 %v216, %v3308
    %v7385 = vmul.bf16 %v217, %v3320
    %v7386 = vmul.bf16 %v218, %v3332
    %v7387 = vmul.bf16 %v219, %v3344
    %v7388 = vmul.bf16 %v220, %v3356
    %v7389 = vmul.bf16 %v221, %v3368
    %v7390 = vmul.bf16 %v222, %v3380
    %v7391 = vmul.bf16 %v223, %v3392
    %v7392 = vmul.bf16 %v224, %v3404
    %v7393 = vmul.bf16 %v225, %v3416
    %v7394 = vmul.bf16 %v226, %v3428
    %v7395 = vmul.bf16 %v227, %v3440
    %v7396 = vmul.bf16 %v228, %v3452
    %v7397 = vmul.bf16 %v229, %v3464
    %v7398 = vmul.bf16 %v230, %v3476
    %v7399 = vmul.bf16 %v231, %v3488
    %v7400 = vmul.bf16 %v232, %v3500
    %v7401 = vmul.bf16 %v233, %v3512
    %v7402 = vmul.bf16 %v234, %v3524
    %v7403 = vmul.bf16 %v235, %v3536
    %v7404 = vmul.bf16 %v236, %v3548
    %v7405 = vmul.bf16 %v237, %v3560
    %v7406 = vmul.bf16 %v238, %v3572
    %v7407 = vmul.bf16 %v239, %v3584
    %v7408 = vmul.bf16 %v240, %v3596
    %v7409 = vmul.bf16 %v241, %v3608
    %v7410 = vmul.bf16 %v242, %v3620
    %v7411 = vmul.bf16 %v243, %v3632
    %v7412 = vmul.bf16 %v244, %v3644
    %v7413 = vmul.bf16 %v245, %v3656
    %v7414 = vmul.bf16 %v246, %v3668
    %v7415 = vmul.bf16 %v247, %v3680
    %v7416 = vmul.bf16 %v248, %v3692
    %v7417 = vmul.bf16 %v249, %v3704
    %v7418 = vmul.bf16 %v250, %v3716
    %v7419 = vmul.bf16 %v251, %v3728
    %v7420 = vmul.bf16 %v252, %v3740
    %v7421 = vmul.bf16 %v253, %v3752
    %v7422 = vmul.bf16 %v254, %v3764
    %v7423 = vmul.bf16 %v255, %v3776
    %v7424 = vmul.bf16 %v256, %v3788
    %v7425 = vmul.bf16 %v257, %v3800
    %v7426 = vmul.bf16 %v258, %v3812
    %v7427 = vmul.bf16 %v259, %v3824
    %v7428 = vmul.bf16 %v260, %v3836
    %v7429 = vmul.bf16 %v261, %v3848
    %v7430 = vmul.bf16 %v262, %v3860
    %v7431 = vmul.bf16 %v263, %v3872
    %v7432 = vmul.bf16 %v264, %v3884
    %v7433 = vmul.bf16 %v265, %v3896
    %v7434 = vmul.bf16 %v266, %v3908
    %v7435 = vmul.bf16 %v267, %v3920
    %v7436 = vmul.bf16 %v268, %v3932
    %v7437 = vmul.bf16 %v269, %v3944
    %v7438 = vmul.bf16 %v270, %v3956
    %v7439 = vmul.bf16 %v271, %v3968
    %v7440 = vmul.bf16 %v272, %v3980
    %v7441 = vmul.bf16 %v273, %v3992
    %v7442 = vmul.bf16 %v274, %v4004
    %v7443 = vmul.bf16 %v275, %v4016
    %v7444 = vmul.bf16 %v276, %v4028
    %v7445 = vmul.bf16 %v277, %v4040
    %v7446 = vmul.bf16 %v278, %v4052
    %v7447 = vmul.bf16 %v279, %v4064
    %v7448 = vmul.bf16 %v280, %v4076
    %v7449 = vmul.bf16 %v281, %v4088
    %v7450 = vmul.bf16 %v282, %v4100
    %v7451 = vmul.bf16 %v283, %v4112
    %v7452 = vmul.bf16 %v284, %v4124
    %v7453 = vmul.bf16 %v285, %v4136
    %v7454 = vmul.bf16 %v286, %v4148
    %v7455 = vmul.bf16 %v287, %v4160
    %v7456 = vmul.bf16 %v288, %v4172
    %v7457 = vmul.bf16 %v289, %v4184
    %v7458 = vmul.bf16 %v290, %v4196
    %v7459 = vmul.bf16 %v291, %v4208
    %v7460 = vmul.bf16 %v292, %v4220
    %v7461 = vmul.bf16 %v293, %v4232
    %v7462 = vmul.bf16 %v294, %v4244
    %v7463 = vmul.bf16 %v295, %v4256
    %v7464 = vmul.bf16 %v296, %v4268
    %v7465 = vmul.bf16 %v297, %v4280
    %v7466 = vmul.bf16 %v298, %v4292
    %v7467 = vmul.bf16 %v299, %v4304
    %v7468 = vmul.bf16 %v300, %v4316
    %v7469 = vmul.bf16 %v301, %v4328
    %v7470 = vmul.bf16 %v302, %v4340
    %v7471 = vmul.bf16 %v303, %v4352
    %v7472 = vmul.bf16 %v304, %v4364
    %v7473 = vmul.bf16 %v305, %v4376
    %v7474 = vmul.bf16 %v306, %v4388
    %v7475 = vmul.bf16 %v307, %v4400
    %v7476 = vmul.bf16 %v308, %v4412
    %v7477 = vmul.bf16 %v309, %v4424
    %v7478 = vmul.bf16 %v310, %v4436
    %v7479 = vmul.bf16 %v311, %v4448
    %v7480 = vmul.bf16 %v312, %v4460
    %v7481 = vmul.bf16 %v313, %v4472
    %v7482 = vmul.bf16 %v314, %v4484
    %v7483 = vmul.bf16 %v315, %v4496
    %v7484 = vmul.bf16 %v316, %v4508
    %v7485 = vmul.bf16 %v317, %v4520
    %v7486 = vmul.bf16 %v318, %v4532
    %v7487 = vmul.bf16 %v319, %v4544
    %v7488 = vmul.bf16 %v320, %v4556
    %v7489 = vmul.bf16 %v321, %v4568
    %v7490 = vmul.bf16 %v322, %v4580
    %v7491 = vmul.bf16 %v323, %v4592
    %v7492 = vmul.bf16 %v324, %v4604
    %v7493 = vmul.bf16 %v325, %v4616
    %v7494 = vmul.bf16 %v326, %v4628
    %v7495 = vmul.bf16 %v327, %v4640
    %v7496 = vmul.bf16 %v328, %v4652
    %v7497 = vmul.bf16 %v329, %v4664
    %v7498 = vmul.bf16 %v330, %v4676
    %v7499 = vmul.bf16 %v331, %v4688
    %v7500 = vmul.bf16 %v332, %v4700
    %v7501 = vmul.bf16 %v333, %v4712
    %v7502 = vmul.bf16 %v334, %v4724
    %v7503 = vmul.bf16 %v335, %v4736
    %v7504 = vmul.bf16 %v336, %v4748
    %v7505 = vmul.bf16 %v337, %v4760
    %v7506 = vmul.bf16 %v338, %v4772
    %v7507 = vmul.bf16 %v339, %v4784
    %v7508 = vmul.bf16 %v340, %v4796
    %v7509 = vmul.bf16 %v341, %v4808
    %v7510 = vmul.bf16 %v342, %v4820
    %v7511 = vmul.bf16 %v343, %v4832
    %v7512 = vmul.bf16 %v344, %v4844
    %v7513 = vmul.bf16 %v345, %v4856
    %v7514 = vmul.bf16 %v346, %v4868
    %v7515 = vmul.bf16 %v347, %v4880
    %v7516 = vmul.bf16 %v348, %v4892
    %v7517 = vmul.bf16 %v349, %v4904
    %v7518 = vmul.bf16 %v350, %v4916
    %v7519 = vmul.bf16 %v351, %v4928
    %v7520 = vmul.bf16 %v352, %v4940
    %v7521 = vmul.bf16 %v353, %v4952
    %v7522 = vmul.bf16 %v354, %v4964
    %v7523 = vmul.bf16 %v355, %v4976
    %v7524 = vmul.bf16 %v356, %v4988
    %v7525 = vmul.bf16 %v357, %v5000
    %v7526 = vmul.bf16 %v358, %v5012
    %v7527 = vmul.bf16 %v359, %v5024
    %v7528 = vmul.bf16 %v360, %v5036
    %v7529 = vmul.bf16 %v361, %v5048
    %v7530 = vmul.bf16 %v362, %v5060
    %v7531 = vmul.bf16 %v363, %v5072
    %v7532 = vmul.bf16 %v364, %v5084
    %v7533 = vmul.bf16 %v365, %v5096
    %v7534 = vmul.bf16 %v366, %v5108
    %v7535 = vmul.bf16 %v367, %v5120
    %v7536 = vmul.bf16 %v368, %v5132
    %v7537 = vmul.bf16 %v369, %v5144
    %v7538 = vmul.bf16 %v370, %v5156
    %v7539 = vmul.bf16 %v371, %v5168
    %v7540 = vmul.bf16 %v372, %v5180
    %v7541 = vmul.bf16 %v373, %v5192
    %v7542 = vmul.bf16 %v374, %v5204
    %v7543 = vmul.bf16 %v375, %v5216
    %v7544 = vmul.bf16 %v376, %v5228
    %v7545 = vmul.bf16 %v377, %v5240
    %v7546 = vmul.bf16 %v378, %v5252
    %v7547 = vmul.bf16 %v379, %v5264
    %v7548 = vmul.bf16 %v380, %v5276
    %v7549 = vmul.bf16 %v381, %v5288
    %v7550 = vmul.bf16 %v382, %v5300
    %v7551 = vmul.bf16 %v383, %v5312
    %v7552 = vmul.bf16 %v384, %v5324
    %v7553 = vmul.bf16 %v385, %v5336
    %v7554 = vmul.bf16 %v386, %v5348
    %v7555 = vmul.bf16 %v387, %v5360
    %v7556 = vmul.bf16 %v388, %v5372
    %v7557 = vmul.bf16 %v389, %v5384
    %v7558 = vmul.bf16 %v390, %v5396
    %v7559 = vmul.bf16 %v391, %v5408
    %v7560 = vmul.bf16 %v392, %v5420
    %v7561 = vmul.bf16 %v393, %v5432
    %v7562 = vmul.bf16 %v394, %v5444
    %v7563 = vmul.bf16 %v395, %v5456
    %v7564 = vmul.bf16 %v396, %v5468
    %v7565 = vmul.bf16 %v397, %v5480
    %v7566 = vmul.bf16 %v398, %v5492
    %v7567 = vmul.bf16 %v399, %v5504
    %v7568 = vmul.bf16 %v400, %v5516
    %v7569 = vmul.bf16 %v401, %v5528
    %v7570 = vmul.bf16 %v402, %v5540
    %v7571 = vmul.bf16 %v403, %v5552
    %v7572 = vmul.bf16 %v404, %v5564
    %v7573 = vmul.bf16 %v405, %v5576
    %v7574 = vmul.bf16 %v406, %v5588
    %v7575 = vmul.bf16 %v407, %v5600
    %v7576 = vmul.bf16 %v408, %v5612
    %v7577 = vmul.bf16 %v409, %v5624
    %v7578 = vmul.bf16 %v410, %v5636
    %v7579 = vmul.bf16 %v411, %v5648
    %v7580 = vmul.bf16 %v412, %v5660
    %v7581 = vmul.bf16 %v413, %v5672
    %v7582 = vmul.bf16 %v414, %v5684
    %v7583 = vmul.bf16 %v415, %v5696
    %v7584 = vmul.bf16 %v416, %v5708
    %v7585 = vmul.bf16 %v417, %v5720
    %v7586 = vmul.bf16 %v418, %v5732
    %v7587 = vmul.bf16 %v419, %v5744
    %v7588 = vmul.bf16 %v420, %v5756
    %v7589 = vmul.bf16 %v421, %v5768
    %v7590 = vmul.bf16 %v422, %v5780
    %v7591 = vmul.bf16 %v423, %v5792
    %v7592 = vmul.bf16 %v424, %v5804
    %v7593 = vmul.bf16 %v425, %v5816
    %v7594 = vmul.bf16 %v426, %v5828
    %v7595 = vmul.bf16 %v427, %v5840
    %v7596 = vmul.bf16 %v428, %v5852
    %v7597 = vmul.bf16 %v429, %v5864
    %v7598 = vmul.bf16 %v430, %v5876
    %v7599 = vmul.bf16 %v431, %v5888
    %v7600 = vmul.bf16 %v432, %v5900
    %v7601 = vmul.bf16 %v433, %v5912
    %v7602 = vmul.bf16 %v434, %v5924
    %v7603 = vmul.bf16 %v435, %v5936
    %v7604 = vmul.bf16 %v436, %v5948
    %v7605 = vmul.bf16 %v437, %v5960
    %v7606 = vmul.bf16 %v438, %v5972
    %v7607 = vmul.bf16 %v439, %v5984
    %v7608 = vmul.bf16 %v440, %v5996
    %v7609 = vmul.bf16 %v441, %v6008
    %v7610 = vmul.bf16 %v442, %v6020
    %v7611 = vmul.bf16 %v443, %v6032
    %v7612 = vmul.bf16 %v444, %v6044
    %v7613 = vmul.bf16 %v445, %v6056
    %v7614 = vmul.bf16 %v446, %v6068
    %v7615 = vmul.bf16 %v447, %v6080
    %v7616 = vmul.bf16 %v448, %v6092
    %v7617 = vmul.bf16 %v449, %v6104
    %v7618 = vmul.bf16 %v450, %v6116
    %v7619 = vmul.bf16 %v451, %v6128
    %v7620 = vmul.bf16 %v452, %v6140
    %v7621 = vmul.bf16 %v453, %v6152
    %v7622 = vmul.bf16 %v454, %v6164
    %v7623 = vmul.bf16 %v455, %v6176
    %v7624 = vmul.bf16 %v456, %v6188
    %v7625 = vmul.bf16 %v457, %v6200
    %v7626 = vmul.bf16 %v458, %v6212
    %v7627 = vmul.bf16 %v459, %v6224
    %v7628 = vmul.bf16 %v460, %v6236
    %v7629 = vmul.bf16 %v461, %v6248
    %v7630 = vmul.bf16 %v462, %v6260
    %v7631 = vmul.bf16 %v463, %v6272
    %v7632 = vmul.bf16 %v464, %v6284
    %v7633 = vmul.bf16 %v465, %v6296
    %v7634 = vmul.bf16 %v466, %v6308
    %v7635 = vmul.bf16 %v467, %v6320
    %v7636 = vmul.bf16 %v468, %v6332
    %v7637 = vmul.bf16 %v469, %v6344
    %v7638 = vmul.bf16 %v470, %v6356
    %v7639 = vmul.bf16 %v471, %v6368
    %v7640 = vmul.bf16 %v472, %v6380
    %v7641 = vmul.bf16 %v473, %v6392
    %v7642 = vmul.bf16 %v474, %v6404
    %v7643 = vmul.bf16 %v475, %v6416
    %v7644 = vmul.bf16 %v476, %v6428
    %v7645 = vmul.bf16 %v477, %v6440
    %v7646 = vmul.bf16 %v478, %v6452
    %v7647 = vmul.bf16 %v479, %v6464
    %v7648 = vmul.bf16 %v480, %v6476
    %v7649 = vmul.bf16 %v481, %v6488
    %v7650 = vmul.bf16 %v482, %v6500
    %v7651 = vmul.bf16 %v483, %v6512
    %v7652 = vmul.bf16 %v484, %v6524
    %v7653 = vmul.bf16 %v485, %v6536
    %v7654 = vmul.bf16 %v486, %v6548
    %v7655 = vmul.bf16 %v487, %v6560
    %v7656 = vmul.bf16 %v488, %v6572
    %v7657 = vmul.bf16 %v489, %v6584
    %v7658 = vmul.bf16 %v490, %v6596
    %v7659 = vmul.bf16 %v491, %v6608
    %v7660 = vmul.bf16 %v492, %v6620
    %v7661 = vmul.bf16 %v493, %v6632
    %v7662 = vmul.bf16 %v494, %v6644
    %v7663 = vmul.bf16 %v495, %v6656
    %v7664 = vmul.bf16 %v496, %v6668
    %v7665 = vmul.bf16 %v497, %v6680
    %v7666 = vmul.bf16 %v498, %v6692
    %v7667 = vmul.bf16 %v499, %v6704
    %v7668 = vmul.bf16 %v500, %v6716
    %v7669 = vmul.bf16 %v501, %v6728
    %v7670 = vmul.bf16 %v502, %v6740
    %v7671 = vmul.bf16 %v503, %v6752
    %v7672 = vmul.bf16 %v504, %v6764
    %v7673 = vmul.bf16 %v505, %v6776
    %v7674 = vmul.bf16 %v506, %v6788
    %v7675 = vmul.bf16 %v507, %v6800
    %v7676 = vmul.bf16 %v508, %v6812
    %v7677 = vmul.bf16 %v509, %v6824
    %v7678 = vmul.bf16 %v510, %v6836
    %v7679 = vmul.bf16 %v511, %v6848
    %v7680 = vmul.bf16 %v512, %v6860
    %v7681 = vmul.bf16 %v513, %v6872
    %v7682 = vmul.bf16 %v514, %v6884
    %v7683 = vmul.bf16 %v515, %v6896
    %v7684 = vmul.bf16 %v516, %v6908
    %v7685 = vmul.bf16 %v517, %v6920
    %v7686 = vmul.bf16 %v518, %v6932
    %v7687 = vmul.bf16 %v519, %v6944
    %v7688 = vmul.bf16 %v520, %v6956
    %v7689 = vmul.bf16 %v521, %v6968
    %v7690 = vmul.bf16 %v522, %v6980
    %v7691 = vmul.bf16 %v523, %v6992
    %v7692 = vmul.bf16 %v524, %v7004
    %v7693 = vmul.bf16 %v525, %v7016
    %v7694 = vmul.bf16 %v526, %v7028
    %v7695 = vmul.bf16 %v527, %v7040
    %v7696 = vmul.bf16 %v528, %v7052
    %v7697 = vmul.bf16 %v529, %v7064
    %v7698 = vmul.bf16 %v530, %v7076
    %v7699 = vmul.bf16 %v531, %v7088
    %v7700 = vmul.bf16 %v532, %v7100
    %v7701 = vmul.bf16 %v533, %v7112
    %v7702 = vmul.bf16 %v534, %v7124
    %v7703 = vmul.bf16 %v535, %v7136
    %v7704 = vmul.bf16 %v536, %v7148
    %v7705 = vmul.bf16 %v537, %v7160
    %v7706 = vmul.bf16 %v538, %v7172
    %v7707 = vmul.bf16 %v539, %v7184
    %v7708 = vmul.bf16 %v540, %v7196
    %v7709 = vunpack.c.l.bf16 %v7197
    %v7710 = vunpack.c.h.bf16 %v7197
    %v7711 = vunpack.c.l.bf16 %v7198
    %v7712 = vunpack.c.h.bf16 %v7198
    %v7713 = vunpack.c.l.bf16 %v7199
    %v7714 = vunpack.c.h.bf16 %v7199
    %v7715 = vunpack.c.l.bf16 %v7200
    %v7716 = vunpack.c.h.bf16 %v7200
    %v7717 = vunpack.c.l.bf16 %v7201
    %v7718 = vunpack.c.h.bf16 %v7201
    %v7719 = vunpack.c.l.bf16 %v7202
    %v7720 = vunpack.c.h.bf16 %v7202
    %v7721 = vunpack.c.l.bf16 %v7203
    %v7722 = vunpack.c.h.bf16 %v7203
    %v7723 = vunpack.c.l.bf16 %v7204
    %v7724 = vunpack.c.h.bf16 %v7204
    %v7725 = vunpack.c.l.bf16 %v7205
    %v7726 = vunpack.c.h.bf16 %v7205
    %v7727 = vunpack.c.l.bf16 %v7206
    %v7728 = vunpack.c.h.bf16 %v7206
    %v7729 = vunpack.c.l.bf16 %v7207
    %v7730 = vunpack.c.h.bf16 %v7207
    %v7731 = vunpack.c.l.bf16 %v7208
    %v7732 = vunpack.c.h.bf16 %v7208
    %v7733 = vunpack.c.l.bf16 %v7209
    %v7734 = vunpack.c.h.bf16 %v7209
    %v7735 = vunpack.c.l.bf16 %v7210
    %v7736 = vunpack.c.h.bf16 %v7210
    %v7737 = vunpack.c.l.bf16 %v7211
    %v7738 = vunpack.c.h.bf16 %v7211
    %v7739 = vunpack.c.l.bf16 %v7212
    %v7740 = vunpack.c.h.bf16 %v7212
    %v7741 = vunpack.c.l.bf16 %v7213
    %v7742 = vunpack.c.h.bf16 %v7213
    %v7743 = vunpack.c.l.bf16 %v7214
    %v7744 = vunpack.c.h.bf16 %v7214
    %v7745 = vunpack.c.l.bf16 %v7215
    %v7746 = vunpack.c.h.bf16 %v7215
    %v7747 = vunpack.c.l.bf16 %v7216
    %v7748 = vunpack.c.h.bf16 %v7216
    %v7749 = vunpack.c.l.bf16 %v7217
    %v7750 = vunpack.c.h.bf16 %v7217
    %v7751 = vunpack.c.l.bf16 %v7218
    %v7752 = vunpack.c.h.bf16 %v7218
    %v7753 = vunpack.c.l.bf16 %v7219
    %v7754 = vunpack.c.h.bf16 %v7219
    %v7755 = vunpack.c.l.bf16 %v7220
    %v7756 = vunpack.c.h.bf16 %v7220
    %v7757 = vunpack.c.l.bf16 %v7221
    %v7758 = vunpack.c.h.bf16 %v7221
    %v7759 = vunpack.c.l.bf16 %v7222
    %v7760 = vunpack.c.h.bf16 %v7222
    %v7761 = vunpack.c.l.bf16 %v7223
    %v7762 = vunpack.c.h.bf16 %v7223
    %v7763 = vunpack.c.l.bf16 %v7224
    %v7764 = vunpack.c.h.bf16 %v7224
    %v7765 = vunpack.c.l.bf16 %v7225
    %v7766 = vunpack.c.h.bf16 %v7225
    %v7767 = vunpack.c.l.bf16 %v7226
    %v7768 = vunpack.c.h.bf16 %v7226
    %v7769 = vunpack.c.l.bf16 %v7227
    %v7770 = vunpack.c.h.bf16 %v7227
    %v7771 = vunpack.c.l.bf16 %v7228
    %v7772 = vunpack.c.h.bf16 %v7228
    %v7773 = vunpack.c.l.bf16 %v7229
    %v7774 = vunpack.c.h.bf16 %v7229
    %v7775 = vunpack.c.l.bf16 %v7230
    %v7776 = vunpack.c.h.bf16 %v7230
    %v7777 = vunpack.c.l.bf16 %v7231
    %v7778 = vunpack.c.h.bf16 %v7231
    %v7779 = vunpack.c.l.bf16 %v7232
    %v7780 = vunpack.c.h.bf16 %v7232
    %v7781 = vunpack.c.l.bf16 %v7233
    %v7782 = vunpack.c.h.bf16 %v7233
    %v7783 = vunpack.c.l.bf16 %v7234
    %v7784 = vunpack.c.h.bf16 %v7234
    %v7785 = vunpack.c.l.bf16 %v7235
    %v7786 = vunpack.c.h.bf16 %v7235
    %v7787 = vunpack.c.l.bf16 %v7236
    %v7788 = vunpack.c.h.bf16 %v7236
    %v7789 = vunpack.c.l.bf16 %v7237
    %v7790 = vunpack.c.h.bf16 %v7237
    %v7791 = vunpack.c.l.bf16 %v7238
    %v7792 = vunpack.c.h.bf16 %v7238
    %v7793 = vunpack.c.l.bf16 %v7239
    %v7794 = vunpack.c.h.bf16 %v7239
    %v7795 = vunpack.c.l.bf16 %v7240
    %v7796 = vunpack.c.h.bf16 %v7240
    %v7797 = vunpack.c.l.bf16 %v7241
    %v7798 = vunpack.c.h.bf16 %v7241
    %v7799 = vunpack.c.l.bf16 %v7242
    %v7800 = vunpack.c.h.bf16 %v7242
    %v7801 = vunpack.c.l.bf16 %v7243
    %v7802 = vunpack.c.h.bf16 %v7243
    %v7803 = vunpack.c.l.bf16 %v7244
    %v7804 = vunpack.c.h.bf16 %v7244
    %v7805 = vunpack.c.l.bf16 %v7245
    %v7806 = vunpack.c.h.bf16 %v7245
    %v7807 = vunpack.c.l.bf16 %v7246
    %v7808 = vunpack.c.h.bf16 %v7246
    %v7809 = vunpack.c.l.bf16 %v7247
    %v7810 = vunpack.c.h.bf16 %v7247
    %v7811 = vunpack.c.l.bf16 %v7248
    %v7812 = vunpack.c.h.bf16 %v7248
    %v7813 = vunpack.c.l.bf16 %v7249
    %v7814 = vunpack.c.h.bf16 %v7249
    %v7815 = vunpack.c.l.bf16 %v7250
    %v7816 = vunpack.c.h.bf16 %v7250
    %v7817 = vunpack.c.l.bf16 %v7251
    %v7818 = vunpack.c.h.bf16 %v7251
    %v7819 = vunpack.c.l.bf16 %v7252
    %v7820 = vunpack.c.h.bf16 %v7252
    %v7821 = vunpack.c.l.bf16 %v7253
    %v7822 = vunpack.c.h.bf16 %v7253
    %v7823 = vunpack.c.l.bf16 %v7254
    %v7824 = vunpack.c.h.bf16 %v7254
    %v7825 = vunpack.c.l.bf16 %v7255
    %v7826 = vunpack.c.h.bf16 %v7255
    %v7827 = vunpack.c.l.bf16 %v7256
    %v7828 = vunpack.c.h.bf16 %v7256
    %v7829 = vunpack.c.l.bf16 %v7257
    %v7830 = vunpack.c.h.bf16 %v7257
    %v7831 = vunpack.c.l.bf16 %v7258
    %v7832 = vunpack.c.h.bf16 %v7258
    %v7833 = vunpack.c.l.bf16 %v7259
    %v7834 = vunpack.c.h.bf16 %v7259
    %v7835 = vunpack.c.l.bf16 %v7260
    %v7836 = vunpack.c.h.bf16 %v7260
    %v7837 = vunpack.c.l.bf16 %v7261
    %v7838 = vunpack.c.h.bf16 %v7261
    %v7839 = vunpack.c.l.bf16 %v7262
    %v7840 = vunpack.c.h.bf16 %v7262
    %v7841 = vunpack.c.l.bf16 %v7263
    %v7842 = vunpack.c.h.bf16 %v7263
    %v7843 = vunpack.c.l.bf16 %v7264
    %v7844 = vunpack.c.h.bf16 %v7264
    %v7845 = vunpack.c.l.bf16 %v7265
    %v7846 = vunpack.c.h.bf16 %v7265
    %v7847 = vunpack.c.l.bf16 %v7266
    %v7848 = vunpack.c.h.bf16 %v7266
    %v7849 = vunpack.c.l.bf16 %v7267
    %v7850 = vunpack.c.h.bf16 %v7267
    %v7851 = vunpack.c.l.bf16 %v7268
    %v7852 = vunpack.c.h.bf16 %v7268
    %v7853 = vunpack.c.l.bf16 %v7269
    %v7854 = vunpack.c.h.bf16 %v7269
    %v7855 = vunpack.c.l.bf16 %v7270
    %v7856 = vunpack.c.h.bf16 %v7270
    %v7857 = vunpack.c.l.bf16 %v7271
    %v7858 = vunpack.c.h.bf16 %v7271
    %v7859 = vunpack.c.l.bf16 %v7272
    %v7860 = vunpack.c.h.bf16 %v7272
    %v7861 = vunpack.c.l.bf16 %v7273
    %v7862 = vunpack.c.h.bf16 %v7273
    %v7863 = vunpack.c.l.bf16 %v7274
    %v7864 = vunpack.c.h.bf16 %v7274
    %v7865 = vunpack.c.l.bf16 %v7275
    %v7866 = vunpack.c.h.bf16 %v7275
    %v7867 = vunpack.c.l.bf16 %v7276
    %v7868 = vunpack.c.h.bf16 %v7276
    %v7869 = vunpack.c.l.bf16 %v7277
    %v7870 = vunpack.c.h.bf16 %v7277
    %v7871 = vunpack.c.l.bf16 %v7278
    %v7872 = vunpack.c.h.bf16 %v7278
    %v7873 = vunpack.c.l.bf16 %v7279
    %v7874 = vunpack.c.h.bf16 %v7279
    %v7875 = vunpack.c.l.bf16 %v7280
    %v7876 = vunpack.c.h.bf16 %v7280
    %v7877 = vunpack.c.l.bf16 %v7281
    %v7878 = vunpack.c.h.bf16 %v7281
    %v7879 = vunpack.c.l.bf16 %v7282
    %v7880 = vunpack.c.h.bf16 %v7282
    %v7881 = vunpack.c.l.bf16 %v7283
    %v7882 = vunpack.c.h.bf16 %v7283
    %v7883 = vunpack.c.l.bf16 %v7284
    %v7884 = vunpack.c.h.bf16 %v7284
    %v7885 = vunpack.c.l.bf16 %v7285
    %v7886 = vunpack.c.h.bf16 %v7285
    %v7887 = vunpack.c.l.bf16 %v7286
    %v7888 = vunpack.c.h.bf16 %v7286
    %v7889 = vunpack.c.l.bf16 %v7287
    %v7890 = vunpack.c.h.bf16 %v7287
    %v7891 = vunpack.c.l.bf16 %v7288
    %v7892 = vunpack.c.h.bf16 %v7288
    %v7893 = vunpack.c.l.bf16 %v7289
    %v7894 = vunpack.c.h.bf16 %v7289
    %v7895 = vunpack.c.l.bf16 %v7290
    %v7896 = vunpack.c.h.bf16 %v7290
    %v7897 = vunpack.c.l.bf16 %v7291
    %v7898 = vunpack.c.h.bf16 %v7291
    %v7899 = vunpack.c.l.bf16 %v7292
    %v7900 = vunpack.c.h.bf16 %v7292
    %v7901 = vunpack.c.l.bf16 %v7293
    %v7902 = vunpack.c.h.bf16 %v7293
    %v7903 = vunpack.c.l.bf16 %v7294
    %v7904 = vunpack.c.h.bf16 %v7294
    %v7905 = vunpack.c.l.bf16 %v7295
    %v7906 = vunpack.c.h.bf16 %v7295
    %v7907 = vunpack.c.l.bf16 %v7296
    %v7908 = vunpack.c.h.bf16 %v7296
    %v7909 = vunpack.c.l.bf16 %v7297
    %v7910 = vunpack.c.h.bf16 %v7297
    %v7911 = vunpack.c.l.bf16 %v7298
    %v7912 = vunpack.c.h.bf16 %v7298
    %v7913 = vunpack.c.l.bf16 %v7299
    %v7914 = vunpack.c.h.bf16 %v7299
    %v7915 = vunpack.c.l.bf16 %v7300
    %v7916 = vunpack.c.h.bf16 %v7300
    %v7917 = vunpack.c.l.bf16 %v7301
    %v7918 = vunpack.c.h.bf16 %v7301
    %v7919 = vunpack.c.l.bf16 %v7302
    %v7920 = vunpack.c.h.bf16 %v7302
    %v7921 = vunpack.c.l.bf16 %v7303
    %v7922 = vunpack.c.h.bf16 %v7303
    %v7923 = vunpack.c.l.bf16 %v7304
    %v7924 = vunpack.c.h.bf16 %v7304
    %v7925 = vunpack.c.l.bf16 %v7305
    %v7926 = vunpack.c.h.bf16 %v7305
    %v7927 = vunpack.c.l.bf16 %v7306
    %v7928 = vunpack.c.h.bf16 %v7306
    %v7929 = vunpack.c.l.bf16 %v7307
    %v7930 = vunpack.c.h.bf16 %v7307
    %v7931 = vunpack.c.l.bf16 %v7308
    %v7932 = vunpack.c.h.bf16 %v7308
    %v7933 = vunpack.c.l.bf16 %v7309
    %v7934 = vunpack.c.h.bf16 %v7309
    %v7935 = vunpack.c.l.bf16 %v7310
    %v7936 = vunpack.c.h.bf16 %v7310
    %v7937 = vunpack.c.l.bf16 %v7311
    %v7938 = vunpack.c.h.bf16 %v7311
    %v7939 = vunpack.c.l.bf16 %v7312
    %v7940 = vunpack.c.h.bf16 %v7312
    %v7941 = vunpack.c.l.bf16 %v7313
    %v7942 = vunpack.c.h.bf16 %v7313
    %v7943 = vunpack.c.l.bf16 %v7314
    %v7944 = vunpack.c.h.bf16 %v7314
    %v7945 = vunpack.c.l.bf16 %v7315
    %v7946 = vunpack.c.h.bf16 %v7315
    %v7947 = vunpack.c.l.bf16 %v7316
    %v7948 = vunpack.c.h.bf16 %v7316
    %v7949 = vunpack.c.l.bf16 %v7317
    %v7950 = vunpack.c.h.bf16 %v7317
    %v7951 = vunpack.c.l.bf16 %v7318
    %v7952 = vunpack.c.h.bf16 %v7318
    %v7953 = vunpack.c.l.bf16 %v7319
    %v7954 = vunpack.c.h.bf16 %v7319
    %v7955 = vunpack.c.l.bf16 %v7320
    %v7956 = vunpack.c.h.bf16 %v7320
    %v7957 = vunpack.c.l.bf16 %v7321
    %v7958 = vunpack.c.h.bf16 %v7321
    %v7959 = vunpack.c.l.bf16 %v7322
    %v7960 = vunpack.c.h.bf16 %v7322
    %v7961 = vunpack.c.l.bf16 %v7323
    %v7962 = vunpack.c.h.bf16 %v7323
    %v7963 = vunpack.c.l.bf16 %v7324
    %v7964 = vunpack.c.h.bf16 %v7324
    %v7965 = vunpack.c.l.bf16 %v7325
    %v7966 = vunpack.c.h.bf16 %v7325
    %v7967 = vunpack.c.l.bf16 %v7326
    %v7968 = vunpack.c.h.bf16 %v7326
    %v7969 = vunpack.c.l.bf16 %v7327
    %v7970 = vunpack.c.h.bf16 %v7327
    %v7971 = vunpack.c.l.bf16 %v7328
    %v7972 = vunpack.c.h.bf16 %v7328
    %v7973 = vunpack.c.l.bf16 %v7329
    %v7974 = vunpack.c.h.bf16 %v7329
    %v7975 = vunpack.c.l.bf16 %v7330
    %v7976 = vunpack.c.h.bf16 %v7330
    %v7977 = vunpack.c.l.bf16 %v7331
    %v7978 = vunpack.c.h.bf16 %v7331
    %v7979 = vunpack.c.l.bf16 %v7332
    %v7980 = vunpack.c.h.bf16 %v7332
    %v7981 = vunpack.c.l.bf16 %v7333
    %v7982 = vunpack.c.h.bf16 %v7333
    %v7983 = vunpack.c.l.bf16 %v7334
    %v7984 = vunpack.c.h.bf16 %v7334
    %v7985 = vunpack.c.l.bf16 %v7335
    %v7986 = vunpack.c.h.bf16 %v7335
    %v7987 = vunpack.c.l.bf16 %v7336
    %v7988 = vunpack.c.h.bf16 %v7336
    %v7989 = vunpack.c.l.bf16 %v7337
    %v7990 = vunpack.c.h.bf16 %v7337
    %v7991 = vunpack.c.l.bf16 %v7338
    %v7992 = vunpack.c.h.bf16 %v7338
    %v7993 = vunpack.c.l.bf16 %v7339
    %v7994 = vunpack.c.h.bf16 %v7339
    %v7995 = vunpack.c.l.bf16 %v7340
    %v7996 = vunpack.c.h.bf16 %v7340
    %v7997 = vunpack.c.l.bf16 %v7341
    %v7998 = vunpack.c.h.bf16 %v7341
    %v7999 = vunpack.c.l.bf16 %v7342
    %v8000 = vunpack.c.h.bf16 %v7342
    %v8001 = vunpack.c.l.bf16 %v7343
    %v8002 = vunpack.c.h.bf16 %v7343
    %v8003 = vunpack.c.l.bf16 %v7344
    %v8004 = vunpack.c.h.bf16 %v7344
    %v8005 = vunpack.c.l.bf16 %v7345
    %v8006 = vunpack.c.h.bf16 %v7345
    %v8007 = vunpack.c.l.bf16 %v7346
    %v8008 = vunpack.c.h.bf16 %v7346
    %v8009 = vunpack.c.l.bf16 %v7347
    %v8010 = vunpack.c.h.bf16 %v7347
    %v8011 = vunpack.c.l.bf16 %v7348
    %v8012 = vunpack.c.h.bf16 %v7348
    %v8013 = vunpack.c.l.bf16 %v7349
    %v8014 = vunpack.c.h.bf16 %v7349
    %v8015 = vunpack.c.l.bf16 %v7350
    %v8016 = vunpack.c.h.bf16 %v7350
    %v8017 = vunpack.c.l.bf16 %v7351
    %v8018 = vunpack.c.h.bf16 %v7351
    %v8019 = vunpack.c.l.bf16 %v7352
    %v8020 = vunpack.c.h.bf16 %v7352
    %v8021 = vunpack.c.l.bf16 %v7353
    %v8022 = vunpack.c.h.bf16 %v7353
    %v8023 = vunpack.c.l.bf16 %v7354
    %v8024 = vunpack.c.h.bf16 %v7354
    %v8025 = vunpack.c.l.bf16 %v7355
    %v8026 = vunpack.c.h.bf16 %v7355
    %v8027 = vunpack.c.l.bf16 %v7356
    %v8028 = vunpack.c.h.bf16 %v7356
    %v8029 = vunpack.c.l.bf16 %v7357
    %v8030 = vunpack.c.h.bf16 %v7357
    %v8031 = vunpack.c.l.bf16 %v7358
    %v8032 = vunpack.c.h.bf16 %v7358
    %v8033 = vunpack.c.l.bf16 %v7359
    %v8034 = vunpack.c.h.bf16 %v7359
    %v8035 = vunpack.c.l.bf16 %v7360
    %v8036 = vunpack.c.h.bf16 %v7360
    %v8037 = vunpack.c.l.bf16 %v7361
    %v8038 = vunpack.c.h.bf16 %v7361
    %v8039 = vunpack.c.l.bf16 %v7362
    %v8040 = vunpack.c.h.bf16 %v7362
    %v8041 = vunpack.c.l.bf16 %v7363
    %v8042 = vunpack.c.h.bf16 %v7363
    %v8043 = vunpack.c.l.bf16 %v7364
    %v8044 = vunpack.c.h.bf16 %v7364
    %v8045 = vunpack.c.l.bf16 %v7365
    %v8046 = vunpack.c.h.bf16 %v7365
    %v8047 = vunpack.c.l.bf16 %v7366
    %v8048 = vunpack.c.h.bf16 %v7366
    %v8049 = vunpack.c.l.bf16 %v7367
    %v8050 = vunpack.c.h.bf16 %v7367
    %v8051 = vunpack.c.l.bf16 %v7368
    %v8052 = vunpack.c.h.bf16 %v7368
    %v8053 = vunpack.c.l.bf16 %v7369
    %v8054 = vunpack.c.h.bf16 %v7369
    %v8055 = vunpack.c.l.bf16 %v7370
    %v8056 = vunpack.c.h.bf16 %v7370
    %v8057 = vunpack.c.l.bf16 %v7371
    %v8058 = vunpack.c.h.bf16 %v7371
    %v8059 = vunpack.c.l.bf16 %v7372
    %v8060 = vunpack.c.h.bf16 %v7372
    %v8061 = vunpack.c.l.bf16 %v7373
    %v8062 = vunpack.c.h.bf16 %v7373
    %v8063 = vunpack.c.l.bf16 %v7374
    %v8064 = vunpack.c.h.bf16 %v7374
    %v8065 = vunpack.c.l.bf16 %v7375
    %v8066 = vunpack.c.h.bf16 %v7375
    %v8067 = vunpack.c.l.bf16 %v7376
    %v8068 = vunpack.c.h.bf16 %v7376
    %v8069 = vunpack.c.l.bf16 %v7377
    %v8070 = vunpack.c.h.bf16 %v7377
    %v8071 = vunpack.c.l.bf16 %v7378
    %v8072 = vunpack.c.h.bf16 %v7378
    %v8073 = vunpack.c.l.bf16 %v7379
    %v8074 = vunpack.c.h.bf16 %v7379
    %v8075 = vunpack.c.l.bf16 %v7380
    %v8076 = vunpack.c.h.bf16 %v7380
    %v8077 = vunpack.c.l.bf16 %v7381
    %v8078 = vunpack.c.h.bf16 %v7381
    %v8079 = vunpack.c.l.bf16 %v7382
    %v8080 = vunpack.c.h.bf16 %v7382
    %v8081 = vunpack.c.l.bf16 %v7383
    %v8082 = vunpack.c.h.bf16 %v7383
    %v8083 = vunpack.c.l.bf16 %v7384
    %v8084 = vunpack.c.h.bf16 %v7384
    %v8085 = vunpack.c.l.bf16 %v7385
    %v8086 = vunpack.c.h.bf16 %v7385
    %v8087 = vunpack.c.l.bf16 %v7386
    %v8088 = vunpack.c.h.bf16 %v7386
    %v8089 = vunpack.c.l.bf16 %v7387
    %v8090 = vunpack.c.h.bf16 %v7387
    %v8091 = vunpack.c.l.bf16 %v7388
    %v8092 = vunpack.c.h.bf16 %v7388
    %v8093 = vunpack.c.l.bf16 %v7389
    %v8094 = vunpack.c.h.bf16 %v7389
    %v8095 = vunpack.c.l.bf16 %v7390
    %v8096 = vunpack.c.h.bf16 %v7390
    %v8097 = vunpack.c.l.bf16 %v7391
    %v8098 = vunpack.c.h.bf16 %v7391
    %v8099 = vunpack.c.l.bf16 %v7392
    %v8100 = vunpack.c.h.bf16 %v7392
    %v8101 = vunpack.c.l.bf16 %v7393
    %v8102 = vunpack.c.h.bf16 %v7393
    %v8103 = vunpack.c.l.bf16 %v7394
    %v8104 = vunpack.c.h.bf16 %v7394
    %v8105 = vunpack.c.l.bf16 %v7395
    %v8106 = vunpack.c.h.bf16 %v7395
    %v8107 = vunpack.c.l.bf16 %v7396
    %v8108 = vunpack.c.h.bf16 %v7396
    %v8109 = vunpack.c.l.bf16 %v7397
    %v8110 = vunpack.c.h.bf16 %v7397
    %v8111 = vunpack.c.l.bf16 %v7398
    %v8112 = vunpack.c.h.bf16 %v7398
    %v8113 = vunpack.c.l.bf16 %v7399
    %v8114 = vunpack.c.h.bf16 %v7399
    %v8115 = vunpack.c.l.bf16 %v7400
    %v8116 = vunpack.c.h.bf16 %v7400
    %v8117 = vunpack.c.l.bf16 %v7401
    %v8118 = vunpack.c.h.bf16 %v7401
    %v8119 = vunpack.c.l.bf16 %v7402
    %v8120 = vunpack.c.h.bf16 %v7402
    %v8121 = vunpack.c.l.bf16 %v7403
    %v8122 = vunpack.c.h.bf16 %v7403
    %v8123 = vunpack.c.l.bf16 %v7404
    %v8124 = vunpack.c.h.bf16 %v7404
    %v8125 = vunpack.c.l.bf16 %v7405
    %v8126 = vunpack.c.h.bf16 %v7405
    %v8127 = vunpack.c.l.bf16 %v7406
    %v8128 = vunpack.c.h.bf16 %v7406
    %v8129 = vunpack.c.l.bf16 %v7407
    %v8130 = vunpack.c.h.bf16 %v7407
    %v8131 = vunpack.c.l.bf16 %v7408
    %v8132 = vunpack.c.h.bf16 %v7408
    %v8133 = vunpack.c.l.bf16 %v7409
    %v8134 = vunpack.c.h.bf16 %v7409
    %v8135 = vunpack.c.l.bf16 %v7410
    %v8136 = vunpack.c.h.bf16 %v7410
    %v8137 = vunpack.c.l.bf16 %v7411
    %v8138 = vunpack.c.h.bf16 %v7411
    %v8139 = vunpack.c.l.bf16 %v7412
    %v8140 = vunpack.c.h.bf16 %v7412
    %v8141 = vunpack.c.l.bf16 %v7413
    %v8142 = vunpack.c.h.bf16 %v7413
    %v8143 = vunpack.c.l.bf16 %v7414
    %v8144 = vunpack.c.h.bf16 %v7414
    %v8145 = vunpack.c.l.bf16 %v7415
    %v8146 = vunpack.c.h.bf16 %v7415
    %v8147 = vunpack.c.l.bf16 %v7416
    %v8148 = vunpack.c.h.bf16 %v7416
    %v8149 = vunpack.c.l.bf16 %v7417
    %v8150 = vunpack.c.h.bf16 %v7417
    %v8151 = vunpack.c.l.bf16 %v7418
    %v8152 = vunpack.c.h.bf16 %v7418
    %v8153 = vunpack.c.l.bf16 %v7419
    %v8154 = vunpack.c.h.bf16 %v7419
    %v8155 = vunpack.c.l.bf16 %v7420
    %v8156 = vunpack.c.h.bf16 %v7420
    %v8157 = vunpack.c.l.bf16 %v7421
    %v8158 = vunpack.c.h.bf16 %v7421
    %v8159 = vunpack.c.l.bf16 %v7422
    %v8160 = vunpack.c.h.bf16 %v7422
    %v8161 = vunpack.c.l.bf16 %v7423
    %v8162 = vunpack.c.h.bf16 %v7423
    %v8163 = vunpack.c.l.bf16 %v7424
    %v8164 = vunpack.c.h.bf16 %v7424
    %v8165 = vunpack.c.l.bf16 %v7425
    %v8166 = vunpack.c.h.bf16 %v7425
    %v8167 = vunpack.c.l.bf16 %v7426
    %v8168 = vunpack.c.h.bf16 %v7426
    %v8169 = vunpack.c.l.bf16 %v7427
    %v8170 = vunpack.c.h.bf16 %v7427
    %v8171 = vunpack.c.l.bf16 %v7428
    %v8172 = vunpack.c.h.bf16 %v7428
    %v8173 = vunpack.c.l.bf16 %v7429
    %v8174 = vunpack.c.h.bf16 %v7429
    %v8175 = vunpack.c.l.bf16 %v7430
    %v8176 = vunpack.c.h.bf16 %v7430
    %v8177 = vunpack.c.l.bf16 %v7431
    %v8178 = vunpack.c.h.bf16 %v7431
    %v8179 = vunpack.c.l.bf16 %v7432
    %v8180 = vunpack.c.h.bf16 %v7432
    %v8181 = vunpack.c.l.bf16 %v7433
    %v8182 = vunpack.c.h.bf16 %v7433
    %v8183 = vunpack.c.l.bf16 %v7434
    %v8184 = vunpack.c.h.bf16 %v7434
    %v8185 = vunpack.c.l.bf16 %v7435
    %v8186 = vunpack.c.h.bf16 %v7435
    %v8187 = vunpack.c.l.bf16 %v7436
    %v8188 = vunpack.c.h.bf16 %v7436
    %v8189 = vunpack.c.l.bf16 %v7437
    %v8190 = vunpack.c.h.bf16 %v7437
    %v8191 = vunpack.c.l.bf16 %v7438
    %v8192 = vunpack.c.h.bf16 %v7438
    %v8193 = vunpack.c.l.bf16 %v7439
    %v8194 = vunpack.c.h.bf16 %v7439
    %v8195 = vunpack.c.l.bf16 %v7440
    %v8196 = vunpack.c.h.bf16 %v7440
    %v8197 = vunpack.c.l.bf16 %v7441
    %v8198 = vunpack.c.h.bf16 %v7441
    %v8199 = vunpack.c.l.bf16 %v7442
    %v8200 = vunpack.c.h.bf16 %v7442
    %v8201 = vunpack.c.l.bf16 %v7443
    %v8202 = vunpack.c.h.bf16 %v7443
    %v8203 = vunpack.c.l.bf16 %v7444
    %v8204 = vunpack.c.h.bf16 %v7444
    %v8205 = vunpack.c.l.bf16 %v7445
    %v8206 = vunpack.c.h.bf16 %v7445
    %v8207 = vunpack.c.l.bf16 %v7446
    %v8208 = vunpack.c.h.bf16 %v7446
    %v8209 = vunpack.c.l.bf16 %v7447
    %v8210 = vunpack.c.h.bf16 %v7447
    %v8211 = vunpack.c.l.bf16 %v7448
    %v8212 = vunpack.c.h.bf16 %v7448
    %v8213 = vunpack.c.l.bf16 %v7449
    %v8214 = vunpack.c.h.bf16 %v7449
    %v8215 = vunpack.c.l.bf16 %v7450
    %v8216 = vunpack.c.h.bf16 %v7450
    %v8217 = vunpack.c.l.bf16 %v7451
    %v8218 = vunpack.c.h.bf16 %v7451
    %v8219 = vunpack.c.l.bf16 %v7452
    %v8220 = vunpack.c.h.bf16 %v7452
    %v8221 = vunpack.c.l.bf16 %v7453
    %v8222 = vunpack.c.h.bf16 %v7453
    %v8223 = vunpack.c.l.bf16 %v7454
    %v8224 = vunpack.c.h.bf16 %v7454
    %v8225 = vunpack.c.l.bf16 %v7455
    %v8226 = vunpack.c.h.bf16 %v7455
    %v8227 = vunpack.c.l.bf16 %v7456
    %v8228 = vunpack.c.h.bf16 %v7456
    %v8229 = vunpack.c.l.bf16 %v7457
    %v8230 = vunpack.c.h.bf16 %v7457
    %v8231 = vunpack.c.l.bf16 %v7458
    %v8232 = vunpack.c.h.bf16 %v7458
    %v8233 = vunpack.c.l.bf16 %v7459
    %v8234 = vunpack.c.h.bf16 %v7459
    %v8235 = vunpack.c.l.bf16 %v7460
    %v8236 = vunpack.c.h.bf16 %v7460
    %v8237 = vunpack.c.l.bf16 %v7461
    %v8238 = vunpack.c.h.bf16 %v7461
    %v8239 = vunpack.c.l.bf16 %v7462
    %v8240 = vunpack.c.h.bf16 %v7462
    %v8241 = vunpack.c.l.bf16 %v7463
    %v8242 = vunpack.c.h.bf16 %v7463
    %v8243 = vunpack.c.l.bf16 %v7464
    %v8244 = vunpack.c.h.bf16 %v7464
    %v8245 = vunpack.c.l.bf16 %v7465
    %v8246 = vunpack.c.h.bf16 %v7465
    %v8247 = vunpack.c.l.bf16 %v7466
    %v8248 = vunpack.c.h.bf16 %v7466
    %v8249 = vunpack.c.l.bf16 %v7467
    %v8250 = vunpack.c.h.bf16 %v7467
    %v8251 = vunpack.c.l.bf16 %v7468
    %v8252 = vunpack.c.h.bf16 %v7468
    %v8253 = vunpack.c.l.bf16 %v7469
    %v8254 = vunpack.c.h.bf16 %v7469
    %v8255 = vunpack.c.l.bf16 %v7470
    %v8256 = vunpack.c.h.bf16 %v7470
    %v8257 = vunpack.c.l.bf16 %v7471
    %v8258 = vunpack.c.h.bf16 %v7471
    %v8259 = vunpack.c.l.bf16 %v7472
    %v8260 = vunpack.c.h.bf16 %v7472
    %v8261 = vunpack.c.l.bf16 %v7473
    %v8262 = vunpack.c.h.bf16 %v7473
    %v8263 = vunpack.c.l.bf16 %v7474
    %v8264 = vunpack.c.h.bf16 %v7474
    %v8265 = vunpack.c.l.bf16 %v7475
    %v8266 = vunpack.c.h.bf16 %v7475
    %v8267 = vunpack.c.l.bf16 %v7476
    %v8268 = vunpack.c.h.bf16 %v7476
    %v8269 = vunpack.c.l.bf16 %v7477
    %v8270 = vunpack.c.h.bf16 %v7477
    %v8271 = vunpack.c.l.bf16 %v7478
    %v8272 = vunpack.c.h.bf16 %v7478
    %v8273 = vunpack.c.l.bf16 %v7479
    %v8274 = vunpack.c.h.bf16 %v7479
    %v8275 = vunpack.c.l.bf16 %v7480
    %v8276 = vunpack.c.h.bf16 %v7480
    %v8277 = vunpack.c.l.bf16 %v7481
    %v8278 = vunpack.c.h.bf16 %v7481
    %v8279 = vunpack.c.l.bf16 %v7482
    %v8280 = vunpack.c.h.bf16 %v7482
    %v8281 = vunpack.c.l.bf16 %v7483
    %v8282 = vunpack.c.h.bf16 %v7483
    %v8283 = vunpack.c.l.bf16 %v7484
    %v8284 = vunpack.c.h.bf16 %v7484
    %v8285 = vunpack.c.l.bf16 %v7485
    %v8286 = vunpack.c.h.bf16 %v7485
    %v8287 = vunpack.c.l.bf16 %v7486
    %v8288 = vunpack.c.h.bf16 %v7486
    %v8289 = vunpack.c.l.bf16 %v7487
    %v8290 = vunpack.c.h.bf16 %v7487
    %v8291 = vunpack.c.l.bf16 %v7488
    %v8292 = vunpack.c.h.bf16 %v7488
    %v8293 = vunpack.c.l.bf16 %v7489
    %v8294 = vunpack.c.h.bf16 %v7489
    %v8295 = vunpack.c.l.bf16 %v7490
    %v8296 = vunpack.c.h.bf16 %v7490
    %v8297 = vunpack.c.l.bf16 %v7491
    %v8298 = vunpack.c.h.bf16 %v7491
    %v8299 = vunpack.c.l.bf16 %v7492
    %v8300 = vunpack.c.h.bf16 %v7492
    %v8301 = vunpack.c.l.bf16 %v7493
    %v8302 = vunpack.c.h.bf16 %v7493
    %v8303 = vunpack.c.l.bf16 %v7494
    %v8304 = vunpack.c.h.bf16 %v7494
    %v8305 = vunpack.c.l.bf16 %v7495
    %v8306 = vunpack.c.h.bf16 %v7495
    %v8307 = vunpack.c.l.bf16 %v7496
    %v8308 = vunpack.c.h.bf16 %v7496
    %v8309 = vunpack.c.l.bf16 %v7497
    %v8310 = vunpack.c.h.bf16 %v7497
    %v8311 = vunpack.c.l.bf16 %v7498
    %v8312 = vunpack.c.h.bf16 %v7498
    %v8313 = vunpack.c.l.bf16 %v7499
    %v8314 = vunpack.c.h.bf16 %v7499
    %v8315 = vunpack.c.l.bf16 %v7500
    %v8316 = vunpack.c.h.bf16 %v7500
    %v8317 = vunpack.c.l.bf16 %v7501
    %v8318 = vunpack.c.h.bf16 %v7501
    %v8319 = vunpack.c.l.bf16 %v7502
    %v8320 = vunpack.c.h.bf16 %v7502
    %v8321 = vunpack.c.l.bf16 %v7503
    %v8322 = vunpack.c.h.bf16 %v7503
    %v8323 = vunpack.c.l.bf16 %v7504
    %v8324 = vunpack.c.h.bf16 %v7504
    %v8325 = vunpack.c.l.bf16 %v7505
    %v8326 = vunpack.c.h.bf16 %v7505
    %v8327 = vunpack.c.l.bf16 %v7506
    %v8328 = vunpack.c.h.bf16 %v7506
    %v8329 = vunpack.c.l.bf16 %v7507
    %v8330 = vunpack.c.h.bf16 %v7507
    %v8331 = vunpack.c.l.bf16 %v7508
    %v8332 = vunpack.c.h.bf16 %v7508
    %v8333 = vunpack.c.l.bf16 %v7509
    %v8334 = vunpack.c.h.bf16 %v7509
    %v8335 = vunpack.c.l.bf16 %v7510
    %v8336 = vunpack.c.h.bf16 %v7510
    %v8337 = vunpack.c.l.bf16 %v7511
    %v8338 = vunpack.c.h.bf16 %v7511
    %v8339 = vunpack.c.l.bf16 %v7512
    %v8340 = vunpack.c.h.bf16 %v7512
    %v8341 = vunpack.c.l.bf16 %v7513
    %v8342 = vunpack.c.h.bf16 %v7513
    %v8343 = vunpack.c.l.bf16 %v7514
    %v8344 = vunpack.c.h.bf16 %v7514
    %v8345 = vunpack.c.l.bf16 %v7515
    %v8346 = vunpack.c.h.bf16 %v7515
    %v8347 = vunpack.c.l.bf16 %v7516
    %v8348 = vunpack.c.h.bf16 %v7516
    %v8349 = vunpack.c.l.bf16 %v7517
    %v8350 = vunpack.c.h.bf16 %v7517
    %v8351 = vunpack.c.l.bf16 %v7518
    %v8352 = vunpack.c.h.bf16 %v7518
    %v8353 = vunpack.c.l.bf16 %v7519
    %v8354 = vunpack.c.h.bf16 %v7519
    %v8355 = vunpack.c.l.bf16 %v7520
    %v8356 = vunpack.c.h.bf16 %v7520
    %v8357 = vunpack.c.l.bf16 %v7521
    %v8358 = vunpack.c.h.bf16 %v7521
    %v8359 = vunpack.c.l.bf16 %v7522
    %v8360 = vunpack.c.h.bf16 %v7522
    %v8361 = vunpack.c.l.bf16 %v7523
    %v8362 = vunpack.c.h.bf16 %v7523
    %v8363 = vunpack.c.l.bf16 %v7524
    %v8364 = vunpack.c.h.bf16 %v7524
    %v8365 = vunpack.c.l.bf16 %v7525
    %v8366 = vunpack.c.h.bf16 %v7525
    %v8367 = vunpack.c.l.bf16 %v7526
    %v8368 = vunpack.c.h.bf16 %v7526
    %v8369 = vunpack.c.l.bf16 %v7527
    %v8370 = vunpack.c.h.bf16 %v7527
    %v8371 = vunpack.c.l.bf16 %v7528
    %v8372 = vunpack.c.h.bf16 %v7528
    %v8373 = vunpack.c.l.bf16 %v7529
    %v8374 = vunpack.c.h.bf16 %v7529
    %v8375 = vunpack.c.l.bf16 %v7530
    %v8376 = vunpack.c.h.bf16 %v7530
    %v8377 = vunpack.c.l.bf16 %v7531
    %v8378 = vunpack.c.h.bf16 %v7531
    %v8379 = vunpack.c.l.bf16 %v7532
    %v8380 = vunpack.c.h.bf16 %v7532
    %v8381 = vunpack.c.l.bf16 %v7533
    %v8382 = vunpack.c.h.bf16 %v7533
    %v8383 = vunpack.c.l.bf16 %v7534
    %v8384 = vunpack.c.h.bf16 %v7534
    %v8385 = vunpack.c.l.bf16 %v7535
    %v8386 = vunpack.c.h.bf16 %v7535
    %v8387 = vunpack.c.l.bf16 %v7536
    %v8388 = vunpack.c.h.bf16 %v7536
    %v8389 = vunpack.c.l.bf16 %v7537
    %v8390 = vunpack.c.h.bf16 %v7537
    %v8391 = vunpack.c.l.bf16 %v7538
    %v8392 = vunpack.c.h.bf16 %v7538
    %v8393 = vunpack.c.l.bf16 %v7539
    %v8394 = vunpack.c.h.bf16 %v7539
    %v8395 = vunpack.c.l.bf16 %v7540
    %v8396 = vunpack.c.h.bf16 %v7540
    %v8397 = vunpack.c.l.bf16 %v7541
    %v8398 = vunpack.c.h.bf16 %v7541
    %v8399 = vunpack.c.l.bf16 %v7542
    %v8400 = vunpack.c.h.bf16 %v7542
    %v8401 = vunpack.c.l.bf16 %v7543
    %v8402 = vunpack.c.h.bf16 %v7543
    %v8403 = vunpack.c.l.bf16 %v7544
    %v8404 = vunpack.c.h.bf16 %v7544
    %v8405 = vunpack.c.l.bf16 %v7545
    %v8406 = vunpack.c.h.bf16 %v7545
    %v8407 = vunpack.c.l.bf16 %v7546
    %v8408 = vunpack.c.h.bf16 %v7546
    %v8409 = vunpack.c.l.bf16 %v7547
    %v8410 = vunpack.c.h.bf16 %v7547
    %v8411 = vunpack.c.l.bf16 %v7548
    %v8412 = vunpack.c.h.bf16 %v7548
    %v8413 = vunpack.c.l.bf16 %v7549
    %v8414 = vunpack.c.h.bf16 %v7549
    %v8415 = vunpack.c.l.bf16 %v7550
    %v8416 = vunpack.c.h.bf16 %v7550
    %v8417 = vunpack.c.l.bf16 %v7551
    %v8418 = vunpack.c.h.bf16 %v7551
    %v8419 = vunpack.c.l.bf16 %v7552
    %v8420 = vunpack.c.h.bf16 %v7552
    %v8421 = vunpack.c.l.bf16 %v7553
    %v8422 = vunpack.c.h.bf16 %v7553
    %v8423 = vunpack.c.l.bf16 %v7554
    %v8424 = vunpack.c.h.bf16 %v7554
    %v8425 = vunpack.c.l.bf16 %v7555
    %v8426 = vunpack.c.h.bf16 %v7555
    %v8427 = vunpack.c.l.bf16 %v7556
    %v8428 = vunpack.c.h.bf16 %v7556
    %v8429 = vunpack.c.l.bf16 %v7557
    %v8430 = vunpack.c.h.bf16 %v7557
    %v8431 = vunpack.c.l.bf16 %v7558
    %v8432 = vunpack.c.h.bf16 %v7558
    %v8433 = vunpack.c.l.bf16 %v7559
    %v8434 = vunpack.c.h.bf16 %v7559
    %v8435 = vunpack.c.l.bf16 %v7560
    %v8436 = vunpack.c.h.bf16 %v7560
    %v8437 = vunpack.c.l.bf16 %v7561
    %v8438 = vunpack.c.h.bf16 %v7561
    %v8439 = vunpack.c.l.bf16 %v7562
    %v8440 = vunpack.c.h.bf16 %v7562
    %v8441 = vunpack.c.l.bf16 %v7563
    %v8442 = vunpack.c.h.bf16 %v7563
    %v8443 = vunpack.c.l.bf16 %v7564
    %v8444 = vunpack.c.h.bf16 %v7564
    %v8445 = vunpack.c.l.bf16 %v7565
    %v8446 = vunpack.c.h.bf16 %v7565
    %v8447 = vunpack.c.l.bf16 %v7566
    %v8448 = vunpack.c.h.bf16 %v7566
    %v8449 = vunpack.c.l.bf16 %v7567
    %v8450 = vunpack.c.h.bf16 %v7567
    %v8451 = vunpack.c.l.bf16 %v7568
    %v8452 = vunpack.c.h.bf16 %v7568
    %v8453 = vunpack.c.l.bf16 %v7569
    %v8454 = vunpack.c.h.bf16 %v7569
    %v8455 = vunpack.c.l.bf16 %v7570
    %v8456 = vunpack.c.h.bf16 %v7570
    %v8457 = vunpack.c.l.bf16 %v7571
    %v8458 = vunpack.c.h.bf16 %v7571
    %v8459 = vunpack.c.l.bf16 %v7572
    %v8460 = vunpack.c.h.bf16 %v7572
    %v8461 = vunpack.c.l.bf16 %v7573
    %v8462 = vunpack.c.h.bf16 %v7573
    %v8463 = vunpack.c.l.bf16 %v7574
    %v8464 = vunpack.c.h.bf16 %v7574
    %v8465 = vunpack.c.l.bf16 %v7575
    %v8466 = vunpack.c.h.bf16 %v7575
    %v8467 = vunpack.c.l.bf16 %v7576
    %v8468 = vunpack.c.h.bf16 %v7576
    %v8469 = vunpack.c.l.bf16 %v7577
    %v8470 = vunpack.c.h.bf16 %v7577
    %v8471 = vunpack.c.l.bf16 %v7578
    %v8472 = vunpack.c.h.bf16 %v7578
    %v8473 = vunpack.c.l.bf16 %v7579
    %v8474 = vunpack.c.h.bf16 %v7579
    %v8475 = vunpack.c.l.bf16 %v7580
    %v8476 = vunpack.c.h.bf16 %v7580
    %v8477 = vunpack.c.l.bf16 %v7581
    %v8478 = vunpack.c.h.bf16 %v7581
    %v8479 = vunpack.c.l.bf16 %v7582
    %v8480 = vunpack.c.h.bf16 %v7582
    %v8481 = vunpack.c.l.bf16 %v7583
    %v8482 = vunpack.c.h.bf16 %v7583
    %v8483 = vunpack.c.l.bf16 %v7584
    %v8484 = vunpack.c.h.bf16 %v7584
    %v8485 = vunpack.c.l.bf16 %v7585
    %v8486 = vunpack.c.h.bf16 %v7585
    %v8487 = vunpack.c.l.bf16 %v7586
    %v8488 = vunpack.c.h.bf16 %v7586
    %v8489 = vunpack.c.l.bf16 %v7587
    %v8490 = vunpack.c.h.bf16 %v7587
    %v8491 = vunpack.c.l.bf16 %v7588
    %v8492 = vunpack.c.h.bf16 %v7588
    %v8493 = vunpack.c.l.bf16 %v7589
    %v8494 = vunpack.c.h.bf16 %v7589
    %v8495 = vunpack.c.l.bf16 %v7590
    %v8496 = vunpack.c.h.bf16 %v7590
    %v8497 = vunpack.c.l.bf16 %v7591
    %v8498 = vunpack.c.h.bf16 %v7591
    %v8499 = vunpack.c.l.bf16 %v7592
    %v8500 = vunpack.c.h.bf16 %v7592
    %v8501 = vunpack.c.l.bf16 %v7593
    %v8502 = vunpack.c.h.bf16 %v7593
    %v8503 = vunpack.c.l.bf16 %v7594
    %v8504 = vunpack.c.h.bf16 %v7594
    %v8505 = vunpack.c.l.bf16 %v7595
    %v8506 = vunpack.c.h.bf16 %v7595
    %v8507 = vunpack.c.l.bf16 %v7596
    %v8508 = vunpack.c.h.bf16 %v7596
    %v8509 = vunpack.c.l.bf16 %v7597
    %v8510 = vunpack.c.h.bf16 %v7597
    %v8511 = vunpack.c.l.bf16 %v7598
    %v8512 = vunpack.c.h.bf16 %v7598
    %v8513 = vunpack.c.l.bf16 %v7599
    %v8514 = vunpack.c.h.bf16 %v7599
    %v8515 = vunpack.c.l.bf16 %v7600
    %v8516 = vunpack.c.h.bf16 %v7600
    %v8517 = vunpack.c.l.bf16 %v7601
    %v8518 = vunpack.c.h.bf16 %v7601
    %v8519 = vunpack.c.l.bf16 %v7602
    %v8520 = vunpack.c.h.bf16 %v7602
    %v8521 = vunpack.c.l.bf16 %v7603
    %v8522 = vunpack.c.h.bf16 %v7603
    %v8523 = vunpack.c.l.bf16 %v7604
    %v8524 = vunpack.c.h.bf16 %v7604
    %v8525 = vunpack.c.l.bf16 %v7605
    %v8526 = vunpack.c.h.bf16 %v7605
    %v8527 = vunpack.c.l.bf16 %v7606
    %v8528 = vunpack.c.h.bf16 %v7606
    %v8529 = vunpack.c.l.bf16 %v7607
    %v8530 = vunpack.c.h.bf16 %v7607
    %v8531 = vunpack.c.l.bf16 %v7608
    %v8532 = vunpack.c.h.bf16 %v7608
    %v8533 = vunpack.c.l.bf16 %v7609
    %v8534 = vunpack.c.h.bf16 %v7609
    %v8535 = vunpack.c.l.bf16 %v7610
    %v8536 = vunpack.c.h.bf16 %v7610
    %v8537 = vunpack.c.l.bf16 %v7611
    %v8538 = vunpack.c.h.bf16 %v7611
    %v8539 = vunpack.c.l.bf16 %v7612
    %v8540 = vunpack.c.h.bf16 %v7612
    %v8541 = vunpack.c.l.bf16 %v7613
    %v8542 = vunpack.c.h.bf16 %v7613
    %v8543 = vunpack.c.l.bf16 %v7614
    %v8544 = vunpack.c.h.bf16 %v7614
    %v8545 = vunpack.c.l.bf16 %v7615
    %v8546 = vunpack.c.h.bf16 %v7615
    %v8547 = vunpack.c.l.bf16 %v7616
    %v8548 = vunpack.c.h.bf16 %v7616
    %v8549 = vunpack.c.l.bf16 %v7617
    %v8550 = vunpack.c.h.bf16 %v7617
    %v8551 = vunpack.c.l.bf16 %v7618
    %v8552 = vunpack.c.h.bf16 %v7618
    %v8553 = vunpack.c.l.bf16 %v7619
    %v8554 = vunpack.c.h.bf16 %v7619
    %v8555 = vunpack.c.l.bf16 %v7620
    %v8556 = vunpack.c.h.bf16 %v7620
    %v8557 = vunpack.c.l.bf16 %v7621
    %v8558 = vunpack.c.h.bf16 %v7621
    %v8559 = vunpack.c.l.bf16 %v7622
    %v8560 = vunpack.c.h.bf16 %v7622
    %v8561 = vunpack.c.l.bf16 %v7623
    %v8562 = vunpack.c.h.bf16 %v7623
    %v8563 = vunpack.c.l.bf16 %v7624
    %v8564 = vunpack.c.h.bf16 %v7624
    %v8565 = vunpack.c.l.bf16 %v7625
    %v8566 = vunpack.c.h.bf16 %v7625
    %v8567 = vunpack.c.l.bf16 %v7626
    %v8568 = vunpack.c.h.bf16 %v7626
    %v8569 = vunpack.c.l.bf16 %v7627
    %v8570 = vunpack.c.h.bf16 %v7627
    %v8571 = vunpack.c.l.bf16 %v7628
    %v8572 = vunpack.c.h.bf16 %v7628
    %v8573 = vunpack.c.l.bf16 %v7629
    %v8574 = vunpack.c.h.bf16 %v7629
    %v8575 = vunpack.c.l.bf16 %v7630
    %v8576 = vunpack.c.h.bf16 %v7630
    %v8577 = vunpack.c.l.bf16 %v7631
    %v8578 = vunpack.c.h.bf16 %v7631
    %v8579 = vunpack.c.l.bf16 %v7632
    %v8580 = vunpack.c.h.bf16 %v7632
    %v8581 = vunpack.c.l.bf16 %v7633
    %v8582 = vunpack.c.h.bf16 %v7633
    %v8583 = vunpack.c.l.bf16 %v7634
    %v8584 = vunpack.c.h.bf16 %v7634
    %v8585 = vunpack.c.l.bf16 %v7635
    %v8586 = vunpack.c.h.bf16 %v7635
    %v8587 = vunpack.c.l.bf16 %v7636
    %v8588 = vunpack.c.h.bf16 %v7636
    %v8589 = vunpack.c.l.bf16 %v7637
    %v8590 = vunpack.c.h.bf16 %v7637
    %v8591 = vunpack.c.l.bf16 %v7638
    %v8592 = vunpack.c.h.bf16 %v7638
    %v8593 = vunpack.c.l.bf16 %v7639
    %v8594 = vunpack.c.h.bf16 %v7639
    %v8595 = vunpack.c.l.bf16 %v7640
    %v8596 = vunpack.c.h.bf16 %v7640
    %v8597 = vunpack.c.l.bf16 %v7641
    %v8598 = vunpack.c.h.bf16 %v7641
    %v8599 = vunpack.c.l.bf16 %v7642
    %v8600 = vunpack.c.h.bf16 %v7642
    %v8601 = vunpack.c.l.bf16 %v7643
    %v8602 = vunpack.c.h.bf16 %v7643
    %v8603 = vunpack.c.l.bf16 %v7644
    %v8604 = vunpack.c.h.bf16 %v7644
    %v8605 = vunpack.c.l.bf16 %v7645
    %v8606 = vunpack.c.h.bf16 %v7645
    %v8607 = vunpack.c.l.bf16 %v7646
    %v8608 = vunpack.c.h.bf16 %v7646
    %v8609 = vunpack.c.l.bf16 %v7647
    %v8610 = vunpack.c.h.bf16 %v7647
    %v8611 = vunpack.c.l.bf16 %v7648
    %v8612 = vunpack.c.h.bf16 %v7648
    %v8613 = vunpack.c.l.bf16 %v7649
    %v8614 = vunpack.c.h.bf16 %v7649
    %v8615 = vunpack.c.l.bf16 %v7650
    %v8616 = vunpack.c.h.bf16 %v7650
    %v8617 = vunpack.c.l.bf16 %v7651
    %v8618 = vunpack.c.h.bf16 %v7651
    %v8619 = vunpack.c.l.bf16 %v7652
    %v8620 = vunpack.c.h.bf16 %v7652
    %v8621 = vunpack.c.l.bf16 %v7653
    %v8622 = vunpack.c.h.bf16 %v7653
    %v8623 = vunpack.c.l.bf16 %v7654
    %v8624 = vunpack.c.h.bf16 %v7654
    %v8625 = vunpack.c.l.bf16 %v7655
    %v8626 = vunpack.c.h.bf16 %v7655
    %v8627 = vunpack.c.l.bf16 %v7656
    %v8628 = vunpack.c.h.bf16 %v7656
    %v8629 = vunpack.c.l.bf16 %v7657
    %v8630 = vunpack.c.h.bf16 %v7657
    %v8631 = vunpack.c.l.bf16 %v7658
    %v8632 = vunpack.c.h.bf16 %v7658
    %v8633 = vunpack.c.l.bf16 %v7659
    %v8634 = vunpack.c.h.bf16 %v7659
    %v8635 = vunpack.c.l.bf16 %v7660
    %v8636 = vunpack.c.h.bf16 %v7660
    %v8637 = vunpack.c.l.bf16 %v7661
    %v8638 = vunpack.c.h.bf16 %v7661
    %v8639 = vunpack.c.l.bf16 %v7662
    %v8640 = vunpack.c.h.bf16 %v7662
    %v8641 = vunpack.c.l.bf16 %v7663
    %v8642 = vunpack.c.h.bf16 %v7663
    %v8643 = vunpack.c.l.bf16 %v7664
    %v8644 = vunpack.c.h.bf16 %v7664
    %v8645 = vunpack.c.l.bf16 %v7665
    %v8646 = vunpack.c.h.bf16 %v7665
    %v8647 = vunpack.c.l.bf16 %v7666
    %v8648 = vunpack.c.h.bf16 %v7666
    %v8649 = vunpack.c.l.bf16 %v7667
    %v8650 = vunpack.c.h.bf16 %v7667
    %v8651 = vunpack.c.l.bf16 %v7668
    %v8652 = vunpack.c.h.bf16 %v7668
    %v8653 = vunpack.c.l.bf16 %v7669
    %v8654 = vunpack.c.h.bf16 %v7669
    %v8655 = vunpack.c.l.bf16 %v7670
    %v8656 = vunpack.c.h.bf16 %v7670
    %v8657 = vunpack.c.l.bf16 %v7671
    %v8658 = vunpack.c.h.bf16 %v7671
    %v8659 = vunpack.c.l.bf16 %v7672
    %v8660 = vunpack.c.h.bf16 %v7672
    %v8661 = vunpack.c.l.bf16 %v7673
    %v8662 = vunpack.c.h.bf16 %v7673
    %v8663 = vunpack.c.l.bf16 %v7674
    %v8664 = vunpack.c.h.bf16 %v7674
    %v8665 = vunpack.c.l.bf16 %v7675
    %v8666 = vunpack.c.h.bf16 %v7675
    %v8667 = vunpack.c.l.bf16 %v7676
    %v8668 = vunpack.c.h.bf16 %v7676
    %v8669 = vunpack.c.l.bf16 %v7677
    %v8670 = vunpack.c.h.bf16 %v7677
    %v8671 = vunpack.c.l.bf16 %v7678
    %v8672 = vunpack.c.h.bf16 %v7678
    %v8673 = vunpack.c.l.bf16 %v7679
    %v8674 = vunpack.c.h.bf16 %v7679
    %v8675 = vunpack.c.l.bf16 %v7680
    %v8676 = vunpack.c.h.bf16 %v7680
    %v8677 = vunpack.c.l.bf16 %v7681
    %v8678 = vunpack.c.h.bf16 %v7681
    %v8679 = vunpack.c.l.bf16 %v7682
    %v8680 = vunpack.c.h.bf16 %v7682
    %v8681 = vunpack.c.l.bf16 %v7683
    %v8682 = vunpack.c.h.bf16 %v7683
    %v8683 = vunpack.c.l.bf16 %v7684
    %v8684 = vunpack.c.h.bf16 %v7684
    %v8685 = vunpack.c.l.bf16 %v7685
    %v8686 = vunpack.c.h.bf16 %v7685
    %v8687 = vunpack.c.l.bf16 %v7686
    %v8688 = vunpack.c.h.bf16 %v7686
    %v8689 = vunpack.c.l.bf16 %v7687
    %v8690 = vunpack.c.h.bf16 %v7687
    %v8691 = vunpack.c.l.bf16 %v7688
    %v8692 = vunpack.c.h.bf16 %v7688
    %v8693 = vunpack.c.l.bf16 %v7689
    %v8694 = vunpack.c.h.bf16 %v7689
    %v8695 = vunpack.c.l.bf16 %v7690
    %v8696 = vunpack.c.h.bf16 %v7690
    %v8697 = vunpack.c.l.bf16 %v7691
    %v8698 = vunpack.c.h.bf16 %v7691
    %v8699 = vunpack.c.l.bf16 %v7692
    %v8700 = vunpack.c.h.bf16 %v7692
    %v8701 = vunpack.c.l.bf16 %v7693
    %v8702 = vunpack.c.h.bf16 %v7693
    %v8703 = vunpack.c.l.bf16 %v7694
    %v8704 = vunpack.c.h.bf16 %v7694
    %v8705 = vunpack.c.l.bf16 %v7695
    %v8706 = vunpack.c.h.bf16 %v7695
    %v8707 = vunpack.c.l.bf16 %v7696
    %v8708 = vunpack.c.h.bf16 %v7696
    %v8709 = vunpack.c.l.bf16 %v7697
    %v8710 = vunpack.c.h.bf16 %v7697
    %v8711 = vunpack.c.l.bf16 %v7698
    %v8712 = vunpack.c.h.bf16 %v7698
    %v8713 = vunpack.c.l.bf16 %v7699
    %v8714 = vunpack.c.h.bf16 %v7699
    %v8715 = vunpack.c.l.bf16 %v7700
    %v8716 = vunpack.c.h.bf16 %v7700
    %v8717 = vunpack.c.l.bf16 %v7701
    %v8718 = vunpack.c.h.bf16 %v7701
    %v8719 = vunpack.c.l.bf16 %v7702
    %v8720 = vunpack.c.h.bf16 %v7702
    %v8721 = vunpack.c.l.bf16 %v7703
    %v8722 = vunpack.c.h.bf16 %v7703
    %v8723 = vunpack.c.l.bf16 %v7704
    %v8724 = vunpack.c.h.bf16 %v7704
    %v8725 = vunpack.c.l.bf16 %v7705
    %v8726 = vunpack.c.h.bf16 %v7705
    %v8727 = vunpack.c.l.bf16 %v7706
    %v8728 = vunpack.c.h.bf16 %v7706
    %v8729 = vunpack.c.l.bf16 %v7707
    %v8730 = vunpack.c.h.bf16 %v7707
    %v8731 = vunpack.c.l.bf16 %v7708
    %v8732 = vunpack.c.h.bf16 %v7708
    %v8733 = vadd.f32 %v7709, %v7711
    %v8734 = vadd.f32 %v8733, %v7713
    %v8735 = vadd.f32 %v8734, %v7715
    %v8736 = vadd.f32 %v8735, %v7717
    %v8737 = vadd.f32 %v8736, %v7719
    %v8738 = vadd.f32 %v8737, %v7721
    %v8739 = vadd.f32 %v8738, %v7723
    %v8740 = vadd.f32 %v8739, %v7725
    %v8741 = vadd.f32 %v8740, %v7727
    %v8742 = vadd.f32 %v8741, %v7729
    %v8743 = vadd.f32 %v8742, %v7731
    %v8744 = vadd.f32 %v8743, %v7733
    %v8745 = vadd.f32 %v8744, %v7735
    %v8746 = vadd.f32 %v8745, %v7737
    %v8747 = vadd.f32 %v8746, %v7739
    %v8748 = vadd.f32 %v8747, %v7741
    %v8749 = vadd.f32 %v8748, %v7743
    %v8750 = vadd.f32 %v8749, %v7745
    %v8751 = vadd.f32 %v8750, %v7747
    %v8752 = vadd.f32 %v8751, %v7749
    %v8753 = vadd.f32 %v8752, %v7751
    %v8754 = vadd.f32 %v8753, %v7753
    %v8755 = vadd.f32 %v8754, %v7755
    %v8756 = vadd.f32 %v8755, %v7757
    %v8757 = vadd.f32 %v8756, %v7759
    %v8758 = vadd.f32 %v8757, %v7761
    %v8759 = vadd.f32 %v8758, %v7763
    %v8760 = vadd.f32 %v8759, %v7765
    %v8761 = vadd.f32 %v8760, %v7767
    %v8762 = vadd.f32 %v8761, %v7769
    %v8763 = vadd.f32 %v8762, %v7771
    %v8764 = vrot.slane %v8763, 4
    %v8765 = vadd.f32 %v8763, %v8764
    %v8766 = vrot.slane %v8765, 2
    %v8767 = vadd.f32 %v8765, %v8766
    %v8768 = vrot.slane %v8767, 1
    %v8769 = vadd.f32 %v8767, %v8768
    %v8770 = vadd.f32 %v7710, %v7712
    %v8771 = vadd.f32 %v8770, %v7714
    %v8772 = vadd.f32 %v8771, %v7716
    %v8773 = vadd.f32 %v8772, %v7718
    %v8774 = vadd.f32 %v8773, %v7720
    %v8775 = vadd.f32 %v8774, %v7722
    %v8776 = vadd.f32 %v8775, %v7724
    %v8777 = vadd.f32 %v8776, %v7726
    %v8778 = vadd.f32 %v8777, %v7728
    %v8779 = vadd.f32 %v8778, %v7730
    %v8780 = vadd.f32 %v8779, %v7732
    %v8781 = vadd.f32 %v8780, %v7734
    %v8782 = vadd.f32 %v8781, %v7736
    %v8783 = vadd.f32 %v8782, %v7738
    %v8784 = vadd.f32 %v8783, %v7740
    %v8785 = vadd.f32 %v8784, %v7742
    %v8786 = vadd.f32 %v8785, %v7744
    %v8787 = vadd.f32 %v8786, %v7746
    %v8788 = vadd.f32 %v8787, %v7748
    %v8789 = vadd.f32 %v8788, %v7750
    %v8790 = vadd.f32 %v8789, %v7752
    %v8791 = vadd.f32 %v8790, %v7754
    %v8792 = vadd.f32 %v8791, %v7756
    %v8793 = vadd.f32 %v8792, %v7758
    %v8794 = vadd.f32 %v8793, %v7760
    %v8795 = vadd.f32 %v8794, %v7762
    %v8796 = vadd.f32 %v8795, %v7764
    %v8797 = vadd.f32 %v8796, %v7766
    %v8798 = vadd.f32 %v8797, %v7768
    %v8799 = vadd.f32 %v8798, %v7770
    %v8800 = vadd.f32 %v8799, %v7772
    %v8801 = vrot.slane %v8800, 4
    %v8802 = vadd.f32 %v8800, %v8801
    %v8803 = vrot.slane %v8802, 2
    %v8804 = vadd.f32 %v8802, %v8803
    %v8805 = vrot.slane %v8804, 1
    %v8806 = vadd.f32 %v8804, %v8805
    %v8807 = vadd.f32 %v7773, %v7775
    %v8808 = vadd.f32 %v8807, %v7777
    %v8809 = vadd.f32 %v8808, %v7779
    %v8810 = vadd.f32 %v8809, %v7781
    %v8811 = vadd.f32 %v8810, %v7783
    %v8812 = vadd.f32 %v8811, %v7785
    %v8813 = vadd.f32 %v8812, %v7787
    %v8814 = vadd.f32 %v8813, %v7789
    %v8815 = vadd.f32 %v8814, %v7791
    %v8816 = vadd.f32 %v8815, %v7793
    %v8817 = vadd.f32 %v8816, %v7795
    %v8818 = vadd.f32 %v8817, %v7797
    %v8819 = vadd.f32 %v8818, %v7799
    %v8820 = vadd.f32 %v8819, %v7801
    %v8821 = vadd.f32 %v8820, %v7803
    %v8822 = vadd.f32 %v8821, %v7805
    %v8823 = vadd.f32 %v8822, %v7807
    %v8824 = vadd.f32 %v8823, %v7809
    %v8825 = vadd.f32 %v8824, %v7811
    %v8826 = vadd.f32 %v8825, %v7813
    %v8827 = vadd.f32 %v8826, %v7815
    %v8828 = vadd.f32 %v8827, %v7817
    %v8829 = vadd.f32 %v8828, %v7819
    %v8830 = vadd.f32 %v8829, %v7821
    %v8831 = vadd.f32 %v8830, %v7823
    %v8832 = vadd.f32 %v8831, %v7825
    %v8833 = vadd.f32 %v8832, %v7827
    %v8834 = vadd.f32 %v8833, %v7829
    %v8835 = vadd.f32 %v8834, %v7831
    %v8836 = vadd.f32 %v8835, %v7833
    %v8837 = vadd.f32 %v8836, %v7835
    %v8838 = vrot.slane %v8837, 4
    %v8839 = vadd.f32 %v8837, %v8838
    %v8840 = vrot.slane %v8839, 2
    %v8841 = vadd.f32 %v8839, %v8840
    %v8842 = vrot.slane %v8841, 1
    %v8843 = vadd.f32 %v8841, %v8842
    %v8844 = vadd.f32 %v7774, %v7776
    %v8845 = vadd.f32 %v8844, %v7778
    %v8846 = vadd.f32 %v8845, %v7780
    %v8847 = vadd.f32 %v8846, %v7782
    %v8848 = vadd.f32 %v8847, %v7784
    %v8849 = vadd.f32 %v8848, %v7786
    %v8850 = vadd.f32 %v8849, %v7788
    %v8851 = vadd.f32 %v8850, %v7790
    %v8852 = vadd.f32 %v8851, %v7792
    %v8853 = vadd.f32 %v8852, %v7794
    %v8854 = vadd.f32 %v8853, %v7796
    %v8855 = vadd.f32 %v8854, %v7798
    %v8856 = vadd.f32 %v8855, %v7800
    %v8857 = vadd.f32 %v8856, %v7802
    %v8858 = vadd.f32 %v8857, %v7804
    %v8859 = vadd.f32 %v8858, %v7806
    %v8860 = vadd.f32 %v8859, %v7808
    %v8861 = vadd.f32 %v8860, %v7810
    %v8862 = vadd.f32 %v8861, %v7812
    %v8863 = vadd.f32 %v8862, %v7814
    %v8864 = vadd.f32 %v8863, %v7816
    %v8865 = vadd.f32 %v8864, %v7818
    %v8866 = vadd.f32 %v8865, %v7820
    %v8867 = vadd.f32 %v8866, %v7822
    %v8868 = vadd.f32 %v8867, %v7824
    %v8869 = vadd.f32 %v8868, %v7826
    %v8870 = vadd.f32 %v8869, %v7828
    %v8871 = vadd.f32 %v8870, %v7830
    %v8872 = vadd.f32 %v8871, %v7832
    %v8873 = vadd.f32 %v8872, %v7834
    %v8874 = vadd.f32 %v8873, %v7836
    %v8875 = vrot.slane %v8874, 4
    %v8876 = vadd.f32 %v8874, %v8875
    %v8877 = vrot.slane %v8876, 2
    %v8878 = vadd.f32 %v8876, %v8877
    %v8879 = vrot.slane %v8878, 1
    %v8880 = vadd.f32 %v8878, %v8879
    %v8881 = vadd.f32 %v7837, %v7839
    %v8882 = vadd.f32 %v8881, %v7841
    %v8883 = vadd.f32 %v8882, %v7843
    %v8884 = vadd.f32 %v8883, %v7845
    %v8885 = vadd.f32 %v8884, %v7847
    %v8886 = vadd.f32 %v8885, %v7849
    %v8887 = vadd.f32 %v8886, %v7851
    %v8888 = vadd.f32 %v8887, %v7853
    %v8889 = vadd.f32 %v8888, %v7855
    %v8890 = vadd.f32 %v8889, %v7857
    %v8891 = vadd.f32 %v8890, %v7859
    %v8892 = vadd.f32 %v8891, %v7861
    %v8893 = vadd.f32 %v8892, %v7863
    %v8894 = vadd.f32 %v8893, %v7865
    %v8895 = vadd.f32 %v8894, %v7867
    %v8896 = vadd.f32 %v8895, %v7869
    %v8897 = vadd.f32 %v8896, %v7871
    %v8898 = vadd.f32 %v8897, %v7873
    %v8899 = vadd.f32 %v8898, %v7875
    %v8900 = vadd.f32 %v8899, %v7877
    %v8901 = vadd.f32 %v8900, %v7879
    %v8902 = vadd.f32 %v8901, %v7881
    %v8903 = vadd.f32 %v8902, %v7883
    %v8904 = vadd.f32 %v8903, %v7885
    %v8905 = vadd.f32 %v8904, %v7887
    %v8906 = vadd.f32 %v8905, %v7889
    %v8907 = vadd.f32 %v8906, %v7891
    %v8908 = vadd.f32 %v8907, %v7893
    %v8909 = vadd.f32 %v8908, %v7895
    %v8910 = vadd.f32 %v8909, %v7897
    %v8911 = vadd.f32 %v8910, %v7899
    %v8912 = vrot.slane %v8911, 4
    %v8913 = vadd.f32 %v8911, %v8912
    %v8914 = vrot.slane %v8913, 2
    %v8915 = vadd.f32 %v8913, %v8914
    %v8916 = vrot.slane %v8915, 1
    %v8917 = vadd.f32 %v8915, %v8916
    %v8918 = vadd.f32 %v7838, %v7840
    %v8919 = vadd.f32 %v8918, %v7842
    %v8920 = vadd.f32 %v8919, %v7844
    %v8921 = vadd.f32 %v8920, %v7846
    %v8922 = vadd.f32 %v8921, %v7848
    %v8923 = vadd.f32 %v8922, %v7850
    %v8924 = vadd.f32 %v8923, %v7852
    %v8925 = vadd.f32 %v8924, %v7854
    %v8926 = vadd.f32 %v8925, %v7856
    %v8927 = vadd.f32 %v8926, %v7858
    %v8928 = vadd.f32 %v8927, %v7860
    %v8929 = vadd.f32 %v8928, %v7862
    %v8930 = vadd.f32 %v8929, %v7864
    %v8931 = vadd.f32 %v8930, %v7866
    %v8932 = vadd.f32 %v8931, %v7868
    %v8933 = vadd.f32 %v8932, %v7870
    %v8934 = vadd.f32 %v8933, %v7872
    %v8935 = vadd.f32 %v8934, %v7874
    %v8936 = vadd.f32 %v8935, %v7876
    %v8937 = vadd.f32 %v8936, %v7878
    %v8938 = vadd.f32 %v8937, %v7880
    %v8939 = vadd.f32 %v8938, %v7882
    %v8940 = vadd.f32 %v8939, %v7884
    %v8941 = vadd.f32 %v8940, %v7886
    %v8942 = vadd.f32 %v8941, %v7888
    %v8943 = vadd.f32 %v8942, %v7890
    %v8944 = vadd.f32 %v8943, %v7892
    %v8945 = vadd.f32 %v8944, %v7894
    %v8946 = vadd.f32 %v8945, %v7896
    %v8947 = vadd.f32 %v8946, %v7898
    %v8948 = vadd.f32 %v8947, %v7900
    %v8949 = vrot.slane %v8948, 4
    %v8950 = vadd.f32 %v8948, %v8949
    %v8951 = vrot.slane %v8950, 2
    %v8952 = vadd.f32 %v8950, %v8951
    %v8953 = vrot.slane %v8952, 1
    %v8954 = vadd.f32 %v8952, %v8953
    %v8955 = vadd.f32 %v7901, %v7903
    %v8956 = vadd.f32 %v8955, %v7905
    %v8957 = vadd.f32 %v8956, %v7907
    %v8958 = vadd.f32 %v8957, %v7909
    %v8959 = vadd.f32 %v8958, %v7911
    %v8960 = vadd.f32 %v8959, %v7913
    %v8961 = vadd.f32 %v8960, %v7915
    %v8962 = vadd.f32 %v8961, %v7917
    %v8963 = vadd.f32 %v8962, %v7919
    %v8964 = vadd.f32 %v8963, %v7921
    %v8965 = vadd.f32 %v8964, %v7923
    %v8966 = vadd.f32 %v8965, %v7925
    %v8967 = vadd.f32 %v8966, %v7927
    %v8968 = vadd.f32 %v8967, %v7929
    %v8969 = vadd.f32 %v8968, %v7931
    %v8970 = vadd.f32 %v8969, %v7933
    %v8971 = vadd.f32 %v8970, %v7935
    %v8972 = vadd.f32 %v8971, %v7937
    %v8973 = vadd.f32 %v8972, %v7939
    %v8974 = vadd.f32 %v8973, %v7941
    %v8975 = vadd.f32 %v8974, %v7943
    %v8976 = vadd.f32 %v8975, %v7945
    %v8977 = vadd.f32 %v8976, %v7947
    %v8978 = vadd.f32 %v8977, %v7949
    %v8979 = vadd.f32 %v8978, %v7951
    %v8980 = vadd.f32 %v8979, %v7953
    %v8981 = vadd.f32 %v8980, %v7955
    %v8982 = vadd.f32 %v8981, %v7957
    %v8983 = vadd.f32 %v8982, %v7959
    %v8984 = vadd.f32 %v8983, %v7961
    %v8985 = vadd.f32 %v8984, %v7963
    %v8986 = vrot.slane %v8985, 4
    %v8987 = vadd.f32 %v8985, %v8986
    %v8988 = vrot.slane %v8987, 2
    %v8989 = vadd.f32 %v8987, %v8988
    %v8990 = vrot.slane %v8989, 1
    %v8991 = vadd.f32 %v8989, %v8990
    %v8992 = vadd.f32 %v7902, %v7904
    %v8993 = vadd.f32 %v8992, %v7906
    %v8994 = vadd.f32 %v8993, %v7908
    %v8995 = vadd.f32 %v8994, %v7910
    %v8996 = vadd.f32 %v8995, %v7912
    %v8997 = vadd.f32 %v8996, %v7914
    %v8998 = vadd.f32 %v8997, %v7916
    %v8999 = vadd.f32 %v8998, %v7918
    %v9000 = vadd.f32 %v8999, %v7920
    %v9001 = vadd.f32 %v9000, %v7922
    %v9002 = vadd.f32 %v9001, %v7924
    %v9003 = vadd.f32 %v9002, %v7926
    %v9004 = vadd.f32 %v9003, %v7928
    %v9005 = vadd.f32 %v9004, %v7930
    %v9006 = vadd.f32 %v9005, %v7932
    %v9007 = vadd.f32 %v9006, %v7934
    %v9008 = vadd.f32 %v9007, %v7936
    %v9009 = vadd.f32 %v9008, %v7938
    %v9010 = vadd.f32 %v9009, %v7940
    %v9011 = vadd.f32 %v9010, %v7942
    %v9012 = vadd.f32 %v9011, %v7944
    %v9013 = vadd.f32 %v9012, %v7946
    %v9014 = vadd.f32 %v9013, %v7948
    %v9015 = vadd.f32 %v9014, %v7950
    %v9016 = vadd.f32 %v9015, %v7952
    %v9017 = vadd.f32 %v9016, %v7954
    %v9018 = vadd.f32 %v9017, %v7956
    %v9019 = vadd.f32 %v9018, %v7958
    %v9020 = vadd.f32 %v9019, %v7960
    %v9021 = vadd.f32 %v9020, %v7962
    %v9022 = vadd.f32 %v9021, %v7964
    %v9023 = vrot.slane %v9022, 4
    %v9024 = vadd.f32 %v9022, %v9023
    %v9025 = vrot.slane %v9024, 2
    %v9026 = vadd.f32 %v9024, %v9025
    %v9027 = vrot.slane %v9026, 1
    %v9028 = vadd.f32 %v9026, %v9027
    %v9029 = vadd.f32 %v7965, %v7967
    %v9030 = vadd.f32 %v9029, %v7969
    %v9031 = vadd.f32 %v9030, %v7971
    %v9032 = vadd.f32 %v9031, %v7973
    %v9033 = vadd.f32 %v9032, %v7975
    %v9034 = vadd.f32 %v9033, %v7977
    %v9035 = vadd.f32 %v9034, %v7979
    %v9036 = vadd.f32 %v9035, %v7981
    %v9037 = vadd.f32 %v9036, %v7983
    %v9038 = vadd.f32 %v9037, %v7985
    %v9039 = vadd.f32 %v9038, %v7987
    %v9040 = vadd.f32 %v9039, %v7989
    %v9041 = vadd.f32 %v9040, %v7991
    %v9042 = vadd.f32 %v9041, %v7993
    %v9043 = vadd.f32 %v9042, %v7995
    %v9044 = vadd.f32 %v9043, %v7997
    %v9045 = vadd.f32 %v9044, %v7999
    %v9046 = vadd.f32 %v9045, %v8001
    %v9047 = vadd.f32 %v9046, %v8003
    %v9048 = vadd.f32 %v9047, %v8005
    %v9049 = vadd.f32 %v9048, %v8007
    %v9050 = vadd.f32 %v9049, %v8009
    %v9051 = vadd.f32 %v9050, %v8011
    %v9052 = vadd.f32 %v9051, %v8013
    %v9053 = vadd.f32 %v9052, %v8015
    %v9054 = vadd.f32 %v9053, %v8017
    %v9055 = vadd.f32 %v9054, %v8019
    %v9056 = vadd.f32 %v9055, %v8021
    %v9057 = vadd.f32 %v9056, %v8023
    %v9058 = vadd.f32 %v9057, %v8025
    %v9059 = vadd.f32 %v9058, %v8027
    %v9060 = vrot.slane %v9059, 4
    %v9061 = vadd.f32 %v9059, %v9060
    %v9062 = vrot.slane %v9061, 2
    %v9063 = vadd.f32 %v9061, %v9062
    %v9064 = vrot.slane %v9063, 1
    %v9065 = vadd.f32 %v9063, %v9064
    %v9066 = vadd.f32 %v7966, %v7968
    %v9067 = vadd.f32 %v9066, %v7970
    %v9068 = vadd.f32 %v9067, %v7972
    %v9069 = vadd.f32 %v9068, %v7974
    %v9070 = vadd.f32 %v9069, %v7976
    %v9071 = vadd.f32 %v9070, %v7978
    %v9072 = vadd.f32 %v9071, %v7980
    %v9073 = vadd.f32 %v9072, %v7982
    %v9074 = vadd.f32 %v9073, %v7984
    %v9075 = vadd.f32 %v9074, %v7986
    %v9076 = vadd.f32 %v9075, %v7988
    %v9077 = vadd.f32 %v9076, %v7990
    %v9078 = vadd.f32 %v9077, %v7992
    %v9079 = vadd.f32 %v9078, %v7994
    %v9080 = vadd.f32 %v9079, %v7996
    %v9081 = vadd.f32 %v9080, %v7998
    %v9082 = vadd.f32 %v9081, %v8000
    %v9083 = vadd.f32 %v9082, %v8002
    %v9084 = vadd.f32 %v9083, %v8004
    %v9085 = vadd.f32 %v9084, %v8006
    %v9086 = vadd.f32 %v9085, %v8008
    %v9087 = vadd.f32 %v9086, %v8010
    %v9088 = vadd.f32 %v9087, %v8012
    %v9089 = vadd.f32 %v9088, %v8014
    %v9090 = vadd.f32 %v9089, %v8016
    %v9091 = vadd.f32 %v9090, %v8018
    %v9092 = vadd.f32 %v9091, %v8020
    %v9093 = vadd.f32 %v9092, %v8022
    %v9094 = vadd.f32 %v9093, %v8024
    %v9095 = vadd.f32 %v9094, %v8026
    %v9096 = vadd.f32 %v9095, %v8028
    %v9097 = vrot.slane %v9096, 4
    %v9098 = vadd.f32 %v9096, %v9097
    %v9099 = vrot.slane %v9098, 2
    %v9100 = vadd.f32 %v9098, %v9099
    %v9101 = vrot.slane %v9100, 1
    %v9102 = vadd.f32 %v9100, %v9101
    %v9103 = vadd.f32 %v8029, %v8031
    %v9104 = vadd.f32 %v9103, %v8033
    %v9105 = vadd.f32 %v9104, %v8035
    %v9106 = vadd.f32 %v9105, %v8037
    %v9107 = vadd.f32 %v9106, %v8039
    %v9108 = vadd.f32 %v9107, %v8041
    %v9109 = vadd.f32 %v9108, %v8043
    %v9110 = vadd.f32 %v9109, %v8045
    %v9111 = vadd.f32 %v9110, %v8047
    %v9112 = vadd.f32 %v9111, %v8049
    %v9113 = vadd.f32 %v9112, %v8051
    %v9114 = vadd.f32 %v9113, %v8053
    %v9115 = vadd.f32 %v9114, %v8055
    %v9116 = vadd.f32 %v9115, %v8057
    %v9117 = vadd.f32 %v9116, %v8059
    %v9118 = vadd.f32 %v9117, %v8061
    %v9119 = vadd.f32 %v9118, %v8063
    %v9120 = vadd.f32 %v9119, %v8065
    %v9121 = vadd.f32 %v9120, %v8067
    %v9122 = vadd.f32 %v9121, %v8069
    %v9123 = vadd.f32 %v9122, %v8071
    %v9124 = vadd.f32 %v9123, %v8073
    %v9125 = vadd.f32 %v9124, %v8075
    %v9126 = vadd.f32 %v9125, %v8077
    %v9127 = vadd.f32 %v9126, %v8079
    %v9128 = vadd.f32 %v9127, %v8081
    %v9129 = vadd.f32 %v9128, %v8083
    %v9130 = vadd.f32 %v9129, %v8085
    %v9131 = vadd.f32 %v9130, %v8087
    %v9132 = vadd.f32 %v9131, %v8089
    %v9133 = vadd.f32 %v9132, %v8091
    %v9134 = vrot.slane %v9133, 4
    %v9135 = vadd.f32 %v9133, %v9134
    %v9136 = vrot.slane %v9135, 2
    %v9137 = vadd.f32 %v9135, %v9136
    %v9138 = vrot.slane %v9137, 1
    %v9139 = vadd.f32 %v9137, %v9138
    %v9140 = vadd.f32 %v8030, %v8032
    %v9141 = vadd.f32 %v9140, %v8034
    %v9142 = vadd.f32 %v9141, %v8036
    %v9143 = vadd.f32 %v9142, %v8038
    %v9144 = vadd.f32 %v9143, %v8040
    %v9145 = vadd.f32 %v9144, %v8042
    %v9146 = vadd.f32 %v9145, %v8044
    %v9147 = vadd.f32 %v9146, %v8046
    %v9148 = vadd.f32 %v9147, %v8048
    %v9149 = vadd.f32 %v9148, %v8050
    %v9150 = vadd.f32 %v9149, %v8052
    %v9151 = vadd.f32 %v9150, %v8054
    %v9152 = vadd.f32 %v9151, %v8056
    %v9153 = vadd.f32 %v9152, %v8058
    %v9154 = vadd.f32 %v9153, %v8060
    %v9155 = vadd.f32 %v9154, %v8062
    %v9156 = vadd.f32 %v9155, %v8064
    %v9157 = vadd.f32 %v9156, %v8066
    %v9158 = vadd.f32 %v9157, %v8068
    %v9159 = vadd.f32 %v9158, %v8070
    %v9160 = vadd.f32 %v9159, %v8072
    %v9161 = vadd.f32 %v9160, %v8074
    %v9162 = vadd.f32 %v9161, %v8076
    %v9163 = vadd.f32 %v9162, %v8078
    %v9164 = vadd.f32 %v9163, %v8080
    %v9165 = vadd.f32 %v9164, %v8082
    %v9166 = vadd.f32 %v9165, %v8084
    %v9167 = vadd.f32 %v9166, %v8086
    %v9168 = vadd.f32 %v9167, %v8088
    %v9169 = vadd.f32 %v9168, %v8090
    %v9170 = vadd.f32 %v9169, %v8092
    %v9171 = vrot.slane %v9170, 4
    %v9172 = vadd.f32 %v9170, %v9171
    %v9173 = vrot.slane %v9172, 2
    %v9174 = vadd.f32 %v9172, %v9173
    %v9175 = vrot.slane %v9174, 1
    %v9176 = vadd.f32 %v9174, %v9175
    %v9177 = vadd.f32 %v8093, %v8095
    %v9178 = vadd.f32 %v9177, %v8097
    %v9179 = vadd.f32 %v9178, %v8099
    %v9180 = vadd.f32 %v9179, %v8101
    %v9181 = vadd.f32 %v9180, %v8103
    %v9182 = vadd.f32 %v9181, %v8105
    %v9183 = vadd.f32 %v9182, %v8107
    %v9184 = vadd.f32 %v9183, %v8109
    %v9185 = vadd.f32 %v9184, %v8111
    %v9186 = vadd.f32 %v9185, %v8113
    %v9187 = vadd.f32 %v9186, %v8115
    %v9188 = vadd.f32 %v9187, %v8117
    %v9189 = vadd.f32 %v9188, %v8119
    %v9190 = vadd.f32 %v9189, %v8121
    %v9191 = vadd.f32 %v9190, %v8123
    %v9192 = vadd.f32 %v9191, %v8125
    %v9193 = vadd.f32 %v9192, %v8127
    %v9194 = vadd.f32 %v9193, %v8129
    %v9195 = vadd.f32 %v9194, %v8131
    %v9196 = vadd.f32 %v9195, %v8133
    %v9197 = vadd.f32 %v9196, %v8135
    %v9198 = vadd.f32 %v9197, %v8137
    %v9199 = vadd.f32 %v9198, %v8139
    %v9200 = vadd.f32 %v9199, %v8141
    %v9201 = vadd.f32 %v9200, %v8143
    %v9202 = vadd.f32 %v9201, %v8145
    %v9203 = vadd.f32 %v9202, %v8147
    %v9204 = vadd.f32 %v9203, %v8149
    %v9205 = vadd.f32 %v9204, %v8151
    %v9206 = vadd.f32 %v9205, %v8153
    %v9207 = vadd.f32 %v9206, %v8155
    %v9208 = vrot.slane %v9207, 4
    %v9209 = vadd.f32 %v9207, %v9208
    %v9210 = vrot.slane %v9209, 2
    %v9211 = vadd.f32 %v9209, %v9210
    %v9212 = vrot.slane %v9211, 1
    %v9213 = vadd.f32 %v9211, %v9212
    %v9214 = vadd.f32 %v8094, %v8096
    %v9215 = vadd.f32 %v9214, %v8098
    %v9216 = vadd.f32 %v9215, %v8100
    %v9217 = vadd.f32 %v9216, %v8102
    %v9218 = vadd.f32 %v9217, %v8104
    %v9219 = vadd.f32 %v9218, %v8106
    %v9220 = vadd.f32 %v9219, %v8108
    %v9221 = vadd.f32 %v9220, %v8110
    %v9222 = vadd.f32 %v9221, %v8112
    %v9223 = vadd.f32 %v9222, %v8114
    %v9224 = vadd.f32 %v9223, %v8116
    %v9225 = vadd.f32 %v9224, %v8118
    %v9226 = vadd.f32 %v9225, %v8120
    %v9227 = vadd.f32 %v9226, %v8122
    %v9228 = vadd.f32 %v9227, %v8124
    %v9229 = vadd.f32 %v9228, %v8126
    %v9230 = vadd.f32 %v9229, %v8128
    %v9231 = vadd.f32 %v9230, %v8130
    %v9232 = vadd.f32 %v9231, %v8132
    %v9233 = vadd.f32 %v9232, %v8134
    %v9234 = vadd.f32 %v9233, %v8136
    %v9235 = vadd.f32 %v9234, %v8138
    %v9236 = vadd.f32 %v9235, %v8140
    %v9237 = vadd.f32 %v9236, %v8142
    %v9238 = vadd.f32 %v9237, %v8144
    %v9239 = vadd.f32 %v9238, %v8146
    %v9240 = vadd.f32 %v9239, %v8148
    %v9241 = vadd.f32 %v9240, %v8150
    %v9242 = vadd.f32 %v9241, %v8152
    %v9243 = vadd.f32 %v9242, %v8154
    %v9244 = vadd.f32 %v9243, %v8156
    %v9245 = vrot.slane %v9244, 4
    %v9246 = vadd.f32 %v9244, %v9245
    %v9247 = vrot.slane %v9246, 2
    %v9248 = vadd.f32 %v9246, %v9247
    %v9249 = vrot.slane %v9248, 1
    %v9250 = vadd.f32 %v9248, %v9249
    %v9251 = vadd.f32 %v8157, %v8159
    %v9252 = vadd.f32 %v9251, %v8161
    %v9253 = vadd.f32 %v9252, %v8163
    %v9254 = vadd.f32 %v9253, %v8165
    %v9255 = vadd.f32 %v9254, %v8167
    %v9256 = vadd.f32 %v9255, %v8169
    %v9257 = vadd.f32 %v9256, %v8171
    %v9258 = vadd.f32 %v9257, %v8173
    %v9259 = vadd.f32 %v9258, %v8175
    %v9260 = vadd.f32 %v9259, %v8177
    %v9261 = vadd.f32 %v9260, %v8179
    %v9262 = vadd.f32 %v9261, %v8181
    %v9263 = vadd.f32 %v9262, %v8183
    %v9264 = vadd.f32 %v9263, %v8185
    %v9265 = vadd.f32 %v9264, %v8187
    %v9266 = vadd.f32 %v9265, %v8189
    %v9267 = vadd.f32 %v9266, %v8191
    %v9268 = vadd.f32 %v9267, %v8193
    %v9269 = vadd.f32 %v9268, %v8195
    %v9270 = vadd.f32 %v9269, %v8197
    %v9271 = vadd.f32 %v9270, %v8199
    %v9272 = vadd.f32 %v9271, %v8201
    %v9273 = vadd.f32 %v9272, %v8203
    %v9274 = vadd.f32 %v9273, %v8205
    %v9275 = vadd.f32 %v9274, %v8207
    %v9276 = vadd.f32 %v9275, %v8209
    %v9277 = vadd.f32 %v9276, %v8211
    %v9278 = vadd.f32 %v9277, %v8213
    %v9279 = vadd.f32 %v9278, %v8215
    %v9280 = vadd.f32 %v9279, %v8217
    %v9281 = vadd.f32 %v9280, %v8219
    %v9282 = vrot.slane %v9281, 4
    %v9283 = vadd.f32 %v9281, %v9282
    %v9284 = vrot.slane %v9283, 2
    %v9285 = vadd.f32 %v9283, %v9284
    %v9286 = vrot.slane %v9285, 1
    %v9287 = vadd.f32 %v9285, %v9286
    %v9288 = vadd.f32 %v8158, %v8160
    %v9289 = vadd.f32 %v9288, %v8162
    %v9290 = vadd.f32 %v9289, %v8164
    %v9291 = vadd.f32 %v9290, %v8166
    %v9292 = vadd.f32 %v9291, %v8168
    %v9293 = vadd.f32 %v9292, %v8170
    %v9294 = vadd.f32 %v9293, %v8172
    %v9295 = vadd.f32 %v9294, %v8174
    %v9296 = vadd.f32 %v9295, %v8176
    %v9297 = vadd.f32 %v9296, %v8178
    %v9298 = vadd.f32 %v9297, %v8180
    %v9299 = vadd.f32 %v9298, %v8182
    %v9300 = vadd.f32 %v9299, %v8184
    %v9301 = vadd.f32 %v9300, %v8186
    %v9302 = vadd.f32 %v9301, %v8188
    %v9303 = vadd.f32 %v9302, %v8190
    %v9304 = vadd.f32 %v9303, %v8192
    %v9305 = vadd.f32 %v9304, %v8194
    %v9306 = vadd.f32 %v9305, %v8196
    %v9307 = vadd.f32 %v9306, %v8198
    %v9308 = vadd.f32 %v9307, %v8200
    %v9309 = vadd.f32 %v9308, %v8202
    %v9310 = vadd.f32 %v9309, %v8204
    %v9311 = vadd.f32 %v9310, %v8206
    %v9312 = vadd.f32 %v9311, %v8208
    %v9313 = vadd.f32 %v9312, %v8210
    %v9314 = vadd.f32 %v9313, %v8212
    %v9315 = vadd.f32 %v9314, %v8214
    %v9316 = vadd.f32 %v9315, %v8216
    %v9317 = vadd.f32 %v9316, %v8218
    %v9318 = vadd.f32 %v9317, %v8220
    %v9319 = vrot.slane %v9318, 4
    %v9320 = vadd.f32 %v9318, %v9319
    %v9321 = vrot.slane %v9320, 2
    %v9322 = vadd.f32 %v9320, %v9321
    %v9323 = vrot.slane %v9322, 1
    %v9324 = vadd.f32 %v9322, %v9323
    %v9325 = vadd.f32 %v8221, %v8223
    %v9326 = vadd.f32 %v9325, %v8225
    %v9327 = vadd.f32 %v9326, %v8227
    %v9328 = vadd.f32 %v9327, %v8229
    %v9329 = vadd.f32 %v9328, %v8231
    %v9330 = vadd.f32 %v9329, %v8233
    %v9331 = vadd.f32 %v9330, %v8235
    %v9332 = vadd.f32 %v9331, %v8237
    %v9333 = vadd.f32 %v9332, %v8239
    %v9334 = vadd.f32 %v9333, %v8241
    %v9335 = vadd.f32 %v9334, %v8243
    %v9336 = vadd.f32 %v9335, %v8245
    %v9337 = vadd.f32 %v9336, %v8247
    %v9338 = vadd.f32 %v9337, %v8249
    %v9339 = vadd.f32 %v9338, %v8251
    %v9340 = vadd.f32 %v9339, %v8253
    %v9341 = vadd.f32 %v9340, %v8255
    %v9342 = vadd.f32 %v9341, %v8257
    %v9343 = vadd.f32 %v9342, %v8259
    %v9344 = vadd.f32 %v9343, %v8261
    %v9345 = vadd.f32 %v9344, %v8263
    %v9346 = vadd.f32 %v9345, %v8265
    %v9347 = vadd.f32 %v9346, %v8267
    %v9348 = vadd.f32 %v9347, %v8269
    %v9349 = vadd.f32 %v9348, %v8271
    %v9350 = vadd.f32 %v9349, %v8273
    %v9351 = vadd.f32 %v9350, %v8275
    %v9352 = vadd.f32 %v9351, %v8277
    %v9353 = vadd.f32 %v9352, %v8279
    %v9354 = vadd.f32 %v9353, %v8281
    %v9355 = vadd.f32 %v9354, %v8283
    %v9356 = vrot.slane %v9355, 4
    %v9357 = vadd.f32 %v9355, %v9356
    %v9358 = vrot.slane %v9357, 2
    %v9359 = vadd.f32 %v9357, %v9358
    %v9360 = vrot.slane %v9359, 1
    %v9361 = vadd.f32 %v9359, %v9360
    %v9362 = vadd.f32 %v8222, %v8224
    %v9363 = vadd.f32 %v9362, %v8226
    %v9364 = vadd.f32 %v9363, %v8228
    %v9365 = vadd.f32 %v9364, %v8230
    %v9366 = vadd.f32 %v9365, %v8232
    %v9367 = vadd.f32 %v9366, %v8234
    %v9368 = vadd.f32 %v9367, %v8236
    %v9369 = vadd.f32 %v9368, %v8238
    %v9370 = vadd.f32 %v9369, %v8240
    %v9371 = vadd.f32 %v9370, %v8242
    %v9372 = vadd.f32 %v9371, %v8244
    %v9373 = vadd.f32 %v9372, %v8246
    %v9374 = vadd.f32 %v9373, %v8248
    %v9375 = vadd.f32 %v9374, %v8250
    %v9376 = vadd.f32 %v9375, %v8252
    %v9377 = vadd.f32 %v9376, %v8254
    %v9378 = vadd.f32 %v9377, %v8256
    %v9379 = vadd.f32 %v9378, %v8258
    %v9380 = vadd.f32 %v9379, %v8260
    %v9381 = vadd.f32 %v9380, %v8262
    %v9382 = vadd.f32 %v9381, %v8264
    %v9383 = vadd.f32 %v9382, %v8266
    %v9384 = vadd.f32 %v9383, %v8268
    %v9385 = vadd.f32 %v9384, %v8270
    %v9386 = vadd.f32 %v9385, %v8272
    %v9387 = vadd.f32 %v9386, %v8274
    %v9388 = vadd.f32 %v9387, %v8276
    %v9389 = vadd.f32 %v9388, %v8278
    %v9390 = vadd.f32 %v9389, %v8280
    %v9391 = vadd.f32 %v9390, %v8282
    %v9392 = vadd.f32 %v9391, %v8284
    %v9393 = vrot.slane %v9392, 4
    %v9394 = vadd.f32 %v9392, %v9393
    %v9395 = vrot.slane %v9394, 2
    %v9396 = vadd.f32 %v9394, %v9395
    %v9397 = vrot.slane %v9396, 1
    %v9398 = vadd.f32 %v9396, %v9397
    %v9399 = vadd.f32 %v8285, %v8287
    %v9400 = vadd.f32 %v9399, %v8289
    %v9401 = vadd.f32 %v9400, %v8291
    %v9402 = vadd.f32 %v9401, %v8293
    %v9403 = vadd.f32 %v9402, %v8295
    %v9404 = vadd.f32 %v9403, %v8297
    %v9405 = vadd.f32 %v9404, %v8299
    %v9406 = vadd.f32 %v9405, %v8301
    %v9407 = vadd.f32 %v9406, %v8303
    %v9408 = vadd.f32 %v9407, %v8305
    %v9409 = vadd.f32 %v9408, %v8307
    %v9410 = vadd.f32 %v9409, %v8309
    %v9411 = vadd.f32 %v9410, %v8311
    %v9412 = vadd.f32 %v9411, %v8313
    %v9413 = vadd.f32 %v9412, %v8315
    %v9414 = vadd.f32 %v9413, %v8317
    %v9415 = vadd.f32 %v9414, %v8319
    %v9416 = vadd.f32 %v9415, %v8321
    %v9417 = vadd.f32 %v9416, %v8323
    %v9418 = vadd.f32 %v9417, %v8325
    %v9419 = vadd.f32 %v9418, %v8327
    %v9420 = vadd.f32 %v9419, %v8329
    %v9421 = vadd.f32 %v9420, %v8331
    %v9422 = vadd.f32 %v9421, %v8333
    %v9423 = vadd.f32 %v9422, %v8335
    %v9424 = vadd.f32 %v9423, %v8337
    %v9425 = vadd.f32 %v9424, %v8339
    %v9426 = vadd.f32 %v9425, %v8341
    %v9427 = vadd.f32 %v9426, %v8343
    %v9428 = vadd.f32 %v9427, %v8345
    %v9429 = vadd.f32 %v9428, %v8347
    %v9430 = vrot.slane %v9429, 4
    %v9431 = vadd.f32 %v9429, %v9430
    %v9432 = vrot.slane %v9431, 2
    %v9433 = vadd.f32 %v9431, %v9432
    %v9434 = vrot.slane %v9433, 1
    %v9435 = vadd.f32 %v9433, %v9434
    %v9436 = vadd.f32 %v8286, %v8288
    %v9437 = vadd.f32 %v9436, %v8290
    %v9438 = vadd.f32 %v9437, %v8292
    %v9439 = vadd.f32 %v9438, %v8294
    %v9440 = vadd.f32 %v9439, %v8296
    %v9441 = vadd.f32 %v9440, %v8298
    %v9442 = vadd.f32 %v9441, %v8300
    %v9443 = vadd.f32 %v9442, %v8302
    %v9444 = vadd.f32 %v9443, %v8304
    %v9445 = vadd.f32 %v9444, %v8306
    %v9446 = vadd.f32 %v9445, %v8308
    %v9447 = vadd.f32 %v9446, %v8310
    %v9448 = vadd.f32 %v9447, %v8312
    %v9449 = vadd.f32 %v9448, %v8314
    %v9450 = vadd.f32 %v9449, %v8316
    %v9451 = vadd.f32 %v9450, %v8318
    %v9452 = vadd.f32 %v9451, %v8320
    %v9453 = vadd.f32 %v9452, %v8322
    %v9454 = vadd.f32 %v9453, %v8324
    %v9455 = vadd.f32 %v9454, %v8326
    %v9456 = vadd.f32 %v9455, %v8328
    %v9457 = vadd.f32 %v9456, %v8330
    %v9458 = vadd.f32 %v9457, %v8332
    %v9459 = vadd.f32 %v9458, %v8334
    %v9460 = vadd.f32 %v9459, %v8336
    %v9461 = vadd.f32 %v9460, %v8338
    %v9462 = vadd.f32 %v9461, %v8340
    %v9463 = vadd.f32 %v9462, %v8342
    %v9464 = vadd.f32 %v9463, %v8344
    %v9465 = vadd.f32 %v9464, %v8346
    %v9466 = vadd.f32 %v9465, %v8348
    %v9467 = vrot.slane %v9466, 4
    %v9468 = vadd.f32 %v9466, %v9467
    %v9469 = vrot.slane %v9468, 2
    %v9470 = vadd.f32 %v9468, %v9469
    %v9471 = vrot.slane %v9470, 1
    %v9472 = vadd.f32 %v9470, %v9471
    %v9473 = vadd.f32 %v8349, %v8351
    %v9474 = vadd.f32 %v9473, %v8353
    %v9475 = vadd.f32 %v9474, %v8355
    %v9476 = vadd.f32 %v9475, %v8357
    %v9477 = vadd.f32 %v9476, %v8359
    %v9478 = vadd.f32 %v9477, %v8361
    %v9479 = vadd.f32 %v9478, %v8363
    %v9480 = vadd.f32 %v9479, %v8365
    %v9481 = vadd.f32 %v9480, %v8367
    %v9482 = vadd.f32 %v9481, %v8369
    %v9483 = vadd.f32 %v9482, %v8371
    %v9484 = vadd.f32 %v9483, %v8373
    %v9485 = vadd.f32 %v9484, %v8375
    %v9486 = vadd.f32 %v9485, %v8377
    %v9487 = vadd.f32 %v9486, %v8379
    %v9488 = vadd.f32 %v9487, %v8381
    %v9489 = vadd.f32 %v9488, %v8383
    %v9490 = vadd.f32 %v9489, %v8385
    %v9491 = vadd.f32 %v9490, %v8387
    %v9492 = vadd.f32 %v9491, %v8389
    %v9493 = vadd.f32 %v9492, %v8391
    %v9494 = vadd.f32 %v9493, %v8393
    %v9495 = vadd.f32 %v9494, %v8395
    %v9496 = vadd.f32 %v9495, %v8397
    %v9497 = vadd.f32 %v9496, %v8399
    %v9498 = vadd.f32 %v9497, %v8401
    %v9499 = vadd.f32 %v9498, %v8403
    %v9500 = vadd.f32 %v9499, %v8405
    %v9501 = vadd.f32 %v9500, %v8407
    %v9502 = vadd.f32 %v9501, %v8409
    %v9503 = vadd.f32 %v9502, %v8411
    %v9504 = vrot.slane %v9503, 4
    %v9505 = vadd.f32 %v9503, %v9504
    %v9506 = vrot.slane %v9505, 2
    %v9507 = vadd.f32 %v9505, %v9506
    %v9508 = vrot.slane %v9507, 1
    %v9509 = vadd.f32 %v9507, %v9508
    %v9510 = vadd.f32 %v8350, %v8352
    %v9511 = vadd.f32 %v9510, %v8354
    %v9512 = vadd.f32 %v9511, %v8356
    %v9513 = vadd.f32 %v9512, %v8358
    %v9514 = vadd.f32 %v9513, %v8360
    %v9515 = vadd.f32 %v9514, %v8362
    %v9516 = vadd.f32 %v9515, %v8364
    %v9517 = vadd.f32 %v9516, %v8366
    %v9518 = vadd.f32 %v9517, %v8368
    %v9519 = vadd.f32 %v9518, %v8370
    %v9520 = vadd.f32 %v9519, %v8372
    %v9521 = vadd.f32 %v9520, %v8374
    %v9522 = vadd.f32 %v9521, %v8376
    %v9523 = vadd.f32 %v9522, %v8378
    %v9524 = vadd.f32 %v9523, %v8380
    %v9525 = vadd.f32 %v9524, %v8382
    %v9526 = vadd.f32 %v9525, %v8384
    %v9527 = vadd.f32 %v9526, %v8386
    %v9528 = vadd.f32 %v9527, %v8388
    %v9529 = vadd.f32 %v9528, %v8390
    %v9530 = vadd.f32 %v9529, %v8392
    %v9531 = vadd.f32 %v9530, %v8394
    %v9532 = vadd.f32 %v9531, %v8396
    %v9533 = vadd.f32 %v9532, %v8398
    %v9534 = vadd.f32 %v9533, %v8400
    %v9535 = vadd.f32 %v9534, %v8402
    %v9536 = vadd.f32 %v9535, %v8404
    %v9537 = vadd.f32 %v9536, %v8406
    %v9538 = vadd.f32 %v9537, %v8408
    %v9539 = vadd.f32 %v9538, %v8410
    %v9540 = vadd.f32 %v9539, %v8412
    %v9541 = vrot.slane %v9540, 4
    %v9542 = vadd.f32 %v9540, %v9541
    %v9543 = vrot.slane %v9542, 2
    %v9544 = vadd.f32 %v9542, %v9543
    %v9545 = vrot.slane %v9544, 1
    %v9546 = vadd.f32 %v9544, %v9545
    %v9547 = vadd.f32 %v8413, %v8415
    %v9548 = vadd.f32 %v9547, %v8417
    %v9549 = vadd.f32 %v9548, %v8419
    %v9550 = vadd.f32 %v9549, %v8421
    %v9551 = vadd.f32 %v9550, %v8423
    %v9552 = vadd.f32 %v9551, %v8425
    %v9553 = vadd.f32 %v9552, %v8427
    %v9554 = vadd.f32 %v9553, %v8429
    %v9555 = vadd.f32 %v9554, %v8431
    %v9556 = vadd.f32 %v9555, %v8433
    %v9557 = vadd.f32 %v9556, %v8435
    %v9558 = vadd.f32 %v9557, %v8437
    %v9559 = vadd.f32 %v9558, %v8439
    %v9560 = vadd.f32 %v9559, %v8441
    %v9561 = vadd.f32 %v9560, %v8443
    %v9562 = vadd.f32 %v9561, %v8445
    %v9563 = vadd.f32 %v9562, %v8447
    %v9564 = vadd.f32 %v9563, %v8449
    %v9565 = vadd.f32 %v9564, %v8451
    %v9566 = vadd.f32 %v9565, %v8453
    %v9567 = vadd.f32 %v9566, %v8455
    %v9568 = vadd.f32 %v9567, %v8457
    %v9569 = vadd.f32 %v9568, %v8459
    %v9570 = vadd.f32 %v9569, %v8461
    %v9571 = vadd.f32 %v9570, %v8463
    %v9572 = vadd.f32 %v9571, %v8465
    %v9573 = vadd.f32 %v9572, %v8467
    %v9574 = vadd.f32 %v9573, %v8469
    %v9575 = vadd.f32 %v9574, %v8471
    %v9576 = vadd.f32 %v9575, %v8473
    %v9577 = vadd.f32 %v9576, %v8475
    %v9578 = vrot.slane %v9577, 4
    %v9579 = vadd.f32 %v9577, %v9578
    %v9580 = vrot.slane %v9579, 2
    %v9581 = vadd.f32 %v9579, %v9580
    %v9582 = vrot.slane %v9581, 1
    %v9583 = vadd.f32 %v9581, %v9582
    %v9584 = vadd.f32 %v8414, %v8416
    %v9585 = vadd.f32 %v9584, %v8418
    %v9586 = vadd.f32 %v9585, %v8420
    %v9587 = vadd.f32 %v9586, %v8422
    %v9588 = vadd.f32 %v9587, %v8424
    %v9589 = vadd.f32 %v9588, %v8426
    %v9590 = vadd.f32 %v9589, %v8428
    %v9591 = vadd.f32 %v9590, %v8430
    %v9592 = vadd.f32 %v9591, %v8432
    %v9593 = vadd.f32 %v9592, %v8434
    %v9594 = vadd.f32 %v9593, %v8436
    %v9595 = vadd.f32 %v9594, %v8438
    %v9596 = vadd.f32 %v9595, %v8440
    %v9597 = vadd.f32 %v9596, %v8442
    %v9598 = vadd.f32 %v9597, %v8444
    %v9599 = vadd.f32 %v9598, %v8446
    %v9600 = vadd.f32 %v9599, %v8448
    %v9601 = vadd.f32 %v9600, %v8450
    %v9602 = vadd.f32 %v9601, %v8452
    %v9603 = vadd.f32 %v9602, %v8454
    %v9604 = vadd.f32 %v9603, %v8456
    %v9605 = vadd.f32 %v9604, %v8458
    %v9606 = vadd.f32 %v9605, %v8460
    %v9607 = vadd.f32 %v9606, %v8462
    %v9608 = vadd.f32 %v9607, %v8464
    %v9609 = vadd.f32 %v9608, %v8466
    %v9610 = vadd.f32 %v9609, %v8468
    %v9611 = vadd.f32 %v9610, %v8470
    %v9612 = vadd.f32 %v9611, %v8472
    %v9613 = vadd.f32 %v9612, %v8474
    %v9614 = vadd.f32 %v9613, %v8476
    %v9615 = vrot.slane %v9614, 4
    %v9616 = vadd.f32 %v9614, %v9615
    %v9617 = vrot.slane %v9616, 2
    %v9618 = vadd.f32 %v9616, %v9617
    %v9619 = vrot.slane %v9618, 1
    %v9620 = vadd.f32 %v9618, %v9619
    %v9621 = vadd.f32 %v8477, %v8479
    %v9622 = vadd.f32 %v9621, %v8481
    %v9623 = vadd.f32 %v9622, %v8483
    %v9624 = vadd.f32 %v9623, %v8485
    %v9625 = vadd.f32 %v9624, %v8487
    %v9626 = vadd.f32 %v9625, %v8489
    %v9627 = vadd.f32 %v9626, %v8491
    %v9628 = vadd.f32 %v9627, %v8493
    %v9629 = vadd.f32 %v9628, %v8495
    %v9630 = vadd.f32 %v9629, %v8497
    %v9631 = vadd.f32 %v9630, %v8499
    %v9632 = vadd.f32 %v9631, %v8501
    %v9633 = vadd.f32 %v9632, %v8503
    %v9634 = vadd.f32 %v9633, %v8505
    %v9635 = vadd.f32 %v9634, %v8507
    %v9636 = vadd.f32 %v9635, %v8509
    %v9637 = vadd.f32 %v9636, %v8511
    %v9638 = vadd.f32 %v9637, %v8513
    %v9639 = vadd.f32 %v9638, %v8515
    %v9640 = vadd.f32 %v9639, %v8517
    %v9641 = vadd.f32 %v9640, %v8519
    %v9642 = vadd.f32 %v9641, %v8521
    %v9643 = vadd.f32 %v9642, %v8523
    %v9644 = vadd.f32 %v9643, %v8525
    %v9645 = vadd.f32 %v9644, %v8527
    %v9646 = vadd.f32 %v9645, %v8529
    %v9647 = vadd.f32 %v9646, %v8531
    %v9648 = vadd.f32 %v9647, %v8533
    %v9649 = vadd.f32 %v9648, %v8535
    %v9650 = vadd.f32 %v9649, %v8537
    %v9651 = vadd.f32 %v9650, %v8539
    %v9652 = vrot.slane %v9651, 4
    %v9653 = vadd.f32 %v9651, %v9652
    %v9654 = vrot.slane %v9653, 2
    %v9655 = vadd.f32 %v9653, %v9654
    %v9656 = vrot.slane %v9655, 1
    %v9657 = vadd.f32 %v9655, %v9656
    %v9658 = vadd.f32 %v8478, %v8480
    %v9659 = vadd.f32 %v9658, %v8482
    %v9660 = vadd.f32 %v9659, %v8484
    %v9661 = vadd.f32 %v9660, %v8486
    %v9662 = vadd.f32 %v9661, %v8488
    %v9663 = vadd.f32 %v9662, %v8490
    %v9664 = vadd.f32 %v9663, %v8492
    %v9665 = vadd.f32 %v9664, %v8494
    %v9666 = vadd.f32 %v9665, %v8496
    %v9667 = vadd.f32 %v9666, %v8498
    %v9668 = vadd.f32 %v9667, %v8500
    %v9669 = vadd.f32 %v9668, %v8502
    %v9670 = vadd.f32 %v9669, %v8504
    %v9671 = vadd.f32 %v9670, %v8506
    %v9672 = vadd.f32 %v9671, %v8508
    %v9673 = vadd.f32 %v9672, %v8510
    %v9674 = vadd.f32 %v9673, %v8512
    %v9675 = vadd.f32 %v9674, %v8514
    %v9676 = vadd.f32 %v9675, %v8516
    %v9677 = vadd.f32 %v9676, %v8518
    %v9678 = vadd.f32 %v9677, %v8520
    %v9679 = vadd.f32 %v9678, %v8522
    %v9680 = vadd.f32 %v9679, %v8524
    %v9681 = vadd.f32 %v9680, %v8526
    %v9682 = vadd.f32 %v9681, %v8528
    %v9683 = vadd.f32 %v9682, %v8530
    %v9684 = vadd.f32 %v9683, %v8532
    %v9685 = vadd.f32 %v9684, %v8534
    %v9686 = vadd.f32 %v9685, %v8536
    %v9687 = vadd.f32 %v9686, %v8538
    %v9688 = vadd.f32 %v9687, %v8540
    %v9689 = vrot.slane %v9688, 4
    %v9690 = vadd.f32 %v9688, %v9689
    %v9691 = vrot.slane %v9690, 2
    %v9692 = vadd.f32 %v9690, %v9691
    %v9693 = vrot.slane %v9692, 1
    %v9694 = vadd.f32 %v9692, %v9693
    %v9695 = vadd.f32 %v8541, %v8543
    %v9696 = vadd.f32 %v9695, %v8545
    %v9697 = vadd.f32 %v9696, %v8547
    %v9698 = vadd.f32 %v9697, %v8549
    %v9699 = vadd.f32 %v9698, %v8551
    %v9700 = vadd.f32 %v9699, %v8553
    %v9701 = vadd.f32 %v9700, %v8555
    %v9702 = vadd.f32 %v9701, %v8557
    %v9703 = vadd.f32 %v9702, %v8559
    %v9704 = vadd.f32 %v9703, %v8561
    %v9705 = vadd.f32 %v9704, %v8563
    %v9706 = vadd.f32 %v9705, %v8565
    %v9707 = vadd.f32 %v9706, %v8567
    %v9708 = vadd.f32 %v9707, %v8569
    %v9709 = vadd.f32 %v9708, %v8571
    %v9710 = vadd.f32 %v9709, %v8573
    %v9711 = vadd.f32 %v9710, %v8575
    %v9712 = vadd.f32 %v9711, %v8577
    %v9713 = vadd.f32 %v9712, %v8579
    %v9714 = vadd.f32 %v9713, %v8581
    %v9715 = vadd.f32 %v9714, %v8583
    %v9716 = vadd.f32 %v9715, %v8585
    %v9717 = vadd.f32 %v9716, %v8587
    %v9718 = vadd.f32 %v9717, %v8589
    %v9719 = vadd.f32 %v9718, %v8591
    %v9720 = vadd.f32 %v9719, %v8593
    %v9721 = vadd.f32 %v9720, %v8595
    %v9722 = vadd.f32 %v9721, %v8597
    %v9723 = vadd.f32 %v9722, %v8599
    %v9724 = vadd.f32 %v9723, %v8601
    %v9725 = vadd.f32 %v9724, %v8603
    %v9726 = vrot.slane %v9725, 4
    %v9727 = vadd.f32 %v9725, %v9726
    %v9728 = vrot.slane %v9727, 2
    %v9729 = vadd.f32 %v9727, %v9728
    %v9730 = vrot.slane %v9729, 1
    %v9731 = vadd.f32 %v9729, %v9730
    %v9732 = vadd.f32 %v8542, %v8544
    %v9733 = vadd.f32 %v9732, %v8546
    %v9734 = vadd.f32 %v9733, %v8548
    %v9735 = vadd.f32 %v9734, %v8550
    %v9736 = vadd.f32 %v9735, %v8552
    %v9737 = vadd.f32 %v9736, %v8554
    %v9738 = vadd.f32 %v9737, %v8556
    %v9739 = vadd.f32 %v9738, %v8558
    %v9740 = vadd.f32 %v9739, %v8560
    %v9741 = vadd.f32 %v9740, %v8562
    %v9742 = vadd.f32 %v9741, %v8564
    %v9743 = vadd.f32 %v9742, %v8566
    %v9744 = vadd.f32 %v9743, %v8568
    %v9745 = vadd.f32 %v9744, %v8570
    %v9746 = vadd.f32 %v9745, %v8572
    %v9747 = vadd.f32 %v9746, %v8574
    %v9748 = vadd.f32 %v9747, %v8576
    %v9749 = vadd.f32 %v9748, %v8578
    %v9750 = vadd.f32 %v9749, %v8580
    %v9751 = vadd.f32 %v9750, %v8582
    %v9752 = vadd.f32 %v9751, %v8584
    %v9753 = vadd.f32 %v9752, %v8586
    %v9754 = vadd.f32 %v9753, %v8588
    %v9755 = vadd.f32 %v9754, %v8590
    %v9756 = vadd.f32 %v9755, %v8592
    %v9757 = vadd.f32 %v9756, %v8594
    %v9758 = vadd.f32 %v9757, %v8596
    %v9759 = vadd.f32 %v9758, %v8598
    %v9760 = vadd.f32 %v9759, %v8600
    %v9761 = vadd.f32 %v9760, %v8602
    %v9762 = vadd.f32 %v9761, %v8604
    %v9763 = vrot.slane %v9762, 4
    %v9764 = vadd.f32 %v9762, %v9763
    %v9765 = vrot.slane %v9764, 2
    %v9766 = vadd.f32 %v9764, %v9765
    %v9767 = vrot.slane %v9766, 1
    %v9768 = vadd.f32 %v9766, %v9767
    %v9769 = vadd.f32 %v8605, %v8607
    %v9770 = vadd.f32 %v9769, %v8609
    %v9771 = vadd.f32 %v9770, %v8611
    %v9772 = vadd.f32 %v9771, %v8613
    %v9773 = vadd.f32 %v9772, %v8615
    %v9774 = vadd.f32 %v9773, %v8617
    %v9775 = vadd.f32 %v9774, %v8619
    %v9776 = vadd.f32 %v9775, %v8621
    %v9777 = vadd.f32 %v9776, %v8623
    %v9778 = vadd.f32 %v9777, %v8625
    %v9779 = vadd.f32 %v9778, %v8627
    %v9780 = vadd.f32 %v9779, %v8629
    %v9781 = vadd.f32 %v9780, %v8631
    %v9782 = vadd.f32 %v9781, %v8633
    %v9783 = vadd.f32 %v9782, %v8635
    %v9784 = vadd.f32 %v9783, %v8637
    %v9785 = vadd.f32 %v9784, %v8639
    %v9786 = vadd.f32 %v9785, %v8641
    %v9787 = vadd.f32 %v9786, %v8643
    %v9788 = vadd.f32 %v9787, %v8645
    %v9789 = vadd.f32 %v9788, %v8647
    %v9790 = vadd.f32 %v9789, %v8649
    %v9791 = vadd.f32 %v9790, %v8651
    %v9792 = vadd.f32 %v9791, %v8653
    %v9793 = vadd.f32 %v9792, %v8655
    %v9794 = vadd.f32 %v9793, %v8657
    %v9795 = vadd.f32 %v9794, %v8659
    %v9796 = vadd.f32 %v9795, %v8661
    %v9797 = vadd.f32 %v9796, %v8663
    %v9798 = vadd.f32 %v9797, %v8665
    %v9799 = vadd.f32 %v9798, %v8667
    %v9800 = vrot.slane %v9799, 4
    %v9801 = vadd.f32 %v9799, %v9800
    %v9802 = vrot.slane %v9801, 2
    %v9803 = vadd.f32 %v9801, %v9802
    %v9804 = vrot.slane %v9803, 1
    %v9805 = vadd.f32 %v9803, %v9804
    %v9806 = vadd.f32 %v8606, %v8608
    %v9807 = vadd.f32 %v9806, %v8610
    %v9808 = vadd.f32 %v9807, %v8612
    %v9809 = vadd.f32 %v9808, %v8614
    %v9810 = vadd.f32 %v9809, %v8616
    %v9811 = vadd.f32 %v9810, %v8618
    %v9812 = vadd.f32 %v9811, %v8620
    %v9813 = vadd.f32 %v9812, %v8622
    %v9814 = vadd.f32 %v9813, %v8624
    %v9815 = vadd.f32 %v9814, %v8626
    %v9816 = vadd.f32 %v9815, %v8628
    %v9817 = vadd.f32 %v9816, %v8630
    %v9818 = vadd.f32 %v9817, %v8632
    %v9819 = vadd.f32 %v9818, %v8634
    %v9820 = vadd.f32 %v9819, %v8636
    %v9821 = vadd.f32 %v9820, %v8638
    %v9822 = vadd.f32 %v9821, %v8640
    %v9823 = vadd.f32 %v9822, %v8642
    %v9824 = vadd.f32 %v9823, %v8644
    %v9825 = vadd.f32 %v9824, %v8646
    %v9826 = vadd.f32 %v9825, %v8648
    %v9827 = vadd.f32 %v9826, %v8650
    %v9828 = vadd.f32 %v9827, %v8652
    %v9829 = vadd.f32 %v9828, %v8654
    %v9830 = vadd.f32 %v9829, %v8656
    %v9831 = vadd.f32 %v9830, %v8658
    %v9832 = vadd.f32 %v9831, %v8660
    %v9833 = vadd.f32 %v9832, %v8662
    %v9834 = vadd.f32 %v9833, %v8664
    %v9835 = vadd.f32 %v9834, %v8666
    %v9836 = vadd.f32 %v9835, %v8668
    %v9837 = vrot.slane %v9836, 4
    %v9838 = vadd.f32 %v9836, %v9837
    %v9839 = vrot.slane %v9838, 2
    %v9840 = vadd.f32 %v9838, %v9839
    %v9841 = vrot.slane %v9840, 1
    %v9842 = vadd.f32 %v9840, %v9841
    %v9843 = vadd.f32 %v8669, %v8671
    %v9844 = vadd.f32 %v9843, %v8673
    %v9845 = vadd.f32 %v9844, %v8675
    %v9846 = vadd.f32 %v9845, %v8677
    %v9847 = vadd.f32 %v9846, %v8679
    %v9848 = vadd.f32 %v9847, %v8681
    %v9849 = vadd.f32 %v9848, %v8683
    %v9850 = vadd.f32 %v9849, %v8685
    %v9851 = vadd.f32 %v9850, %v8687
    %v9852 = vadd.f32 %v9851, %v8689
    %v9853 = vadd.f32 %v9852, %v8691
    %v9854 = vadd.f32 %v9853, %v8693
    %v9855 = vadd.f32 %v9854, %v8695
    %v9856 = vadd.f32 %v9855, %v8697
    %v9857 = vadd.f32 %v9856, %v8699
    %v9858 = vadd.f32 %v9857, %v8701
    %v9859 = vadd.f32 %v9858, %v8703
    %v9860 = vadd.f32 %v9859, %v8705
    %v9861 = vadd.f32 %v9860, %v8707
    %v9862 = vadd.f32 %v9861, %v8709
    %v9863 = vadd.f32 %v9862, %v8711
    %v9864 = vadd.f32 %v9863, %v8713
    %v9865 = vadd.f32 %v9864, %v8715
    %v9866 = vadd.f32 %v9865, %v8717
    %v9867 = vadd.f32 %v9866, %v8719
    %v9868 = vadd.f32 %v9867, %v8721
    %v9869 = vadd.f32 %v9868, %v8723
    %v9870 = vadd.f32 %v9869, %v8725
    %v9871 = vadd.f32 %v9870, %v8727
    %v9872 = vadd.f32 %v9871, %v8729
    %v9873 = vadd.f32 %v9872, %v8731
    %v9874 = vrot.slane %v9873, 4
    %v9875 = vadd.f32 %v9873, %v9874
    %v9876 = vrot.slane %v9875, 2
    %v9877 = vadd.f32 %v9875, %v9876
    %v9878 = vrot.slane %v9877, 1
    %v9879 = vadd.f32 %v9877, %v9878
    %v9880 = vadd.f32 %v8670, %v8672
    %v9881 = vadd.f32 %v9880, %v8674
    %v9882 = vadd.f32 %v9881, %v8676
    %v9883 = vadd.f32 %v9882, %v8678
    %v9884 = vadd.f32 %v9883, %v8680
    %v9885 = vadd.f32 %v9884, %v8682
    %v9886 = vadd.f32 %v9885, %v8684
    %v9887 = vadd.f32 %v9886, %v8686
    %v9888 = vadd.f32 %v9887, %v8688
    %v9889 = vadd.f32 %v9888, %v8690
    %v9890 = vadd.f32 %v9889, %v8692
    %v9891 = vadd.f32 %v9890, %v8694
    %v9892 = vadd.f32 %v9891, %v8696
    %v9893 = vadd.f32 %v9892, %v8698
    %v9894 = vadd.f32 %v9893, %v8700
    %v9895 = vadd.f32 %v9894, %v8702
    %v9896 = vadd.f32 %v9895, %v8704
    %v9897 = vadd.f32 %v9896, %v8706
    %v9898 = vadd.f32 %v9897, %v8708
    %v9899 = vadd.f32 %v9898, %v8710
    %v9900 = vadd.f32 %v9899, %v8712
    %v9901 = vadd.f32 %v9900, %v8714
    %v9902 = vadd.f32 %v9901, %v8716
    %v9903 = vadd.f32 %v9902, %v8718
    %v9904 = vadd.f32 %v9903, %v8720
    %v9905 = vadd.f32 %v9904, %v8722
    %v9906 = vadd.f32 %v9905, %v8724
    %v9907 = vadd.f32 %v9906, %v8726
    %v9908 = vadd.f32 %v9907, %v8728
    %v9909 = vadd.f32 %v9908, %v8730
    %v9910 = vadd.f32 %v9909, %v8732
    %v9911 = vrot.slane %v9910, 4
    %v9912 = vadd.f32 %v9910, %v9911
    %v9913 = vrot.slane %v9912, 2
    %v9914 = vadd.f32 %v9912, %v9913
    %v9915 = vrot.slane %v9914, 1
    %v9916 = vadd.f32 %v9914, %v9915
    %v9917 = vld [vmem:[%s2] sm:$0xff]
    %v9918 = vld [vmem:[%s2 + $0x8] sm:$0xff]
    %9920 = vset.pattern.permute.xlu0 0
    %9921 = vperm.xlu0 %9920, %v9917
    %v9922 = vpop.permute.xlu0 %9921
    %9924 = vset.pattern.permute.xlu0 0
    %9925 = vperm.xlu0 %9924, %v9918
    %v9926 = vpop.permute.xlu0 %9925
    %v9927 = vrot.slane %v9922, 1
    %v9928 = vrot.slane %v9922, 2
    %v9929 = vrot.slane %v9922, 3
    %v9930 = vrot.slane %v9922, 4
    %v9931 = vrot.slane %v9922, 5
    %v9932 = vrot.slane %v9922, 6
    %v9933 = vrot.slane %v9922, 7
    %v9934 = vrot.slane %v9926, 1
    %v9935 = vrot.slane %v9926, 2
    %v9936 = vrot.slane %v9926, 3
    %v9937 = vrot.slane %v9926, 4
    %v9938 = vrot.slane %v9926, 5
    %v9939 = vrot.slane %v9926, 6
    %v9940 = vrot.slane %v9926, 7
    %v9957 = vmul.f32 %v8769, %v9922
    %v9958 = vmul.f32 %v8806, %v9922
    %v9959 = vmul.f32 %v8843, %v9927
    %v9960 = vmul.f32 %v8880, %v9927
    %v9961 = vmul.f32 %v8917, %v9928
    %v9962 = vmul.f32 %v8954, %v9928
    %v9963 = vmul.f32 %v8991, %v9929
    %v9964 = vmul.f32 %v9028, %v9929
    %v9965 = vmul.f32 %v9065, %v9930
    %v9966 = vmul.f32 %v9102, %v9930
    %v9967 = vmul.f32 %v9139, %v9931
    %v9968 = vmul.f32 %v9176, %v9931
    %v9969 = vmul.f32 %v9213, %v9932
    %v9970 = vmul.f32 %v9250, %v9932
    %v9971 = vmul.f32 %v9287, %v9933
    %v9972 = vmul.f32 %v9324, %v9933
    %v9973 = vmul.f32 %v9361, %v9926
    %v9974 = vmul.f32 %v9398, %v9926
    %v9975 = vmul.f32 %v9435, %v9934
    %v9976 = vmul.f32 %v9472, %v9934
    %v9977 = vmul.f32 %v9509, %v9935
    %v9978 = vmul.f32 %v9546, %v9935
    %v9979 = vmul.f32 %v9583, %v9936
    %v9980 = vmul.f32 %v9620, %v9936
    %v9981 = vmul.f32 %v9657, %v9937
    %v9982 = vmul.f32 %v9694, %v9937
    %v9983 = vmul.f32 %v9731, %v9938
    %v9984 = vmul.f32 %v9768, %v9938
    %v9985 = vmul.f32 %v9805, %v9939
    %v9986 = vmul.f32 %v9842, %v9939
    %v9987 = vmul.f32 %v9879, %v9940
    %v9988 = vmul.f32 %v9916, %v9940
    %v9989 = vpack.c.bf16 %v9957, %v9957
    %v9990 = vpack.c.bf16 %v9958, %v9958
    %v9991 = vpack.c.bf16 %v9959, %v9959
    %v9992 = vpack.c.bf16 %v9960, %v9960
    %v9993 = vpack.c.bf16 %v9961, %v9961
    %v9994 = vpack.c.bf16 %v9962, %v9962
    %v9995 = vpack.c.bf16 %v9963, %v9963
    %v9996 = vpack.c.bf16 %v9964, %v9964
    %v9997 = vpack.c.bf16 %v9965, %v9965
    %v9998 = vpack.c.bf16 %v9966, %v9966
    %v9999 = vpack.c.bf16 %v9967, %v9967
    %v10000 = vpack.c.bf16 %v9968, %v9968
    %v10001 = vpack.c.bf16 %v9969, %v9969
    %v10002 = vpack.c.bf16 %v9970, %v9970
    %v10003 = vpack.c.bf16 %v9971, %v9971
    %v10004 = vpack.c.bf16 %v9972, %v9972
    %v10005 = vpack.c.bf16 %v9973, %v9973
    %v10006 = vpack.c.bf16 %v9974, %v9974
    %v10007 = vpack.c.bf16 %v9975, %v9975
    %v10008 = vpack.c.bf16 %v9976, %v9976
    %v10009 = vpack.c.bf16 %v9977, %v9977
    %v10010 = vpack.c.bf16 %v9978, %v9978
    %v10011 = vpack.c.bf16 %v9979, %v9979
    %v10012 = vpack.c.bf16 %v9980, %v9980
    %v10013 = vpack.c.bf16 %v9981, %v9981
    %v10014 = vpack.c.bf16 %v9982, %v9982
    %v10015 = vpack.c.bf16 %v9983, %v9983
    %v10016 = vpack.c.bf16 %v9984, %v9984
    %v10017 = vpack.c.bf16 %v9985, %v9985
    %v10018 = vpack.c.bf16 %v9986, %v9986
    %v10019 = vpack.c.bf16 %v9987, %v9987
    %v10020 = vpack.c.bf16 %v9988, %v9988
    %v10053 = vunpack.c.l.b16 %v9989
    %v10054 = vunpack.c.l.b16 %v9990
    %v10055 = vunpack.c.l.b16 %v9991
    %v10056 = vunpack.c.l.b16 %v9992
    %v10057 = vunpack.c.l.b16 %v9993
    %v10058 = vunpack.c.l.b16 %v9994
    %v10059 = vunpack.c.l.b16 %v9995
    %v10060 = vunpack.c.l.b16 %v9996
    %v10061 = vunpack.c.l.b16 %v9997
    %v10062 = vunpack.c.l.b16 %v9998
    %v10063 = vunpack.c.l.b16 %v9999
    %v10064 = vunpack.c.l.b16 %v10000
    %v10065 = vunpack.c.l.b16 %v10001
    %v10066 = vunpack.c.l.b16 %v10002
    %v10067 = vunpack.c.l.b16 %v10003
    %v10068 = vunpack.c.l.b16 %v10004
    %v10069 = vunpack.c.l.b16 %v10005
    %v10070 = vunpack.c.l.b16 %v10006
    %v10071 = vunpack.c.l.b16 %v10007
    %v10072 = vunpack.c.l.b16 %v10008
    %v10073 = vunpack.c.l.b16 %v10009
    %v10074 = vunpack.c.l.b16 %v10010
    %v10075 = vunpack.c.l.b16 %v10011
    %v10076 = vunpack.c.l.b16 %v10012
    %v10077 = vunpack.c.l.b16 %v10013
    %v10078 = vunpack.c.l.b16 %v10014
    %v10079 = vunpack.c.l.b16 %v10015
    %v10080 = vunpack.c.l.b16 %v10016
    %v10081 = vunpack.c.l.b16 %v10017
    %v10082 = vunpack.c.l.b16 %v10018
    %v10083 = vunpack.c.l.b16 %v10019
    %v10084 = vunpack.c.l.b16 %v10020
    %v10085 = vpack.c.b16 %v10054, %v10053
    %v10086 = vpack.c.b16 %v10056, %v10055
    %v10087 = vpack.c.b16 %v10058, %v10057
    %v10088 = vpack.c.b16 %v10060, %v10059
    %v10089 = vpack.c.b16 %v10062, %v10061
    %v10090 = vpack.c.b16 %v10064, %v10063
    %v10091 = vpack.c.b16 %v10066, %v10065
    %v10092 = vpack.c.b16 %v10068, %v10067
    %v10093 = vpack.c.b16 %v10070, %v10069
    %v10094 = vpack.c.b16 %v10072, %v10071
    %v10095 = vpack.c.b16 %v10074, %v10073
    %v10096 = vpack.c.b16 %v10076, %v10075
    %v10097 = vpack.c.b16 %v10078, %v10077
    %v10098 = vpack.c.b16 %v10080, %v10079
    %v10099 = vpack.c.b16 %v10082, %v10081
    %v10100 = vpack.c.b16 %v10084, %v10083
    %v10101 = vunpack.c.l.b16 %v10085
    %v10102 = vunpack.c.h.b16 %v10085
    %v10103 = vunpack.c.l.b16 %v10086
    %v10104 = vunpack.c.h.b16 %v10086
    %v10105 = vunpack.c.l.b16 %v10087
    %v10106 = vunpack.c.h.b16 %v10087
    %v10107 = vunpack.c.l.b16 %v10088
    %v10108 = vunpack.c.h.b16 %v10088
    %v10109 = vunpack.c.l.b16 %v10089
    %v10110 = vunpack.c.h.b16 %v10089
    %v10111 = vunpack.c.l.b16 %v10090
    %v10112 = vunpack.c.h.b16 %v10090
    %v10113 = vunpack.c.l.b16 %v10091
    %v10114 = vunpack.c.h.b16 %v10091
    %v10115 = vunpack.c.l.b16 %v10092
    %v10116 = vunpack.c.h.b16 %v10092
    %v10117 = vunpack.c.l.b16 %v10093
    %v10118 = vunpack.c.h.b16 %v10093
    %v10119 = vunpack.c.l.b16 %v10094
    %v10120 = vunpack.c.h.b16 %v10094
    %v10121 = vunpack.c.l.b16 %v10095
    %v10122 = vunpack.c.h.b16 %v10095
    %v10123 = vunpack.c.l.b16 %v10096
    %v10124 = vunpack.c.h.b16 %v10096
    %v10125 = vunpack.c.l.b16 %v10097
    %v10126 = vunpack.c.h.b16 %v10097
    %v10127 = vunpack.c.l.b16 %v10098
    %v10128 = vunpack.c.h.b16 %v10098
    %v10129 = vunpack.c.l.b16 %v10099
    %v10130 = vunpack.c.h.b16 %v10099
    %v10131 = vunpack.c.l.b16 %v10100
    %v10132 = vunpack.c.h.b16 %v10100
    %v10133 = vrot.slane %v10103, 7
    %vm10134 = vcmask 1041409
    %v10135 = vsel %vm10134, %v10133, %v10101
    %v10136 = vrot.slane %v10105, 6
    %vm10137 = vcmask 1042434
    %v10138 = vsel %vm10137, %v10136, %v10135
    %v10139 = vrot.slane %v10107, 5
    %vm10140 = vcmask 1043459
    %v10141 = vsel %vm10140, %v10139, %v10138
    %v10142 = vrot.slane %v10109, 4
    %vm10143 = vcmask 1044484
    %v10144 = vsel %vm10143, %v10142, %v10141
    %v10145 = vrot.slane %v10111, 3
    %vm10146 = vcmask 1045509
    %v10147 = vsel %vm10146, %v10145, %v10144
    %v10148 = vrot.slane %v10113, 2
    %vm10149 = vcmask 1046534
    %v10150 = vsel %vm10149, %v10148, %v10147
    %v10151 = vrot.slane %v10115, 1
    %vm10152 = vcmask 1047559
    %v10153 = vsel %vm10152, %v10151, %v10150
    %v10154 = vrot.slane %v10104, 7
    %v10155 = vsel %vm10134, %v10154, %v10102
    %v10156 = vrot.slane %v10106, 6
    %v10157 = vsel %vm10137, %v10156, %v10155
    %v10158 = vrot.slane %v10108, 5
    %v10159 = vsel %vm10140, %v10158, %v10157
    %v10160 = vrot.slane %v10110, 4
    %v10161 = vsel %vm10143, %v10160, %v10159
    %v10162 = vrot.slane %v10112, 3
    %v10163 = vsel %vm10146, %v10162, %v10161
    %v10164 = vrot.slane %v10114, 2
    %v10165 = vsel %vm10149, %v10164, %v10163
    %v10166 = vrot.slane %v10116, 1
    %v10167 = vsel %vm10152, %v10166, %v10165
    %v10168 = vrot.slane %v10119, 7
    %v10169 = vsel %vm10134, %v10168, %v10117
    %v10170 = vrot.slane %v10121, 6
    %v10171 = vsel %vm10137, %v10170, %v10169
    %v10172 = vrot.slane %v10123, 5
    %v10173 = vsel %vm10140, %v10172, %v10171
    %v10174 = vrot.slane %v10125, 4
    %v10175 = vsel %vm10143, %v10174, %v10173
    %v10176 = vrot.slane %v10127, 3
    %v10177 = vsel %vm10146, %v10176, %v10175
    %v10178 = vrot.slane %v10129, 2
    %v10179 = vsel %vm10149, %v10178, %v10177
    %v10180 = vrot.slane %v10131, 1
    %v10181 = vsel %vm10152, %v10180, %v10179
    %v10182 = vrot.slane %v10120, 7
    %v10183 = vsel %vm10134, %v10182, %v10118
    %v10184 = vrot.slane %v10122, 6
    %v10185 = vsel %vm10137, %v10184, %v10183
    %v10186 = vrot.slane %v10124, 5
    %v10187 = vsel %vm10140, %v10186, %v10185
    %v10188 = vrot.slane %v10126, 4
    %v10189 = vsel %vm10143, %v10188, %v10187
    %v10190 = vrot.slane %v10128, 3
    %v10191 = vsel %vm10146, %v10190, %v10189
    %v10192 = vrot.slane %v10130, 2
    %v10193 = vsel %vm10149, %v10192, %v10191
    %v10194 = vrot.slane %v10132, 1
    %v10195 = vsel %vm10152, %v10194, %v10193
    %v10196 = vpack.c.b16 %v10167, %v10153
    %v10197 = vpack.c.b16 %v10195, %v10181
    %10200 = vst [vmem:[#allocation5] sm:$0xff] %v10196
    %10201 = vst [vmem:[#allocation5 + $0x8] sm:$0xff] %v10197
    // Predicated region
    $region18: #{tpu_custom_call.1} parent=1 // pred_check
      _
    $region19: #{tpu_custom_call.1} parent=1 // pred_check_branch
      %10203 = sbr.rel (0) target = $region21
    $region20: #{tpu_custom_call.1} parent=1 // pred_region
      %s10205 = ssub.s32 256, 256
      %10206 = vsyncadd [#allocation4], %s10205
      %s10207 = sshll.u32 [#allocation5], 4
      %s10208 = int_to_ptr.vmem [resolvable:$true] %s10207
      %10213 = dma.vmem_to_hbm [thread:$0]  %s10208, 256, %s3, [#allocation4], 128, 128, 8
    $region21: #{tpu_custom_call.1} parent=1 // pred_fallthru
      _
    // Predicated region
    $region22: #{tpu_custom_call.1} parent=1 // pred_check
      _
    $region23: #{tpu_custom_call.1} parent=1 // pred_check_branch
      %10215 = sbr.rel (0) target = $region25
    $region24: #{tpu_custom_call.1} parent=1 // pred_region
      %10216 = dma.done [#allocation4], 256
    $region25: #{tpu_custom_call.1} parent=1 // pred_fallthru
      _
    %10217 = vsyncpa [#allocation3], 1
    %10218 = vsyncpa [#allocation4], 1

</llo_original>
